<compile_context>
chip_gen: v6e
topology: v6e:2x2x1
jax: 0.10.0
libtpu: 0.0.40
codegen_flags: <defaults>
</compile_context>

<pallas_src>
import numpy as np
import jax
import jax.numpy as jnp
from jax.experimental import pallas as pl
from jax.experimental.pallas import tpu as pltpu


_COMPILER_PARAMS = pltpu.CompilerParams(
    dimension_semantics=("parallel",),          # batch grid axis
    vmem_limit_bytes=32 * 1024 * 1024,
)


def _images_per_grid_step(batch):
    """1 image/step on multi-TensorCore chips (core-level parallelism over batch);
    whole batch folded into one step (bigger GEMM M, fewer launches) otherwise."""
    try:
        kind = jax.devices()[0].device_kind.lower()
    except Exception:
        kind = ""
    multi_tc = any(tag in kind for tag in ("v7", "7x", "v4"))
    return 1 if multi_tc else batch


# ----------------------------- Pallas kernels ------------------------------

def _stage_kernel(x_ref, w_ref, b_ref, stage_ref, lat_ref):
    """One GEMM producing [stage feature | lateral feature], split into two outputs."""
    nimg, hw, _ = x_ref.shape
    cbb = stage_ref.shape[-1]
    xs = [x_ref[i] for i in range(nimg)]
    x = xs[0] if nimg == 1 else jnp.concatenate(xs, axis=0)        # (nimg*hw, cin) bf16
    y = jnp.dot(x, w_ref[...], preferred_element_type=jnp.float32) + b_ref[...]
    for i in range(nimg):
        yi = y[i * hw:(i + 1) * hw]
        stage_ref[i] = yi[:, :cbb].astype(stage_ref.dtype)          # bf16 writeback
        lat_ref[i] = yi[:, cbb:]                                    # f32


def _make_level_kernel(w, has_prev):
    """Fused FPN level: bilinear upsample-add + 3x3 conv (single GEMM) + BN + ReLU."""

    def kernel(*refs):
        if has_prev:
            lat_ref, prev_ref, u_ref, w_ref, mask_ref, shift_ref, o_ref = refs
        else:
            lat_ref, w_ref, mask_ref, shift_ref, o_ref = refs
        nimg, hw, cout = lat_ref.shape

        m_left = mask_ref[:, 0:1]      # source column <= w-2  (feeds dx = -1 taps)
        m_right = mask_ref[:, 1:2]     # source column >= 1    (feeds dx = +1 taps)

        per_image_taps = []
        for i in range(nimg):
            feat = lat_ref[i]                                       # (hw, cout) f32
            if has_prev:
                prev = prev_ref[i].astype(jnp.bfloat16)
                feat = feat + jnp.dot(u_ref[...], prev,             # bilinear upsample
                                      preferred_element_type=jnp.float32)
            fc = feat.astype(jnp.bfloat16)
            fl = (feat * m_left).astype(jnp.bfloat16)
            fr = (feat * m_right).astype(jnp.bfloat16)

            # padding=1 semantics: zero-fill shifts handle out-of-image rows,
            # the precomputed source-column masks handle out-of-image columns.
            taps = []
            for dy in (-1, 0, 1):
                for dx in (-1, 0, 1):
                    src = fl if dx == -1 else (fr if dx == 1 else fc)
                    s = dy * w + dx                                 # tap[p] = src[p + s]
                    if s == 0:
                        tap = src
                    elif s > 0:
                        tap = jnp.concatenate(
                            [src[s:], jnp.zeros((s, cout), jnp.bfloat16)], axis=0)
                    else:
                        tap = jnp.concatenate(
                            [jnp.zeros((-s, cout), jnp.bfloat16), src[:s]], axis=0)
                    taps.append(tap)
            per_image_taps.append(jnp.concatenate(taps, axis=1))    # (hw, 9*cout)

        tapmat = (per_image_taps[0] if nimg == 1
                  else jnp.concatenate(per_image_taps, axis=0))     # (nimg*hw, 9*cout)
        acc = jnp.dot(tapmat, w_ref[...],                           # single conv GEMM
                      preferred_element_type=jnp.float32)
        y = jnp.maximum(acc + shift_ref[...], 0.0)                  # folded BN + ReLU
        for i in range(nimg):
            o_ref[i] = y[i * hw:(i + 1) * hw]

    return kernel


# ------------------------------ thin wrappers -------------------------------

def _bilinear_matrix(out_size, in_size):
    # 1D bilinear interpolation matrix, align_corners=False (PyTorch semantics)
    scale = in_size / out_size
    dst = np.arange(out_size)
    src = np.maximum(scale * (dst + 0.5) - 0.5, 0.0)
    i0 = np.minimum(np.floor(src).astype(np.int64), in_size - 1)
    i1 = np.minimum(i0 + 1, in_size - 1)
    lam = src - i0
    A = np.zeros((out_size, in_size), np.float32)
    np.add.at(A, (dst, i0), 1.0 - lam)
    np.add.at(A, (dst, i1), lam)
    return A


def fused_stage_lateral(x_flat, w_bb, b_bb, w_lat, b_lat, nimg):
    """Backbone-stage 1x1 conv composed with the FPN lateral 1x1 conv (one GEMM)."""
    B, HW, cin = x_flat.shape
    cbb = w_bb.shape[0]
    cout = w_lat.shape[0]
    n = cbb + cout
    wbb = w_bb[:, :, 0, 0].T                                        # (cin, cbb)
    wlat = w_lat[:, :, 0, 0].T                                      # (cbb, cout)
    wcat = jnp.concatenate([wbb, wbb @ wlat], axis=1).astype(jnp.bfloat16)   # (cin, n)
    bcat = jnp.concatenate([b_bb, b_bb @ wlat + b_lat]).reshape(1, n).astype(jnp.float32)

    stage, lat = pl.pallas_call(
        _stage_kernel,
        out_shape=(jax.ShapeDtypeStruct((B, HW, cbb), jnp.bfloat16),
                   jax.ShapeDtypeStruct((B, HW, cout), jnp.float32)),
        grid=(B // nimg,),
        in_specs=[pl.BlockSpec((nimg, HW, cin), lambda b: (b, 0, 0)),
                  pl.BlockSpec((cin, n), lambda b: (0, 0)),
                  pl.BlockSpec((1, n), lambda b: (0, 0))],
        out_specs=(pl.BlockSpec((nimg, HW, cbb), lambda b: (b, 0, 0)),
                   pl.BlockSpec((nimg, HW, cout), lambda b: (b, 0, 0))),
        compiler_params=_COMPILER_PARAMS,
    )(x_flat, wcat, bcat)
    return stage, lat


def fused_level(lat, prev, prev_hw, h, w, w_conv, b_conv, gamma, beta, rmean, rvar,
                nimg, eps=1e-5):
    """One fused pallas_call per pyramid level (upsample-add + conv3x3 + BN + ReLU)."""
    B, hw, cout = lat.shape

    # Conv weights as a (9*cout, cout) stack along the contraction axis with the
    # BatchNorm scale folded in; conv bias + BN shift stay as one f32 epilogue vector.
    scale_v = gamma / jnp.sqrt(rvar + eps)
    wstack = jnp.transpose(w_conv, (2, 3, 1, 0)).reshape(9 * cout, cout)
    wstack = (wstack * scale_v[None, :]).astype(jnp.bfloat16)
    shift = (beta + (b_conv - rmean) * scale_v).reshape(1, cout).astype(jnp.float32)

    # Precomputed source-column masks (no iota/mod chains in-kernel).
    col = np.arange(hw) % w
    mask = jnp.asarray(np.stack([col <= w - 2, col >= 1], axis=1).astype(np.float32))

    has_prev = prev is not None
    kern = _make_level_kernel(w, has_prev)

    if has_prev:
        hp, wp = prev_hw
        hpwp = hp * wp
        U = jnp.asarray(np.kron(_bilinear_matrix(h, hp), _bilinear_matrix(w, wp)),
                        dtype=jnp.bfloat16)                         # (hw, hp*wp), VMEM-resident
        args = (lat, prev, U, wstack, mask, shift)
        in_specs = [pl.BlockSpec((nimg, hw, cout), lambda b: (b, 0, 0)),
                    pl.BlockSpec((nimg, hpwp, cout), lambda b: (b, 0, 0)),
                    pl.BlockSpec((hw, hpwp), lambda b: (0, 0)),
                    pl.BlockSpec((9 * cout, cout), lambda b: (0, 0)),
                    pl.BlockSpec((hw, 2), lambda b: (0, 0)),
                    pl.BlockSpec((1, cout), lambda b: (0, 0))]
    else:
        args = (lat, wstack, mask, shift)
        in_specs = [pl.BlockSpec((nimg, hw, cout), lambda b: (b, 0, 0)),
                    pl.BlockSpec((9 * cout, cout), lambda b: (0, 0)),
                    pl.BlockSpec((hw, 2), lambda b: (0, 0)),
                    pl.BlockSpec((1, cout), lambda b: (0, 0))]

    return pl.pallas_call(
        kern,
        out_shape=jax.ShapeDtypeStruct((B, hw, cout), jnp.float32),
        grid=(B // nimg,),
        in_specs=in_specs,
        out_specs=pl.BlockSpec((nimg, hw, cout), lambda b: (b, 0, 0)),
        compiler_params=_COMPILER_PARAMS,
    )(*args)


# ----------------------------- synthetic backbone ---------------------------

class SyntheticBackbone:
    """Synthetic stand-in for a ResNet backbone: 4 stages of (2x2 avg-pool + 1x1 conv).

    Acts as a parameter container; the stage computation runs (fused with the FPN
    lateral convs) inside ResNetFeaturePyramidPallas.__call__.
    """

    def __init__(self, key, in_channels=3, channels=(8, 16, 32, 64)):
        self._channels = {f'stage{i + 1}': c for i, c in enumerate(channels)}
        self.params = []
        prev = in_channels
        for c in channels:
            key, kw, kb = jax.random.split(key, 3)
            w = jax.random.normal(kw, (c, prev, 1, 1), jnp.float32) / np.sqrt(prev)
            b = 0.01 * jax.random.normal(kb, (c,), jnp.float32)
            self.params.append((w, b))
            prev = c

    def get_channels(self):
        return self._channels


# ------------------------------- FPN module ---------------------------------

class ResNetFeaturePyramidPallas:
    def __init__(self, backbone, out_channels=32, key=None):
        self.backbone = backbone
        channels = backbone.get_channels()
        self.out_channels = out_channels
        self.lateral = []
        self.output = []
        for i in range(1, 5):
            cin = channels[f'stage{i}']
            key, k1, k2, k3, k4, k5, k6, k7, k8 = jax.random.split(key, 9)
            lw = jax.random.normal(k1, (out_channels, cin, 1, 1), jnp.float32) / np.sqrt(cin)
            lb = 0.01 * jax.random.normal(k2, (out_channels,), jnp.float32)
            self.lateral.append((lw, lb))
            ow = jax.random.normal(k3, (out_channels, out_channels, 3, 3),
                                   jnp.float32) / np.sqrt(9 * out_channels)
            ob = 0.01 * jax.random.normal(k4, (out_channels,), jnp.float32)
            gamma = 1.0 + 0.1 * jax.random.normal(k5, (out_channels,), jnp.float32)
            beta = 0.1 * jax.random.normal(k6, (out_channels,), jnp.float32)
            rmean = 0.1 * jax.random.normal(k7, (out_channels,), jnp.float32)
            rvar = jnp.abs(jax.random.normal(k8, (out_channels,), jnp.float32)) + 0.5
            self.output.append((ow, ob, gamma, beta, rmean, rvar))

    def __call__(self, x_nchw):
        x = jnp.transpose(x_nchw, (0, 2, 3, 1)).astype(jnp.bfloat16)   # NCHW -> NHWC bf16
        B = x.shape[0]
        nimg = _images_per_grid_step(B)

        # Backbone stages, each fused with its (composed) FPN lateral conv.
        laterals, sizes = [], []
        h = x
        for (w_bb, b_bb), (w_lat, b_lat) in zip(self.backbone.params, self.lateral):
            Bh, H, W, C = h.shape
            pooled = h.reshape(Bh, H // 2, 2, W // 2, 2, C).mean(axis=(2, 4))  # 2x2 pool (glue)
            Hp, Wp = H // 2, W // 2
            stage, lat = fused_stage_lateral(pooled.reshape(Bh, Hp * Wp, C),
                                             w_bb, b_bb, w_lat, b_lat, nimg)
            sizes.append((Hp, Wp))
            laterals.append(lat)
            h = stage.reshape(Bh, Hp, Wp, -1)           # bf16 stage feeds next stage

        # Top-down pass: one fused kernel per level, mirroring the PyTorch forward.
        # TODO(synk): the 4 level calls could be merged into one pallas_call carrying
        #             the upsample source in VMEM scratch across an 'arbitrary' axis.
        processed = []
        last, last_hw = None, None
        for lvl in range(3, -1, -1):
            hh, ww = sizes[lvl]
            ow, ob, g, be, rm, rv = self.output[lvl]
            out = fused_level(laterals[lvl], last, last_hw, hh, ww,
                              ow, ob, g, be, rm, rv, nimg)
            processed.append(out)
            last, last_hw = out, (hh, ww)
        processed = processed[::-1]

        outs = []
        for p, (hh, ww) in zip(processed, sizes):
            outs.append(jnp.transpose(p.reshape(B, hh, ww, self.out_channels),
                                      (0, 3, 1, 2)))    # back to NCHW
        return outs


# ---------------------------------- main -------------------------------------

if __name__ == "__main__":
    key = jax.random.PRNGKey(0)
    kx, kb, kf = jax.random.split(key, 3)

    # input image: [B, C, H, W] = [2, 3, 32, 32]
    x = jax.random.normal(kx, (2, 3, 32, 32), jnp.float32)

    backbone = SyntheticBackbone(kb, in_channels=3, channels=(8, 16, 32, 64))
    fpn = ResNetFeaturePyramidPallas(backbone, out_channels=32, key=kf)

    fwd = jax.jit(fpn.__call__)
    outs = jax.block_until_ready(fwd(x))

    expected = [(2, 32, 16, 16), (2, 32, 8, 8), (2, 32, 4, 4), (2, 32, 2, 2)]
    assert [tuple(o.shape) for o in outs] == expected, [o.shape for o in outs]
    assert all(o.dtype == jnp.float32 for o in outs)
    assert all(bool(jnp.all(jnp.isfinite(o))) for o in outs)

    print("KERNEL_OK")
</pallas_src>

<mosaic_0001>
module attributes {stable_mosaic.version = 11 : i64} {
  func.func @_stage_kernel(%arg0: i32, %arg1: memref<2x256x3xbf16, #tpu.memory_space<vmem>>, %arg2: memref<3x40xbf16, #tpu.memory_space<vmem>>, %arg3: memref<1x40xf32, #tpu.memory_space<vmem>>, %arg4: memref<2x256x8xbf16, #tpu.memory_space<vmem>>, %arg5: memref<2x256x32xf32, #tpu.memory_space<vmem>>) attributes {dimension_semantics = [#tpu.dimension_semantics<parallel>], iteration_bounds = array<i64: 1>, scalar_prefetch = 0 : i64, scratch_operands = 0 : i64, tpu.core_type = #tpu.core_type<tc>, window_params = [{transform_indices = @transform_0, window_bounds = array<i64: 2, 256, 3>}, {pipeline_mode = #tpu.pipeline_mode<synchronous>, transform_indices = @transform_1, window_bounds = array<i64: 3, 40>}, {pipeline_mode = #tpu.pipeline_mode<synchronous>, transform_indices = @transform_2, window_bounds = array<i64: 1, 40>}, {transform_indices = @transform_3, window_bounds = array<i64: 2, 256, 8>}, {transform_indices = @transform_4, window_bounds = array<i64: 2, 256, 32>}]} {
    %c0 = arith.constant 0 : index
    %c0_0 = arith.constant 0 : index
    %c0_1 = arith.constant 0 : index
    %0 = vector.load %arg1[%c0, %c0_0, %c0_1] : memref<2x256x3xbf16, #tpu.memory_space<vmem>>, vector<1x256x3xbf16>
    %1 = vector.shape_cast %0 : vector<1x256x3xbf16> to vector<256x3xbf16>
    %c1 = arith.constant 1 : index
    %c0_2 = arith.constant 0 : index
    %c0_3 = arith.constant 0 : index
    %2 = vector.load %arg1[%c1, %c0_2, %c0_3] : memref<2x256x3xbf16, #tpu.memory_space<vmem>>, vector<1x256x3xbf16>
    %3 = vector.shape_cast %2 : vector<1x256x3xbf16> to vector<256x3xbf16>
    %4 = tpu.concatenate %1, %3 in 0 : vector<256x3xbf16>, vector<256x3xbf16> -> vector<512x3xbf16>
    %c0_4 = arith.constant 0 : index
    %c0_5 = arith.constant 0 : index
    %5 = vector.load %arg2[%c0_4, %c0_5] : memref<3x40xbf16, #tpu.memory_space<vmem>>, vector<3x40xbf16>
    %cst = arith.constant dense<0.000000e+00> : vector<512x40xf32>
    %6 = tpu.matmul %4, %5, %cst {dimension_numbers = #tpu.dot_dimension_numbers<[1], [0], [0], [1], [0, 0, 1, 1], [], []>} : vector<512x3xbf16>, vector<3x40xbf16>, vector<512x40xf32> -> vector<512x40xf32>
    %c0_6 = arith.constant 0 : index
    %c0_7 = arith.constant 0 : index
    %7 = vector.load %arg3[%c0_6, %c0_7] : memref<1x40xf32, #tpu.memory_space<vmem>>, vector<1x40xf32>
    %8 = vector.broadcast %7 : vector<1x40xf32> to vector<512x40xf32>
    %9 = arith.addf %6, %8 : vector<512x40xf32>
    %10 = vector.extract_strided_slice %9 {offsets = [0, 0], sizes = [256, 40], strides = [1, 1]} : vector<512x40xf32> to vector<256x40xf32>
    %11 = vector.extract_strided_slice %10 {offsets = [0, 0], sizes = [256, 8], strides = [1, 1]} : vector<256x40xf32> to vector<256x8xf32>
    %12 = arith.truncf %11 : vector<256x8xf32> to vector<256x8xbf16>
    %c0_8 = arith.constant 0 : index
    %c0_9 = arith.constant 0 : index
    %c0_10 = arith.constant 0 : index
    %13 = vector.load %arg4[%c0_8, %c0_9, %c0_10] : memref<2x256x8xbf16, #tpu.memory_space<vmem>>, vector<1x256x8xbf16>
    %14 = vector.shape_cast %13 : vector<1x256x8xbf16> to vector<256x8xbf16>
    %15 = vector.shape_cast %12 : vector<256x8xbf16> to vector<1x256x8xbf16>
    tpu.vector_store %arg4[%c0_8, %c0_9, %c0_10], %15 {strides = array<i32>} : memref<2x256x8xbf16, #tpu.memory_space<vmem>>, vector<1x256x8xbf16>,
    %16 = vector.extract_strided_slice %10 {offsets = [0, 8], sizes = [256, 32], strides = [1, 1]} : vector<256x40xf32> to vector<256x32xf32>
    %c0_11 = arith.constant 0 : index
    %c0_12 = arith.constant 0 : index
    %c0_13 = arith.constant 0 : index
    %17 = vector.load %arg5[%c0_11, %c0_12, %c0_13] : memref<2x256x32xf32, #tpu.memory_space<vmem>>, vector<1x256x32xf32>
    %18 = vector.shape_cast %17 : vector<1x256x32xf32> to vector<256x32xf32>
    %19 = vector.shape_cast %16 : vector<256x32xf32> to vector<1x256x32xf32>
    tpu.vector_store %arg5[%c0_11, %c0_12, %c0_13], %19 {strides = array<i32>} : memref<2x256x32xf32, #tpu.memory_space<vmem>>, vector<1x256x32xf32>,
    %20 = vector.extract_strided_slice %9 {offsets = [256, 0], sizes = [256, 40], strides = [1, 1]} : vector<512x40xf32> to vector<256x40xf32>
    %21 = vector.extract_strided_slice %20 {offsets = [0, 0], sizes = [256, 8], strides = [1, 1]} : vector<256x40xf32> to vector<256x8xf32>
    %22 = arith.truncf %21 : vector<256x8xf32> to vector<256x8xbf16>
    %c1_14 = arith.constant 1 : index
    %c0_15 = arith.constant 0 : index
    %c0_16 = arith.constant 0 : index
    %23 = vector.load %arg4[%c1_14, %c0_15, %c0_16] : memref<2x256x8xbf16, #tpu.memory_space<vmem>>, vector<1x256x8xbf16>
    %24 = vector.shape_cast %23 : vector<1x256x8xbf16> to vector<256x8xbf16>
    %25 = vector.shape_cast %22 : vector<256x8xbf16> to vector<1x256x8xbf16>
    tpu.vector_store %arg4[%c1_14, %c0_15, %c0_16], %25 {strides = array<i32>} : memref<2x256x8xbf16, #tpu.memory_space<vmem>>, vector<1x256x8xbf16>,
    %26 = vector.extract_strided_slice %20 {offsets = [0, 8], sizes = [256, 32], strides = [1, 1]} : vector<256x40xf32> to vector<256x32xf32>
    %c1_17 = arith.constant 1 : index
    %c0_18 = arith.constant 0 : index
    %c0_19 = arith.constant 0 : index
    %27 = vector.load %arg5[%c1_17, %c0_18, %c0_19] : memref<2x256x32xf32, #tpu.memory_space<vmem>>, vector<1x256x32xf32>
    %28 = vector.shape_cast %27 : vector<1x256x32xf32> to vector<256x32xf32>
    %29 = vector.shape_cast %26 : vector<256x32xf32> to vector<1x256x32xf32>
    tpu.vector_store %arg5[%c1_17, %c0_18, %c0_19], %29 {strides = array<i32>} : memref<2x256x32xf32, #tpu.memory_space<vmem>>, vector<1x256x32xf32>,
    return
  }
  func.func @transform_0(%arg0: i32) -> (i32, i32, i32) {
    %c0_i32 = arith.constant 0 : i32
    %c0_i32_0 = arith.constant 0 : i32
    %c0_i32_1 = arith.constant 0 : i32
    return %arg0, %c0_i32, %c0_i32_0 : i32, i32, i32
  }
  func.func @transform_1(%arg0: i32) -> (i32, i32) {
    %c0_i32 = arith.constant 0 : i32
    %c0_i32_0 = arith.constant 0 : i32
    %c0_i32_1 = arith.constant 0 : i32
    return %c0_i32, %c0_i32_0 : i32, i32
  }
  func.func @transform_2(%arg0: i32) -> (i32, i32) {
    %c0_i32 = arith.constant 0 : i32
    %c0_i32_0 = arith.constant 0 : i32
    %c0_i32_1 = arith.constant 0 : i32
    return %c0_i32, %c0_i32_0 : i32, i32
  }
  func.func @transform_3(%arg0: i32) -> (i32, i32, i32) {
    %c0_i32 = arith.constant 0 : i32
    %c0_i32_0 = arith.constant 0 : i32
    %c0_i32_1 = arith.constant 0 : i32
    return %arg0, %c0_i32, %c0_i32_0 : i32, i32, i32
  }
  func.func @transform_4(%arg0: i32) -> (i32, i32, i32) {
    %c0_i32 = arith.constant 0 : i32
    %c0_i32_0 = arith.constant 0 : i32
    %c0_i32_1 = arith.constant 0 : i32
    return %arg0, %c0_i32, %c0_i32_0 : i32, i32, i32
  }
}

module attributes {stable_mosaic.version = 11 : i64} {
  func.func @_stage_kernel(%arg0: i32, %arg1: memref<2x64x8xbf16, #tpu.memory_space<vmem>>, %arg2: memref<8x48xbf16, #tpu.memory_space<vmem>>, %arg3: memref<1x48xf32, #tpu.memory_space<vmem>>, %arg4: memref<2x64x16xbf16, #tpu.memory_space<vmem>>, %arg5: memref<2x64x32xf32, #tpu.memory_space<vmem>>) attributes {dimension_semantics = [#tpu.dimension_semantics<parallel>], iteration_bounds = array<i64: 1>, scalar_prefetch = 0 : i64, scratch_operands = 0 : i64, tpu.core_type = #tpu.core_type<tc>, window_params = [{transform_indices = @transform_0, window_bounds = array<i64: 2, 64, 8>}, {pipeline_mode = #tpu.pipeline_mode<synchronous>, transform_indices = @transform_1, window_bounds = array<i64: 8, 48>}, {pipeline_mode = #tpu.pipeline_mode<synchronous>, transform_indices = @transform_2, window_bounds = array<i64: 1, 48>}, {transform_indices = @transform_3, window_bounds = array<i64: 2, 64, 16>}, {transform_indices = @transform_4, window_bounds = array<i64: 2, 64, 32>}]} {
    %c0 = arith.constant 0 : index
    %c0_0 = arith.constant 0 : index
    %c0_1 = arith.constant 0 : index
    %0 = vector.load %arg1[%c0, %c0_0, %c0_1] : memref<2x64x8xbf16, #tpu.memory_space<vmem>>, vector<1x64x8xbf16>
    %1 = vector.shape_cast %0 : vector<1x64x8xbf16> to vector<64x8xbf16>
    %c1 = arith.constant 1 : index
    %c0_2 = arith.constant 0 : index
    %c0_3 = arith.constant 0 : index
    %2 = vector.load %arg1[%c1, %c0_2, %c0_3] : memref<2x64x8xbf16, #tpu.memory_space<vmem>>, vector<1x64x8xbf16>
    %3 = vector.shape_cast %2 : vector<1x64x8xbf16> to vector<64x8xbf16>
    %4 = tpu.concatenate %1, %3 in 0 : vector<64x8xbf16>, vector<64x8xbf16> -> vector<128x8xbf16>
    %c0_4 = arith.constant 0 : index
    %c0_5 = arith.constant 0 : index
    %5 = vector.load %arg2[%c0_4, %c0_5] : memref<8x48xbf16, #tpu.memory_space<vmem>>, vector<8x48xbf16>
    %cst = arith.constant dense<0.000000e+00> : vector<128x48xf32>
    %6 = tpu.matmul %4, %5, %cst {dimension_numbers = #tpu.dot_dimension_numbers<[1], [0], [0], [1], [0, 0, 1, 1], [], []>} : vector<128x8xbf16>, vector<8x48xbf16>, vector<128x48xf32> -> vector<128x48xf32>
    %c0_6 = arith.constant 0 : index
    %c0_7 = arith.constant 0 : index
    %7 = vector.load %arg3[%c0_6, %c0_7] : memref<1x48xf32, #tpu.memory_space<vmem>>, vector<1x48xf32>
    %8 = vector.broadcast %7 : vector<1x48xf32> to vector<128x48xf32>
    %9 = arith.addf %6, %8 : vector<128x48xf32>
    %10 = vector.extract_strided_slice %9 {offsets = [0, 0], sizes = [64, 48], strides = [1, 1]} : vector<128x48xf32> to vector<64x48xf32>
    %11 = vector.extract_strided_slice %10 {offsets = [0, 0], sizes = [64, 16], strides = [1, 1]} : vector<64x48xf32> to vector<64x16xf32>
    %12 = arith.truncf %11 : vector<64x16xf32> to vector<64x16xbf16>
    %c0_8 = arith.constant 0 : index
    %c0_9 = arith.constant 0 : index
    %c0_10 = arith.constant 0 : index
    %13 = vector.load %arg4[%c0_8, %c0_9, %c0_10] : memref<2x64x16xbf16, #tpu.memory_space<vmem>>, vector<1x64x16xbf16>
    %14 = vector.shape_cast %13 : vector<1x64x16xbf16> to vector<64x16xbf16>
    %15 = vector.shape_cast %12 : vector<64x16xbf16> to vector<1x64x16xbf16>
    tpu.vector_store %arg4[%c0_8, %c0_9, %c0_10], %15 {strides = array<i32>} : memref<2x64x16xbf16, #tpu.memory_space<vmem>>, vector<1x64x16xbf16>,
    %16 = vector.extract_strided_slice %10 {offsets = [0, 16], sizes = [64, 32], strides = [1, 1]} : vector<64x48xf32> to vector<64x32xf32>
    %c0_11 = arith.constant 0 : index
    %c0_12 = arith.constant 0 : index
    %c0_13 = arith.constant 0 : index
    %17 = vector.load %arg5[%c0_11, %c0_12, %c0_13] : memref<2x64x32xf32, #tpu.memory_space<vmem>>, vector<1x64x32xf32>
    %18 = vector.shape_cast %17 : vector<1x64x32xf32> to vector<64x32xf32>
    %19 = vector.shape_cast %16 : vector<64x32xf32> to vector<1x64x32xf32>
    tpu.vector_store %arg5[%c0_11, %c0_12, %c0_13], %19 {strides = array<i32>} : memref<2x64x32xf32, #tpu.memory_space<vmem>>, vector<1x64x32xf32>,
    %20 = vector.extract_strided_slice %9 {offsets = [64, 0], sizes = [64, 48], strides = [1, 1]} : vector<128x48xf32> to vector<64x48xf32>
    %21 = vector.extract_strided_slice %20 {offsets = [0, 0], sizes = [64, 16], strides = [1, 1]} : vector<64x48xf32> to vector<64x16xf32>
    %22 = arith.truncf %21 : vector<64x16xf32> to vector<64x16xbf16>
    %c1_14 = arith.constant 1 : index
    %c0_15 = arith.constant 0 : index
    %c0_16 = arith.constant 0 : index
    %23 = vector.load %arg4[%c1_14, %c0_15, %c0_16] : memref<2x64x16xbf16, #tpu.memory_space<vmem>>, vector<1x64x16xbf16>
    %24 = vector.shape_cast %23 : vector<1x64x16xbf16> to vector<64x16xbf16>
    %25 = vector.shape_cast %22 : vector<64x16xbf16> to vector<1x64x16xbf16>
    tpu.vector_store %arg4[%c1_14, %c0_15, %c0_16], %25 {strides = array<i32>} : memref<2x64x16xbf16, #tpu.memory_space<vmem>>, vector<1x64x16xbf16>,
    %26 = vector.extract_strided_slice %20 {offsets = [0, 16], sizes = [64, 32], strides = [1, 1]} : vector<64x48xf32> to vector<64x32xf32>
    %c1_17 = arith.constant 1 : index
    %c0_18 = arith.constant 0 : index
    %c0_19 = arith.constant 0 : index
    %27 = vector.load %arg5[%c1_17, %c0_18, %c0_19] : memref<2x64x32xf32, #tpu.memory_space<vmem>>, vector<1x64x32xf32>
    %28 = vector.shape_cast %27 : vector<1x64x32xf32> to vector<64x32xf32>
    %29 = vector.shape_cast %26 : vector<64x32xf32> to vector<1x64x32xf32>
    tpu.vector_store %arg5[%c1_17, %c0_18, %c0_19], %29 {strides = array<i32>} : memref<2x64x32xf32, #tpu.memory_space<vmem>>, vector<1x64x32xf32>,
    return
  }
  func.func @transform_0(%arg0: i32) -> (i32, i32, i32) {
    %c0_i32 = arith.constant 0 : i32
    %c0_i32_0 = arith.constant 0 : i32
    %c0_i32_1 = arith.constant 0 : i32
    return %arg0, %c0_i32, %c0_i32_0 : i32, i32, i32
  }
  func.func @transform_1(%arg0: i32) -> (i32, i32) {
    %c0_i32 = arith.constant 0 : i32
    %c0_i32_0 = arith.constant 0 : i32
    %c0_i32_1 = arith.constant 0 : i32
    return %c0_i32, %c0_i32_0 : i32, i32
  }
  func.func @transform_2(%arg0: i32) -> (i32, i32) {
    %c0_i32 = arith.constant 0 : i32
    %c0_i32_0 = arith.constant 0 : i32
    %c0_i32_1 = arith.constant 0 : i32
    return %c0_i32, %c0_i32_0 : i32, i32
  }
  func.func @transform_3(%arg0: i32) -> (i32, i32, i32) {
    %c0_i32 = arith.constant 0 : i32
    %c0_i32_0 = arith.constant 0 : i32
    %c0_i32_1 = arith.constant 0 : i32
    return %arg0, %c0_i32, %c0_i32_0 : i32, i32, i32
  }
  func.func @transform_4(%arg0: i32) -> (i32, i32, i32) {
    %c0_i32 = arith.constant 0 : i32
    %c0_i32_0 = arith.constant 0 : i32
    %c0_i32_1 = arith.constant 0 : i32
    return %arg0, %c0_i32, %c0_i32_0 : i32, i32, i32
  }
}

module attributes {stable_mosaic.version = 11 : i64} {
  func.func @_stage_kernel(%arg0: i32, %arg1: memref<2x16x16xbf16, #tpu.memory_space<vmem>>, %arg2: memref<16x64xbf16, #tpu.memory_space<vmem>>, %arg3: memref<1x64xf32, #tpu.memory_space<vmem>>, %arg4: memref<2x16x32xbf16, #tpu.memory_space<vmem>>, %arg5: memref<2x16x32xf32, #tpu.memory_space<vmem>>) attributes {dimension_semantics = [#tpu.dimension_semantics<parallel>], iteration_bounds = array<i64: 1>, scalar_prefetch = 0 : i64, scratch_operands = 0 : i64, tpu.core_type = #tpu.core_type<tc>, window_params = [{transform_indices = @transform_0, window_bounds = array<i64: 2, 16, 16>}, {pipeline_mode = #tpu.pipeline_mode<synchronous>, transform_indices = @transform_1, window_bounds = array<i64: 16, 64>}, {pipeline_mode = #tpu.pipeline_mode<synchronous>, transform_indices = @transform_2, window_bounds = array<i64: 1, 64>}, {transform_indices = @transform_3, window_bounds = array<i64: 2, 16, 32>}, {transform_indices = @transform_4, window_bounds = array<i64: 2, 16, 32>}]} {
    %c0 = arith.constant 0 : index
    %c0_0 = arith.constant 0 : index
    %c0_1 = arith.constant 0 : index
    %0 = vector.load %arg1[%c0, %c0_0, %c0_1] : memref<2x16x16xbf16, #tpu.memory_space<vmem>>, vector<1x16x16xbf16>
    %1 = vector.shape_cast %0 : vector<1x16x16xbf16> to vector<16x16xbf16>
    %c1 = arith.constant 1 : index
    %c0_2 = arith.constant 0 : index
    %c0_3 = arith.constant 0 : index
    %2 = vector.load %arg1[%c1, %c0_2, %c0_3] : memref<2x16x16xbf16, #tpu.memory_space<vmem>>, vector<1x16x16xbf16>
    %3 = vector.shape_cast %2 : vector<1x16x16xbf16> to vector<16x16xbf16>
    %4 = tpu.concatenate %1, %3 in 0 : vector<16x16xbf16>, vector<16x16xbf16> -> vector<32x16xbf16>
    %c0_4 = arith.constant 0 : index
    %c0_5 = arith.constant 0 : index
    %5 = vector.load %arg2[%c0_4, %c0_5] : memref<16x64xbf16, #tpu.memory_space<vmem>>, vector<16x64xbf16>
    %cst = arith.constant dense<0.000000e+00> : vector<32x64xf32>
    %6 = tpu.matmul %4, %5, %cst {dimension_numbers = #tpu.dot_dimension_numbers<[1], [0], [0], [1], [0, 0, 1, 1], [], []>} : vector<32x16xbf16>, vector<16x64xbf16>, vector<32x64xf32> -> vector<32x64xf32>
    %c0_6 = arith.constant 0 : index
    %c0_7 = arith.constant 0 : index
    %7 = vector.load %arg3[%c0_6, %c0_7] : memref<1x64xf32, #tpu.memory_space<vmem>>, vector<1x64xf32>
    %8 = vector.broadcast %7 : vector<1x64xf32> to vector<32x64xf32>
    %9 = arith.addf %6, %8 : vector<32x64xf32>
    %10 = vector.extract_strided_slice %9 {offsets = [0, 0], sizes = [16, 64], strides = [1, 1]} : vector<32x64xf32> to vector<16x64xf32>
    %11 = vector.extract_strided_slice %10 {offsets = [0, 0], sizes = [16, 32], strides = [1, 1]} : vector<16x64xf32> to vector<16x32xf32>
    %12 = arith.truncf %11 : vector<16x32xf32> to vector<16x32xbf16>
    %c0_8 = arith.constant 0 : index
    %c0_9 = arith.constant 0 : index
    %c0_10 = arith.constant 0 : index
    %13 = vector.load %arg4[%c0_8, %c0_9, %c0_10] : memref<2x16x32xbf16, #tpu.memory_space<vmem>>, vector<1x16x32xbf16>
    %14 = vector.shape_cast %13 : vector<1x16x32xbf16> to vector<16x32xbf16>
    %15 = vector.shape_cast %12 : vector<16x32xbf16> to vector<1x16x32xbf16>
    tpu.vector_store %arg4[%c0_8, %c0_9, %c0_10], %15 {strides = array<i32>} : memref<2x16x32xbf16, #tpu.memory_space<vmem>>, vector<1x16x32xbf16>,
    %16 = vector.extract_strided_slice %10 {offsets = [0, 32], sizes = [16, 32], strides = [1, 1]} : vector<16x64xf32> to vector<16x32xf32>
    %c0_11 = arith.constant 0 : index
    %c0_12 = arith.constant 0 : index
    %c0_13 = arith.constant 0 : index
    %17 = vector.load %arg5[%c0_11, %c0_12, %c0_13] : memref<2x16x32xf32, #tpu.memory_space<vmem>>, vector<1x16x32xf32>
    %18 = vector.shape_cast %17 : vector<1x16x32xf32> to vector<16x32xf32>
    %19 = vector.shape_cast %16 : vector<16x32xf32> to vector<1x16x32xf32>
    tpu.vector_store %arg5[%c0_11, %c0_12, %c0_13], %19 {strides = array<i32>} : memref<2x16x32xf32, #tpu.memory_space<vmem>>, vector<1x16x32xf32>,
    %20 = vector.extract_strided_slice %9 {offsets = [16, 0], sizes = [16, 64], strides = [1, 1]} : vector<32x64xf32> to vector<16x64xf32>
    %21 = vector.extract_strided_slice %20 {offsets = [0, 0], sizes = [16, 32], strides = [1, 1]} : vector<16x64xf32> to vector<16x32xf32>
    %22 = arith.truncf %21 : vector<16x32xf32> to vector<16x32xbf16>
    %c1_14 = arith.constant 1 : index
    %c0_15 = arith.constant 0 : index
    %c0_16 = arith.constant 0 : index
    %23 = vector.load %arg4[%c1_14, %c0_15, %c0_16] : memref<2x16x32xbf16, #tpu.memory_space<vmem>>, vector<1x16x32xbf16>
    %24 = vector.shape_cast %23 : vector<1x16x32xbf16> to vector<16x32xbf16>
    %25 = vector.shape_cast %22 : vector<16x32xbf16> to vector<1x16x32xbf16>
    tpu.vector_store %arg4[%c1_14, %c0_15, %c0_16], %25 {strides = array<i32>} : memref<2x16x32xbf16, #tpu.memory_space<vmem>>, vector<1x16x32xbf16>,
    %26 = vector.extract_strided_slice %20 {offsets = [0, 32], sizes = [16, 32], strides = [1, 1]} : vector<16x64xf32> to vector<16x32xf32>
    %c1_17 = arith.constant 1 : index
    %c0_18 = arith.constant 0 : index
    %c0_19 = arith.constant 0 : index
    %27 = vector.load %arg5[%c1_17, %c0_18, %c0_19] : memref<2x16x32xf32, #tpu.memory_space<vmem>>, vector<1x16x32xf32>
    %28 = vector.shape_cast %27 : vector<1x16x32xf32> to vector<16x32xf32>
    %29 = vector.shape_cast %26 : vector<16x32xf32> to vector<1x16x32xf32>
    tpu.vector_store %arg5[%c1_17, %c0_18, %c0_19], %29 {strides = array<i32>} : memref<2x16x32xf32, #tpu.memory_space<vmem>>, vector<1x16x32xf32>,
    return
  }
  func.func @transform_0(%arg0: i32) -> (i32, i32, i32) {
    %c0_i32 = arith.constant 0 : i32
    %c0_i32_0 = arith.constant 0 : i32
    %c0_i32_1 = arith.constant 0 : i32
    return %arg0, %c0_i32, %c0_i32_0 : i32, i32, i32
  }
  func.func @transform_1(%arg0: i32) -> (i32, i32) {
    %c0_i32 = arith.constant 0 : i32
    %c0_i32_0 = arith.constant 0 : i32
    %c0_i32_1 = arith.constant 0 : i32
    return %c0_i32, %c0_i32_0 : i32, i32
  }
  func.func @transform_2(%arg0: i32) -> (i32, i32) {
    %c0_i32 = arith.constant 0 : i32
    %c0_i32_0 = arith.constant 0 : i32
    %c0_i32_1 = arith.constant 0 : i32
    return %c0_i32, %c0_i32_0 : i32, i32
  }
  func.func @transform_3(%arg0: i32) -> (i32, i32, i32) {
    %c0_i32 = arith.constant 0 : i32
    %c0_i32_0 = arith.constant 0 : i32
    %c0_i32_1 = arith.constant 0 : i32
    return %arg0, %c0_i32, %c0_i32_0 : i32, i32, i32
  }
  func.func @transform_4(%arg0: i32) -> (i32, i32, i32) {
    %c0_i32 = arith.constant 0 : i32
    %c0_i32_0 = arith.constant 0 : i32
    %c0_i32_1 = arith.constant 0 : i32
    return %arg0, %c0_i32, %c0_i32_0 : i32, i32, i32
  }
}

module attributes {stable_mosaic.version = 11 : i64} {
  func.func @_stage_kernel(%arg0: i32, %arg1: memref<2x4x32xbf16, #tpu.memory_space<vmem>>, %arg2: memref<32x96xbf16, #tpu.memory_space<vmem>>, %arg3: memref<1x96xf32, #tpu.memory_space<vmem>>, %arg4: memref<2x4x64xbf16, #tpu.memory_space<vmem>>, %arg5: memref<2x4x32xf32, #tpu.memory_space<vmem>>) attributes {dimension_semantics = [#tpu.dimension_semantics<parallel>], iteration_bounds = array<i64: 1>, scalar_prefetch = 0 : i64, scratch_operands = 0 : i64, tpu.core_type = #tpu.core_type<tc>, window_params = [{transform_indices = @transform_0, window_bounds = array<i64: 2, 4, 32>}, {pipeline_mode = #tpu.pipeline_mode<synchronous>, transform_indices = @transform_1, window_bounds = array<i64: 32, 96>}, {pipeline_mode = #tpu.pipeline_mode<synchronous>, transform_indices = @transform_2, window_bounds = array<i64: 1, 96>}, {transform_indices = @transform_3, window_bounds = array<i64: 2, 4, 64>}, {transform_indices = @transform_4, window_bounds = array<i64: 2, 4, 32>}]} {
    %c0 = arith.constant 0 : index
    %c0_0 = arith.constant 0 : index
    %c0_1 = arith.constant 0 : index
    %0 = vector.load %arg1[%c0, %c0_0, %c0_1] : memref<2x4x32xbf16, #tpu.memory_space<vmem>>, vector<1x4x32xbf16>
    %1 = vector.shape_cast %0 : vector<1x4x32xbf16> to vector<4x32xbf16>
    %c1 = arith.constant 1 : index
    %c0_2 = arith.constant 0 : index
    %c0_3 = arith.constant 0 : index
    %2 = vector.load %arg1[%c1, %c0_2, %c0_3] : memref<2x4x32xbf16, #tpu.memory_space<vmem>>, vector<1x4x32xbf16>
    %3 = vector.shape_cast %2 : vector<1x4x32xbf16> to vector<4x32xbf16>
    %4 = tpu.concatenate %1, %3 in 0 : vector<4x32xbf16>, vector<4x32xbf16> -> vector<8x32xbf16>
    %c0_4 = arith.constant 0 : index
    %c0_5 = arith.constant 0 : index
    %5 = vector.load %arg2[%c0_4, %c0_5] : memref<32x96xbf16, #tpu.memory_space<vmem>>, vector<32x96xbf16>
    %cst = arith.constant dense<0.000000e+00> : vector<8x96xf32>
    %6 = tpu.matmul %4, %5, %cst {dimension_numbers = #tpu.dot_dimension_numbers<[1], [0], [0], [1], [0, 0, 1, 1], [], []>} : vector<8x32xbf16>, vector<32x96xbf16>, vector<8x96xf32> -> vector<8x96xf32>
    %c0_6 = arith.constant 0 : index
    %c0_7 = arith.constant 0 : index
    %7 = vector.load %arg3[%c0_6, %c0_7] : memref<1x96xf32, #tpu.memory_space<vmem>>, vector<1x96xf32>
    %8 = vector.broadcast %7 : vector<1x96xf32> to vector<8x96xf32>
    %9 = arith.addf %6, %8 : vector<8x96xf32>
    %10 = vector.extract_strided_slice %9 {offsets = [0, 0], sizes = [4, 96], strides = [1, 1]} : vector<8x96xf32> to vector<4x96xf32>
    %11 = vector.extract_strided_slice %10 {offsets = [0, 0], sizes = [4, 64], strides = [1, 1]} : vector<4x96xf32> to vector<4x64xf32>
    %12 = arith.truncf %11 : vector<4x64xf32> to vector<4x64xbf16>
    %c0_8 = arith.constant 0 : index
    %c0_9 = arith.constant 0 : index
    %c0_10 = arith.constant 0 : index
    %13 = vector.load %arg4[%c0_8, %c0_9, %c0_10] : memref<2x4x64xbf16, #tpu.memory_space<vmem>>, vector<1x4x64xbf16>
    %14 = vector.shape_cast %13 : vector<1x4x64xbf16> to vector<4x64xbf16>
    %15 = vector.shape_cast %12 : vector<4x64xbf16> to vector<1x4x64xbf16>
    tpu.vector_store %arg4[%c0_8, %c0_9, %c0_10], %15 {strides = array<i32>} : memref<2x4x64xbf16, #tpu.memory_space<vmem>>, vector<1x4x64xbf16>,
    %16 = vector.extract_strided_slice %10 {offsets = [0, 64], sizes = [4, 32], strides = [1, 1]} : vector<4x96xf32> to vector<4x32xf32>
    %c0_11 = arith.constant 0 : index
    %c0_12 = arith.constant 0 : index
    %c0_13 = arith.constant 0 : index
    %17 = vector.load %arg5[%c0_11, %c0_12, %c0_13] : memref<2x4x32xf32, #tpu.memory_space<vmem>>, vector<1x4x32xf32>
    %18 = vector.shape_cast %17 : vector<1x4x32xf32> to vector<4x32xf32>
    %19 = vector.shape_cast %16 : vector<4x32xf32> to vector<1x4x32xf32>
    tpu.vector_store %arg5[%c0_11, %c0_12, %c0_13], %19 {strides = array<i32>} : memref<2x4x32xf32, #tpu.memory_space<vmem>>, vector<1x4x32xf32>,
    %20 = vector.extract_strided_slice %9 {offsets = [4, 0], sizes = [4, 96], strides = [1, 1]} : vector<8x96xf32> to vector<4x96xf32>
    %21 = vector.extract_strided_slice %20 {offsets = [0, 0], sizes = [4, 64], strides = [1, 1]} : vector<4x96xf32> to vector<4x64xf32>
    %22 = arith.truncf %21 : vector<4x64xf32> to vector<4x64xbf16>
    %c1_14 = arith.constant 1 : index
    %c0_15 = arith.constant 0 : index
    %c0_16 = arith.constant 0 : index
    %23 = vector.load %arg4[%c1_14, %c0_15, %c0_16] : memref<2x4x64xbf16, #tpu.memory_space<vmem>>, vector<1x4x64xbf16>
    %24 = vector.shape_cast %23 : vector<1x4x64xbf16> to vector<4x64xbf16>
    %25 = vector.shape_cast %22 : vector<4x64xbf16> to vector<1x4x64xbf16>
    tpu.vector_store %arg4[%c1_14, %c0_15, %c0_16], %25 {strides = array<i32>} : memref<2x4x64xbf16, #tpu.memory_space<vmem>>, vector<1x4x64xbf16>,
    %26 = vector.extract_strided_slice %20 {offsets = [0, 64], sizes = [4, 32], strides = [1, 1]} : vector<4x96xf32> to vector<4x32xf32>
    %c1_17 = arith.constant 1 : index
    %c0_18 = arith.constant 0 : index
    %c0_19 = arith.constant 0 : index
    %27 = vector.load %arg5[%c1_17, %c0_18, %c0_19] : memref<2x4x32xf32, #tpu.memory_space<vmem>>, vector<1x4x32xf32>
    %28 = vector.shape_cast %27 : vector<1x4x32xf32> to vector<4x32xf32>
    %29 = vector.shape_cast %26 : vector<4x32xf32> to vector<1x4x32xf32>
    tpu.vector_store %arg5[%c1_17, %c0_18, %c0_19], %29 {strides = array<i32>} : memref<2x4x32xf32, #tpu.memory_space<vmem>>, vector<1x4x32xf32>,
    return
  }
  func.func @transform_0(%arg0: i32) -> (i32, i32, i32) {
    %c0_i32 = arith.constant 0 : i32
    %c0_i32_0 = arith.constant 0 : i32
    %c0_i32_1 = arith.constant 0 : i32
    return %arg0, %c0_i32, %c0_i32_0 : i32, i32, i32
  }
  func.func @transform_1(%arg0: i32) -> (i32, i32) {
    %c0_i32 = arith.constant 0 : i32
    %c0_i32_0 = arith.constant 0 : i32
    %c0_i32_1 = arith.constant 0 : i32
    return %c0_i32, %c0_i32_0 : i32, i32
  }
  func.func @transform_2(%arg0: i32) -> (i32, i32) {
    %c0_i32 = arith.constant 0 : i32
    %c0_i32_0 = arith.constant 0 : i32
    %c0_i32_1 = arith.constant 0 : i32
    return %c0_i32, %c0_i32_0 : i32, i32
  }
  func.func @transform_3(%arg0: i32) -> (i32, i32, i32) {
    %c0_i32 = arith.constant 0 : i32
    %c0_i32_0 = arith.constant 0 : i32
    %c0_i32_1 = arith.constant 0 : i32
    return %arg0, %c0_i32, %c0_i32_0 : i32, i32, i32
  }
  func.func @transform_4(%arg0: i32) -> (i32, i32, i32) {
    %c0_i32 = arith.constant 0 : i32
    %c0_i32_0 = arith.constant 0 : i32
    %c0_i32_1 = arith.constant 0 : i32
    return %arg0, %c0_i32, %c0_i32_0 : i32, i32, i32
  }
}

module attributes {stable_mosaic.version = 11 : i64} {
  func.func @kernel(%arg0: i32, %arg1: memref<2x4x32xf32, #tpu.memory_space<vmem>>, %arg2: memref<288x32xbf16, #tpu.memory_space<vmem>>, %arg3: memref<4x2xf32, #tpu.memory_space<vmem>>, %arg4: memref<1x32xf32, #tpu.memory_space<vmem>>, %arg5: memref<2x4x32xf32, #tpu.memory_space<vmem>>) attributes {dimension_semantics = [#tpu.dimension_semantics<parallel>], iteration_bounds = array<i64: 1>, scalar_prefetch = 0 : i64, scratch_operands = 0 : i64, tpu.core_type = #tpu.core_type<tc>, window_params = [{transform_indices = @transform_0, window_bounds = array<i64: 2, 4, 32>}, {pipeline_mode = #tpu.pipeline_mode<synchronous>, transform_indices = @transform_1, window_bounds = array<i64: 288, 32>}, {pipeline_mode = #tpu.pipeline_mode<synchronous>, transform_indices = @transform_2, window_bounds = array<i64: 4, 2>}, {pipeline_mode = #tpu.pipeline_mode<synchronous>, transform_indices = @transform_3, window_bounds = array<i64: 1, 32>}, {transform_indices = @transform_4, window_bounds = array<i64: 2, 4, 32>}]} {
    %c0 = arith.constant 0 : index
    %c0_0 = arith.constant 0 : index
    %0 = vector.load %arg3[%c0, %c0_0] : memref<4x2xf32, #tpu.memory_space<vmem>>, vector<4x1xf32>
    %c0_1 = arith.constant 0 : index
    %c1 = arith.constant 1 : index
    %1 = vector.load %arg3[%c0_1, %c1] : memref<4x2xf32, #tpu.memory_space<vmem>>, vector<4x1xf32>
    %c0_2 = arith.constant 0 : index
    %c0_3 = arith.constant 0 : index
    %c0_4 = arith.constant 0 : index
    %2 = vector.load %arg1[%c0_2, %c0_3, %c0_4] : memref<2x4x32xf32, #tpu.memory_space<vmem>>, vector<1x4x32xf32>
    %3 = vector.shape_cast %2 : vector<1x4x32xf32> to vector<4x32xf32>
    %4 = arith.truncf %3 : vector<4x32xf32> to vector<4x32xbf16>
    %5 = vector.broadcast %0 : vector<4x1xf32> to vector<4x32xf32>
    %6 = arith.mulf %3, %5 : vector<4x32xf32>
    %7 = arith.truncf %6 : vector<4x32xf32> to vector<4x32xbf16>
    %8 = vector.broadcast %1 : vector<4x1xf32> to vector<4x32xf32>
    %9 = arith.mulf %3, %8 : vector<4x32xf32>
    %10 = arith.truncf %9 : vector<4x32xf32> to vector<4x32xbf16>
    %cst = arith.constant 0.000000e+00 : bf16
    %11 = vector.broadcast %cst : bf16 to vector<3x32xbf16>
    %12 = vector.extract_strided_slice %7 {offsets = [0, 0], sizes = [1, 32], strides = [1, 1]} : vector<4x32xbf16> to vector<1x32xbf16>
    %13 = tpu.concatenate %11, %12 in 0 : vector<3x32xbf16>, vector<1x32xbf16> -> vector<4x32xbf16>
    %cst_5 = arith.constant 0.000000e+00 : bf16
    %14 = vector.broadcast %cst_5 : bf16 to vector<2x32xbf16>
    %15 = vector.extract_strided_slice %4 {offsets = [0, 0], sizes = [2, 32], strides = [1, 1]} : vector<4x32xbf16> to vector<2x32xbf16>
    %16 = tpu.concatenate %14, %15 in 0 : vector<2x32xbf16>, vector<2x32xbf16> -> vector<4x32xbf16>
    %cst_6 = arith.constant 0.000000e+00 : bf16
    %17 = vector.broadcast %cst_6 : bf16 to vector<1x32xbf16>
    %18 = vector.extract_strided_slice %10 {offsets = [0, 0], sizes = [3, 32], strides = [1, 1]} : vector<4x32xbf16> to vector<3x32xbf16>
    %19 = tpu.concatenate %17, %18 in 0 : vector<1x32xbf16>, vector<3x32xbf16> -> vector<4x32xbf16>
    %cst_7 = arith.constant 0.000000e+00 : bf16
    %20 = vector.broadcast %cst_7 : bf16 to vector<1x32xbf16>
    %21 = vector.extract_strided_slice %7 {offsets = [0, 0], sizes = [3, 32], strides = [1, 1]} : vector<4x32xbf16> to vector<3x32xbf16>
    %22 = tpu.concatenate %20, %21 in 0 : vector<1x32xbf16>, vector<3x32xbf16> -> vector<4x32xbf16>
    %23 = vector.extract_strided_slice %10 {offsets = [1, 0], sizes = [3, 32], strides = [1, 1]} : vector<4x32xbf16> to vector<3x32xbf16>
    %cst_8 = arith.constant 0.000000e+00 : bf16
    %24 = vector.broadcast %cst_8 : bf16 to vector<1x32xbf16>
    %25 = tpu.concatenate %23, %24 in 0 : vector<3x32xbf16>, vector<1x32xbf16> -> vector<4x32xbf16>
    %26 = vector.extract_strided_slice %7 {offsets = [1, 0], sizes = [3, 32], strides = [1, 1]} : vector<4x32xbf16> to vector<3x32xbf16>
    %cst_9 = arith.constant 0.000000e+00 : bf16
    %27 = vector.broadcast %cst_9 : bf16 to vector<1x32xbf16>
    %28 = tpu.concatenate %26, %27 in 0 : vector<3x32xbf16>, vector<1x32xbf16> -> vector<4x32xbf16>
    %29 = vector.extract_strided_slice %4 {offsets = [2, 0], sizes = [2, 32], strides = [1, 1]} : vector<4x32xbf16> to vector<2x32xbf16>
    %cst_10 = arith.constant 0.000000e+00 : bf16
    %30 = vector.broadcast %cst_10 : bf16 to vector<2x32xbf16>
    %31 = tpu.concatenate %29, %30 in 0 : vector<2x32xbf16>, vector<2x32xbf16> -> vector<4x32xbf16>
    %32 = vector.extract_strided_slice %10 {offsets = [3, 0], sizes = [1, 32], strides = [1, 1]} : vector<4x32xbf16> to vector<1x32xbf16>
    %cst_11 = arith.constant 0.000000e+00 : bf16
    %33 = vector.broadcast %cst_11 : bf16 to vector<3x32xbf16>
    %34 = tpu.concatenate %32, %33 in 0 : vector<1x32xbf16>, vector<3x32xbf16> -> vector<4x32xbf16>
    %35 = tpu.concatenate %13, %16, %19, %22, %4, %25, %28, %31, %34 in 1 : vector<4x32xbf16>, vector<4x32xbf16>, vector<4x32xbf16>, vector<4x32xbf16>, vector<4x32xbf16>, vector<4x32xbf16>, vector<4x32xbf16>, vector<4x32xbf16>, vector<4x32xbf16> -> vector<4x288xbf16>
    %c1_12 = arith.constant 1 : index
    %c0_13 = arith.constant 0 : index
    %c0_14 = arith.constant 0 : index
    %36 = vector.load %arg1[%c1_12, %c0_13, %c0_14] : memref<2x4x32xf32, #tpu.memory_space<vmem>>, vector<1x4x32xf32>
    %37 = vector.shape_cast %36 : vector<1x4x32xf32> to vector<4x32xf32>
    %38 = arith.truncf %37 : vector<4x32xf32> to vector<4x32xbf16>
    %39 = vector.broadcast %0 : vector<4x1xf32> to vector<4x32xf32>
    %40 = arith.mulf %37, %39 : vector<4x32xf32>
    %41 = arith.truncf %40 : vector<4x32xf32> to vector<4x32xbf16>
    %42 = vector.broadcast %1 : vector<4x1xf32> to vector<4x32xf32>
    %43 = arith.mulf %37, %42 : vector<4x32xf32>
    %44 = arith.truncf %43 : vector<4x32xf32> to vector<4x32xbf16>
    %cst_15 = arith.constant 0.000000e+00 : bf16
    %45 = vector.broadcast %cst_15 : bf16 to vector<3x32xbf16>
    %46 = vector.extract_strided_slice %41 {offsets = [0, 0], sizes = [1, 32], strides = [1, 1]} : vector<4x32xbf16> to vector<1x32xbf16>
    %47 = tpu.concatenate %45, %46 in 0 : vector<3x32xbf16>, vector<1x32xbf16> -> vector<4x32xbf16>
    %cst_16 = arith.constant 0.000000e+00 : bf16
    %48 = vector.broadcast %cst_16 : bf16 to vector<2x32xbf16>
    %49 = vector.extract_strided_slice %38 {offsets = [0, 0], sizes = [2, 32], strides = [1, 1]} : vector<4x32xbf16> to vector<2x32xbf16>
    %50 = tpu.concatenate %48, %49 in 0 : vector<2x32xbf16>, vector<2x32xbf16> -> vector<4x32xbf16>
    %cst_17 = arith.constant 0.000000e+00 : bf16
    %51 = vector.broadcast %cst_17 : bf16 to vector<1x32xbf16>
    %52 = vector.extract_strided_slice %44 {offsets = [0, 0], sizes = [3, 32], strides = [1, 1]} : vector<4x32xbf16> to vector<3x32xbf16>
    %53 = tpu.concatenate %51, %52 in 0 : vector<1x32xbf16>, vector<3x32xbf16> -> vector<4x32xbf16>
    %cst_18 = arith.constant 0.000000e+00 : bf16
    %54 = vector.broadcast %cst_18 : bf16 to vector<1x32xbf16>
    %55 = vector.extract_strided_slice %41 {offsets = [0, 0], sizes = [3, 32], strides = [1, 1]} : vector<4x32xbf16> to vector<3x32xbf16>
    %56 = tpu.concatenate %54, %55 in 0 : vector<1x32xbf16>, vector<3x32xbf16> -> vector<4x32xbf16>
    %57 = vector.extract_strided_slice %44 {offsets = [1, 0], sizes = [3, 32], strides = [1, 1]} : vector<4x32xbf16> to vector<3x32xbf16>
    %cst_19 = arith.constant 0.000000e+00 : bf16
    %58 = vector.broadcast %cst_19 : bf16 to vector<1x32xbf16>
    %59 = tpu.concatenate %57, %58 in 0 : vector<3x32xbf16>, vector<1x32xbf16> -> vector<4x32xbf16>
    %60 = vector.extract_strided_slice %41 {offsets = [1, 0], sizes = [3, 32], strides = [1, 1]} : vector<4x32xbf16> to vector<3x32xbf16>
    %cst_20 = arith.constant 0.000000e+00 : bf16
    %61 = vector.broadcast %cst_20 : bf16 to vector<1x32xbf16>
    %62 = tpu.concatenate %60, %61 in 0 : vector<3x32xbf16>, vector<1x32xbf16> -> vector<4x32xbf16>
    %63 = vector.extract_strided_slice %38 {offsets = [2, 0], sizes = [2, 32], strides = [1, 1]} : vector<4x32xbf16> to vector<2x32xbf16>
    %cst_21 = arith.constant 0.000000e+00 : bf16
    %64 = vector.broadcast %cst_21 : bf16 to vector<2x32xbf16>
    %65 = tpu.concatenate %63, %64 in 0 : vector<2x32xbf16>, vector<2x32xbf16> -> vector<4x32xbf16>
    %66 = vector.extract_strided_slice %44 {offsets = [3, 0], sizes = [1, 32], strides = [1, 1]} : vector<4x32xbf16> to vector<1x32xbf16>
    %cst_22 = arith.constant 0.000000e+00 : bf16
    %67 = vector.broadcast %cst_22 : bf16 to vector<3x32xbf16>
    %68 = tpu.concatenate %66, %67 in 0 : vector<1x32xbf16>, vector<3x32xbf16> -> vector<4x32xbf16>
    %69 = tpu.concatenate %47, %50, %53, %56, %38, %59, %62, %65, %68 in 1 : vector<4x32xbf16>, vector<4x32xbf16>, vector<4x32xbf16>, vector<4x32xbf16>, vector<4x32xbf16>, vector<4x32xbf16>, vector<4x32xbf16>, vector<4x32xbf16>, vector<4x32xbf16> -> vector<4x288xbf16>
    %70 = tpu.concatenate %35, %69 in 0 : vector<4x288xbf16>, vector<4x288xbf16> -> vector<8x288xbf16>
    %c0_23 = arith.constant 0 : index
    %c0_24 = arith.constant 0 : index
    %71 = vector.load %arg2[%c0_23, %c0_24] : memref<288x32xbf16, #tpu.memory_space<vmem>>, vector<288x32xbf16>
    %cst_25 = arith.constant dense<0.000000e+00> : vector<8x32xf32>
    %72 = tpu.matmul %70, %71, %cst_25 {dimension_numbers = #tpu.dot_dimension_numbers<[1], [0], [0], [1], [0, 0, 1, 1], [], []>} : vector<8x288xbf16>, vector<288x32xbf16>, vector<8x32xf32> -> vector<8x32xf32>
    %c0_26 = arith.constant 0 : index
    %c0_27 = arith.constant 0 : index
    %73 = vector.load %arg4[%c0_26, %c0_27] : memref<1x32xf32, #tpu.memory_space<vmem>>, vector<1x32xf32>
    %74 = vector.broadcast %73 : vector<1x32xf32> to vector<8x32xf32>
    %75 = arith.addf %72, %74 : vector<8x32xf32>
    %cst_28 = arith.constant 0.000000e+00 : f32
    %76 = vector.broadcast %cst_28 : f32 to vector<8x32xf32>
    %77 = arith.maximumf %75, %76 : vector<8x32xf32>
    %78 = vector.extract_strided_slice %77 {offsets = [0, 0], sizes = [4, 32], strides = [1, 1]} : vector<8x32xf32> to vector<4x32xf32>
    %c0_29 = arith.constant 0 : index
    %c0_30 = arith.constant 0 : index
    %c0_31 = arith.constant 0 : index
    %79 = vector.load %arg5[%c0_29, %c0_30, %c0_31] : memref<2x4x32xf32, #tpu.memory_space<vmem>>, vector<1x4x32xf32>
    %80 = vector.shape_cast %79 : vector<1x4x32xf32> to vector<4x32xf32>
    %81 = vector.shape_cast %78 : vector<4x32xf32> to vector<1x4x32xf32>
    tpu.vector_store %arg5[%c0_29, %c0_30, %c0_31], %81 {strides = array<i32>} : memref<2x4x32xf32, #tpu.memory_space<vmem>>, vector<1x4x32xf32>,
    %82 = vector.extract_strided_slice %77 {offsets = [4, 0], sizes = [4, 32], strides = [1, 1]} : vector<8x32xf32> to vector<4x32xf32>
    %c1_32 = arith.constant 1 : index
    %c0_33 = arith.constant 0 : index
    %c0_34 = arith.constant 0 : index
    %83 = vector.load %arg5[%c1_32, %c0_33, %c0_34] : memref<2x4x32xf32, #tpu.memory_space<vmem>>, vector<1x4x32xf32>
    %84 = vector.shape_cast %83 : vector<1x4x32xf32> to vector<4x32xf32>
    %85 = vector.shape_cast %82 : vector<4x32xf32> to vector<1x4x32xf32>
    tpu.vector_store %arg5[%c1_32, %c0_33, %c0_34], %85 {strides = array<i32>} : memref<2x4x32xf32, #tpu.memory_space<vmem>>, vector<1x4x32xf32>,
    return
  }
  func.func @transform_0(%arg0: i32) -> (i32, i32, i32) {
    %c0_i32 = arith.constant 0 : i32
    %c0_i32_0 = arith.constant 0 : i32
    %c0_i32_1 = arith.constant 0 : i32
    return %arg0, %c0_i32, %c0_i32_0 : i32, i32, i32
  }
  func.func @transform_1(%arg0: i32) -> (i32, i32) {
    %c0_i32 = arith.constant 0 : i32
    %c0_i32_0 = arith.constant 0 : i32
    %c0_i32_1 = arith.constant 0 : i32
    return %c0_i32, %c0_i32_0 : i32, i32
  }
  func.func @transform_2(%arg0: i32) -> (i32, i32) {
    %c0_i32 = arith.constant 0 : i32
    %c0_i32_0 = arith.constant 0 : i32
    %c0_i32_1 = arith.constant 0 : i32
    return %c0_i32, %c0_i32_0 : i32, i32
  }
  func.func @transform_3(%arg0: i32) -> (i32, i32) {
    %c0_i32 = arith.constant 0 : i32
    %c0_i32_0 = arith.constant 0 : i32
    %c0_i32_1 = arith.constant 0 : i32
    return %c0_i32, %c0_i32_0 : i32, i32
  }
  func.func @transform_4(%arg0: i32) -> (i32, i32, i32) {
    %c0_i32 = arith.constant 0 : i32
    %c0_i32_0 = arith.constant 0 : i32
    %c0_i32_1 = arith.constant 0 : i32
    return %arg0, %c0_i32, %c0_i32_0 : i32, i32, i32
  }
}

module attributes {stable_mosaic.version = 11 : i64} {
  func.func @kernel(%arg0: i32, %arg1: memref<2x16x32xf32, #tpu.memory_space<vmem>>, %arg2: memref<2x4x32xf32, #tpu.memory_space<vmem>>, %arg3: memref<16x4xbf16, #tpu.memory_space<vmem>>, %arg4: memref<288x32xbf16, #tpu.memory_space<vmem>>, %arg5: memref<16x2xf32, #tpu.memory_space<vmem>>, %arg6: memref<1x32xf32, #tpu.memory_space<vmem>>, %arg7: memref<2x16x32xf32, #tpu.memory_space<vmem>>) attributes {dimension_semantics = [#tpu.dimension_semantics<parallel>], iteration_bounds = array<i64: 1>, scalar_prefetch = 0 : i64, scratch_operands = 0 : i64, tpu.core_type = #tpu.core_type<tc>, window_params = [{transform_indices = @transform_0, window_bounds = array<i64: 2, 16, 32>}, {transform_indices = @transform_1, window_bounds = array<i64: 2, 4, 32>}, {pipeline_mode = #tpu.pipeline_mode<synchronous>, transform_indices = @transform_2, window_bounds = array<i64: 16, 4>}, {pipeline_mode = #tpu.pipeline_mode<synchronous>, transform_indices = @transform_3, window_bounds = array<i64: 288, 32>}, {pipeline_mode = #tpu.pipeline_mode<synchronous>, transform_indices = @transform_4, window_bounds = array<i64: 16, 2>}, {pipeline_mode = #tpu.pipeline_mode<synchronous>, transform_indices = @transform_5, window_bounds = array<i64: 1, 32>}, {transform_indices = @transform_6, window_bounds = array<i64: 2, 16, 32>}]} {
    %c0 = arith.constant 0 : index
    %c0_0 = arith.constant 0 : index
    %0 = vector.load %arg5[%c0, %c0_0] : memref<16x2xf32, #tpu.memory_space<vmem>>, vector<16x1xf32>
    %c0_1 = arith.constant 0 : index
    %c1 = arith.constant 1 : index
    %1 = vector.load %arg5[%c0_1, %c1] : memref<16x2xf32, #tpu.memory_space<vmem>>, vector<16x1xf32>
    %c0_2 = arith.constant 0 : index
    %c0_3 = arith.constant 0 : index
    %c0_4 = arith.constant 0 : index
    %2 = vector.load %arg1[%c0_2, %c0_3, %c0_4] : memref<2x16x32xf32, #tpu.memory_space<vmem>>, vector<1x16x32xf32>
    %3 = vector.shape_cast %2 : vector<1x16x32xf32> to vector<16x32xf32>
    %c0_5 = arith.constant 0 : index
    %c0_6 = arith.constant 0 : index
    %c0_7 = arith.constant 0 : index
    %4 = vector.load %arg2[%c0_5, %c0_6, %c0_7] : memref<2x4x32xf32, #tpu.memory_space<vmem>>, vector<1x4x32xf32>
    %5 = vector.shape_cast %4 : vector<1x4x32xf32> to vector<4x32xf32>
    %6 = arith.truncf %5 : vector<4x32xf32> to vector<4x32xbf16>
    %c0_8 = arith.constant 0 : index
    %c0_9 = arith.constant 0 : index
    %7 = vector.load %arg3[%c0_8, %c0_9] : memref<16x4xbf16, #tpu.memory_space<vmem>>, vector<16x4xbf16>
    %cst = arith.constant dense<0.000000e+00> : vector<16x32xf32>
    %8 = tpu.matmul %7, %6, %cst {dimension_numbers = #tpu.dot_dimension_numbers<[1], [0], [0], [1], [0, 0, 1, 1], [], []>} : vector<16x4xbf16>, vector<4x32xbf16>, vector<16x32xf32> -> vector<16x32xf32>
    %9 = arith.addf %3, %8 : vector<16x32xf32>
    %10 = arith.truncf %9 : vector<16x32xf32> to vector<16x32xbf16>
    %11 = vector.broadcast %0 : vector<16x1xf32> to vector<16x32xf32>
    %12 = arith.mulf %9, %11 : vector<16x32xf32>
    %13 = arith.truncf %12 : vector<16x32xf32> to vector<16x32xbf16>
    %14 = vector.broadcast %1 : vector<16x1xf32> to vector<16x32xf32>
    %15 = arith.mulf %9, %14 : vector<16x32xf32>
    %16 = arith.truncf %15 : vector<16x32xf32> to vector<16x32xbf16>
    %cst_10 = arith.constant 0.000000e+00 : bf16
    %17 = vector.broadcast %cst_10 : bf16 to vector<5x32xbf16>
    %18 = vector.extract_strided_slice %13 {offsets = [0, 0], sizes = [11, 32], strides = [1, 1]} : vector<16x32xbf16> to vector<11x32xbf16>
    %19 = tpu.concatenate %17, %18 in 0 : vector<5x32xbf16>, vector<11x32xbf16> -> vector<16x32xbf16>
    %cst_11 = arith.constant 0.000000e+00 : bf16
    %20 = vector.broadcast %cst_11 : bf16 to vector<4x32xbf16>
    %21 = vector.extract_strided_slice %10 {offsets = [0, 0], sizes = [12, 32], strides = [1, 1]} : vector<16x32xbf16> to vector<12x32xbf16>
    %22 = tpu.concatenate %20, %21 in 0 : vector<4x32xbf16>, vector<12x32xbf16> -> vector<16x32xbf16>
    %cst_12 = arith.constant 0.000000e+00 : bf16
    %23 = vector.broadcast %cst_12 : bf16 to vector<3x32xbf16>
    %24 = vector.extract_strided_slice %16 {offsets = [0, 0], sizes = [13, 32], strides = [1, 1]} : vector<16x32xbf16> to vector<13x32xbf16>
    %25 = tpu.concatenate %23, %24 in 0 : vector<3x32xbf16>, vector<13x32xbf16> -> vector<16x32xbf16>
    %cst_13 = arith.constant 0.000000e+00 : bf16
    %26 = vector.broadcast %cst_13 : bf16 to vector<1x32xbf16>
    %27 = vector.extract_strided_slice %13 {offsets = [0, 0], sizes = [15, 32], strides = [1, 1]} : vector<16x32xbf16> to vector<15x32xbf16>
    %28 = tpu.concatenate %26, %27 in 0 : vector<1x32xbf16>, vector<15x32xbf16> -> vector<16x32xbf16>
    %29 = vector.extract_strided_slice %16 {offsets = [1, 0], sizes = [15, 32], strides = [1, 1]} : vector<16x32xbf16> to vector<15x32xbf16>
    %cst_14 = arith.constant 0.000000e+00 : bf16
    %30 = vector.broadcast %cst_14 : bf16 to vector<1x32xbf16>
    %31 = tpu.concatenate %29, %30 in 0 : vector<15x32xbf16>, vector<1x32xbf16> -> vector<16x32xbf16>
    %32 = vector.extract_strided_slice %13 {offsets = [3, 0], sizes = [13, 32], strides = [1, 1]} : vector<16x32xbf16> to vector<13x32xbf16>
    %cst_15 = arith.constant 0.000000e+00 : bf16
    %33 = vector.broadcast %cst_15 : bf16 to vector<3x32xbf16>
    %34 = tpu.concatenate %32, %33 in 0 : vector<13x32xbf16>, vector<3x32xbf16> -> vector<16x32xbf16>
    %35 = vector.extract_strided_slice %10 {offsets = [4, 0], sizes = [12, 32], strides = [1, 1]} : vector<16x32xbf16> to vector<12x32xbf16>
    %cst_16 = arith.constant 0.000000e+00 : bf16
    %36 = vector.broadcast %cst_16 : bf16 to vector<4x32xbf16>
    %37 = tpu.concatenate %35, %36 in 0 : vector<12x32xbf16>, vector<4x32xbf16> -> vector<16x32xbf16>
    %38 = vector.extract_strided_slice %16 {offsets = [5, 0], sizes = [11, 32], strides = [1, 1]} : vector<16x32xbf16> to vector<11x32xbf16>
    %cst_17 = arith.constant 0.000000e+00 : bf16
    %39 = vector.broadcast %cst_17 : bf16 to vector<5x32xbf16>
    %40 = tpu.concatenate %38, %39 in 0 : vector<11x32xbf16>, vector<5x32xbf16> -> vector<16x32xbf16>
    %41 = tpu.concatenate %19, %22, %25, %28, %10, %31, %34, %37, %40 in 1 : vector<16x32xbf16>, vector<16x32xbf16>, vector<16x32xbf16>, vector<16x32xbf16>, vector<16x32xbf16>, vector<16x32xbf16>, vector<16x32xbf16>, vector<16x32xbf16>, vector<16x32xbf16> -> vector<16x288xbf16>
    %c1_18 = arith.constant 1 : index
    %c0_19 = arith.constant 0 : index
    %c0_20 = arith.constant 0 : index
    %42 = vector.load %arg1[%c1_18, %c0_19, %c0_20] : memref<2x16x32xf32, #tpu.memory_space<vmem>>, vector<1x16x32xf32>
    %43 = vector.shape_cast %42 : vector<1x16x32xf32> to vector<16x32xf32>
    %c1_21 = arith.constant 1 : index
    %c0_22 = arith.constant 0 : index
    %c0_23 = arith.constant 0 : index
    %44 = vector.load %arg2[%c1_21, %c0_22, %c0_23] : memref<2x4x32xf32, #tpu.memory_space<vmem>>, vector<1x4x32xf32>
    %45 = vector.shape_cast %44 : vector<1x4x32xf32> to vector<4x32xf32>
    %46 = arith.truncf %45 : vector<4x32xf32> to vector<4x32xbf16>
    %c0_24 = arith.constant 0 : index
    %c0_25 = arith.constant 0 : index
    %47 = vector.load %arg3[%c0_24, %c0_25] : memref<16x4xbf16, #tpu.memory_space<vmem>>, vector<16x4xbf16>
    %cst_26 = arith.constant dense<0.000000e+00> : vector<16x32xf32>
    %48 = tpu.matmul %47, %46, %cst_26 {dimension_numbers = #tpu.dot_dimension_numbers<[1], [0], [0], [1], [0, 0, 1, 1], [], []>} : vector<16x4xbf16>, vector<4x32xbf16>, vector<16x32xf32> -> vector<16x32xf32>
    %49 = arith.addf %43, %48 : vector<16x32xf32>
    %50 = arith.truncf %49 : vector<16x32xf32> to vector<16x32xbf16>
    %51 = vector.broadcast %0 : vector<16x1xf32> to vector<16x32xf32>
    %52 = arith.mulf %49, %51 : vector<16x32xf32>
    %53 = arith.truncf %52 : vector<16x32xf32> to vector<16x32xbf16>
    %54 = vector.broadcast %1 : vector<16x1xf32> to vector<16x32xf32>
    %55 = arith.mulf %49, %54 : vector<16x32xf32>
    %56 = arith.truncf %55 : vector<16x32xf32> to vector<16x32xbf16>
    %cst_27 = arith.constant 0.000000e+00 : bf16
    %57 = vector.broadcast %cst_27 : bf16 to vector<5x32xbf16>
    %58 = vector.extract_strided_slice %53 {offsets = [0, 0], sizes = [11, 32], strides = [1, 1]} : vector<16x32xbf16> to vector<11x32xbf16>
    %59 = tpu.concatenate %57, %58 in 0 : vector<5x32xbf16>, vector<11x32xbf16> -> vector<16x32xbf16>
    %cst_28 = arith.constant 0.000000e+00 : bf16
    %60 = vector.broadcast %cst_28 : bf16 to vector<4x32xbf16>
    %61 = vector.extract_strided_slice %50 {offsets = [0, 0], sizes = [12, 32], strides = [1, 1]} : vector<16x32xbf16> to vector<12x32xbf16>
    %62 = tpu.concatenate %60, %61 in 0 : vector<4x32xbf16>, vector<12x32xbf16> -> vector<16x32xbf16>
    %cst_29 = arith.constant 0.000000e+00 : bf16
    %63 = vector.broadcast %cst_29 : bf16 to vector<3x32xbf16>
    %64 = vector.extract_strided_slice %56 {offsets = [0, 0], sizes = [13, 32], strides = [1, 1]} : vector<16x32xbf16> to vector<13x32xbf16>
    %65 = tpu.concatenate %63, %64 in 0 : vector<3x32xbf16>, vector<13x32xbf16> -> vector<16x32xbf16>
    %cst_30 = arith.constant 0.000000e+00 : bf16
    %66 = vector.broadcast %cst_30 : bf16 to vector<1x32xbf16>
    %67 = vector.extract_strided_slice %53 {offsets = [0, 0], sizes = [15, 32], strides = [1, 1]} : vector<16x32xbf16> to vector<15x32xbf16>
    %68 = tpu.concatenate %66, %67 in 0 : vector<1x32xbf16>, vector<15x32xbf16> -> vector<16x32xbf16>
    %69 = vector.extract_strided_slice %56 {offsets = [1, 0], sizes = [15, 32], strides = [1, 1]} : vector<16x32xbf16> to vector<15x32xbf16>
    %cst_31 = arith.constant 0.000000e+00 : bf16
    %70 = vector.broadcast %cst_31 : bf16 to vector<1x32xbf16>
    %71 = tpu.concatenate %69, %70 in 0 : vector<15x32xbf16>, vector<1x32xbf16> -> vector<16x32xbf16>
    %72 = vector.extract_strided_slice %53 {offsets = [3, 0], sizes = [13, 32], strides = [1, 1]} : vector<16x32xbf16> to vector<13x32xbf16>
    %cst_32 = arith.constant 0.000000e+00 : bf16
    %73 = vector.broadcast %cst_32 : bf16 to vector<3x32xbf16>
    %74 = tpu.concatenate %72, %73 in 0 : vector<13x32xbf16>, vector<3x32xbf16> -> vector<16x32xbf16>
    %75 = vector.extract_strided_slice %50 {offsets = [4, 0], sizes = [12, 32], strides = [1, 1]} : vector<16x32xbf16> to vector<12x32xbf16>
    %cst_33 = arith.constant 0.000000e+00 : bf16
    %76 = vector.broadcast %cst_33 : bf16 to vector<4x32xbf16>
    %77 = tpu.concatenate %75, %76 in 0 : vector<12x32xbf16>, vector<4x32xbf16> -> vector<16x32xbf16>
    %78 = vector.extract_strided_slice %56 {offsets = [5, 0], sizes = [11, 32], strides = [1, 1]} : vector<16x32xbf16> to vector<11x32xbf16>
    %cst_34 = arith.constant 0.000000e+00 : bf16
    %79 = vector.broadcast %cst_34 : bf16 to vector<5x32xbf16>
    %80 = tpu.concatenate %78, %79 in 0 : vector<11x32xbf16>, vector<5x32xbf16> -> vector<16x32xbf16>
    %81 = tpu.concatenate %59, %62, %65, %68, %50, %71, %74, %77, %80 in 1 : vector<16x32xbf16>, vector<16x32xbf16>, vector<16x32xbf16>, vector<16x32xbf16>, vector<16x32xbf16>, vector<16x32xbf16>, vector<16x32xbf16>, vector<16x32xbf16>, vector<16x32xbf16> -> vector<16x288xbf16>
    %82 = tpu.concatenate %41, %81 in 0 : vector<16x288xbf16>, vector<16x288xbf16> -> vector<32x288xbf16>
    %c0_35 = arith.constant 0 : index
    %c0_36 = arith.constant 0 : index
    %83 = vector.load %arg4[%c0_35, %c0_36] : memref<288x32xbf16, #tpu.memory_space<vmem>>, vector<288x32xbf16>
    %cst_37 = arith.constant dense<0.000000e+00> : vector<32x32xf32>
    %84 = tpu.matmul %82, %83, %cst_37 {dimension_numbers = #tpu.dot_dimension_numbers<[1], [0], [0], [1], [0, 0, 1, 1], [], []>} : vector<32x288xbf16>, vector<288x32xbf16>, vector<32x32xf32> -> vector<32x32xf32>
    %c0_38 = arith.constant 0 : index
    %c0_39 = arith.constant 0 : index
    %85 = vector.load %arg6[%c0_38, %c0_39] : memref<1x32xf32, #tpu.memory_space<vmem>>, vector<1x32xf32>
    %86 = vector.broadcast %85 : vector<1x32xf32> to vector<32x32xf32>
    %87 = arith.addf %84, %86 : vector<32x32xf32>
    %cst_40 = arith.constant 0.000000e+00 : f32
    %88 = vector.broadcast %cst_40 : f32 to vector<32x32xf32>
    %89 = arith.maximumf %87, %88 : vector<32x32xf32>
    %90 = vector.extract_strided_slice %89 {offsets = [0, 0], sizes = [16, 32], strides = [1, 1]} : vector<32x32xf32> to vector<16x32xf32>
    %c0_41 = arith.constant 0 : index
    %c0_42 = arith.constant 0 : index
    %c0_43 = arith.constant 0 : index
    %91 = vector.load %arg7[%c0_41, %c0_42, %c0_43] : memref<2x16x32xf32, #tpu.memory_space<vmem>>, vector<1x16x32xf32>
    %92 = vector.shape_cast %91 : vector<1x16x32xf32> to vector<16x32xf32>
    %93 = vector.shape_cast %90 : vector<16x32xf32> to vector<1x16x32xf32>
    tpu.vector_store %arg7[%c0_41, %c0_42, %c0_43], %93 {strides = array<i32>} : memref<2x16x32xf32, #tpu.memory_space<vmem>>, vector<1x16x32xf32>,
    %94 = vector.extract_strided_slice %89 {offsets = [16, 0], sizes = [16, 32], strides = [1, 1]} : vector<32x32xf32> to vector<16x32xf32>
    %c1_44 = arith.constant 1 : index
    %c0_45 = arith.constant 0 : index
    %c0_46 = arith.constant 0 : index
    %95 = vector.load %arg7[%c1_44, %c0_45, %c0_46] : memref<2x16x32xf32, #tpu.memory_space<vmem>>, vector<1x16x32xf32>
    %96 = vector.shape_cast %95 : vector<1x16x32xf32> to vector<16x32xf32>
    %97 = vector.shape_cast %94 : vector<16x32xf32> to vector<1x16x32xf32>
    tpu.vector_store %arg7[%c1_44, %c0_45, %c0_46], %97 {strides = array<i32>} : memref<2x16x32xf32, #tpu.memory_space<vmem>>, vector<1x16x32xf32>,
    return
  }
  func.func @transform_0(%arg0: i32) -> (i32, i32, i32) {
    %c0_i32 = arith.constant 0 : i32
    %c0_i32_0 = arith.constant 0 : i32
    %c0_i32_1 = arith.constant 0 : i32
    return %arg0, %c0_i32, %c0_i32_0 : i32, i32, i32
  }
  func.func @transform_1(%arg0: i32) -> (i32, i32, i32) {
    %c0_i32 = arith.constant 0 : i32
    %c0_i32_0 = arith.constant 0 : i32
    %c0_i32_1 = arith.constant 0 : i32
    return %arg0, %c0_i32, %c0_i32_0 : i32, i32, i32
  }
  func.func @transform_2(%arg0: i32) -> (i32, i32) {
    %c0_i32 = arith.constant 0 : i32
    %c0_i32_0 = arith.constant 0 : i32
    %c0_i32_1 = arith.constant 0 : i32
    return %c0_i32, %c0_i32_0 : i32, i32
  }
  func.func @transform_3(%arg0: i32) -> (i32, i32) {
    %c0_i32 = arith.constant 0 : i32
    %c0_i32_0 = arith.constant 0 : i32
    %c0_i32_1 = arith.constant 0 : i32
    return %c0_i32, %c0_i32_0 : i32, i32
  }
  func.func @transform_4(%arg0: i32) -> (i32, i32) {
    %c0_i32 = arith.constant 0 : i32
    %c0_i32_0 = arith.constant 0 : i32
    %c0_i32_1 = arith.constant 0 : i32
    return %c0_i32, %c0_i32_0 : i32, i32
  }
  func.func @transform_5(%arg0: i32) -> (i32, i32) {
    %c0_i32 = arith.constant 0 : i32
    %c0_i32_0 = arith.constant 0 : i32
    %c0_i32_1 = arith.constant 0 : i32
    return %c0_i32, %c0_i32_0 : i32, i32
  }
  func.func @transform_6(%arg0: i32) -> (i32, i32, i32) {
    %c0_i32 = arith.constant 0 : i32
    %c0_i32_0 = arith.constant 0 : i32
    %c0_i32_1 = arith.constant 0 : i32
    return %arg0, %c0_i32, %c0_i32_0 : i32, i32, i32
  }
}

module attributes {stable_mosaic.version = 11 : i64} {
  func.func @kernel(%arg0: i32, %arg1: memref<2x64x32xf32, #tpu.memory_space<vmem>>, %arg2: memref<2x16x32xf32, #tpu.memory_space<vmem>>, %arg3: memref<64x16xbf16, #tpu.memory_space<vmem>>, %arg4: memref<288x32xbf16, #tpu.memory_space<vmem>>, %arg5: memref<64x2xf32, #tpu.memory_space<vmem>>, %arg6: memref<1x32xf32, #tpu.memory_space<vmem>>, %arg7: memref<2x64x32xf32, #tpu.memory_space<vmem>>) attributes {dimension_semantics = [#tpu.dimension_semantics<parallel>], iteration_bounds = array<i64: 1>, scalar_prefetch = 0 : i64, scratch_operands = 0 : i64, tpu.core_type = #tpu.core_type<tc>, window_params = [{transform_indices = @transform_0, window_bounds = array<i64: 2, 64, 32>}, {transform_indices = @transform_1, window_bounds = array<i64: 2, 16, 32>}, {pipeline_mode = #tpu.pipeline_mode<synchronous>, transform_indices = @transform_2, window_bounds = array<i64: 64, 16>}, {pipeline_mode = #tpu.pipeline_mode<synchronous>, transform_indices = @transform_3, window_bounds = array<i64: 288, 32>}, {pipeline_mode = #tpu.pipeline_mode<synchronous>, transform_indices = @transform_4, window_bounds = array<i64: 64, 2>}, {pipeline_mode = #tpu.pipeline_mode<synchronous>, transform_indices = @transform_5, window_bounds = array<i64: 1, 32>}, {transform_indices = @transform_6, window_bounds = array<i64: 2, 64, 32>}]} {
    %c0 = arith.constant 0 : index
    %c0_0 = arith.constant 0 : index
    %0 = vector.load %arg5[%c0, %c0_0] : memref<64x2xf32, #tpu.memory_space<vmem>>, vector<64x1xf32>
    %c0_1 = arith.constant 0 : index
    %c1 = arith.constant 1 : index
    %1 = vector.load %arg5[%c0_1, %c1] : memref<64x2xf32, #tpu.memory_space<vmem>>, vector<64x1xf32>
    %c0_2 = arith.constant 0 : index
    %c0_3 = arith.constant 0 : index
    %c0_4 = arith.constant 0 : index
    %2 = vector.load %arg1[%c0_2, %c0_3, %c0_4] : memref<2x64x32xf32, #tpu.memory_space<vmem>>, vector<1x64x32xf32>
    %3 = vector.shape_cast %2 : vector<1x64x32xf32> to vector<64x32xf32>
    %c0_5 = arith.constant 0 : index
    %c0_6 = arith.constant 0 : index
    %c0_7 = arith.constant 0 : index
    %4 = vector.load %arg2[%c0_5, %c0_6, %c0_7] : memref<2x16x32xf32, #tpu.memory_space<vmem>>, vector<1x16x32xf32>
    %5 = vector.shape_cast %4 : vector<1x16x32xf32> to vector<16x32xf32>
    %6 = arith.truncf %5 : vector<16x32xf32> to vector<16x32xbf16>
    %c0_8 = arith.constant 0 : index
    %c0_9 = arith.constant 0 : index
    %7 = vector.load %arg3[%c0_8, %c0_9] : memref<64x16xbf16, #tpu.memory_space<vmem>>, vector<64x16xbf16>
    %cst = arith.constant dense<0.000000e+00> : vector<64x32xf32>
    %8 = tpu.matmul %7, %6, %cst {dimension_numbers = #tpu.dot_dimension_numbers<[1], [0], [0], [1], [0, 0, 1, 1], [], []>} : vector<64x16xbf16>, vector<16x32xbf16>, vector<64x32xf32> -> vector<64x32xf32>
    %9 = arith.addf %3, %8 : vector<64x32xf32>
    %10 = arith.truncf %9 : vector<64x32xf32> to vector<64x32xbf16>
    %11 = vector.broadcast %0 : vector<64x1xf32> to vector<64x32xf32>
    %12 = arith.mulf %9, %11 : vector<64x32xf32>
    %13 = arith.truncf %12 : vector<64x32xf32> to vector<64x32xbf16>
    %14 = vector.broadcast %1 : vector<64x1xf32> to vector<64x32xf32>
    %15 = arith.mulf %9, %14 : vector<64x32xf32>
    %16 = arith.truncf %15 : vector<64x32xf32> to vector<64x32xbf16>
    %cst_10 = arith.constant 0.000000e+00 : bf16
    %17 = vector.broadcast %cst_10 : bf16 to vector<9x32xbf16>
    %18 = vector.extract_strided_slice %13 {offsets = [0, 0], sizes = [55, 32], strides = [1, 1]} : vector<64x32xbf16> to vector<55x32xbf16>
    %19 = tpu.concatenate %17, %18 in 0 : vector<9x32xbf16>, vector<55x32xbf16> -> vector<64x32xbf16>
    %cst_11 = arith.constant 0.000000e+00 : bf16
    %20 = vector.broadcast %cst_11 : bf16 to vector<8x32xbf16>
    %21 = vector.extract_strided_slice %10 {offsets = [0, 0], sizes = [56, 32], strides = [1, 1]} : vector<64x32xbf16> to vector<56x32xbf16>
    %22 = tpu.concatenate %20, %21 in 0 : vector<8x32xbf16>, vector<56x32xbf16> -> vector<64x32xbf16>
    %cst_12 = arith.constant 0.000000e+00 : bf16
    %23 = vector.broadcast %cst_12 : bf16 to vector<7x32xbf16>
    %24 = vector.extract_strided_slice %16 {offsets = [0, 0], sizes = [57, 32], strides = [1, 1]} : vector<64x32xbf16> to vector<57x32xbf16>
    %25 = tpu.concatenate %23, %24 in 0 : vector<7x32xbf16>, vector<57x32xbf16> -> vector<64x32xbf16>
    %cst_13 = arith.constant 0.000000e+00 : bf16
    %26 = vector.broadcast %cst_13 : bf16 to vector<1x32xbf16>
    %27 = vector.extract_strided_slice %13 {offsets = [0, 0], sizes = [63, 32], strides = [1, 1]} : vector<64x32xbf16> to vector<63x32xbf16>
    %28 = tpu.concatenate %26, %27 in 0 : vector<1x32xbf16>, vector<63x32xbf16> -> vector<64x32xbf16>
    %29 = vector.extract_strided_slice %16 {offsets = [1, 0], sizes = [63, 32], strides = [1, 1]} : vector<64x32xbf16> to vector<63x32xbf16>
    %cst_14 = arith.constant 0.000000e+00 : bf16
    %30 = vector.broadcast %cst_14 : bf16 to vector<1x32xbf16>
    %31 = tpu.concatenate %29, %30 in 0 : vector<63x32xbf16>, vector<1x32xbf16> -> vector<64x32xbf16>
    %32 = vector.extract_strided_slice %13 {offsets = [7, 0], sizes = [57, 32], strides = [1, 1]} : vector<64x32xbf16> to vector<57x32xbf16>
    %cst_15 = arith.constant 0.000000e+00 : bf16
    %33 = vector.broadcast %cst_15 : bf16 to vector<7x32xbf16>
    %34 = tpu.concatenate %32, %33 in 0 : vector<57x32xbf16>, vector<7x32xbf16> -> vector<64x32xbf16>
    %35 = vector.extract_strided_slice %10 {offsets = [8, 0], sizes = [56, 32], strides = [1, 1]} : vector<64x32xbf16> to vector<56x32xbf16>
    %cst_16 = arith.constant 0.000000e+00 : bf16
    %36 = vector.broadcast %cst_16 : bf16 to vector<8x32xbf16>
    %37 = tpu.concatenate %35, %36 in 0 : vector<56x32xbf16>, vector<8x32xbf16> -> vector<64x32xbf16>
    %38 = vector.extract_strided_slice %16 {offsets = [9, 0], sizes = [55, 32], strides = [1, 1]} : vector<64x32xbf16> to vector<55x32xbf16>
    %cst_17 = arith.constant 0.000000e+00 : bf16
    %39 = vector.broadcast %cst_17 : bf16 to vector<9x32xbf16>
    %40 = tpu.concatenate %38, %39 in 0 : vector<55x32xbf16>, vector<9x32xbf16> -> vector<64x32xbf16>
    %41 = tpu.concatenate %19, %22, %25, %28, %10, %31, %34, %37, %40 in 1 : vector<64x32xbf16>, vector<64x32xbf16>, vector<64x32xbf16>, vector<64x32xbf16>, vector<64x32xbf16>, vector<64x32xbf16>, vector<64x32xbf16>, vector<64x32xbf16>, vector<64x32xbf16> -> vector<64x288xbf16>
    %c1_18 = arith.constant 1 : index
    %c0_19 = arith.constant 0 : index
    %c0_20 = arith.constant 0 : index
    %42 = vector.load %arg1[%c1_18, %c0_19, %c0_20] : memref<2x64x32xf32, #tpu.memory_space<vmem>>, vector<1x64x32xf32>
    %43 = vector.shape_cast %42 : vector<1x64x32xf32> to vector<64x32xf32>
    %c1_21 = arith.constant 1 : index
    %c0_22 = arith.constant 0 : index
    %c0_23 = arith.constant 0 : index
    %44 = vector.load %arg2[%c1_21, %c0_22, %c0_23] : memref<2x16x32xf32, #tpu.memory_space<vmem>>, vector<1x16x32xf32>
    %45 = vector.shape_cast %44 : vector<1x16x32xf32> to vector<16x32xf32>
    %46 = arith.truncf %45 : vector<16x32xf32> to vector<16x32xbf16>
    %c0_24 = arith.constant 0 : index
    %c0_25 = arith.constant 0 : index
    %47 = vector.load %arg3[%c0_24, %c0_25] : memref<64x16xbf16, #tpu.memory_space<vmem>>, vector<64x16xbf16>
    %cst_26 = arith.constant dense<0.000000e+00> : vector<64x32xf32>
    %48 = tpu.matmul %47, %46, %cst_26 {dimension_numbers = #tpu.dot_dimension_numbers<[1], [0], [0], [1], [0, 0, 1, 1], [], []>} : vector<64x16xbf16>, vector<16x32xbf16>, vector<64x32xf32> -> vector<64x32xf32>
    %49 = arith.addf %43, %48 : vector<64x32xf32>
    %50 = arith.truncf %49 : vector<64x32xf32> to vector<64x32xbf16>
    %51 = vector.broadcast %0 : vector<64x1xf32> to vector<64x32xf32>
    %52 = arith.mulf %49, %51 : vector<64x32xf32>
    %53 = arith.truncf %52 : vector<64x32xf32> to vector<64x32xbf16>
    %54 = vector.broadcast %1 : vector<64x1xf32> to vector<64x32xf32>
    %55 = arith.mulf %49, %54 : vector<64x32xf32>
    %56 = arith.truncf %55 : vector<64x32xf32> to vector<64x32xbf16>
    %cst_27 = arith.constant 0.000000e+00 : bf16
    %57 = vector.broadcast %cst_27 : bf16 to vector<9x32xbf16>
    %58 = vector.extract_strided_slice %53 {offsets = [0, 0], sizes = [55, 32], strides = [1, 1]} : vector<64x32xbf16> to vector<55x32xbf16>
    %59 = tpu.concatenate %57, %58 in 0 : vector<9x32xbf16>, vector<55x32xbf16> -> vector<64x32xbf16>
    %cst_28 = arith.constant 0.000000e+00 : bf16
    %60 = vector.broadcast %cst_28 : bf16 to vector<8x32xbf16>
    %61 = vector.extract_strided_slice %50 {offsets = [0, 0], sizes = [56, 32], strides = [1, 1]} : vector<64x32xbf16> to vector<56x32xbf16>
    %62 = tpu.concatenate %60, %61 in 0 : vector<8x32xbf16>, vector<56x32xbf16> -> vector<64x32xbf16>
    %cst_29 = arith.constant 0.000000e+00 : bf16
    %63 = vector.broadcast %cst_29 : bf16 to vector<7x32xbf16>
    %64 = vector.extract_strided_slice %56 {offsets = [0, 0], sizes = [57, 32], strides = [1, 1]} : vector<64x32xbf16> to vector<57x32xbf16>
    %65 = tpu.concatenate %63, %64 in 0 : vector<7x32xbf16>, vector<57x32xbf16> -> vector<64x32xbf16>
    %cst_30 = arith.constant 0.000000e+00 : bf16
    %66 = vector.broadcast %cst_30 : bf16 to vector<1x32xbf16>
    %67 = vector.extract_strided_slice %53 {offsets = [0, 0], sizes = [63, 32], strides = [1, 1]} : vector<64x32xbf16> to vector<63x32xbf16>
    %68 = tpu.concatenate %66, %67 in 0 : vector<1x32xbf16>, vector<63x32xbf16> -> vector<64x32xbf16>
    %69 = vector.extract_strided_slice %56 {offsets = [1, 0], sizes = [63, 32], strides = [1, 1]} : vector<64x32xbf16> to vector<63x32xbf16>
    %cst_31 = arith.constant 0.000000e+00 : bf16
    %70 = vector.broadcast %cst_31 : bf16 to vector<1x32xbf16>
    %71 = tpu.concatenate %69, %70 in 0 : vector<63x32xbf16>, vector<1x32xbf16> -> vector<64x32xbf16>
    %72 = vector.extract_strided_slice %53 {offsets = [7, 0], sizes = [57, 32], strides = [1, 1]} : vector<64x32xbf16> to vector<57x32xbf16>
    %cst_32 = arith.constant 0.000000e+00 : bf16
    %73 = vector.broadcast %cst_32 : bf16 to vector<7x32xbf16>
    %74 = tpu.concatenate %72, %73 in 0 : vector<57x32xbf16>, vector<7x32xbf16> -> vector<64x32xbf16>
    %75 = vector.extract_strided_slice %50 {offsets = [8, 0], sizes = [56, 32], strides = [1, 1]} : vector<64x32xbf16> to vector<56x32xbf16>
    %cst_33 = arith.constant 0.000000e+00 : bf16
    %76 = vector.broadcast %cst_33 : bf16 to vector<8x32xbf16>
    %77 = tpu.concatenate %75, %76 in 0 : vector<56x32xbf16>, vector<8x32xbf16> -> vector<64x32xbf16>
    %78 = vector.extract_strided_slice %56 {offsets = [9, 0], sizes = [55, 32], strides = [1, 1]} : vector<64x32xbf16> to vector<55x32xbf16>
    %cst_34 = arith.constant 0.000000e+00 : bf16
    %79 = vector.broadcast %cst_34 : bf16 to vector<9x32xbf16>
    %80 = tpu.concatenate %78, %79 in 0 : vector<55x32xbf16>, vector<9x32xbf16> -> vector<64x32xbf16>
    %81 = tpu.concatenate %59, %62, %65, %68, %50, %71, %74, %77, %80 in 1 : vector<64x32xbf16>, vector<64x32xbf16>, vector<64x32xbf16>, vector<64x32xbf16>, vector<64x32xbf16>, vector<64x32xbf16>, vector<64x32xbf16>, vector<64x32xbf16>, vector<64x32xbf16> -> vector<64x288xbf16>
    %82 = tpu.concatenate %41, %81 in 0 : vector<64x288xbf16>, vector<64x288xbf16> -> vector<128x288xbf16>
    %c0_35 = arith.constant 0 : index
    %c0_36 = arith.constant 0 : index
    %83 = vector.load %arg4[%c0_35, %c0_36] : memref<288x32xbf16, #tpu.memory_space<vmem>>, vector<288x32xbf16>
    %cst_37 = arith.constant dense<0.000000e+00> : vector<128x32xf32>
    %84 = tpu.matmul %82, %83, %cst_37 {dimension_numbers = #tpu.dot_dimension_numbers<[1], [0], [0], [1], [0, 0, 1, 1], [], []>} : vector<128x288xbf16>, vector<288x32xbf16>, vector<128x32xf32> -> vector<128x32xf32>
    %c0_38 = arith.constant 0 : index
    %c0_39 = arith.constant 0 : index
    %85 = vector.load %arg6[%c0_38, %c0_39] : memref<1x32xf32, #tpu.memory_space<vmem>>, vector<1x32xf32>
    %86 = vector.broadcast %85 : vector<1x32xf32> to vector<128x32xf32>
    %87 = arith.addf %84, %86 : vector<128x32xf32>
    %cst_40 = arith.constant 0.000000e+00 : f32
    %88 = vector.broadcast %cst_40 : f32 to vector<128x32xf32>
    %89 = arith.maximumf %87, %88 : vector<128x32xf32>
    %90 = vector.extract_strided_slice %89 {offsets = [0, 0], sizes = [64, 32], strides = [1, 1]} : vector<128x32xf32> to vector<64x32xf32>
    %c0_41 = arith.constant 0 : index
    %c0_42 = arith.constant 0 : index
    %c0_43 = arith.constant 0 : index
    %91 = vector.load %arg7[%c0_41, %c0_42, %c0_43] : memref<2x64x32xf32, #tpu.memory_space<vmem>>, vector<1x64x32xf32>
    %92 = vector.shape_cast %91 : vector<1x64x32xf32> to vector<64x32xf32>
    %93 = vector.shape_cast %90 : vector<64x32xf32> to vector<1x64x32xf32>
    tpu.vector_store %arg7[%c0_41, %c0_42, %c0_43], %93 {strides = array<i32>} : memref<2x64x32xf32, #tpu.memory_space<vmem>>, vector<1x64x32xf32>,
    %94 = vector.extract_strided_slice %89 {offsets = [64, 0], sizes = [64, 32], strides = [1, 1]} : vector<128x32xf32> to vector<64x32xf32>
    %c1_44 = arith.constant 1 : index
    %c0_45 = arith.constant 0 : index
    %c0_46 = arith.constant 0 : index
    %95 = vector.load %arg7[%c1_44, %c0_45, %c0_46] : memref<2x64x32xf32, #tpu.memory_space<vmem>>, vector<1x64x32xf32>
    %96 = vector.shape_cast %95 : vector<1x64x32xf32> to vector<64x32xf32>
    %97 = vector.shape_cast %94 : vector<64x32xf32> to vector<1x64x32xf32>
    tpu.vector_store %arg7[%c1_44, %c0_45, %c0_46], %97 {strides = array<i32>} : memref<2x64x32xf32, #tpu.memory_space<vmem>>, vector<1x64x32xf32>,
    return
  }
  func.func @transform_0(%arg0: i32) -> (i32, i32, i32) {
    %c0_i32 = arith.constant 0 : i32
    %c0_i32_0 = arith.constant 0 : i32
    %c0_i32_1 = arith.constant 0 : i32
    return %arg0, %c0_i32, %c0_i32_0 : i32, i32, i32
  }
  func.func @transform_1(%arg0: i32) -> (i32, i32, i32) {
    %c0_i32 = arith.constant 0 : i32
    %c0_i32_0 = arith.constant 0 : i32
    %c0_i32_1 = arith.constant 0 : i32
    return %arg0, %c0_i32, %c0_i32_0 : i32, i32, i32
  }
  func.func @transform_2(%arg0: i32) -> (i32, i32) {
    %c0_i32 = arith.constant 0 : i32
    %c0_i32_0 = arith.constant 0 : i32
    %c0_i32_1 = arith.constant 0 : i32
    return %c0_i32, %c0_i32_0 : i32, i32
  }
  func.func @transform_3(%arg0: i32) -> (i32, i32) {
    %c0_i32 = arith.constant 0 : i32
    %c0_i32_0 = arith.constant 0 : i32
    %c0_i32_1 = arith.constant 0 : i32
    return %c0_i32, %c0_i32_0 : i32, i32
  }
  func.func @transform_4(%arg0: i32) -> (i32, i32) {
    %c0_i32 = arith.constant 0 : i32
    %c0_i32_0 = arith.constant 0 : i32
    %c0_i32_1 = arith.constant 0 : i32
    return %c0_i32, %c0_i32_0 : i32, i32
  }
  func.func @transform_5(%arg0: i32) -> (i32, i32) {
    %c0_i32 = arith.constant 0 : i32
    %c0_i32_0 = arith.constant 0 : i32
    %c0_i32_1 = arith.constant 0 : i32
    return %c0_i32, %c0_i32_0 : i32, i32
  }
  func.func @transform_6(%arg0: i32) -> (i32, i32, i32) {
    %c0_i32 = arith.constant 0 : i32
    %c0_i32_0 = arith.constant 0 : i32
    %c0_i32_1 = arith.constant 0 : i32
    return %arg0, %c0_i32, %c0_i32_0 : i32, i32, i32
  }
}

module attributes {stable_mosaic.version = 11 : i64} {
  func.func @kernel(%arg0: i32, %arg1: memref<2x256x32xf32, #tpu.memory_space<vmem>>, %arg2: memref<2x64x32xf32, #tpu.memory_space<vmem>>, %arg3: memref<256x64xbf16, #tpu.memory_space<vmem>>, %arg4: memref<288x32xbf16, #tpu.memory_space<vmem>>, %arg5: memref<256x2xf32, #tpu.memory_space<vmem>>, %arg6: memref<1x32xf32, #tpu.memory_space<vmem>>, %arg7: memref<2x256x32xf32, #tpu.memory_space<vmem>>) attributes {dimension_semantics = [#tpu.dimension_semantics<parallel>], iteration_bounds = array<i64: 1>, scalar_prefetch = 0 : i64, scratch_operands = 0 : i64, tpu.core_type = #tpu.core_type<tc>, window_params = [{transform_indices = @transform_0, window_bounds = array<i64: 2, 256, 32>}, {transform_indices = @transform_1, window_bounds = array<i64: 2, 64, 32>}, {pipeline_mode = #tpu.pipeline_mode<synchronous>, transform_indices = @transform_2, window_bounds = array<i64: 256, 64>}, {pipeline_mode = #tpu.pipeline_mode<synchronous>, transform_indices = @transform_3, window_bounds = array<i64: 288, 32>}, {pipeline_mode = #tpu.pipeline_mode<synchronous>, transform_indices = @transform_4, window_bounds = array<i64: 256, 2>}, {pipeline_mode = #tpu.pipeline_mode<synchronous>, transform_indices = @transform_5, window_bounds = array<i64: 1, 32>}, {transform_indices = @transform_6, window_bounds = array<i64: 2, 256, 32>}]} {
    %c0 = arith.constant 0 : index
    %c0_0 = arith.constant 0 : index
    %0 = vector.load %arg5[%c0, %c0_0] : memref<256x2xf32, #tpu.memory_space<vmem>>, vector<256x1xf32>
    %c0_1 = arith.constant 0 : index
    %c1 = arith.constant 1 : index
    %1 = vector.load %arg5[%c0_1, %c1] : memref<256x2xf32, #tpu.memory_space<vmem>>, vector<256x1xf32>
    %c0_2 = arith.constant 0 : index
    %c0_3 = arith.constant 0 : index
    %c0_4 = arith.constant 0 : index
    %2 = vector.load %arg1[%c0_2, %c0_3, %c0_4] : memref<2x256x32xf32, #tpu.memory_space<vmem>>, vector<1x256x32xf32>
    %3 = vector.shape_cast %2 : vector<1x256x32xf32> to vector<256x32xf32>
    %c0_5 = arith.constant 0 : index
    %c0_6 = arith.constant 0 : index
    %c0_7 = arith.constant 0 : index
    %4 = vector.load %arg2[%c0_5, %c0_6, %c0_7] : memref<2x64x32xf32, #tpu.memory_space<vmem>>, vector<1x64x32xf32>
    %5 = vector.shape_cast %4 : vector<1x64x32xf32> to vector<64x32xf32>
    %6 = arith.truncf %5 : vector<64x32xf32> to vector<64x32xbf16>
    %c0_8 = arith.constant 0 : index
    %c0_9 = arith.constant 0 : index
    %7 = vector.load %arg3[%c0_8, %c0_9] : memref<256x64xbf16, #tpu.memory_space<vmem>>, vector<256x64xbf16>
    %cst = arith.constant dense<0.000000e+00> : vector<256x32xf32>
    %8 = tpu.matmul %7, %6, %cst {dimension_numbers = #tpu.dot_dimension_numbers<[1], [0], [0], [1], [0, 0, 1, 1], [], []>} : vector<256x64xbf16>, vector<64x32xbf16>, vector<256x32xf32> -> vector<256x32xf32>
    %9 = arith.addf %3, %8 : vector<256x32xf32>
    %10 = arith.truncf %9 : vector<256x32xf32> to vector<256x32xbf16>
    %11 = vector.broadcast %0 : vector<256x1xf32> to vector<256x32xf32>
    %12 = arith.mulf %9, %11 : vector<256x32xf32>
    %13 = arith.truncf %12 : vector<256x32xf32> to vector<256x32xbf16>
    %14 = vector.broadcast %1 : vector<256x1xf32> to vector<256x32xf32>
    %15 = arith.mulf %9, %14 : vector<256x32xf32>
    %16 = arith.truncf %15 : vector<256x32xf32> to vector<256x32xbf16>
    %cst_10 = arith.constant 0.000000e+00 : bf16
    %17 = vector.broadcast %cst_10 : bf16 to vector<17x32xbf16>
    %18 = vector.extract_strided_slice %13 {offsets = [0, 0], sizes = [239, 32], strides = [1, 1]} : vector<256x32xbf16> to vector<239x32xbf16>
    %19 = tpu.concatenate %17, %18 in 0 : vector<17x32xbf16>, vector<239x32xbf16> -> vector<256x32xbf16>
    %cst_11 = arith.constant 0.000000e+00 : bf16
    %20 = vector.broadcast %cst_11 : bf16 to vector<16x32xbf16>
    %21 = vector.extract_strided_slice %10 {offsets = [0, 0], sizes = [240, 32], strides = [1, 1]} : vector<256x32xbf16> to vector<240x32xbf16>
    %22 = tpu.concatenate %20, %21 in 0 : vector<16x32xbf16>, vector<240x32xbf16> -> vector<256x32xbf16>
    %cst_12 = arith.constant 0.000000e+00 : bf16
    %23 = vector.broadcast %cst_12 : bf16 to vector<15x32xbf16>
    %24 = vector.extract_strided_slice %16 {offsets = [0, 0], sizes = [241, 32], strides = [1, 1]} : vector<256x32xbf16> to vector<241x32xbf16>
    %25 = tpu.concatenate %23, %24 in 0 : vector<15x32xbf16>, vector<241x32xbf16> -> vector<256x32xbf16>
    %cst_13 = arith.constant 0.000000e+00 : bf16
    %26 = vector.broadcast %cst_13 : bf16 to vector<1x32xbf16>
    %27 = vector.extract_strided_slice %13 {offsets = [0, 0], sizes = [255, 32], strides = [1, 1]} : vector<256x32xbf16> to vector<255x32xbf16>
    %28 = tpu.concatenate %26, %27 in 0 : vector<1x32xbf16>, vector<255x32xbf16> -> vector<256x32xbf16>
    %29 = vector.extract_strided_slice %16 {offsets = [1, 0], sizes = [255, 32], strides = [1, 1]} : vector<256x32xbf16> to vector<255x32xbf16>
    %cst_14 = arith.constant 0.000000e+00 : bf16
    %30 = vector.broadcast %cst_14 : bf16 to vector<1x32xbf16>
    %31 = tpu.concatenate %29, %30 in 0 : vector<255x32xbf16>, vector<1x32xbf16> -> vector<256x32xbf16>
    %32 = vector.extract_strided_slice %13 {offsets = [15, 0], sizes = [241, 32], strides = [1, 1]} : vector<256x32xbf16> to vector<241x32xbf16>
    %cst_15 = arith.constant 0.000000e+00 : bf16
    %33 = vector.broadcast %cst_15 : bf16 to vector<15x32xbf16>
    %34 = tpu.concatenate %32, %33 in 0 : vector<241x32xbf16>, vector<15x32xbf16> -> vector<256x32xbf16>
    %35 = vector.extract_strided_slice %10 {offsets = [16, 0], sizes = [240, 32], strides = [1, 1]} : vector<256x32xbf16> to vector<240x32xbf16>
    %cst_16 = arith.constant 0.000000e+00 : bf16
    %36 = vector.broadcast %cst_16 : bf16 to vector<16x32xbf16>
    %37 = tpu.concatenate %35, %36 in 0 : vector<240x32xbf16>, vector<16x32xbf16> -> vector<256x32xbf16>
    %38 = vector.extract_strided_slice %16 {offsets = [17, 0], sizes = [239, 32], strides = [1, 1]} : vector<256x32xbf16> to vector<239x32xbf16>
    %cst_17 = arith.constant 0.000000e+00 : bf16
    %39 = vector.broadcast %cst_17 : bf16 to vector<17x32xbf16>
    %40 = tpu.concatenate %38, %39 in 0 : vector<239x32xbf16>, vector<17x32xbf16> -> vector<256x32xbf16>
    %41 = tpu.concatenate %19, %22, %25, %28, %10, %31, %34, %37, %40 in 1 : vector<256x32xbf16>, vector<256x32xbf16>, vector<256x32xbf16>, vector<256x32xbf16>, vector<256x32xbf16>, vector<256x32xbf16>, vector<256x32xbf16>, vector<256x32xbf16>, vector<256x32xbf16> -> vector<256x288xbf16>
    %c1_18 = arith.constant 1 : index
    %c0_19 = arith.constant 0 : index
    %c0_20 = arith.constant 0 : index
    %42 = vector.load %arg1[%c1_18, %c0_19, %c0_20] : memref<2x256x32xf32, #tpu.memory_space<vmem>>, vector<1x256x32xf32>
    %43 = vector.shape_cast %42 : vector<1x256x32xf32> to vector<256x32xf32>
    %c1_21 = arith.constant 1 : index
    %c0_22 = arith.constant 0 : index
    %c0_23 = arith.constant 0 : index
    %44 = vector.load %arg2[%c1_21, %c0_22, %c0_23] : memref<2x64x32xf32, #tpu.memory_space<vmem>>, vector<1x64x32xf32>
    %45 = vector.shape_cast %44 : vector<1x64x32xf32> to vector<64x32xf32>
    %46 = arith.truncf %45 : vector<64x32xf32> to vector<64x32xbf16>
    %c0_24 = arith.constant 0 : index
    %c0_25 = arith.constant 0 : index
    %47 = vector.load %arg3[%c0_24, %c0_25] : memref<256x64xbf16, #tpu.memory_space<vmem>>, vector<256x64xbf16>
    %cst_26 = arith.constant dense<0.000000e+00> : vector<256x32xf32>
    %48 = tpu.matmul %47, %46, %cst_26 {dimension_numbers = #tpu.dot_dimension_numbers<[1], [0], [0], [1], [0, 0, 1, 1], [], []>} : vector<256x64xbf16>, vector<64x32xbf16>, vector<256x32xf32> -> vector<256x32xf32>
    %49 = arith.addf %43, %48 : vector<256x32xf32>
    %50 = arith.truncf %49 : vector<256x32xf32> to vector<256x32xbf16>
    %51 = vector.broadcast %0 : vector<256x1xf32> to vector<256x32xf32>
    %52 = arith.mulf %49, %51 : vector<256x32xf32>
    %53 = arith.truncf %52 : vector<256x32xf32> to vector<256x32xbf16>
    %54 = vector.broadcast %1 : vector<256x1xf32> to vector<256x32xf32>
    %55 = arith.mulf %49, %54 : vector<256x32xf32>
    %56 = arith.truncf %55 : vector<256x32xf32> to vector<256x32xbf16>
    %cst_27 = arith.constant 0.000000e+00 : bf16
    %57 = vector.broadcast %cst_27 : bf16 to vector<17x32xbf16>
    %58 = vector.extract_strided_slice %53 {offsets = [0, 0], sizes = [239, 32], strides = [1, 1]} : vector<256x32xbf16> to vector<239x32xbf16>
    %59 = tpu.concatenate %57, %58 in 0 : vector<17x32xbf16>, vector<239x32xbf16> -> vector<256x32xbf16>
    %cst_28 = arith.constant 0.000000e+00 : bf16
    %60 = vector.broadcast %cst_28 : bf16 to vector<16x32xbf16>
    %61 = vector.extract_strided_slice %50 {offsets = [0, 0], sizes = [240, 32], strides = [1, 1]} : vector<256x32xbf16> to vector<240x32xbf16>
    %62 = tpu.concatenate %60, %61 in 0 : vector<16x32xbf16>, vector<240x32xbf16> -> vector<256x32xbf16>
    %cst_29 = arith.constant 0.000000e+00 : bf16
    %63 = vector.broadcast %cst_29 : bf16 to vector<15x32xbf16>
    %64 = vector.extract_strided_slice %56 {offsets = [0, 0], sizes = [241, 32], strides = [1, 1]} : vector<256x32xbf16> to vector<241x32xbf16>
    %65 = tpu.concatenate %63, %64 in 0 : vector<15x32xbf16>, vector<241x32xbf16> -> vector<256x32xbf16>
    %cst_30 = arith.constant 0.000000e+00 : bf16
    %66 = vector.broadcast %cst_30 : bf16 to vector<1x32xbf16>
    %67 = vector.extract_strided_slice %53 {offsets = [0, 0], sizes = [255, 32], strides = [1, 1]} : vector<256x32xbf16> to vector<255x32xbf16>
    %68 = tpu.concatenate %66, %67 in 0 : vector<1x32xbf16>, vector<255x32xbf16> -> vector<256x32xbf16>
    %69 = vector.extract_strided_slice %56 {offsets = [1, 0], sizes = [255, 32], strides = [1, 1]} : vector<256x32xbf16> to vector<255x32xbf16>
    %cst_31 = arith.constant 0.000000e+00 : bf16
    %70 = vector.broadcast %cst_31 : bf16 to vector<1x32xbf16>
    %71 = tpu.concatenate %69, %70 in 0 : vector<255x32xbf16>, vector<1x32xbf16> -> vector<256x32xbf16>
    %72 = vector.extract_strided_slice %53 {offsets = [15, 0], sizes = [241, 32], strides = [1, 1]} : vector<256x32xbf16> to vector<241x32xbf16>
    %cst_32 = arith.constant 0.000000e+00 : bf16
    %73 = vector.broadcast %cst_32 : bf16 to vector<15x32xbf16>
    %74 = tpu.concatenate %72, %73 in 0 : vector<241x32xbf16>, vector<15x32xbf16> -> vector<256x32xbf16>
    %75 = vector.extract_strided_slice %50 {offsets = [16, 0], sizes = [240, 32], strides = [1, 1]} : vector<256x32xbf16> to vector<240x32xbf16>
    %cst_33 = arith.constant 0.000000e+00 : bf16
    %76 = vector.broadcast %cst_33 : bf16 to vector<16x32xbf16>
    %77 = tpu.concatenate %75, %76 in 0 : vector<240x32xbf16>, vector<16x32xbf16> -> vector<256x32xbf16>
    %78 = vector.extract_strided_slice %56 {offsets = [17, 0], sizes = [239, 32], strides = [1, 1]} : vector<256x32xbf16> to vector<239x32xbf16>
    %cst_34 = arith.constant 0.000000e+00 : bf16
    %79 = vector.broadcast %cst_34 : bf16 to vector<17x32xbf16>
    %80 = tpu.concatenate %78, %79 in 0 : vector<239x32xbf16>, vector<17x32xbf16> -> vector<256x32xbf16>
    %81 = tpu.concatenate %59, %62, %65, %68, %50, %71, %74, %77, %80 in 1 : vector<256x32xbf16>, vector<256x32xbf16>, vector<256x32xbf16>, vector<256x32xbf16>, vector<256x32xbf16>, vector<256x32xbf16>, vector<256x32xbf16>, vector<256x32xbf16>, vector<256x32xbf16> -> vector<256x288xbf16>
    %82 = tpu.concatenate %41, %81 in 0 : vector<256x288xbf16>, vector<256x288xbf16> -> vector<512x288xbf16>
    %c0_35 = arith.constant 0 : index
    %c0_36 = arith.constant 0 : index
    %83 = vector.load %arg4[%c0_35, %c0_36] : memref<288x32xbf16, #tpu.memory_space<vmem>>, vector<288x32xbf16>
    %cst_37 = arith.constant dense<0.000000e+00> : vector<512x32xf32>
    %84 = tpu.matmul %82, %83, %cst_37 {dimension_numbers = #tpu.dot_dimension_numbers<[1], [0], [0], [1], [0, 0, 1, 1], [], []>} : vector<512x288xbf16>, vector<288x32xbf16>, vector<512x32xf32> -> vector<512x32xf32>
    %c0_38 = arith.constant 0 : index
    %c0_39 = arith.constant 0 : index
    %85 = vector.load %arg6[%c0_38, %c0_39] : memref<1x32xf32, #tpu.memory_space<vmem>>, vector<1x32xf32>
    %86 = vector.broadcast %85 : vector<1x32xf32> to vector<512x32xf32>
    %87 = arith.addf %84, %86 : vector<512x32xf32>
    %cst_40 = arith.constant 0.000000e+00 : f32
    %88 = vector.broadcast %cst_40 : f32 to vector<512x32xf32>
    %89 = arith.maximumf %87, %88 : vector<512x32xf32>
    %90 = vector.extract_strided_slice %89 {offsets = [0, 0], sizes = [256, 32], strides = [1, 1]} : vector<512x32xf32> to vector<256x32xf32>
    %c0_41 = arith.constant 0 : index
    %c0_42 = arith.constant 0 : index
    %c0_43 = arith.constant 0 : index
    %91 = vector.load %arg7[%c0_41, %c0_42, %c0_43] : memref<2x256x32xf32, #tpu.memory_space<vmem>>, vector<1x256x32xf32>
    %92 = vector.shape_cast %91 : vector<1x256x32xf32> to vector<256x32xf32>
    %93 = vector.shape_cast %90 : vector<256x32xf32> to vector<1x256x32xf32>
    tpu.vector_store %arg7[%c0_41, %c0_42, %c0_43], %93 {strides = array<i32>} : memref<2x256x32xf32, #tpu.memory_space<vmem>>, vector<1x256x32xf32>,
    %94 = vector.extract_strided_slice %89 {offsets = [256, 0], sizes = [256, 32], strides = [1, 1]} : vector<512x32xf32> to vector<256x32xf32>
    %c1_44 = arith.constant 1 : index
    %c0_45 = arith.constant 0 : index
    %c0_46 = arith.constant 0 : index
    %95 = vector.load %arg7[%c1_44, %c0_45, %c0_46] : memref<2x256x32xf32, #tpu.memory_space<vmem>>, vector<1x256x32xf32>
    %96 = vector.shape_cast %95 : vector<1x256x32xf32> to vector<256x32xf32>
    %97 = vector.shape_cast %94 : vector<256x32xf32> to vector<1x256x32xf32>
    tpu.vector_store %arg7[%c1_44, %c0_45, %c0_46], %97 {strides = array<i32>} : memref<2x256x32xf32, #tpu.memory_space<vmem>>, vector<1x256x32xf32>,
    return
  }
  func.func @transform_0(%arg0: i32) -> (i32, i32, i32) {
    %c0_i32 = arith.constant 0 : i32
    %c0_i32_0 = arith.constant 0 : i32
    %c0_i32_1 = arith.constant 0 : i32
    return %arg0, %c0_i32, %c0_i32_0 : i32, i32, i32
  }
  func.func @transform_1(%arg0: i32) -> (i32, i32, i32) {
    %c0_i32 = arith.constant 0 : i32
    %c0_i32_0 = arith.constant 0 : i32
    %c0_i32_1 = arith.constant 0 : i32
    return %arg0, %c0_i32, %c0_i32_0 : i32, i32, i32
  }
  func.func @transform_2(%arg0: i32) -> (i32, i32) {
    %c0_i32 = arith.constant 0 : i32
    %c0_i32_0 = arith.constant 0 : i32
    %c0_i32_1 = arith.constant 0 : i32
    return %c0_i32, %c0_i32_0 : i32, i32
  }
  func.func @transform_3(%arg0: i32) -> (i32, i32) {
    %c0_i32 = arith.constant 0 : i32
    %c0_i32_0 = arith.constant 0 : i32
    %c0_i32_1 = arith.constant 0 : i32
    return %c0_i32, %c0_i32_0 : i32, i32
  }
  func.func @transform_4(%arg0: i32) -> (i32, i32) {
    %c0_i32 = arith.constant 0 : i32
    %c0_i32_0 = arith.constant 0 : i32
    %c0_i32_1 = arith.constant 0 : i32
    return %c0_i32, %c0_i32_0 : i32, i32
  }
  func.func @transform_5(%arg0: i32) -> (i32, i32) {
    %c0_i32 = arith.constant 0 : i32
    %c0_i32_0 = arith.constant 0 : i32
    %c0_i32_1 = arith.constant 0 : i32
    return %c0_i32, %c0_i32_0 : i32, i32
  }
  func.func @transform_6(%arg0: i32) -> (i32, i32, i32) {
    %c0_i32 = arith.constant 0 : i32
    %c0_i32_0 = arith.constant 0 : i32
    %c0_i32_1 = arith.constant 0 : i32
    return %arg0, %c0_i32, %c0_i32_0 : i32, i32, i32
  }
}

</mosaic_0001>

<llo_original>
// kernel: a_call__.8
$region0: #{a_call__.8}
  #allocation0 [shape = 'u32[]', space=smem, size = 0x4, offset = 0x4, fixed_abs, tag = 'smem constant byte address 0x4 - core index']
  #allocation1 [shape = 'u32[144,128]{1,0:T(1,128)}', space=vmem, size = 0x12000, scoped, tag = 'internal scratch']
  %s0 = inlined_call_operand.vmem [shape: bf16[2,256,3], index: 0, kind: input, shape index: {}]
  %s1 = inlined_call_operand.vmem [shape: bf16[3,40], index: 1, kind: input, shape index: {}]
  %s2 = inlined_call_operand.vmem [shape: f32[1,40], index: 2, kind: input, shape index: {}]
  %s3 = inlined_call_operand.vmem [shape: bf16[2,256,8], index: 3, kind: output, shape index: {0}]
  %s4 = inlined_call_operand.vmem [shape: f32[2,256,32], index: 4, kind: output, shape index: {1}]
  %5 = xla_tuple %s3, %s4
  %s6 = sld [smem:[#allocation0]]
  $region30: #{a_call__.8} parent=0
    _
  %s8 = ssub.s32 1, %s6
  %s9 = scalar_select 0, %s8, %s6
  // Predicated region
  $region2: #{a_call__.8} parent=0 // pred_check
    _
  $region3: #{a_call__.8} parent=0 // pred_check_branch
    %11 = sbr.rel (0) target = $region5
  $region4: #{a_call__.8} parent=0 // pred_region
    _
  $region5: #{a_call__.8} parent=0 // pred_fallthru
    _
  // Predicated region
  $region6: #{a_call__.8} parent=0 // pred_check
    _
  $region7: #{a_call__.8} parent=0 // pred_check_branch
    %13 = sbr.rel (0) target = $region9
  $region8: #{a_call__.8} parent=0 // pred_region
    _
  $region9: #{a_call__.8} parent=0 // pred_fallthru
    _
  // Predicated region
  $region10: #{a_call__.8} parent=0 // pred_check
    _
  $region11: #{a_call__.8} parent=0 // pred_check_branch
    %15 = sbr.rel (0) target = $region13
  $region12: #{a_call__.8} parent=0 // pred_region
    _
  $region13: #{a_call__.8} parent=0 // pred_fallthru
    _
  %v17 = vld [vmem:[%s0] sm:$0xf]
  %v18 = vld [vmem:[%s0 + $0x4] sm:$0xf]
  %v19 = vld [vmem:[%s0 + $0x8] sm:$0xf]
  %v20 = vld [vmem:[%s0 + $0xc] sm:$0xf]
  %v21 = vld [vmem:[%s0 + $0x10] sm:$0xf]
  %v22 = vld [vmem:[%s0 + $0x14] sm:$0xf]
  %v23 = vld [vmem:[%s0 + $0x18] sm:$0xf]
  %v24 = vld [vmem:[%s0 + $0x1c] sm:$0xf]
  %v25 = vld [vmem:[%s0 + $0x20] sm:$0xf]
  %v26 = vld [vmem:[%s0 + $0x24] sm:$0xf]
  %v27 = vld [vmem:[%s0 + $0x28] sm:$0xf]
  %v28 = vld [vmem:[%s0 + $0x2c] sm:$0xf]
  %v29 = vld [vmem:[%s0 + $0x30] sm:$0xf]
  %v30 = vld [vmem:[%s0 + $0x34] sm:$0xf]
  %v31 = vld [vmem:[%s0 + $0x38] sm:$0xf]
  %v32 = vld [vmem:[%s0 + $0x3c] sm:$0xf]
  %v33 = vld [vmem:[%s0 + $0x40] sm:$0xf]
  %v34 = vld [vmem:[%s0 + $0x44] sm:$0xf]
  %v35 = vld [vmem:[%s0 + $0x48] sm:$0xf]
  %v36 = vld [vmem:[%s0 + $0x4c] sm:$0xf]
  %v37 = vld [vmem:[%s0 + $0x50] sm:$0xf]
  %v38 = vld [vmem:[%s0 + $0x54] sm:$0xf]
  %v39 = vld [vmem:[%s0 + $0x58] sm:$0xf]
  %v40 = vld [vmem:[%s0 + $0x5c] sm:$0xf]
  %v41 = vld [vmem:[%s0 + $0x60] sm:$0xf]
  %v42 = vld [vmem:[%s0 + $0x64] sm:$0xf]
  %v43 = vld [vmem:[%s0 + $0x68] sm:$0xf]
  %v44 = vld [vmem:[%s0 + $0x6c] sm:$0xf]
  %v45 = vld [vmem:[%s0 + $0x70] sm:$0xf]
  %v46 = vld [vmem:[%s0 + $0x74] sm:$0xf]
  %v47 = vld [vmem:[%s0 + $0x78] sm:$0xf]
  %v48 = vld [vmem:[%s0 + $0x7c] sm:$0xf]
  %s49 = scalar_lea.vmem %s0, 128
  %v50 = vld [vmem:[%s49] sm:$0xf]
  %v51 = vld [vmem:[%s49 + $0x4] sm:$0xf]
  %v52 = vld [vmem:[%s49 + $0x8] sm:$0xf]
  %v53 = vld [vmem:[%s49 + $0xc] sm:$0xf]
  %v54 = vld [vmem:[%s49 + $0x10] sm:$0xf]
  %v55 = vld [vmem:[%s49 + $0x14] sm:$0xf]
  %v56 = vld [vmem:[%s49 + $0x18] sm:$0xf]
  %v57 = vld [vmem:[%s49 + $0x1c] sm:$0xf]
  %v58 = vld [vmem:[%s49 + $0x20] sm:$0xf]
  %v59 = vld [vmem:[%s49 + $0x24] sm:$0xf]
  %v60 = vld [vmem:[%s49 + $0x28] sm:$0xf]
  %v61 = vld [vmem:[%s49 + $0x2c] sm:$0xf]
  %v62 = vld [vmem:[%s49 + $0x30] sm:$0xf]
  %v63 = vld [vmem:[%s49 + $0x34] sm:$0xf]
  %v64 = vld [vmem:[%s49 + $0x38] sm:$0xf]
  %v65 = vld [vmem:[%s49 + $0x3c] sm:$0xf]
  %v66 = vld [vmem:[%s49 + $0x40] sm:$0xf]
  %v67 = vld [vmem:[%s49 + $0x44] sm:$0xf]
  %v68 = vld [vmem:[%s49 + $0x48] sm:$0xf]
  %v69 = vld [vmem:[%s49 + $0x4c] sm:$0xf]
  %v70 = vld [vmem:[%s49 + $0x50] sm:$0xf]
  %v71 = vld [vmem:[%s49 + $0x54] sm:$0xf]
  %v72 = vld [vmem:[%s49 + $0x58] sm:$0xf]
  %v73 = vld [vmem:[%s49 + $0x5c] sm:$0xf]
  %v74 = vld [vmem:[%s49 + $0x60] sm:$0xf]
  %v75 = vld [vmem:[%s49 + $0x64] sm:$0xf]
  %v76 = vld [vmem:[%s49 + $0x68] sm:$0xf]
  %v77 = vld [vmem:[%s49 + $0x6c] sm:$0xf]
  %v78 = vld [vmem:[%s49 + $0x70] sm:$0xf]
  %v79 = vld [vmem:[%s49 + $0x74] sm:$0xf]
  %v80 = vld [vmem:[%s49 + $0x78] sm:$0xf]
  %v81 = vld [vmem:[%s49 + $0x7c] sm:$0xf]
  %v114 = vunpack.c.l.b16 %v17
  %v115 = vunpack.c.l.b16 %v18
  %v116 = vunpack.c.l.b16 %v19
  %v117 = vunpack.c.l.b16 %v20
  %v118 = vunpack.c.l.b16 %v21
  %v119 = vunpack.c.l.b16 %v22
  %v120 = vunpack.c.l.b16 %v23
  %v121 = vunpack.c.l.b16 %v24
  %v122 = vunpack.c.l.b16 %v25
  %v123 = vunpack.c.l.b16 %v26
  %v124 = vunpack.c.l.b16 %v27
  %v125 = vunpack.c.l.b16 %v28
  %v126 = vunpack.c.l.b16 %v29
  %v127 = vunpack.c.l.b16 %v30
  %v128 = vunpack.c.l.b16 %v31
  %v129 = vunpack.c.l.b16 %v32
  %v130 = vunpack.c.l.b16 %v33
  %v131 = vunpack.c.l.b16 %v34
  %v132 = vunpack.c.l.b16 %v35
  %v133 = vunpack.c.l.b16 %v36
  %v134 = vunpack.c.l.b16 %v37
  %v135 = vunpack.c.l.b16 %v38
  %v136 = vunpack.c.l.b16 %v39
  %v137 = vunpack.c.l.b16 %v40
  %v138 = vunpack.c.l.b16 %v41
  %v139 = vunpack.c.l.b16 %v42
  %v140 = vunpack.c.l.b16 %v43
  %v141 = vunpack.c.l.b16 %v44
  %v142 = vunpack.c.l.b16 %v45
  %v143 = vunpack.c.l.b16 %v46
  %v144 = vunpack.c.l.b16 %v47
  %v145 = vunpack.c.l.b16 %v48
  %v146 = vpack.c.b16 %v115, %v114
  %v147 = vpack.c.b16 %v117, %v116
  %v148 = vpack.c.b16 %v119, %v118
  %v149 = vpack.c.b16 %v121, %v120
  %v150 = vpack.c.b16 %v123, %v122
  %v151 = vpack.c.b16 %v125, %v124
  %v152 = vpack.c.b16 %v127, %v126
  %v153 = vpack.c.b16 %v129, %v128
  %v154 = vpack.c.b16 %v131, %v130
  %v155 = vpack.c.b16 %v133, %v132
  %v156 = vpack.c.b16 %v135, %v134
  %v157 = vpack.c.b16 %v137, %v136
  %v158 = vpack.c.b16 %v139, %v138
  %v159 = vpack.c.b16 %v141, %v140
  %v160 = vpack.c.b16 %v143, %v142
  %v161 = vpack.c.b16 %v145, %v144
  %v194 = vunpack.c.l.b16 %v50
  %v195 = vunpack.c.l.b16 %v51
  %v196 = vunpack.c.l.b16 %v52
  %v197 = vunpack.c.l.b16 %v53
  %v198 = vunpack.c.l.b16 %v54
  %v199 = vunpack.c.l.b16 %v55
  %v200 = vunpack.c.l.b16 %v56
  %v201 = vunpack.c.l.b16 %v57
  %v202 = vunpack.c.l.b16 %v58
  %v203 = vunpack.c.l.b16 %v59
  %v204 = vunpack.c.l.b16 %v60
  %v205 = vunpack.c.l.b16 %v61
  %v206 = vunpack.c.l.b16 %v62
  %v207 = vunpack.c.l.b16 %v63
  %v208 = vunpack.c.l.b16 %v64
  %v209 = vunpack.c.l.b16 %v65
  %v210 = vunpack.c.l.b16 %v66
  %v211 = vunpack.c.l.b16 %v67
  %v212 = vunpack.c.l.b16 %v68
  %v213 = vunpack.c.l.b16 %v69
  %v214 = vunpack.c.l.b16 %v70
  %v215 = vunpack.c.l.b16 %v71
  %v216 = vunpack.c.l.b16 %v72
  %v217 = vunpack.c.l.b16 %v73
  %v218 = vunpack.c.l.b16 %v74
  %v219 = vunpack.c.l.b16 %v75
  %v220 = vunpack.c.l.b16 %v76
  %v221 = vunpack.c.l.b16 %v77
  %v222 = vunpack.c.l.b16 %v78
  %v223 = vunpack.c.l.b16 %v79
  %v224 = vunpack.c.l.b16 %v80
  %v225 = vunpack.c.l.b16 %v81
  %v226 = vpack.c.b16 %v195, %v194
  %v227 = vpack.c.b16 %v197, %v196
  %v228 = vpack.c.b16 %v199, %v198
  %v229 = vpack.c.b16 %v201, %v200
  %v230 = vpack.c.b16 %v203, %v202
  %v231 = vpack.c.b16 %v205, %v204
  %v232 = vpack.c.b16 %v207, %v206
  %v233 = vpack.c.b16 %v209, %v208
  %v234 = vpack.c.b16 %v211, %v210
  %v235 = vpack.c.b16 %v213, %v212
  %v236 = vpack.c.b16 %v215, %v214
  %v237 = vpack.c.b16 %v217, %v216
  %v238 = vpack.c.b16 %v219, %v218
  %v239 = vpack.c.b16 %v221, %v220
  %v240 = vpack.c.b16 %v223, %v222
  %v241 = vpack.c.b16 %v225, %v224
  %v242 = vld [vmem:[%s1] sm:$0x3]
  %v243 = vld [vmem:[%s2] sm:$0x1]
  %v245 = vlaneseq
  %v246 = vshrl.u32 %v245, 7
  %v247 = vsub.s32 0, %v246
  %v248 = vrot.slane %v243, %v247
  %vm250 = vcmask 23552
  %v252 = vsel %vm250, %v146, 0
  %v255 = vsel %vm250, %v147, 0
  %v258 = vsel %vm250, %v148, 0
  %v261 = vsel %vm250, %v149, 0
  %v264 = vsel %vm250, %v150, 0
  %v267 = vsel %vm250, %v151, 0
  %v270 = vsel %vm250, %v152, 0
  %v273 = vsel %vm250, %v153, 0
  %v276 = vsel %vm250, %v154, 0
  %v279 = vsel %vm250, %v155, 0
  %v282 = vsel %vm250, %v156, 0
  %v285 = vsel %vm250, %v157, 0
  %v288 = vsel %vm250, %v158, 0
  %v291 = vsel %vm250, %v159, 0
  %v294 = vsel %vm250, %v160, 0
  %v297 = vsel %vm250, %v161, 0
  %v300 = vsel %vm250, %v226, 0
  %v303 = vsel %vm250, %v227, 0
  %v306 = vsel %vm250, %v228, 0
  %v309 = vsel %vm250, %v229, 0
  %v312 = vsel %vm250, %v230, 0
  %v315 = vsel %vm250, %v231, 0
  %v318 = vsel %vm250, %v232, 0
  %v321 = vsel %vm250, %v233, 0
  %v324 = vsel %vm250, %v234, 0
  %v327 = vsel %vm250, %v235, 0
  %v330 = vsel %vm250, %v236, 0
  %v333 = vsel %vm250, %v237, 0
  %v336 = vsel %vm250, %v238, 0
  %v339 = vsel %vm250, %v239, 0
  %v342 = vsel %vm250, %v240, 0
  %v345 = vsel %vm250, %v241, 0
  %vm347 = vcmask 1040384
  %vm348 = vcmask 1041408
  %v349 = vsel %vm347, 4294967295, 65535
  %v350 = vsel %vm348, %v349, 0
  %v352 = vand.u32 %v242, %v350
  %354 = vmatprep.subr.bf16.mxu0 0
  %355 = vmatpush1.bf16.msra.mxu0 0
  %356 = vmatprep.subr.bf16.mxu0 0
  %357 = vmatpush1.bf16.msra.mxu0 0
  %358 = vmatprep.subr.bf16.mxu0 0
  %359 = vmatpush1.bf16.msra.mxu0 0
  %360 = vmatprep.subr.bf16.mxu0 0
  %361 = vmatpush1.bf16.msra.mxu0 0
  %362 = vmatprep.subr.bf16.mxu0 0
  %363 = vmatpush1.bf16.msra.mxu0 0
  %364 = vmatprep.subr.bf16.mxu0 0
  %365 = vmatpush1.bf16.msra.mxu0 0
  %366 = vmatprep.subr.bf16.mxu0 0
  %367 = vmatpush1.bf16.msra.mxu0 0
  %368 = vmatprep.subr.bf16.mxu0 0
  %369 = vmatpush1.bf16.msra.mxu0 %v352
  %370 = vmatprep.subr.bf16.mxu0 0
  %371 = vmatpush2.bf16.msra.mxu0 0
  %372 = vmatprep.subr.bf16.mxu0 0
  %373 = vmatpush2.bf16.msra.mxu0 0
  %374 = vmatprep.subr.bf16.mxu0 0
  %375 = vmatpush2.bf16.msra.mxu0 0
  %376 = vmatprep.subr.bf16.mxu0 0
  %377 = vmatpush2.bf16.msra.mxu0 0
  %378 = vmatprep.subr.bf16.mxu0 0
  %379 = vmatpush2.bf16.msra.mxu0 0
  %380 = vmatprep.subr.bf16.mxu0 0
  %381 = vmatpush2.bf16.msra.mxu0 0
  %382 = vmatprep.subr.bf16.mxu0 0
  %383 = vmatpush2.bf16.msra.mxu0 0
  %384 = vmatprep.subr.bf16.mxu0 0
  %385 = vmatpush2.bf16.msra.mxu0 0
  %386 = vmatprep.mubr.bf16.mxu0 0
  %387 = vmatmul.mubr.bf16.gmra.mxu0 %v252
  %v388 = vpop.f32.mrf.mxu0
  %v389 = vadd.f32 %v248, %v388
  %v390 = vpop.f32.mrf.mxu0
  %v391 = vpop.f32.mrf.mxu0
  %v392 = vadd.f32 %v248, %v391
  %v393 = vpop.f32.mrf.mxu0
  %394 = vmatprep.mubr.bf16.mxu0 0
  %395 = vmatmul.mubr.bf16.gmra.mxu0 %v255
  %v396 = vpop.f32.mrf.mxu0
  %v397 = vadd.f32 %v248, %v396
  %v398 = vpop.f32.mrf.mxu0
  %v399 = vpop.f32.mrf.mxu0
  %v400 = vadd.f32 %v248, %v399
  %v401 = vpop.f32.mrf.mxu0
  %402 = vmatprep.mubr.bf16.mxu0 0
  %403 = vmatmul.mubr.bf16.gmra.mxu0 %v258
  %v404 = vpop.f32.mrf.mxu0
  %v405 = vadd.f32 %v248, %v404
  %v406 = vpop.f32.mrf.mxu0
  %v407 = vpop.f32.mrf.mxu0
  %v408 = vadd.f32 %v248, %v407
  %v409 = vpop.f32.mrf.mxu0
  %410 = vmatprep.mubr.bf16.mxu0 0
  %411 = vmatmul.mubr.bf16.gmra.mxu0 %v261
  %v412 = vpop.f32.mrf.mxu0
  %v413 = vadd.f32 %v248, %v412
  %v414 = vpop.f32.mrf.mxu0
  %v415 = vpop.f32.mrf.mxu0
  %v416 = vadd.f32 %v248, %v415
  %v417 = vpop.f32.mrf.mxu0
  %418 = vmatprep.mubr.bf16.mxu0 0
  %419 = vmatmul.mubr.bf16.gmra.mxu0 %v264
  %v420 = vpop.f32.mrf.mxu0
  %v421 = vadd.f32 %v248, %v420
  %v422 = vpop.f32.mrf.mxu0
  %v423 = vpop.f32.mrf.mxu0
  %v424 = vadd.f32 %v248, %v423
  %v425 = vpop.f32.mrf.mxu0
  %426 = vmatprep.mubr.bf16.mxu0 0
  %427 = vmatmul.mubr.bf16.gmra.mxu0 %v267
  %v428 = vpop.f32.mrf.mxu0
  %v429 = vadd.f32 %v248, %v428
  %v430 = vpop.f32.mrf.mxu0
  %v431 = vpop.f32.mrf.mxu0
  %v432 = vadd.f32 %v248, %v431
  %v433 = vpop.f32.mrf.mxu0
  %434 = vmatprep.mubr.bf16.mxu0 0
  %435 = vmatmul.mubr.bf16.gmra.mxu0 %v270
  %v436 = vpop.f32.mrf.mxu0
  %v437 = vadd.f32 %v248, %v436
  %v438 = vpop.f32.mrf.mxu0
  %v439 = vpop.f32.mrf.mxu0
  %v440 = vadd.f32 %v248, %v439
  %v441 = vpop.f32.mrf.mxu0
  %442 = vmatprep.mubr.bf16.mxu0 0
  %443 = vmatmul.mubr.bf16.gmra.mxu0 %v273
  %v444 = vpop.f32.mrf.mxu0
  %v445 = vadd.f32 %v248, %v444
  %v446 = vpop.f32.mrf.mxu0
  %v447 = vpop.f32.mrf.mxu0
  %v448 = vadd.f32 %v248, %v447
  %v449 = vpop.f32.mrf.mxu0
  %450 = vmatprep.mubr.bf16.mxu0 0
  %451 = vmatmul.mubr.bf16.gmra.mxu0 %v276
  %v452 = vpop.f32.mrf.mxu0
  %v453 = vadd.f32 %v248, %v452
  %v454 = vpop.f32.mrf.mxu0
  %v455 = vpop.f32.mrf.mxu0
  %v456 = vadd.f32 %v248, %v455
  %v457 = vpop.f32.mrf.mxu0
  %458 = vmatprep.mubr.bf16.mxu0 0
  %459 = vmatmul.mubr.bf16.gmra.mxu0 %v279
  %v460 = vpop.f32.mrf.mxu0
  %v461 = vadd.f32 %v248, %v460
  %v462 = vpop.f32.mrf.mxu0
  %v463 = vpop.f32.mrf.mxu0
  %v464 = vadd.f32 %v248, %v463
  %v465 = vpop.f32.mrf.mxu0
  %466 = vmatprep.mubr.bf16.mxu0 0
  %467 = vmatmul.mubr.bf16.gmra.mxu0 %v282
  %v468 = vpop.f32.mrf.mxu0
  %v469 = vadd.f32 %v248, %v468
  %v470 = vpop.f32.mrf.mxu0
  %v471 = vpop.f32.mrf.mxu0
  %v472 = vadd.f32 %v248, %v471
  %v473 = vpop.f32.mrf.mxu0
  %474 = vmatprep.mubr.bf16.mxu0 0
  %475 = vmatmul.mubr.bf16.gmra.mxu0 %v285
  %v476 = vpop.f32.mrf.mxu0
  %v477 = vadd.f32 %v248, %v476
  %v478 = vpop.f32.mrf.mxu0
  %v479 = vpop.f32.mrf.mxu0
  %v480 = vadd.f32 %v248, %v479
  %v481 = vpop.f32.mrf.mxu0
  %482 = vmatprep.mubr.bf16.mxu0 0
  %483 = vmatmul.mubr.bf16.gmra.mxu0 %v288
  %v484 = vpop.f32.mrf.mxu0
  %v485 = vadd.f32 %v248, %v484
  %v486 = vpop.f32.mrf.mxu0
  %v487 = vpop.f32.mrf.mxu0
  %v488 = vadd.f32 %v248, %v487
  %v489 = vpop.f32.mrf.mxu0
  %490 = vmatprep.mubr.bf16.mxu0 0
  %491 = vmatmul.mubr.bf16.gmra.mxu0 %v291
  %v492 = vpop.f32.mrf.mxu0
  %v493 = vadd.f32 %v248, %v492
  %v494 = vpop.f32.mrf.mxu0
  %v495 = vpop.f32.mrf.mxu0
  %v496 = vadd.f32 %v248, %v495
  %v497 = vpop.f32.mrf.mxu0
  %498 = vmatprep.mubr.bf16.mxu0 0
  %499 = vmatmul.mubr.bf16.gmra.mxu0 %v294
  %v500 = vpop.f32.mrf.mxu0
  %v501 = vadd.f32 %v248, %v500
  %v502 = vpop.f32.mrf.mxu0
  %v503 = vpop.f32.mrf.mxu0
  %v504 = vadd.f32 %v248, %v503
  %v505 = vpop.f32.mrf.mxu0
  %506 = vmatprep.mubr.bf16.mxu0 0
  %507 = vmatmul.mubr.bf16.gmra.mxu0 %v297
  %v508 = vpop.f32.mrf.mxu0
  %v509 = vadd.f32 %v248, %v508
  %v510 = vpop.f32.mrf.mxu0
  %v511 = vpop.f32.mrf.mxu0
  %v512 = vadd.f32 %v248, %v511
  %v513 = vpop.f32.mrf.mxu0
  %514 = vmatprep.mubr.bf16.mxu0 0
  %515 = vmatmul.mubr.bf16.gmra.mxu0 %v300
  %v516 = vpop.f32.mrf.mxu0
  %v517 = vadd.f32 %v248, %v516
  %v518 = vpop.f32.mrf.mxu0
  %v519 = vpop.f32.mrf.mxu0
  %v520 = vadd.f32 %v248, %v519
  %v521 = vpop.f32.mrf.mxu0
  %522 = vmatprep.mubr.bf16.mxu0 0
  %523 = vmatmul.mubr.bf16.gmra.mxu0 %v303
  %v524 = vpop.f32.mrf.mxu0
  %v525 = vadd.f32 %v248, %v524
  %v526 = vpop.f32.mrf.mxu0
  %v527 = vpop.f32.mrf.mxu0
  %v528 = vadd.f32 %v248, %v527
  %v529 = vpop.f32.mrf.mxu0
  %530 = vmatprep.mubr.bf16.mxu0 0
  %531 = vmatmul.mubr.bf16.gmra.mxu0 %v306
  %v532 = vpop.f32.mrf.mxu0
  %v533 = vadd.f32 %v248, %v532
  %v534 = vpop.f32.mrf.mxu0
  %v535 = vpop.f32.mrf.mxu0
  %v536 = vadd.f32 %v248, %v535
  %v537 = vpop.f32.mrf.mxu0
  %538 = vmatprep.mubr.bf16.mxu0 0
  %539 = vmatmul.mubr.bf16.gmra.mxu0 %v309
  %v540 = vpop.f32.mrf.mxu0
  %v541 = vadd.f32 %v248, %v540
  %v542 = vpop.f32.mrf.mxu0
  %v543 = vpop.f32.mrf.mxu0
  %v544 = vadd.f32 %v248, %v543
  %v545 = vpop.f32.mrf.mxu0
  %546 = vmatprep.mubr.bf16.mxu0 0
  %547 = vmatmul.mubr.bf16.gmra.mxu0 %v312
  %v548 = vpop.f32.mrf.mxu0
  %v549 = vadd.f32 %v248, %v548
  %v550 = vpop.f32.mrf.mxu0
  %v551 = vpop.f32.mrf.mxu0
  %v552 = vadd.f32 %v248, %v551
  %v553 = vpop.f32.mrf.mxu0
  %554 = vmatprep.mubr.bf16.mxu0 0
  %555 = vmatmul.mubr.bf16.gmra.mxu0 %v315
  %v556 = vpop.f32.mrf.mxu0
  %v557 = vadd.f32 %v248, %v556
  %v558 = vpop.f32.mrf.mxu0
  %v559 = vpop.f32.mrf.mxu0
  %v560 = vadd.f32 %v248, %v559
  %v561 = vpop.f32.mrf.mxu0
  %562 = vmatprep.mubr.bf16.mxu0 0
  %563 = vmatmul.mubr.bf16.gmra.mxu0 %v318
  %v564 = vpop.f32.mrf.mxu0
  %v565 = vadd.f32 %v248, %v564
  %v566 = vpop.f32.mrf.mxu0
  %v567 = vpop.f32.mrf.mxu0
  %v568 = vadd.f32 %v248, %v567
  %v569 = vpop.f32.mrf.mxu0
  %570 = vmatprep.mubr.bf16.mxu0 0
  %571 = vmatmul.mubr.bf16.gmra.mxu0 %v321
  %v572 = vpop.f32.mrf.mxu0
  %v573 = vadd.f32 %v248, %v572
  %v574 = vpop.f32.mrf.mxu0
  %v575 = vpop.f32.mrf.mxu0
  %v576 = vadd.f32 %v248, %v575
  %v577 = vpop.f32.mrf.mxu0
  %578 = vmatprep.mubr.bf16.mxu0 0
  %579 = vmatmul.mubr.bf16.gmra.mxu0 %v324
  %v580 = vpop.f32.mrf.mxu0
  %v581 = vadd.f32 %v248, %v580
  %v582 = vpop.f32.mrf.mxu0
  %v583 = vpop.f32.mrf.mxu0
  %v584 = vadd.f32 %v248, %v583
  %v585 = vpop.f32.mrf.mxu0
  %586 = vmatprep.mubr.bf16.mxu0 0
  %587 = vmatmul.mubr.bf16.gmra.mxu0 %v327
  %v588 = vpop.f32.mrf.mxu0
  %v589 = vadd.f32 %v248, %v588
  %v590 = vpop.f32.mrf.mxu0
  %v591 = vpop.f32.mrf.mxu0
  %v592 = vadd.f32 %v248, %v591
  %v593 = vpop.f32.mrf.mxu0
  %594 = vmatprep.mubr.bf16.mxu0 0
  %595 = vmatmul.mubr.bf16.gmra.mxu0 %v330
  %v596 = vpop.f32.mrf.mxu0
  %v597 = vadd.f32 %v248, %v596
  %v598 = vpop.f32.mrf.mxu0
  %v599 = vpop.f32.mrf.mxu0
  %v600 = vadd.f32 %v248, %v599
  %v601 = vpop.f32.mrf.mxu0
  %602 = vmatprep.mubr.bf16.mxu0 0
  %603 = vmatmul.mubr.bf16.gmra.mxu0 %v333
  %v604 = vpop.f32.mrf.mxu0
  %v605 = vadd.f32 %v248, %v604
  %v606 = vpop.f32.mrf.mxu0
  %v607 = vpop.f32.mrf.mxu0
  %v608 = vadd.f32 %v248, %v607
  %v609 = vpop.f32.mrf.mxu0
  %610 = vmatprep.mubr.bf16.mxu0 0
  %611 = vmatmul.mubr.bf16.gmra.mxu0 %v336
  %v612 = vpop.f32.mrf.mxu0
  %v613 = vadd.f32 %v248, %v612
  %v614 = vpop.f32.mrf.mxu0
  %v615 = vpop.f32.mrf.mxu0
  %v616 = vadd.f32 %v248, %v615
  %v617 = vpop.f32.mrf.mxu0
  %618 = vmatprep.mubr.bf16.mxu0 0
  %619 = vmatmul.mubr.bf16.gmra.mxu0 %v339
  %v620 = vpop.f32.mrf.mxu0
  %v621 = vadd.f32 %v248, %v620
  %v622 = vpop.f32.mrf.mxu0
  %v623 = vpop.f32.mrf.mxu0
  %v624 = vadd.f32 %v248, %v623
  %v625 = vpop.f32.mrf.mxu0
  %626 = vmatprep.mubr.bf16.mxu0 0
  %627 = vmatmul.mubr.bf16.gmra.mxu0 %v342
  %v628 = vpop.f32.mrf.mxu0
  %v629 = vadd.f32 %v248, %v628
  %v630 = vpop.f32.mrf.mxu0
  %v631 = vpop.f32.mrf.mxu0
  %v632 = vadd.f32 %v248, %v631
  %v633 = vpop.f32.mrf.mxu0
  %634 = vmatprep.mubr.bf16.mxu0 0
  %635 = vmatmul.mubr.bf16.gmra.mxu0 %v345
  %v636 = vpop.f32.mrf.mxu0
  %v637 = vadd.f32 %v248, %v636
  %v638 = vpop.f32.mrf.mxu0
  %v639 = vpop.f32.mrf.mxu0
  %v640 = vadd.f32 %v248, %v639
  %v641 = vpop.f32.mrf.mxu0
  %642 = vdwg.mxu0
  %v643 = vpack.c.bf16 %v392, %v389
  %v644 = vpack.c.bf16 %v400, %v397
  %v645 = vpack.c.bf16 %v408, %v405
  %v646 = vpack.c.bf16 %v416, %v413
  %v647 = vpack.c.bf16 %v424, %v421
  %v648 = vpack.c.bf16 %v432, %v429
  %v649 = vpack.c.bf16 %v440, %v437
  %v650 = vpack.c.bf16 %v448, %v445
  %v651 = vpack.c.bf16 %v456, %v453
  %v652 = vpack.c.bf16 %v464, %v461
  %v653 = vpack.c.bf16 %v472, %v469
  %v654 = vpack.c.bf16 %v480, %v477
  %v655 = vpack.c.bf16 %v488, %v485
  %v656 = vpack.c.bf16 %v496, %v493
  %v657 = vpack.c.bf16 %v504, %v501
  %v658 = vpack.c.bf16 %v512, %v509
  %v675 = vunpack.c.l.b16 %v643
  %v676 = vunpack.c.h.b16 %v643
  %v677 = vunpack.c.l.b16 %v644
  %v678 = vunpack.c.h.b16 %v644
  %v679 = vunpack.c.l.b16 %v645
  %v680 = vunpack.c.h.b16 %v645
  %v681 = vunpack.c.l.b16 %v646
  %v682 = vunpack.c.h.b16 %v646
  %v683 = vunpack.c.l.b16 %v647
  %v684 = vunpack.c.h.b16 %v647
  %v685 = vunpack.c.l.b16 %v648
  %v686 = vunpack.c.h.b16 %v648
  %v687 = vunpack.c.l.b16 %v649
  %v688 = vunpack.c.h.b16 %v649
  %v689 = vunpack.c.l.b16 %v650
  %v690 = vunpack.c.h.b16 %v650
  %v691 = vunpack.c.l.b16 %v651
  %v692 = vunpack.c.h.b16 %v651
  %v693 = vunpack.c.l.b16 %v652
  %v694 = vunpack.c.h.b16 %v652
  %v695 = vunpack.c.l.b16 %v653
  %v696 = vunpack.c.h.b16 %v653
  %v697 = vunpack.c.l.b16 %v654
  %v698 = vunpack.c.h.b16 %v654
  %v699 = vunpack.c.l.b16 %v655
  %v700 = vunpack.c.h.b16 %v655
  %v701 = vunpack.c.l.b16 %v656
  %v702 = vunpack.c.h.b16 %v656
  %v703 = vunpack.c.l.b16 %v657
  %v704 = vunpack.c.h.b16 %v657
  %v705 = vunpack.c.l.b16 %v658
  %v706 = vunpack.c.h.b16 %v658
  %v707 = vpack.c.b16 %v675, %v675
  %v708 = vpack.c.b16 %v676, %v676
  %v709 = vpack.c.b16 %v677, %v677
  %v710 = vpack.c.b16 %v678, %v678
  %v711 = vpack.c.b16 %v679, %v679
  %v712 = vpack.c.b16 %v680, %v680
  %v713 = vpack.c.b16 %v681, %v681
  %v714 = vpack.c.b16 %v682, %v682
  %v715 = vpack.c.b16 %v683, %v683
  %v716 = vpack.c.b16 %v684, %v684
  %v717 = vpack.c.b16 %v685, %v685
  %v718 = vpack.c.b16 %v686, %v686
  %v719 = vpack.c.b16 %v687, %v687
  %v720 = vpack.c.b16 %v688, %v688
  %v721 = vpack.c.b16 %v689, %v689
  %v722 = vpack.c.b16 %v690, %v690
  %v723 = vpack.c.b16 %v691, %v691
  %v724 = vpack.c.b16 %v692, %v692
  %v725 = vpack.c.b16 %v693, %v693
  %v726 = vpack.c.b16 %v694, %v694
  %v727 = vpack.c.b16 %v695, %v695
  %v728 = vpack.c.b16 %v696, %v696
  %v729 = vpack.c.b16 %v697, %v697
  %v730 = vpack.c.b16 %v698, %v698
  %v731 = vpack.c.b16 %v699, %v699
  %v732 = vpack.c.b16 %v700, %v700
  %v733 = vpack.c.b16 %v701, %v701
  %v734 = vpack.c.b16 %v702, %v702
  %v735 = vpack.c.b16 %v703, %v703
  %v736 = vpack.c.b16 %v704, %v704
  %v737 = vpack.c.b16 %v705, %v705
  %v738 = vpack.c.b16 %v706, %v706
  %vm771 = vcmask 60416
  %772 = vst.msk [vmem:[%s3] sm:$0xf] %vm771, %v707
  %773 = vst.msk [vmem:[%s3 + $0x4] sm:$0xf] %vm771, %v708
  %774 = vst.msk [vmem:[%s3 + $0x8] sm:$0xf] %vm771, %v709
  %775 = vst.msk [vmem:[%s3 + $0xc] sm:$0xf] %vm771, %v710
  %776 = vst.msk [vmem:[%s3 + $0x10] sm:$0xf] %vm771, %v711
  %777 = vst.msk [vmem:[%s3 + $0x14] sm:$0xf] %vm771, %v712
  %778 = vst.msk [vmem:[%s3 + $0x18] sm:$0xf] %vm771, %v713
  %779 = vst.msk [vmem:[%s3 + $0x1c] sm:$0xf] %vm771, %v714
  %780 = vst.msk [vmem:[%s3 + $0x20] sm:$0xf] %vm771, %v715
  %781 = vst.msk [vmem:[%s3 + $0x24] sm:$0xf] %vm771, %v716
  %782 = vst.msk [vmem:[%s3 + $0x28] sm:$0xf] %vm771, %v717
  %783 = vst.msk [vmem:[%s3 + $0x2c] sm:$0xf] %vm771, %v718
  %784 = vst.msk [vmem:[%s3 + $0x30] sm:$0xf] %vm771, %v719
  %785 = vst.msk [vmem:[%s3 + $0x34] sm:$0xf] %vm771, %v720
  %786 = vst.msk [vmem:[%s3 + $0x38] sm:$0xf] %vm771, %v721
  %787 = vst.msk [vmem:[%s3 + $0x3c] sm:$0xf] %vm771, %v722
  %788 = vst.msk [vmem:[%s3 + $0x40] sm:$0xf] %vm771, %v723
  %789 = vst.msk [vmem:[%s3 + $0x44] sm:$0xf] %vm771, %v724
  %790 = vst.msk [vmem:[%s3 + $0x48] sm:$0xf] %vm771, %v725
  %791 = vst.msk [vmem:[%s3 + $0x4c] sm:$0xf] %vm771, %v726
  %792 = vst.msk [vmem:[%s3 + $0x50] sm:$0xf] %vm771, %v727
  %793 = vst.msk [vmem:[%s3 + $0x54] sm:$0xf] %vm771, %v728
  %794 = vst.msk [vmem:[%s3 + $0x58] sm:$0xf] %vm771, %v729
  %795 = vst.msk [vmem:[%s3 + $0x5c] sm:$0xf] %vm771, %v730
  %796 = vst.msk [vmem:[%s3 + $0x60] sm:$0xf] %vm771, %v731
  %797 = vst.msk [vmem:[%s3 + $0x64] sm:$0xf] %vm771, %v732
  %798 = vst.msk [vmem:[%s3 + $0x68] sm:$0xf] %vm771, %v733
  %799 = vst.msk [vmem:[%s3 + $0x6c] sm:$0xf] %vm771, %v734
  %800 = vst.msk [vmem:[%s3 + $0x70] sm:$0xf] %vm771, %v735
  %801 = vst.msk [vmem:[%s3 + $0x74] sm:$0xf] %vm771, %v736
  %802 = vst.msk [vmem:[%s3 + $0x78] sm:$0xf] %vm771, %v737
  %803 = vst.msk [vmem:[%s3 + $0x7c] sm:$0xf] %vm771, %v738
  %836 = vrot.lane.b32.xlu0 %v389, 120
  %v837 = vpop.permute.xlu0 %836
  %838 = vrot.lane.b32.xlu0 %v392, 120
  %v839 = vpop.permute.xlu0 %838
  %840 = vrot.lane.b32.xlu0 %v397, 120
  %v841 = vpop.permute.xlu0 %840
  %842 = vrot.lane.b32.xlu0 %v400, 120
  %v843 = vpop.permute.xlu0 %842
  %844 = vrot.lane.b32.xlu0 %v405, 120
  %v845 = vpop.permute.xlu0 %844
  %846 = vrot.lane.b32.xlu0 %v408, 120
  %v847 = vpop.permute.xlu0 %846
  %848 = vrot.lane.b32.xlu0 %v413, 120
  %v849 = vpop.permute.xlu0 %848
  %850 = vrot.lane.b32.xlu0 %v416, 120
  %v851 = vpop.permute.xlu0 %850
  %852 = vrot.lane.b32.xlu0 %v421, 120
  %v853 = vpop.permute.xlu0 %852
  %854 = vrot.lane.b32.xlu0 %v424, 120
  %v855 = vpop.permute.xlu0 %854
  %856 = vrot.lane.b32.xlu0 %v429, 120
  %v857 = vpop.permute.xlu0 %856
  %858 = vrot.lane.b32.xlu0 %v432, 120
  %v859 = vpop.permute.xlu0 %858
  %860 = vrot.lane.b32.xlu0 %v437, 120
  %v861 = vpop.permute.xlu0 %860
  %862 = vrot.lane.b32.xlu0 %v440, 120
  %v863 = vpop.permute.xlu0 %862
  %864 = vrot.lane.b32.xlu0 %v445, 120
  %v865 = vpop.permute.xlu0 %864
  %866 = vrot.lane.b32.xlu0 %v448, 120
  %v867 = vpop.permute.xlu0 %866
  %868 = vrot.lane.b32.xlu0 %v453, 120
  %v869 = vpop.permute.xlu0 %868
  %870 = vrot.lane.b32.xlu0 %v456, 120
  %v871 = vpop.permute.xlu0 %870
  %872 = vrot.lane.b32.xlu0 %v461, 120
  %v873 = vpop.permute.xlu0 %872
  %874 = vrot.lane.b32.xlu0 %v464, 120
  %v875 = vpop.permute.xlu0 %874
  %876 = vrot.lane.b32.xlu0 %v469, 120
  %v877 = vpop.permute.xlu0 %876
  %878 = vrot.lane.b32.xlu0 %v472, 120
  %v879 = vpop.permute.xlu0 %878
  %880 = vrot.lane.b32.xlu0 %v477, 120
  %v881 = vpop.permute.xlu0 %880
  %882 = vrot.lane.b32.xlu0 %v480, 120
  %v883 = vpop.permute.xlu0 %882
  %884 = vrot.lane.b32.xlu0 %v485, 120
  %v885 = vpop.permute.xlu0 %884
  %886 = vrot.lane.b32.xlu0 %v488, 120
  %v887 = vpop.permute.xlu0 %886
  %888 = vrot.lane.b32.xlu0 %v493, 120
  %v889 = vpop.permute.xlu0 %888
  %890 = vrot.lane.b32.xlu0 %v496, 120
  %v891 = vpop.permute.xlu0 %890
  %892 = vrot.lane.b32.xlu0 %v501, 120
  %v893 = vpop.permute.xlu0 %892
  %894 = vrot.lane.b32.xlu0 %v504, 120
  %v895 = vpop.permute.xlu0 %894
  %896 = vrot.lane.b32.xlu0 %v509, 120
  %v897 = vpop.permute.xlu0 %896
  %898 = vrot.lane.b32.xlu0 %v512, 120
  %v899 = vpop.permute.xlu0 %898
  %vm932 = vcmask 261120
  %933 = vst.msk [vmem:[%s4] sm:$0xff] %vm932, %v837
  %934 = vst.msk [vmem:[%s4 + $0x8] sm:$0xff] %vm932, %v839
  %935 = vst.msk [vmem:[%s4 + $0x10] sm:$0xff] %vm932, %v841
  %936 = vst.msk [vmem:[%s4 + $0x18] sm:$0xff] %vm932, %v843
  %937 = vst.msk [vmem:[%s4 + $0x20] sm:$0xff] %vm932, %v845
  %938 = vst.msk [vmem:[%s4 + $0x28] sm:$0xff] %vm932, %v847
  %939 = vst.msk [vmem:[%s4 + $0x30] sm:$0xff] %vm932, %v849
  %940 = vst.msk [vmem:[%s4 + $0x38] sm:$0xff] %vm932, %v851
  %941 = vst.msk [vmem:[%s4 + $0x40] sm:$0xff] %vm932, %v853
  %942 = vst.msk [vmem:[%s4 + $0x48] sm:$0xff] %vm932, %v855
  %943 = vst.msk [vmem:[%s4 + $0x50] sm:$0xff] %vm932, %v857
  %944 = vst.msk [vmem:[%s4 + $0x58] sm:$0xff] %vm932, %v859
  %945 = vst.msk [vmem:[%s4 + $0x60] sm:$0xff] %vm932, %v861
  %946 = vst.msk [vmem:[%s4 + $0x68] sm:$0xff] %vm932, %v863
  %947 = vst.msk [vmem:[%s4 + $0x70] sm:$0xff] %vm932, %v865
  %948 = vst.msk [vmem:[%s4 + $0x78] sm:$0xff] %vm932, %v867
  %949 = vst.msk [vmem:[%s4 + $0x80] sm:$0xff] %vm932, %v869
  %950 = vst.msk [vmem:[%s4 + $0x88] sm:$0xff] %vm932, %v871
  %951 = vst.msk [vmem:[%s4 + $0x90] sm:$0xff] %vm932, %v873
  %952 = vst.msk [vmem:[%s4 + $0x98] sm:$0xff] %vm932, %v875
  %953 = vst.msk [vmem:[%s4 + $0xa0] sm:$0xff] %vm932, %v877
  %954 = vst.msk [vmem:[%s4 + $0xa8] sm:$0xff] %vm932, %v879
  %955 = vst.msk [vmem:[%s4 + $0xb0] sm:$0xff] %vm932, %v881
  %956 = vst.msk [vmem:[%s4 + $0xb8] sm:$0xff] %vm932, %v883
  %957 = vst.msk [vmem:[%s4 + $0xc0] sm:$0xff] %vm932, %v885
  %958 = vst.msk [vmem:[%s4 + $0xc8] sm:$0xff] %vm932, %v887
  %959 = vst.msk [vmem:[%s4 + $0xd0] sm:$0xff] %vm932, %v889
  %960 = vst.msk [vmem:[%s4 + $0xd8] sm:$0xff] %vm932, %v891
  %961 = vst.msk [vmem:[%s4 + $0xe0] sm:$0xff] %vm932, %v893
  %962 = vst.msk [vmem:[%s4 + $0xe8] sm:$0xff] %vm932, %v895
  %963 = vst.msk [vmem:[%s4 + $0xf0] sm:$0xff] %vm932, %v897
  %964 = vst.msk [vmem:[%s4 + $0xf8] sm:$0xff] %vm932, %v899
  %v965 = vpack.c.bf16 %v520, %v517
  %v966 = vpack.c.bf16 %v528, %v525
  %v967 = vpack.c.bf16 %v536, %v533
  %v968 = vpack.c.bf16 %v544, %v541
  %v969 = vpack.c.bf16 %v552, %v549
  %v970 = vpack.c.bf16 %v560, %v557
  %v971 = vpack.c.bf16 %v568, %v565
  %v972 = vpack.c.bf16 %v576, %v573
  %v973 = vpack.c.bf16 %v584, %v581
  %v974 = vpack.c.bf16 %v592, %v589
  %v975 = vpack.c.bf16 %v600, %v597
  %v976 = vpack.c.bf16 %v608, %v605
  %v977 = vpack.c.bf16 %v616, %v613
  %v978 = vpack.c.bf16 %v624, %v621
  %v979 = vpack.c.bf16 %v632, %v629
  %v980 = vpack.c.bf16 %v640, %v637
  %v997 = vunpack.c.l.b16 %v965
  %v998 = vunpack.c.h.b16 %v965
  %v999 = vunpack.c.l.b16 %v966
  %v1000 = vunpack.c.h.b16 %v966
  %v1001 = vunpack.c.l.b16 %v967
  %v1002 = vunpack.c.h.b16 %v967
  %v1003 = vunpack.c.l.b16 %v968
  %v1004 = vunpack.c.h.b16 %v968
  %v1005 = vunpack.c.l.b16 %v969
  %v1006 = vunpack.c.h.b16 %v969
  %v1007 = vunpack.c.l.b16 %v970
  %v1008 = vunpack.c.h.b16 %v970
  %v1009 = vunpack.c.l.b16 %v971
  %v1010 = vunpack.c.h.b16 %v971
  %v1011 = vunpack.c.l.b16 %v972
  %v1012 = vunpack.c.h.b16 %v972
  %v1013 = vunpack.c.l.b16 %v973
  %v1014 = vunpack.c.h.b16 %v973
  %v1015 = vunpack.c.l.b16 %v974
  %v1016 = vunpack.c.h.b16 %v974
  %v1017 = vunpack.c.l.b16 %v975
  %v1018 = vunpack.c.h.b16 %v975
  %v1019 = vunpack.c.l.b16 %v976
  %v1020 = vunpack.c.h.b16 %v976
  %v1021 = vunpack.c.l.b16 %v977
  %v1022 = vunpack.c.h.b16 %v977
  %v1023 = vunpack.c.l.b16 %v978
  %v1024 = vunpack.c.h.b16 %v978
  %v1025 = vunpack.c.l.b16 %v979
  %v1026 = vunpack.c.h.b16 %v979
  %v1027 = vunpack.c.l.b16 %v980
  %v1028 = vunpack.c.h.b16 %v980
  %v1029 = vpack.c.b16 %v997, %v997
  %v1030 = vpack.c.b16 %v998, %v998
  %v1031 = vpack.c.b16 %v999, %v999
  %v1032 = vpack.c.b16 %v1000, %v1000
  %v1033 = vpack.c.b16 %v1001, %v1001
  %v1034 = vpack.c.b16 %v1002, %v1002
  %v1035 = vpack.c.b16 %v1003, %v1003
  %v1036 = vpack.c.b16 %v1004, %v1004
  %v1037 = vpack.c.b16 %v1005, %v1005
  %v1038 = vpack.c.b16 %v1006, %v1006
  %v1039 = vpack.c.b16 %v1007, %v1007
  %v1040 = vpack.c.b16 %v1008, %v1008
  %v1041 = vpack.c.b16 %v1009, %v1009
  %v1042 = vpack.c.b16 %v1010, %v1010
  %v1043 = vpack.c.b16 %v1011, %v1011
  %v1044 = vpack.c.b16 %v1012, %v1012
  %v1045 = vpack.c.b16 %v1013, %v1013
  %v1046 = vpack.c.b16 %v1014, %v1014
  %v1047 = vpack.c.b16 %v1015, %v1015
  %v1048 = vpack.c.b16 %v1016, %v1016
  %v1049 = vpack.c.b16 %v1017, %v1017
  %v1050 = vpack.c.b16 %v1018, %v1018
  %v1051 = vpack.c.b16 %v1019, %v1019
  %v1052 = vpack.c.b16 %v1020, %v1020
  %v1053 = vpack.c.b16 %v1021, %v1021
  %v1054 = vpack.c.b16 %v1022, %v1022
  %v1055 = vpack.c.b16 %v1023, %v1023
  %v1056 = vpack.c.b16 %v1024, %v1024
  %v1057 = vpack.c.b16 %v1025, %v1025
  %v1058 = vpack.c.b16 %v1026, %v1026
  %v1059 = vpack.c.b16 %v1027, %v1027
  %v1060 = vpack.c.b16 %v1028, %v1028
  %s1093 = scalar_lea.vmem %s3, 128
  %1094 = vst.msk [vmem:[%s1093] sm:$0xf] %vm771, %v1029
  %1095 = vst.msk [vmem:[%s1093 + $0x4] sm:$0xf] %vm771, %v1030
  %1096 = vst.msk [vmem:[%s1093 + $0x8] sm:$0xf] %vm771, %v1031
  %1097 = vst.msk [vmem:[%s1093 + $0xc] sm:$0xf] %vm771, %v1032
  %1098 = vst.msk [vmem:[%s1093 + $0x10] sm:$0xf] %vm771, %v1033
  %1099 = vst.msk [vmem:[%s1093 + $0x14] sm:$0xf] %vm771, %v1034
  %1100 = vst.msk [vmem:[%s1093 + $0x18] sm:$0xf] %vm771, %v1035
  %1101 = vst.msk [vmem:[%s1093 + $0x1c] sm:$0xf] %vm771, %v1036
  %1102 = vst.msk [vmem:[%s1093 + $0x20] sm:$0xf] %vm771, %v1037
  %1103 = vst.msk [vmem:[%s1093 + $0x24] sm:$0xf] %vm771, %v1038
  %1104 = vst.msk [vmem:[%s1093 + $0x28] sm:$0xf] %vm771, %v1039
  %1105 = vst.msk [vmem:[%s1093 + $0x2c] sm:$0xf] %vm771, %v1040
  %1106 = vst.msk [vmem:[%s1093 + $0x30] sm:$0xf] %vm771, %v1041
  %1107 = vst.msk [vmem:[%s1093 + $0x34] sm:$0xf] %vm771, %v1042
  %1108 = vst.msk [vmem:[%s1093 + $0x38] sm:$0xf] %vm771, %v1043
  %1109 = vst.msk [vmem:[%s1093 + $0x3c] sm:$0xf] %vm771, %v1044
  %1110 = vst.msk [vmem:[%s1093 + $0x40] sm:$0xf] %vm771, %v1045
  %1111 = vst.msk [vmem:[%s1093 + $0x44] sm:$0xf] %vm771, %v1046
  %1112 = vst.msk [vmem:[%s1093 + $0x48] sm:$0xf] %vm771, %v1047
  %1113 = vst.msk [vmem:[%s1093 + $0x4c] sm:$0xf] %vm771, %v1048
  %1114 = vst.msk [vmem:[%s1093 + $0x50] sm:$0xf] %vm771, %v1049
  %1115 = vst.msk [vmem:[%s1093 + $0x54] sm:$0xf] %vm771, %v1050
  %1116 = vst.msk [vmem:[%s1093 + $0x58] sm:$0xf] %vm771, %v1051
  %1117 = vst.msk [vmem:[%s1093 + $0x5c] sm:$0xf] %vm771, %v1052
  %1118 = vst.msk [vmem:[%s1093 + $0x60] sm:$0xf] %vm771, %v1053
  %1119 = vst.msk [vmem:[%s1093 + $0x64] sm:$0xf] %vm771, %v1054
  %1120 = vst.msk [vmem:[%s1093 + $0x68] sm:$0xf] %vm771, %v1055
  %1121 = vst.msk [vmem:[%s1093 + $0x6c] sm:$0xf] %vm771, %v1056
  %1122 = vst.msk [vmem:[%s1093 + $0x70] sm:$0xf] %vm771, %v1057
  %1123 = vst.msk [vmem:[%s1093 + $0x74] sm:$0xf] %vm771, %v1058
  %1124 = vst.msk [vmem:[%s1093 + $0x78] sm:$0xf] %vm771, %v1059
  %1125 = vst.msk [vmem:[%s1093 + $0x7c] sm:$0xf] %vm771, %v1060
  %1158 = vrot.lane.b32.xlu0 %v517, 120
  %v1159 = vpop.permute.xlu0 %1158
  %1160 = vrot.lane.b32.xlu0 %v520, 120
  %v1161 = vpop.permute.xlu0 %1160
  %1162 = vrot.lane.b32.xlu0 %v525, 120
  %v1163 = vpop.permute.xlu0 %1162
  %1164 = vrot.lane.b32.xlu0 %v528, 120
  %v1165 = vpop.permute.xlu0 %1164
  %1166 = vrot.lane.b32.xlu0 %v533, 120
  %v1167 = vpop.permute.xlu0 %1166
  %1168 = vrot.lane.b32.xlu0 %v536, 120
  %v1169 = vpop.permute.xlu0 %1168
  %1170 = vrot.lane.b32.xlu0 %v541, 120
  %v1171 = vpop.permute.xlu0 %1170
  %1172 = vrot.lane.b32.xlu0 %v544, 120
  %v1173 = vpop.permute.xlu0 %1172
  %1174 = vrot.lane.b32.xlu0 %v549, 120
  %v1175 = vpop.permute.xlu0 %1174
  %1176 = vrot.lane.b32.xlu0 %v552, 120
  %v1177 = vpop.permute.xlu0 %1176
  %1178 = vrot.lane.b32.xlu0 %v557, 120
  %v1179 = vpop.permute.xlu0 %1178
  %1180 = vrot.lane.b32.xlu0 %v560, 120
  %v1181 = vpop.permute.xlu0 %1180
  %1182 = vrot.lane.b32.xlu0 %v565, 120
  %v1183 = vpop.permute.xlu0 %1182
  %1184 = vrot.lane.b32.xlu0 %v568, 120
  %v1185 = vpop.permute.xlu0 %1184
  %1186 = vrot.lane.b32.xlu0 %v573, 120
  %v1187 = vpop.permute.xlu0 %1186
  %1188 = vrot.lane.b32.xlu0 %v576, 120
  %v1189 = vpop.permute.xlu0 %1188
  %1190 = vrot.lane.b32.xlu0 %v581, 120
  %v1191 = vpop.permute.xlu0 %1190
  %1192 = vrot.lane.b32.xlu0 %v584, 120
  %v1193 = vpop.permute.xlu0 %1192
  %1194 = vrot.lane.b32.xlu0 %v589, 120
  %v1195 = vpop.permute.xlu0 %1194
  %1196 = vrot.lane.b32.xlu0 %v592, 120
  %v1197 = vpop.permute.xlu0 %1196
  %1198 = vrot.lane.b32.xlu0 %v597, 120
  %v1199 = vpop.permute.xlu0 %1198
  %1200 = vrot.lane.b32.xlu0 %v600, 120
  %v1201 = vpop.permute.xlu0 %1200
  %1202 = vrot.lane.b32.xlu0 %v605, 120
  %v1203 = vpop.permute.xlu0 %1202
  %1204 = vrot.lane.b32.xlu0 %v608, 120
  %v1205 = vpop.permute.xlu0 %1204
  %1206 = vrot.lane.b32.xlu0 %v613, 120
  %v1207 = vpop.permute.xlu0 %1206
  %1208 = vrot.lane.b32.xlu0 %v616, 120
  %v1209 = vpop.permute.xlu0 %1208
  %1210 = vrot.lane.b32.xlu0 %v621, 120
  %v1211 = vpop.permute.xlu0 %1210
  %1212 = vrot.lane.b32.xlu0 %v624, 120
  %v1213 = vpop.permute.xlu0 %1212
  %1214 = vrot.lane.b32.xlu0 %v629, 120
  %v1215 = vpop.permute.xlu0 %1214
  %1216 = vrot.lane.b32.xlu0 %v632, 120
  %v1217 = vpop.permute.xlu0 %1216
  %1218 = vrot.lane.b32.xlu0 %v637, 120
  %v1219 = vpop.permute.xlu0 %1218
  %1220 = vrot.lane.b32.xlu0 %v640, 120
  %v1221 = vpop.permute.xlu0 %1220
  %s1254 = scalar_lea.vmem %s4, 256
  %1255 = vst.msk [vmem:[%s1254] sm:$0xff] %vm932, %v1159
  %1256 = vst.msk [vmem:[%s1254 + $0x8] sm:$0xff] %vm932, %v1161
  %1257 = vst.msk [vmem:[%s1254 + $0x10] sm:$0xff] %vm932, %v1163
  %1258 = vst.msk [vmem:[%s1254 + $0x18] sm:$0xff] %vm932, %v1165
  %1259 = vst.msk [vmem:[%s1254 + $0x20] sm:$0xff] %vm932, %v1167
  %1260 = vst.msk [vmem:[%s1254 + $0x28] sm:$0xff] %vm932, %v1169
  %1261 = vst.msk [vmem:[%s1254 + $0x30] sm:$0xff] %vm932, %v1171
  %1262 = vst.msk [vmem:[%s1254 + $0x38] sm:$0xff] %vm932, %v1173
  %1263 = vst.msk [vmem:[%s1254 + $0x40] sm:$0xff] %vm932, %v1175
  %1264 = vst.msk [vmem:[%s1254 + $0x48] sm:$0xff] %vm932, %v1177
  %1265 = vst.msk [vmem:[%s1254 + $0x50] sm:$0xff] %vm932, %v1179
  %1266 = vst.msk [vmem:[%s1254 + $0x58] sm:$0xff] %vm932, %v1181
  %1267 = vst.msk [vmem:[%s1254 + $0x60] sm:$0xff] %vm932, %v1183
  %1268 = vst.msk [vmem:[%s1254 + $0x68] sm:$0xff] %vm932, %v1185
  %1269 = vst.msk [vmem:[%s1254 + $0x70] sm:$0xff] %vm932, %v1187
  %1270 = vst.msk [vmem:[%s1254 + $0x78] sm:$0xff] %vm932, %v1189
  %1271 = vst.msk [vmem:[%s1254 + $0x80] sm:$0xff] %vm932, %v1191
  %1272 = vst.msk [vmem:[%s1254 + $0x88] sm:$0xff] %vm932, %v1193
  %1273 = vst.msk [vmem:[%s1254 + $0x90] sm:$0xff] %vm932, %v1195
  %1274 = vst.msk [vmem:[%s1254 + $0x98] sm:$0xff] %vm932, %v1197
  %1275 = vst.msk [vmem:[%s1254 + $0xa0] sm:$0xff] %vm932, %v1199
  %1276 = vst.msk [vmem:[%s1254 + $0xa8] sm:$0xff] %vm932, %v1201
  %1277 = vst.msk [vmem:[%s1254 + $0xb0] sm:$0xff] %vm932, %v1203
  %1278 = vst.msk [vmem:[%s1254 + $0xb8] sm:$0xff] %vm932, %v1205
  %1279 = vst.msk [vmem:[%s1254 + $0xc0] sm:$0xff] %vm932, %v1207
  %1280 = vst.msk [vmem:[%s1254 + $0xc8] sm:$0xff] %vm932, %v1209
  %1281 = vst.msk [vmem:[%s1254 + $0xd0] sm:$0xff] %vm932, %v1211
  %1282 = vst.msk [vmem:[%s1254 + $0xd8] sm:$0xff] %vm932, %v1213
  %1283 = vst.msk [vmem:[%s1254 + $0xe0] sm:$0xff] %vm932, %v1215
  %1284 = vst.msk [vmem:[%s1254 + $0xe8] sm:$0xff] %vm932, %v1217
  %1285 = vst.msk [vmem:[%s1254 + $0xf0] sm:$0xff] %vm932, %v1219
  %1286 = vst.msk [vmem:[%s1254 + $0xf8] sm:$0xff] %vm932, %v1221
  // Predicated region
  $region14: #{a_call__.8} parent=0 // pred_check
    _
  $region15: #{a_call__.8} parent=0 // pred_check_branch
    %1288 = sbr.rel (0) target = $region17
  $region16: #{a_call__.8} parent=0 // pred_region
    _
  $region17: #{a_call__.8} parent=0 // pred_fallthru
    _
  // Predicated region
  $region18: #{a_call__.8} parent=0 // pred_check
    _
  $region19: #{a_call__.8} parent=0 // pred_check_branch
    %1290 = sbr.rel (0) target = $region21
  $region20: #{a_call__.8} parent=0 // pred_region
    _
  $region21: #{a_call__.8} parent=0 // pred_fallthru
    _
  // Predicated region
  $region22: #{a_call__.8} parent=0 // pred_check
    _
  $region23: #{a_call__.8} parent=0 // pred_check_branch
    %1292 = sbr.rel (0) target = $region25
  $region24: #{a_call__.8} parent=0 // pred_region
    _
  $region25: #{a_call__.8} parent=0 // pred_fallthru
    _
  // Predicated region
  $region26: #{a_call__.8} parent=0 // pred_check
    _
  $region27: #{a_call__.8} parent=0 // pred_check_branch
    %1294 = sbr.rel (0) target = $region29
  $region28: #{a_call__.8} parent=0 // pred_region
    _
  $region29: #{a_call__.8} parent=0 // pred_fallthru
    _

// kernel: a_call__.9
$region0: #{a_call__.9}
  #allocation0 [shape = 'u32[]', space=smem, size = 0x4, offset = 0x4, fixed_abs, tag = 'smem constant byte address 0x4 - core index']
  #allocation1 [shape = 'u32[144,128]{1,0:T(1,128)}', space=vmem, size = 0x12000, scoped, tag = 'internal scratch']
  %s0 = inlined_call_operand.vmem [shape: bf16[2,64,8], index: 0, kind: input, shape index: {}]
  %s1 = inlined_call_operand.vmem [shape: bf16[8,48], index: 1, kind: input, shape index: {}]
  %s2 = inlined_call_operand.vmem [shape: f32[1,48], index: 2, kind: input, shape index: {}]
  %s3 = inlined_call_operand.vmem [shape: bf16[2,64,16], index: 3, kind: output, shape index: {0}]
  %s4 = inlined_call_operand.vmem [shape: f32[2,64,32], index: 4, kind: output, shape index: {1}]
  %5 = xla_tuple %s3, %s4
  %s6 = sld [smem:[#allocation0]]
  $region30: #{a_call__.9} parent=0
    _
  %s8 = ssub.s32 1, %s6
  %s9 = scalar_select 0, %s8, %s6
  // Predicated region
  $region2: #{a_call__.9} parent=0 // pred_check
    _
  $region3: #{a_call__.9} parent=0 // pred_check_branch
    %11 = sbr.rel (0) target = $region5
  $region4: #{a_call__.9} parent=0 // pred_region
    _
  $region5: #{a_call__.9} parent=0 // pred_fallthru
    _
  // Predicated region
  $region6: #{a_call__.9} parent=0 // pred_check
    _
  $region7: #{a_call__.9} parent=0 // pred_check_branch
    %13 = sbr.rel (0) target = $region9
  $region8: #{a_call__.9} parent=0 // pred_region
    _
  $region9: #{a_call__.9} parent=0 // pred_fallthru
    _
  // Predicated region
  $region10: #{a_call__.9} parent=0 // pred_check
    _
  $region11: #{a_call__.9} parent=0 // pred_check_branch
    %15 = sbr.rel (0) target = $region13
  $region12: #{a_call__.9} parent=0 // pred_region
    _
  $region13: #{a_call__.9} parent=0 // pred_fallthru
    _
  %v17 = vld [vmem:[%s0] sm:$0xf]
  %v18 = vld [vmem:[%s0 + $0x4] sm:$0xf]
  %v19 = vld [vmem:[%s0 + $0x8] sm:$0xf]
  %v20 = vld [vmem:[%s0 + $0xc] sm:$0xf]
  %v21 = vld [vmem:[%s0 + $0x10] sm:$0xf]
  %v22 = vld [vmem:[%s0 + $0x14] sm:$0xf]
  %v23 = vld [vmem:[%s0 + $0x18] sm:$0xf]
  %v24 = vld [vmem:[%s0 + $0x1c] sm:$0xf]
  %s25 = scalar_lea.vmem %s0, 32
  %v26 = vld [vmem:[%s25] sm:$0xf]
  %v27 = vld [vmem:[%s25 + $0x4] sm:$0xf]
  %v28 = vld [vmem:[%s25 + $0x8] sm:$0xf]
  %v29 = vld [vmem:[%s25 + $0xc] sm:$0xf]
  %v30 = vld [vmem:[%s25 + $0x10] sm:$0xf]
  %v31 = vld [vmem:[%s25 + $0x14] sm:$0xf]
  %v32 = vld [vmem:[%s25 + $0x18] sm:$0xf]
  %v33 = vld [vmem:[%s25 + $0x1c] sm:$0xf]
  %v42 = vunpack.c.l.b16 %v17
  %v43 = vunpack.c.l.b16 %v18
  %v44 = vunpack.c.l.b16 %v19
  %v45 = vunpack.c.l.b16 %v20
  %v46 = vunpack.c.l.b16 %v21
  %v47 = vunpack.c.l.b16 %v22
  %v48 = vunpack.c.l.b16 %v23
  %v49 = vunpack.c.l.b16 %v24
  %v50 = vpack.c.b16 %v43, %v42
  %v51 = vpack.c.b16 %v45, %v44
  %v52 = vpack.c.b16 %v47, %v46
  %v53 = vpack.c.b16 %v49, %v48
  %v62 = vunpack.c.l.b16 %v26
  %v63 = vunpack.c.l.b16 %v27
  %v64 = vunpack.c.l.b16 %v28
  %v65 = vunpack.c.l.b16 %v29
  %v66 = vunpack.c.l.b16 %v30
  %v67 = vunpack.c.l.b16 %v31
  %v68 = vunpack.c.l.b16 %v32
  %v69 = vunpack.c.l.b16 %v33
  %v70 = vpack.c.b16 %v63, %v62
  %v71 = vpack.c.b16 %v65, %v64
  %v72 = vpack.c.b16 %v67, %v66
  %v73 = vpack.c.b16 %v69, %v68
  %v74 = vld [vmem:[%s1] sm:$0xf]
  %v75 = vld [vmem:[%s2] sm:$0x1]
  %v77 = vlaneseq
  %v78 = vshrl.u32 %v77, 7
  %v79 = vsub.s32 0, %v78
  %v80 = vrot.slane %v75, %v79
  %vm82 = vcmask 64512
  %v84 = vsel %vm82, %v50, 0
  %v87 = vsel %vm82, %v51, 0
  %v90 = vsel %vm82, %v52, 0
  %v93 = vsel %vm82, %v53, 0
  %v96 = vsel %vm82, %v70, 0
  %v99 = vsel %vm82, %v71, 0
  %v102 = vsel %vm82, %v72, 0
  %v105 = vsel %vm82, %v73, 0
  %vm107 = vcmask 1043456
  %v109 = vsel %vm107, %v74, 0
  %111 = vmatprep.subr.bf16.mxu0 0
  %112 = vmatpush1.bf16.msra.mxu0 0
  %113 = vmatprep.subr.bf16.mxu0 0
  %114 = vmatpush1.bf16.msra.mxu0 0
  %115 = vmatprep.subr.bf16.mxu0 0
  %116 = vmatpush1.bf16.msra.mxu0 0
  %117 = vmatprep.subr.bf16.mxu0 0
  %118 = vmatpush1.bf16.msra.mxu0 0
  %119 = vmatprep.subr.bf16.mxu0 0
  %120 = vmatpush1.bf16.msra.mxu0 0
  %121 = vmatprep.subr.bf16.mxu0 0
  %122 = vmatpush1.bf16.msra.mxu0 0
  %123 = vmatprep.subr.bf16.mxu0 0
  %124 = vmatpush1.bf16.msra.mxu0 0
  %125 = vmatprep.subr.bf16.mxu0 0
  %126 = vmatpush1.bf16.msra.mxu0 %v109
  %127 = vmatprep.subr.bf16.mxu0 0
  %128 = vmatpush2.bf16.msra.mxu0 0
  %129 = vmatprep.subr.bf16.mxu0 0
  %130 = vmatpush2.bf16.msra.mxu0 0
  %131 = vmatprep.subr.bf16.mxu0 0
  %132 = vmatpush2.bf16.msra.mxu0 0
  %133 = vmatprep.subr.bf16.mxu0 0
  %134 = vmatpush2.bf16.msra.mxu0 0
  %135 = vmatprep.subr.bf16.mxu0 0
  %136 = vmatpush2.bf16.msra.mxu0 0
  %137 = vmatprep.subr.bf16.mxu0 0
  %138 = vmatpush2.bf16.msra.mxu0 0
  %139 = vmatprep.subr.bf16.mxu0 0
  %140 = vmatpush2.bf16.msra.mxu0 0
  %141 = vmatprep.subr.bf16.mxu0 0
  %142 = vmatpush2.bf16.msra.mxu0 0
  %143 = vmatprep.mubr.bf16.mxu0 0
  %144 = vmatmul.mubr.bf16.gmra.mxu0 %v84
  %v145 = vpop.f32.mrf.mxu0
  %v146 = vadd.f32 %v80, %v145
  %v147 = vpop.f32.mrf.mxu0
  %v148 = vpop.f32.mrf.mxu0
  %v149 = vadd.f32 %v80, %v148
  %v150 = vpop.f32.mrf.mxu0
  %151 = vmatprep.mubr.bf16.mxu0 0
  %152 = vmatmul.mubr.bf16.gmra.mxu0 %v87
  %v153 = vpop.f32.mrf.mxu0
  %v154 = vadd.f32 %v80, %v153
  %v155 = vpop.f32.mrf.mxu0
  %v156 = vpop.f32.mrf.mxu0
  %v157 = vadd.f32 %v80, %v156
  %v158 = vpop.f32.mrf.mxu0
  %159 = vmatprep.mubr.bf16.mxu0 0
  %160 = vmatmul.mubr.bf16.gmra.mxu0 %v90
  %v161 = vpop.f32.mrf.mxu0
  %v162 = vadd.f32 %v80, %v161
  %v163 = vpop.f32.mrf.mxu0
  %v164 = vpop.f32.mrf.mxu0
  %v165 = vadd.f32 %v80, %v164
  %v166 = vpop.f32.mrf.mxu0
  %167 = vmatprep.mubr.bf16.mxu0 0
  %168 = vmatmul.mubr.bf16.gmra.mxu0 %v93
  %v169 = vpop.f32.mrf.mxu0
  %v170 = vadd.f32 %v80, %v169
  %v171 = vpop.f32.mrf.mxu0
  %v172 = vpop.f32.mrf.mxu0
  %v173 = vadd.f32 %v80, %v172
  %v174 = vpop.f32.mrf.mxu0
  %175 = vmatprep.mubr.bf16.mxu0 0
  %176 = vmatmul.mubr.bf16.gmra.mxu0 %v96
  %v177 = vpop.f32.mrf.mxu0
  %v178 = vadd.f32 %v80, %v177
  %v179 = vpop.f32.mrf.mxu0
  %v180 = vpop.f32.mrf.mxu0
  %v181 = vadd.f32 %v80, %v180
  %v182 = vpop.f32.mrf.mxu0
  %183 = vmatprep.mubr.bf16.mxu0 0
  %184 = vmatmul.mubr.bf16.gmra.mxu0 %v99
  %v185 = vpop.f32.mrf.mxu0
  %v186 = vadd.f32 %v80, %v185
  %v187 = vpop.f32.mrf.mxu0
  %v188 = vpop.f32.mrf.mxu0
  %v189 = vadd.f32 %v80, %v188
  %v190 = vpop.f32.mrf.mxu0
  %191 = vmatprep.mubr.bf16.mxu0 0
  %192 = vmatmul.mubr.bf16.gmra.mxu0 %v102
  %v193 = vpop.f32.mrf.mxu0
  %v194 = vadd.f32 %v80, %v193
  %v195 = vpop.f32.mrf.mxu0
  %v196 = vpop.f32.mrf.mxu0
  %v197 = vadd.f32 %v80, %v196
  %v198 = vpop.f32.mrf.mxu0
  %199 = vmatprep.mubr.bf16.mxu0 0
  %200 = vmatmul.mubr.bf16.gmra.mxu0 %v105
  %v201 = vpop.f32.mrf.mxu0
  %v202 = vadd.f32 %v80, %v201
  %v203 = vpop.f32.mrf.mxu0
  %v204 = vpop.f32.mrf.mxu0
  %v205 = vadd.f32 %v80, %v204
  %v206 = vpop.f32.mrf.mxu0
  %207 = vdwg.mxu0
  %v208 = vpack.c.bf16 %v149, %v146
  %v209 = vpack.c.bf16 %v157, %v154
  %v210 = vpack.c.bf16 %v165, %v162
  %v211 = vpack.c.bf16 %v173, %v170
  %v216 = vunpack.c.l.b16 %v208
  %v217 = vunpack.c.h.b16 %v208
  %v218 = vunpack.c.l.b16 %v209
  %v219 = vunpack.c.h.b16 %v209
  %v220 = vunpack.c.l.b16 %v210
  %v221 = vunpack.c.h.b16 %v210
  %v222 = vunpack.c.l.b16 %v211
  %v223 = vunpack.c.h.b16 %v211
  %v224 = vpack.c.b16 %v216, %v216
  %v225 = vpack.c.b16 %v217, %v217
  %v226 = vpack.c.b16 %v218, %v218
  %v227 = vpack.c.b16 %v219, %v219
  %v228 = vpack.c.b16 %v220, %v220
  %v229 = vpack.c.b16 %v221, %v221
  %v230 = vpack.c.b16 %v222, %v222
  %v231 = vpack.c.b16 %v223, %v223
  %vm240 = vcmask 125952
  %241 = vst.msk [vmem:[%s3] sm:$0xf] %vm240, %v224
  %242 = vst.msk [vmem:[%s3 + $0x4] sm:$0xf] %vm240, %v225
  %243 = vst.msk [vmem:[%s3 + $0x8] sm:$0xf] %vm240, %v226
  %244 = vst.msk [vmem:[%s3 + $0xc] sm:$0xf] %vm240, %v227
  %245 = vst.msk [vmem:[%s3 + $0x10] sm:$0xf] %vm240, %v228
  %246 = vst.msk [vmem:[%s3 + $0x14] sm:$0xf] %vm240, %v229
  %247 = vst.msk [vmem:[%s3 + $0x18] sm:$0xf] %vm240, %v230
  %248 = vst.msk [vmem:[%s3 + $0x1c] sm:$0xf] %vm240, %v231
  %257 = vrot.lane.b32.xlu0 %v146, 112
  %v258 = vpop.permute.xlu0 %257
  %259 = vrot.lane.b32.xlu0 %v149, 112
  %v260 = vpop.permute.xlu0 %259
  %261 = vrot.lane.b32.xlu0 %v154, 112
  %v262 = vpop.permute.xlu0 %261
  %263 = vrot.lane.b32.xlu0 %v157, 112
  %v264 = vpop.permute.xlu0 %263
  %265 = vrot.lane.b32.xlu0 %v162, 112
  %v266 = vpop.permute.xlu0 %265
  %267 = vrot.lane.b32.xlu0 %v165, 112
  %v268 = vpop.permute.xlu0 %267
  %269 = vrot.lane.b32.xlu0 %v170, 112
  %v270 = vpop.permute.xlu0 %269
  %271 = vrot.lane.b32.xlu0 %v173, 112
  %v272 = vpop.permute.xlu0 %271
  %vm281 = vcmask 261120
  %282 = vst.msk [vmem:[%s4] sm:$0xff] %vm281, %v258
  %283 = vst.msk [vmem:[%s4 + $0x8] sm:$0xff] %vm281, %v260
  %284 = vst.msk [vmem:[%s4 + $0x10] sm:$0xff] %vm281, %v262
  %285 = vst.msk [vmem:[%s4 + $0x18] sm:$0xff] %vm281, %v264
  %286 = vst.msk [vmem:[%s4 + $0x20] sm:$0xff] %vm281, %v266
  %287 = vst.msk [vmem:[%s4 + $0x28] sm:$0xff] %vm281, %v268
  %288 = vst.msk [vmem:[%s4 + $0x30] sm:$0xff] %vm281, %v270
  %289 = vst.msk [vmem:[%s4 + $0x38] sm:$0xff] %vm281, %v272
  %v290 = vpack.c.bf16 %v181, %v178
  %v291 = vpack.c.bf16 %v189, %v186
  %v292 = vpack.c.bf16 %v197, %v194
  %v293 = vpack.c.bf16 %v205, %v202
  %v298 = vunpack.c.l.b16 %v290
  %v299 = vunpack.c.h.b16 %v290
  %v300 = vunpack.c.l.b16 %v291
  %v301 = vunpack.c.h.b16 %v291
  %v302 = vunpack.c.l.b16 %v292
  %v303 = vunpack.c.h.b16 %v292
  %v304 = vunpack.c.l.b16 %v293
  %v305 = vunpack.c.h.b16 %v293
  %v306 = vpack.c.b16 %v298, %v298
  %v307 = vpack.c.b16 %v299, %v299
  %v308 = vpack.c.b16 %v300, %v300
  %v309 = vpack.c.b16 %v301, %v301
  %v310 = vpack.c.b16 %v302, %v302
  %v311 = vpack.c.b16 %v303, %v303
  %v312 = vpack.c.b16 %v304, %v304
  %v313 = vpack.c.b16 %v305, %v305
  %s322 = scalar_lea.vmem %s3, 32
  %323 = vst.msk [vmem:[%s322] sm:$0xf] %vm240, %v306
  %324 = vst.msk [vmem:[%s322 + $0x4] sm:$0xf] %vm240, %v307
  %325 = vst.msk [vmem:[%s322 + $0x8] sm:$0xf] %vm240, %v308
  %326 = vst.msk [vmem:[%s322 + $0xc] sm:$0xf] %vm240, %v309
  %327 = vst.msk [vmem:[%s322 + $0x10] sm:$0xf] %vm240, %v310
  %328 = vst.msk [vmem:[%s322 + $0x14] sm:$0xf] %vm240, %v311
  %329 = vst.msk [vmem:[%s322 + $0x18] sm:$0xf] %vm240, %v312
  %330 = vst.msk [vmem:[%s322 + $0x1c] sm:$0xf] %vm240, %v313
  %339 = vrot.lane.b32.xlu0 %v178, 112
  %v340 = vpop.permute.xlu0 %339
  %341 = vrot.lane.b32.xlu0 %v181, 112
  %v342 = vpop.permute.xlu0 %341
  %343 = vrot.lane.b32.xlu0 %v186, 112
  %v344 = vpop.permute.xlu0 %343
  %345 = vrot.lane.b32.xlu0 %v189, 112
  %v346 = vpop.permute.xlu0 %345
  %347 = vrot.lane.b32.xlu0 %v194, 112
  %v348 = vpop.permute.xlu0 %347
  %349 = vrot.lane.b32.xlu0 %v197, 112
  %v350 = vpop.permute.xlu0 %349
  %351 = vrot.lane.b32.xlu0 %v202, 112
  %v352 = vpop.permute.xlu0 %351
  %353 = vrot.lane.b32.xlu0 %v205, 112
  %v354 = vpop.permute.xlu0 %353
  %s363 = scalar_lea.vmem %s4, 64
  %364 = vst.msk [vmem:[%s363] sm:$0xff] %vm281, %v340
  %365 = vst.msk [vmem:[%s363 + $0x8] sm:$0xff] %vm281, %v342
  %366 = vst.msk [vmem:[%s363 + $0x10] sm:$0xff] %vm281, %v344
  %367 = vst.msk [vmem:[%s363 + $0x18] sm:$0xff] %vm281, %v346
  %368 = vst.msk [vmem:[%s363 + $0x20] sm:$0xff] %vm281, %v348
  %369 = vst.msk [vmem:[%s363 + $0x28] sm:$0xff] %vm281, %v350
  %370 = vst.msk [vmem:[%s363 + $0x30] sm:$0xff] %vm281, %v352
  %371 = vst.msk [vmem:[%s363 + $0x38] sm:$0xff] %vm281, %v354
  // Predicated region
  $region14: #{a_call__.9} parent=0 // pred_check
    _
  $region15: #{a_call__.9} parent=0 // pred_check_branch
    %373 = sbr.rel (0) target = $region17
  $region16: #{a_call__.9} parent=0 // pred_region
    _
  $region17: #{a_call__.9} parent=0 // pred_fallthru
    _
  // Predicated region
  $region18: #{a_call__.9} parent=0 // pred_check
    _
  $region19: #{a_call__.9} parent=0 // pred_check_branch
    %375 = sbr.rel (0) target = $region21
  $region20: #{a_call__.9} parent=0 // pred_region
    _
  $region21: #{a_call__.9} parent=0 // pred_fallthru
    _
  // Predicated region
  $region22: #{a_call__.9} parent=0 // pred_check
    _
  $region23: #{a_call__.9} parent=0 // pred_check_branch
    %377 = sbr.rel (0) target = $region25
  $region24: #{a_call__.9} parent=0 // pred_region
    _
  $region25: #{a_call__.9} parent=0 // pred_fallthru
    _
  // Predicated region
  $region26: #{a_call__.9} parent=0 // pred_check
    _
  $region27: #{a_call__.9} parent=0 // pred_check_branch
    %379 = sbr.rel (0) target = $region29
  $region28: #{a_call__.9} parent=0 // pred_region
    _
  $region29: #{a_call__.9} parent=0 // pred_fallthru
    _

// kernel: a_call__.10
$region0: #{a_call__.10}
  #allocation0 [shape = 'u32[]', space=smem, size = 0x4, offset = 0x4, fixed_abs, tag = 'smem constant byte address 0x4 - core index']
  #allocation1 [shape = 'u32[144,128]{1,0:T(1,128)}', space=vmem, size = 0x12000, scoped, tag = 'internal scratch']
  %s0 = inlined_call_operand.vmem [shape: bf16[2,16,16], index: 0, kind: input, shape index: {}]
  %s1 = inlined_call_operand.vmem [shape: bf16[16,64], index: 1, kind: input, shape index: {}]
  %s2 = inlined_call_operand.vmem [shape: f32[1,64], index: 2, kind: input, shape index: {}]
  %s3 = inlined_call_operand.vmem [shape: bf16[2,16,32], index: 3, kind: output, shape index: {0}]
  %s4 = inlined_call_operand.vmem [shape: f32[2,16,32], index: 4, kind: output, shape index: {1}]
  %5 = xla_tuple %s3, %s4
  %s6 = sld [smem:[#allocation0]]
  $region30: #{a_call__.10} parent=0
    _
  %s8 = ssub.s32 1, %s6
  %s9 = scalar_select 0, %s8, %s6
  // Predicated region
  $region2: #{a_call__.10} parent=0 // pred_check
    _
  $region3: #{a_call__.10} parent=0 // pred_check_branch
    %11 = sbr.rel (0) target = $region5
  $region4: #{a_call__.10} parent=0 // pred_region
    _
  $region5: #{a_call__.10} parent=0 // pred_fallthru
    _
  // Predicated region
  $region6: #{a_call__.10} parent=0 // pred_check
    _
  $region7: #{a_call__.10} parent=0 // pred_check_branch
    %13 = sbr.rel (0) target = $region9
  $region8: #{a_call__.10} parent=0 // pred_region
    _
  $region9: #{a_call__.10} parent=0 // pred_fallthru
    _
  // Predicated region
  $region10: #{a_call__.10} parent=0 // pred_check
    _
  $region11: #{a_call__.10} parent=0 // pred_check_branch
    %15 = sbr.rel (0) target = $region13
  $region12: #{a_call__.10} parent=0 // pred_region
    _
  $region13: #{a_call__.10} parent=0 // pred_fallthru
    _
  %v17 = vld [vmem:[%s0] sm:$0xf]
  %v18 = vld [vmem:[%s0 + $0x4] sm:$0xf]
  %s19 = scalar_lea.vmem %s0, 8
  %v20 = vld [vmem:[%s19] sm:$0xf]
  %v21 = vld [vmem:[%s19 + $0x4] sm:$0xf]
  %v24 = vunpack.c.l.b16 %v17
  %v25 = vunpack.c.l.b16 %v18
  %v26 = vpack.c.b16 %v25, %v24
  %v29 = vunpack.c.l.b16 %v20
  %v30 = vunpack.c.l.b16 %v21
  %v31 = vpack.c.b16 %v30, %v29
  %v32 = vld [vmem:[%s1] sm:$0xf]
  %v33 = vld [vmem:[%s1 + $0x4] sm:$0xf]
  %v34 = vld [vmem:[%s2] sm:$0x1]
  %v36 = vlaneseq
  %v37 = vshrl.u32 %v36, 7
  %v38 = vsub.s32 0, %v37
  %v39 = vrot.slane %v34, %v38
  %v43 = vunpack.c.l.b16 %v32
  %v44 = vunpack.c.l.b16 %v33
  %v45 = vpack.c.b16 %v44, %v43
  %vm47 = vcmask 130048
  %v49 = vsel %vm47, %v26, 0
  %v52 = vsel %vm47, %v31, 0
  %54 = vmatprep.subr.bf16.mxu0 0
  %55 = vmatpush1.bf16.msra.mxu0 0
  %56 = vmatprep.subr.bf16.mxu0 0
  %57 = vmatpush1.bf16.msra.mxu0 0
  %58 = vmatprep.subr.bf16.mxu0 0
  %59 = vmatpush1.bf16.msra.mxu0 0
  %60 = vmatprep.subr.bf16.mxu0 0
  %61 = vmatpush1.bf16.msra.mxu0 0
  %62 = vmatprep.subr.bf16.mxu0 0
  %63 = vmatpush1.bf16.msra.mxu0 0
  %64 = vmatprep.subr.bf16.mxu0 0
  %65 = vmatpush1.bf16.msra.mxu0 0
  %66 = vmatprep.subr.bf16.mxu0 0
  %67 = vmatpush1.bf16.msra.mxu0 0
  %68 = vmatprep.subr.bf16.mxu0 0
  %69 = vmatpush1.bf16.msra.mxu0 %v45
  %70 = vmatprep.subr.bf16.mxu0 0
  %71 = vmatpush2.bf16.msra.mxu0 0
  %72 = vmatprep.subr.bf16.mxu0 0
  %73 = vmatpush2.bf16.msra.mxu0 0
  %74 = vmatprep.subr.bf16.mxu0 0
  %75 = vmatpush2.bf16.msra.mxu0 0
  %76 = vmatprep.subr.bf16.mxu0 0
  %77 = vmatpush2.bf16.msra.mxu0 0
  %78 = vmatprep.subr.bf16.mxu0 0
  %79 = vmatpush2.bf16.msra.mxu0 0
  %80 = vmatprep.subr.bf16.mxu0 0
  %81 = vmatpush2.bf16.msra.mxu0 0
  %82 = vmatprep.subr.bf16.mxu0 0
  %83 = vmatpush2.bf16.msra.mxu0 0
  %84 = vmatprep.subr.bf16.mxu0 0
  %85 = vmatpush2.bf16.msra.mxu0 0
  %86 = vmatprep.mubr.bf16.mxu0 0
  %87 = vmatmul.mubr.bf16.gmra.mxu0 %v49
  %v88 = vpop.f32.mrf.mxu0
  %v89 = vadd.f32 %v39, %v88
  %v90 = vpop.f32.mrf.mxu0
  %v91 = vpop.f32.mrf.mxu0
  %v92 = vadd.f32 %v39, %v91
  %v93 = vpop.f32.mrf.mxu0
  %94 = vmatprep.mubr.bf16.mxu0 0
  %95 = vmatmul.mubr.bf16.gmra.mxu0 %v52
  %v96 = vpop.f32.mrf.mxu0
  %v97 = vadd.f32 %v39, %v96
  %v98 = vpop.f32.mrf.mxu0
  %v99 = vpop.f32.mrf.mxu0
  %v100 = vadd.f32 %v39, %v99
  %v101 = vpop.f32.mrf.mxu0
  %102 = vdwg.mxu0
  %v103 = vpack.c.bf16 %v92, %v89
  %v105 = vunpack.c.l.b16 %v103
  %v106 = vunpack.c.h.b16 %v103
  %v107 = vpack.c.b16 %v105, %v105
  %v108 = vpack.c.b16 %v106, %v106
  %vm111 = vcmask 257024
  %112 = vst.msk [vmem:[%s3] sm:$0xf] %vm111, %v107
  %113 = vst.msk [vmem:[%s3 + $0x4] sm:$0xf] %vm111, %v108
  %116 = vrot.lane.b32.xlu0 %v89, 96
  %v117 = vpop.permute.xlu0 %116
  %118 = vrot.lane.b32.xlu0 %v92, 96
  %v119 = vpop.permute.xlu0 %118
  %vm122 = vcmask 261120
  %123 = vst.msk [vmem:[%s4] sm:$0xff] %vm122, %v117
  %124 = vst.msk [vmem:[%s4 + $0x8] sm:$0xff] %vm122, %v119
  %v125 = vpack.c.bf16 %v100, %v97
  %v127 = vunpack.c.l.b16 %v125
  %v128 = vunpack.c.h.b16 %v125
  %v129 = vpack.c.b16 %v127, %v127
  %v130 = vpack.c.b16 %v128, %v128
  %s133 = scalar_lea.vmem %s3, 8
  %134 = vst.msk [vmem:[%s133] sm:$0xf] %vm111, %v129
  %135 = vst.msk [vmem:[%s133 + $0x4] sm:$0xf] %vm111, %v130
  %138 = vrot.lane.b32.xlu0 %v97, 96
  %v139 = vpop.permute.xlu0 %138
  %140 = vrot.lane.b32.xlu0 %v100, 96
  %v141 = vpop.permute.xlu0 %140
  %s144 = scalar_lea.vmem %s4, 16
  %145 = vst.msk [vmem:[%s144] sm:$0xff] %vm122, %v139
  %146 = vst.msk [vmem:[%s144 + $0x8] sm:$0xff] %vm122, %v141
  // Predicated region
  $region14: #{a_call__.10} parent=0 // pred_check
    _
  $region15: #{a_call__.10} parent=0 // pred_check_branch
    %148 = sbr.rel (0) target = $region17
  $region16: #{a_call__.10} parent=0 // pred_region
    _
  $region17: #{a_call__.10} parent=0 // pred_fallthru
    _
  // Predicated region
  $region18: #{a_call__.10} parent=0 // pred_check
    _
  $region19: #{a_call__.10} parent=0 // pred_check_branch
    %150 = sbr.rel (0) target = $region21
  $region20: #{a_call__.10} parent=0 // pred_region
    _
  $region21: #{a_call__.10} parent=0 // pred_fallthru
    _
  // Predicated region
  $region22: #{a_call__.10} parent=0 // pred_check
    _
  $region23: #{a_call__.10} parent=0 // pred_check_branch
    %152 = sbr.rel (0) target = $region25
  $region24: #{a_call__.10} parent=0 // pred_region
    _
  $region25: #{a_call__.10} parent=0 // pred_fallthru
    _
  // Predicated region
  $region26: #{a_call__.10} parent=0 // pred_check
    _
  $region27: #{a_call__.10} parent=0 // pred_check_branch
    %154 = sbr.rel (0) target = $region29
  $region28: #{a_call__.10} parent=0 // pred_region
    _
  $region29: #{a_call__.10} parent=0 // pred_fallthru
    _

// kernel: a_call__.11
$region0: #{a_call__.11}
  #allocation0 [shape = 'u32[]', space=smem, size = 0x4, offset = 0x4, fixed_abs, tag = 'smem constant byte address 0x4 - core index']
  #allocation1 [shape = 'u32[144,128]{1,0:T(1,128)}', space=vmem, size = 0x12000, scoped, tag = 'internal scratch']
  %s0 = inlined_call_operand.vmem [shape: bf16[2,4,32], index: 0, kind: input, shape index: {}]
  %s1 = inlined_call_operand.vmem [shape: bf16[32,96], index: 1, kind: input, shape index: {}]
  %s2 = inlined_call_operand.vmem [shape: f32[1,96], index: 2, kind: input, shape index: {}]
  %s3 = inlined_call_operand.hbm [shape: bf16[2,4,64], index: 3, kind: output, shape index: {0}]
  %s4 = inlined_call_operand.vmem [shape: f32[2,4,32], index: 4, kind: output, shape index: {1}]
  %5 = xla_tuple %s3, %s4
  %s6 = sld [smem:[#allocation0]]
  $region30: #{a_call__.11} parent=0
    _
  %s8 = ssub.s32 1, %s6
  %s9 = scalar_select 0, %s8, %s6
  $region1: #{a_call__.11} parent=0
    #allocation2 [shape = 'u8[2048]{0}', space=vmem, size = 0x800, scoped, tag = 'output window, operand 0, single buffered']
    #allocation3 [shape = 's32[1]{0}', space=sflag, size = 0x4, scoped, tag = 'scoped memory for a_call__.11']
    %10 = vsyncpa [#allocation3], 0
    // Predicated region
    $region2: #{a_call__.11} parent=1 // pred_check
      _
    $region3: #{a_call__.11} parent=1 // pred_check_branch
      %12 = sbr.rel (0) target = $region5
    $region4: #{a_call__.11} parent=1 // pred_region
      _
    $region5: #{a_call__.11} parent=1 // pred_fallthru
      _
    // Predicated region
    $region6: #{a_call__.11} parent=1 // pred_check
      _
    $region7: #{a_call__.11} parent=1 // pred_check_branch
      %14 = sbr.rel (0) target = $region9
    $region8: #{a_call__.11} parent=1 // pred_region
      _
    $region9: #{a_call__.11} parent=1 // pred_fallthru
      _
    // Predicated region
    $region10: #{a_call__.11} parent=1 // pred_check
      _
    $region11: #{a_call__.11} parent=1 // pred_check_branch
      %16 = sbr.rel (0) target = $region13
    $region12: #{a_call__.11} parent=1 // pred_region
      _
    $region13: #{a_call__.11} parent=1 // pred_fallthru
      _
    %v18 = vld [vmem:[%s0] sm:$0x3]
    %s19 = scalar_lea.vmem %s0, 2
    %v20 = vld [vmem:[%s19] sm:$0x3]
    %v22 = vcombine.low %v20, %v20
    %v24 = vunpack.c.l.s4 1983009808
    %v25 = vunpack.c.0.s8 %v24
    %v26 = vlaneseq
    %v27 = vshrl.u32 %v26, 7
    %v28 = vsub.s32 %v25, %v27
    %v29 = vrot.slane %v22, %v28
    %vm30 = vcmask 1041408
    %v33 = vsel %vm30, %v18, %v29
    %v34 = vld [vmem:[%s1] sm:$0xf]
    %v35 = vld [vmem:[%s1 + $0x4] sm:$0xf]
    %v36 = vld [vmem:[%s1 + $0x8] sm:$0xf]
    %v37 = vld [vmem:[%s1 + $0xc] sm:$0xf]
    %v38 = vld [vmem:[%s2] sm:$0x1]
    %v40 = vlaneseq
    %v41 = vshrl.u32 %v40, 7
    %v42 = vsub.s32 0, %v41
    %v43 = vrot.slane %v38, %v42
    %v49 = vunpack.c.l.b16 %v34
    %v50 = vunpack.c.l.b16 %v35
    %v51 = vunpack.c.l.b16 %v36
    %v52 = vunpack.c.l.b16 %v37
    %v53 = vpack.c.b16 %v50, %v49
    %v54 = vpack.c.b16 %v52, %v51
    %vm57 = vcmask 261120
    %v58 = vsel %vm57, %v33, 0
    %60 = vmatprep.subr.bf16.mxu0 0
    %61 = vmatpush1.bf16.msra.mxu0 0
    %62 = vmatprep.subr.bf16.mxu0 0
    %63 = vmatpush1.bf16.msra.mxu0 0
    %64 = vmatprep.subr.bf16.mxu0 0
    %65 = vmatpush1.bf16.msra.mxu0 0
    %66 = vmatprep.subr.bf16.mxu0 0
    %67 = vmatpush1.bf16.msra.mxu0 0
    %68 = vmatprep.subr.bf16.mxu0 0
    %69 = vmatpush1.bf16.msra.mxu0 0
    %70 = vmatprep.subr.bf16.mxu0 0
    %71 = vmatpush1.bf16.msra.mxu0 0
    %72 = vmatprep.subr.bf16.mxu0 0
    %73 = vmatpush1.bf16.msra.mxu0 %v54
    %74 = vmatprep.subr.bf16.mxu0 0
    %75 = vmatpush1.bf16.msra.mxu0 %v53
    %76 = vmatprep.subr.bf16.mxu0 0
    %77 = vmatpush2.bf16.msra.mxu0 0
    %78 = vmatprep.subr.bf16.mxu0 0
    %79 = vmatpush2.bf16.msra.mxu0 0
    %80 = vmatprep.subr.bf16.mxu0 0
    %81 = vmatpush2.bf16.msra.mxu0 0
    %82 = vmatprep.subr.bf16.mxu0 0
    %83 = vmatpush2.bf16.msra.mxu0 0
    %84 = vmatprep.subr.bf16.mxu0 0
    %85 = vmatpush2.bf16.msra.mxu0 0
    %86 = vmatprep.subr.bf16.mxu0 0
    %87 = vmatpush2.bf16.msra.mxu0 0
    %88 = vmatprep.subr.bf16.mxu0 0
    %89 = vmatpush2.bf16.msra.mxu0 0
    %90 = vmatprep.subr.bf16.mxu0 0
    %91 = vmatpush2.bf16.msra.mxu0 0
    %92 = vmatprep.mubr.bf16.mxu0 0
    %93 = vmatmul.mubr.bf16.gmra.mxu0 %v58
    %v94 = vpop.f32.mrf.mxu0
    %v95 = vadd.f32 %v43, %v94
    %v96 = vpop.f32.mrf.mxu0
    %v97 = vpop.f32.mrf.mxu0
    %v98 = vpop.f32.mrf.mxu0
    %99 = vdwg.mxu0
    %v100 = vpack.c.bf16 %v95, %v95
    %vm101 = vcmask 517120
    %102 = vst.msk [vmem:[#allocation2] sm:$0x3] %vm101, %v100
    %104 = vrot.lane.b32.xlu0 %v95, 64
    %v105 = vpop.permute.xlu0 %104
    %vm107 = vcmask 257024
    %108 = vst.msk [vmem:[%s4] sm:$0xf] %vm107, %v105
    %v111 = vunpack.c.l.s4 1983009808
    %v112 = vunpack.c.0.s8 %v111
    %v113 = vlaneseq
    %v114 = vshrl.u32 %v113, 7
    %v115 = vsub.s32 %v112, %v114
    %v116 = vrot.slane %v100, %v115
    %v117 = vcombine.high %v116, %v116
    %s119 = scalar_lea.vmem [#allocation2], 2
    %120 = vst.msk [vmem:[%s119] sm:$0x3] %vm101, %v117
    %s121 = scalar_lea.vmem %s4, 4
    %vm122 = vcmask 261124
    %123 = vst.msk [vmem:[%s121 - $0x4] sm:$0xf0] %vm122, %v105
    // Predicated region
    $region14: #{a_call__.11} parent=1 // pred_check
      _
    $region15: #{a_call__.11} parent=1 // pred_check_branch
      %125 = sbr.rel (0) target = $region17
    $region16: #{a_call__.11} parent=1 // pred_region
      %s127 = ssub.s32 64, 64
      %128 = vsyncadd [#allocation3], %s127
      %s129 = sshll.u32 [#allocation2], 4
      %s130 = int_to_ptr.vmem [resolvable:$true] %s129
      %135 = dma.vmem_to_hbm [thread:$0]  %s130, 64, %s3, [#allocation3], 32, 32, 2
    $region17: #{a_call__.11} parent=1 // pred_fallthru
      _
    // Predicated region
    $region18: #{a_call__.11} parent=1 // pred_check
      _
    $region19: #{a_call__.11} parent=1 // pred_check_branch
      %137 = sbr.rel (0) target = $region21
    $region20: #{a_call__.11} parent=1 // pred_region
      _
    $region21: #{a_call__.11} parent=1 // pred_fallthru
      _
    // Predicated region
    $region22: #{a_call__.11} parent=1 // pred_check
      _
    $region23: #{a_call__.11} parent=1 // pred_check_branch
      %139 = sbr.rel (0) target = $region25
    $region24: #{a_call__.11} parent=1 // pred_region
      %140 = dma.done [#allocation3], 64
    $region25: #{a_call__.11} parent=1 // pred_fallthru
      _
    // Predicated region
    $region26: #{a_call__.11} parent=1 // pred_check
      _
    $region27: #{a_call__.11} parent=1 // pred_check_branch
      %142 = sbr.rel (0) target = $region29
    $region28: #{a_call__.11} parent=1 // pred_region
      _
    $region29: #{a_call__.11} parent=1 // pred_fallthru
      _
    %143 = vsyncpa [#allocation3], 1

// kernel: a_call__.12
$region0: #{a_call__.12}
  #allocation0 [shape = 'u32[]', space=smem, size = 0x4, offset = 0x4, fixed_abs, tag = 'smem constant byte address 0x4 - core index']
  #allocation1 [shape = 'u32[144,128]{1,0:T(1,128)}', space=vmem, size = 0x12000, scoped, tag = 'internal scratch']
  %s0 = inlined_call_operand.vmem [shape: f32[2,4,32], index: 0, kind: input, shape index: {}]
  %s1 = inlined_call_operand.vmem [shape: bf16[288,32], index: 1, kind: input, shape index: {}]
  %s2 = inlined_call_operand.vmem [shape: f32[4,2], index: 2, kind: input, shape index: {}]
  %s3 = inlined_call_operand.vmem [shape: f32[1,32], index: 3, kind: input, shape index: {}]
  %s4 = inlined_call_operand.vmem [shape: f32[2,4,32], index: 4, kind: output, shape index: {}]
  %s5 = sld [smem:[#allocation0]]
  $region26: #{a_call__.12} parent=0
    _
  %s7 = ssub.s32 1, %s5
  %s8 = scalar_select 0, %s7, %s5
  // Predicated region
  $region2: #{a_call__.12} parent=0 // pred_check
    _
  $region3: #{a_call__.12} parent=0 // pred_check_branch
    %10 = sbr.rel (0) target = $region5
  $region4: #{a_call__.12} parent=0 // pred_region
    _
  $region5: #{a_call__.12} parent=0 // pred_fallthru
    _
  // Predicated region
  $region6: #{a_call__.12} parent=0 // pred_check
    _
  $region7: #{a_call__.12} parent=0 // pred_check_branch
    %12 = sbr.rel (0) target = $region9
  $region8: #{a_call__.12} parent=0 // pred_region
    _
  $region9: #{a_call__.12} parent=0 // pred_fallthru
    _
  // Predicated region
  $region10: #{a_call__.12} parent=0 // pred_check
    _
  $region11: #{a_call__.12} parent=0 // pred_check_branch
    %14 = sbr.rel (0) target = $region13
  $region12: #{a_call__.12} parent=0 // pred_region
    _
  $region13: #{a_call__.12} parent=0 // pred_fallthru
    _
  // Predicated region
  $region14: #{a_call__.12} parent=0 // pred_check
    _
  $region15: #{a_call__.12} parent=0 // pred_check_branch
    %16 = sbr.rel (0) target = $region17
  $region16: #{a_call__.12} parent=0 // pred_region
    _
  $region17: #{a_call__.12} parent=0 // pred_fallthru
    _
  %v18 = vld [vmem:[%s2] sm:$0xf]
  %v19 = vld [vmem:[%s0] sm:$0xf]
  %v20 = vpack.c.bf16 %v19, %v19
  %22 = vset.pattern.permute.xlu0 0
  %23 = vperm.xlu0 %22, %v18
  %v24 = vpop.permute.xlu0 %23
  %v26 = vmul.f32 %v19, %v24
  %v27 = vpack.c.bf16 %v26, %v26
  %28 = vset.pattern.permute.xlu0 1
  %29 = vperm.xlu0 %28, %v18
  %v30 = vpop.permute.xlu0 %29
  %v32 = vmul.f32 %v19, %v30
  %v33 = vpack.c.bf16 %v32, %v32
  %v35 = vshll.u32 %v27, 16
  %v37 = vrot.slane %v35, 7
  %vm39 = vcmask 1041408
  %vm40 = vsmask.f32 1280
  %vm41 = vmand %vm39, %vm40
  %v42 = vsel %vm41, 0, %v37
  %v44 = vrot.slane %v20, 7
  %vm45 = vcmask 1040384
  %v48 = vsel %vm45, 0, %v44
  %v50 = vshrl.u32 %v33, 16
  %v52 = vrot.slane %v50, 7
  %v53 = vshll.u32 %v33, 16
  %v55 = vor.u32 %v52, %v53
  %vm57 = vcmask 1040384
  %vm58 = vsmask.f32 256
  %vm59 = vmand %vm57, %vm58
  %v60 = vsel %vm59, 0, %v55
  %v61 = vshrl.u32 %v27, 16
  %v63 = vrot.slane %v61, 7
  %v64 = vor.u32 %v63, %v35
  %v66 = vsel %vm59, 0, %v64
  %v67 = vrot.slane %v53, 1
  %v68 = vor.u32 %v50, %v67
  %v70 = vsel %vm41, %v68, 0
  %v71 = vrot.slane %v35, 1
  %v72 = vor.u32 %v61, %v71
  %v74 = vsel %vm41, %v72, 0
  %v75 = vrot.slane %v20, 1
  %v77 = vsel %vm45, %v75, 0
  %v78 = vrot.slane %v50, 1
  %v80 = vsel %vm59, %v78, 0
  %82 = vrot.lane.b32.xlu0 %v48, 32
  %v83 = vpop.permute.xlu0 %82
  %85 = vrot.lane.b32.xlu0 %v60, 64
  %v86 = vpop.permute.xlu0 %85
  %88 = vrot.lane.b32.xlu0 %v66, 96
  %v89 = vpop.permute.xlu0 %88
  %91 = vrot.lane.b32.xlu0 %v70, 32
  %v92 = vpop.permute.xlu0 %91
  %94 = vrot.lane.b32.xlu0 %v74, 64
  %v95 = vpop.permute.xlu0 %94
  %97 = vrot.lane.b32.xlu0 %v77, 96
  %v98 = vpop.permute.xlu0 %97
  %vm99 = vcmask 261120
  %v102 = vsel %vm99, %v42, %v83
  %vm103 = vcmask 523264
  %v105 = vsel %vm103, %v102, %v86
  %vm106 = vcmask 785408
  %v108 = vsel %vm106, %v105, %v89
  %v111 = vsel %vm99, %v20, %v92
  %v113 = vsel %vm103, %v111, %v95
  %v115 = vsel %vm106, %v113, %v98
  %s116 = scalar_lea.vmem %s0, 4
  %v117 = vld [vmem:[%s116] sm:$0xf]
  %v118 = vpack.c.bf16 %v117, %v117
  %v119 = vmul.f32 %v117, %v24
  %v120 = vpack.c.bf16 %v119, %v119
  %v121 = vmul.f32 %v117, %v30
  %v122 = vpack.c.bf16 %v121, %v121
  %v124 = vshll.u32 %v120, 16
  %v126 = vrot.slane %v124, 7
  %v128 = vsel %vm41, 0, %v126
  %v130 = vrot.slane %v118, 7
  %v132 = vsel %vm45, 0, %v130
  %v134 = vshrl.u32 %v122, 16
  %v136 = vrot.slane %v134, 7
  %v137 = vshll.u32 %v122, 16
  %v139 = vor.u32 %v136, %v137
  %v141 = vsel %vm59, 0, %v139
  %v142 = vshrl.u32 %v120, 16
  %v144 = vrot.slane %v142, 7
  %v145 = vor.u32 %v144, %v124
  %v147 = vsel %vm59, 0, %v145
  %v148 = vrot.slane %v137, 1
  %v149 = vor.u32 %v134, %v148
  %v151 = vsel %vm41, %v149, 0
  %v152 = vrot.slane %v124, 1
  %v153 = vor.u32 %v142, %v152
  %v155 = vsel %vm41, %v153, 0
  %v156 = vrot.slane %v118, 1
  %v158 = vsel %vm45, %v156, 0
  %v159 = vrot.slane %v134, 1
  %v161 = vsel %vm59, %v159, 0
  %163 = vrot.lane.b32.xlu0 %v132, 32
  %v164 = vpop.permute.xlu0 %163
  %166 = vrot.lane.b32.xlu0 %v141, 64
  %v167 = vpop.permute.xlu0 %166
  %169 = vrot.lane.b32.xlu0 %v147, 96
  %v170 = vpop.permute.xlu0 %169
  %172 = vrot.lane.b32.xlu0 %v151, 32
  %v173 = vpop.permute.xlu0 %172
  %175 = vrot.lane.b32.xlu0 %v155, 64
  %v176 = vpop.permute.xlu0 %175
  %178 = vrot.lane.b32.xlu0 %v158, 96
  %v179 = vpop.permute.xlu0 %178
  %v182 = vsel %vm99, %v128, %v164
  %v184 = vsel %vm103, %v182, %v167
  %v186 = vsel %vm106, %v184, %v170
  %v189 = vsel %vm99, %v118, %v173
  %v191 = vsel %vm103, %v189, %v176
  %v193 = vsel %vm106, %v191, %v179
  %v197 = vrot.slane %v186, 6
  %v198 = vrot.slane %v193, 6
  %v199 = vrot.slane %v161, 6
  %vm200 = vcmask 1041408
  %v202 = vsel %vm200, %v108, %v197
  %v205 = vsel %vm200, %v115, %v198
  %v209 = vsel %vm200, %v80, %v199
  %v210 = vld [vmem:[%s1] sm:$0xf]
  %v211 = vld [vmem:[%s1 + $0x4] sm:$0xf]
  %v212 = vld [vmem:[%s1 + $0x8] sm:$0xf]
  %v213 = vld [vmem:[%s1 + $0xc] sm:$0xf]
  %v214 = vld [vmem:[%s1 + $0x10] sm:$0xf]
  %v215 = vld [vmem:[%s1 + $0x14] sm:$0xf]
  %v216 = vld [vmem:[%s1 + $0x18] sm:$0xf]
  %v217 = vld [vmem:[%s1 + $0x1c] sm:$0xf]
  %v218 = vld [vmem:[%s1 + $0x20] sm:$0xf]
  %v219 = vld [vmem:[%s1 + $0x24] sm:$0xf]
  %v220 = vld [vmem:[%s1 + $0x28] sm:$0xf]
  %v221 = vld [vmem:[%s1 + $0x2c] sm:$0xf]
  %v222 = vld [vmem:[%s1 + $0x30] sm:$0xf]
  %v223 = vld [vmem:[%s1 + $0x34] sm:$0xf]
  %v224 = vld [vmem:[%s1 + $0x38] sm:$0xf]
  %v225 = vld [vmem:[%s1 + $0x3c] sm:$0xf]
  %v226 = vld [vmem:[%s1 + $0x40] sm:$0xf]
  %v227 = vld [vmem:[%s1 + $0x44] sm:$0xf]
  %v228 = vld [vmem:[%s1 + $0x48] sm:$0xf]
  %v229 = vld [vmem:[%s1 + $0x4c] sm:$0xf]
  %v230 = vld [vmem:[%s1 + $0x50] sm:$0xf]
  %v231 = vld [vmem:[%s1 + $0x54] sm:$0xf]
  %v232 = vld [vmem:[%s1 + $0x58] sm:$0xf]
  %v233 = vld [vmem:[%s1 + $0x5c] sm:$0xf]
  %v234 = vld [vmem:[%s1 + $0x60] sm:$0xf]
  %v235 = vld [vmem:[%s1 + $0x64] sm:$0xf]
  %v236 = vld [vmem:[%s1 + $0x68] sm:$0xf]
  %v237 = vld [vmem:[%s1 + $0x6c] sm:$0xf]
  %v238 = vld [vmem:[%s1 + $0x70] sm:$0xf]
  %v239 = vld [vmem:[%s1 + $0x74] sm:$0xf]
  %v240 = vld [vmem:[%s1 + $0x78] sm:$0xf]
  %v241 = vld [vmem:[%s1 + $0x7c] sm:$0xf]
  %v242 = vld [vmem:[%s1 + $0x80] sm:$0xf]
  %v243 = vld [vmem:[%s1 + $0x84] sm:$0xf]
  %v244 = vld [vmem:[%s1 + $0x88] sm:$0xf]
  %v245 = vld [vmem:[%s1 + $0x8c] sm:$0xf]
  %v246 = vld [vmem:[%s3] sm:$0x1]
  %v248 = vlaneseq
  %v249 = vshrl.u32 %v248, 7
  %v250 = vsub.s32 0, %v249
  %v251 = vrot.slane %v246, %v250
  %v289 = vunpack.c.l.b16 %v210
  %v290 = vunpack.c.l.b16 %v211
  %v291 = vunpack.c.l.b16 %v212
  %v292 = vunpack.c.l.b16 %v213
  %v293 = vunpack.c.l.b16 %v214
  %v294 = vunpack.c.l.b16 %v215
  %v295 = vunpack.c.l.b16 %v216
  %v296 = vunpack.c.l.b16 %v217
  %v297 = vunpack.c.l.b16 %v218
  %v298 = vunpack.c.l.b16 %v219
  %v299 = vunpack.c.l.b16 %v220
  %v300 = vunpack.c.l.b16 %v221
  %v301 = vunpack.c.l.b16 %v222
  %v302 = vunpack.c.l.b16 %v223
  %v303 = vunpack.c.l.b16 %v224
  %v304 = vunpack.c.l.b16 %v225
  %v305 = vunpack.c.l.b16 %v226
  %v306 = vunpack.c.l.b16 %v227
  %v307 = vunpack.c.l.b16 %v228
  %v308 = vunpack.c.l.b16 %v229
  %v309 = vunpack.c.l.b16 %v230
  %v310 = vunpack.c.l.b16 %v231
  %v311 = vunpack.c.l.b16 %v232
  %v312 = vunpack.c.l.b16 %v233
  %v313 = vunpack.c.l.b16 %v234
  %v314 = vunpack.c.l.b16 %v235
  %v315 = vunpack.c.l.b16 %v236
  %v316 = vunpack.c.l.b16 %v237
  %v317 = vunpack.c.l.b16 %v238
  %v318 = vunpack.c.l.b16 %v239
  %v319 = vunpack.c.l.b16 %v240
  %v320 = vunpack.c.l.b16 %v241
  %v321 = vunpack.c.l.b16 %v242
  %v322 = vunpack.c.l.b16 %v243
  %v323 = vunpack.c.l.b16 %v244
  %v324 = vunpack.c.l.b16 %v245
  %v325 = vpack.c.b16 %v290, %v289
  %v326 = vpack.c.b16 %v292, %v291
  %v327 = vpack.c.b16 %v294, %v293
  %v328 = vpack.c.b16 %v296, %v295
  %v329 = vpack.c.b16 %v298, %v297
  %v330 = vpack.c.b16 %v300, %v299
  %v331 = vpack.c.b16 %v302, %v301
  %v332 = vpack.c.b16 %v304, %v303
  %v333 = vpack.c.b16 %v306, %v305
  %v334 = vpack.c.b16 %v308, %v307
  %v335 = vpack.c.b16 %v310, %v309
  %v336 = vpack.c.b16 %v312, %v311
  %v337 = vpack.c.b16 %v314, %v313
  %v338 = vpack.c.b16 %v316, %v315
  %v339 = vpack.c.b16 %v318, %v317
  %v340 = vpack.c.b16 %v320, %v319
  %v341 = vpack.c.b16 %v322, %v321
  %v342 = vpack.c.b16 %v324, %v323
  %v361 = vsel %vm99, %v209, 0
  %363 = vmatprep.subr.bf16.mxu0 0
  %364 = vmatpush1.bf16.msra.mxu0 %v332
  %365 = vmatprep.subr.bf16.mxu0 0
  %366 = vmatpush1.bf16.msra.mxu0 %v331
  %367 = vmatprep.subr.bf16.mxu0 0
  %368 = vmatpush1.bf16.msra.mxu0 %v330
  %369 = vmatprep.subr.bf16.mxu0 0
  %370 = vmatpush1.bf16.msra.mxu0 %v329
  %371 = vmatprep.subr.bf16.mxu0 0
  %372 = vmatpush1.bf16.msra.mxu0 %v328
  %373 = vmatprep.subr.bf16.mxu0 0
  %374 = vmatpush1.bf16.msra.mxu0 %v327
  %375 = vmatprep.subr.bf16.mxu0 0
  %376 = vmatpush1.bf16.msra.mxu0 %v326
  %377 = vmatprep.subr.bf16.mxu0 0
  %378 = vmatpush1.bf16.msra.mxu0 %v325
  %379 = vmatprep.subr.bf16.mxu0 0
  %380 = vmatpush2.bf16.msra.mxu0 %v340
  %381 = vmatprep.subr.bf16.mxu0 0
  %382 = vmatpush2.bf16.msra.mxu0 %v339
  %383 = vmatprep.subr.bf16.mxu0 0
  %384 = vmatpush2.bf16.msra.mxu0 %v338
  %385 = vmatprep.subr.bf16.mxu0 0
  %386 = vmatpush2.bf16.msra.mxu0 %v337
  %387 = vmatprep.subr.bf16.mxu0 0
  %388 = vmatpush2.bf16.msra.mxu0 %v336
  %389 = vmatprep.subr.bf16.mxu0 0
  %390 = vmatpush2.bf16.msra.mxu0 %v335
  %391 = vmatprep.subr.bf16.mxu0 0
  %392 = vmatpush2.bf16.msra.mxu0 %v334
  %393 = vmatprep.subr.bf16.mxu0 0
  %394 = vmatpush2.bf16.msra.mxu0 %v333
  %395 = vmatprep.mubr.bf16.mxu0 %v205
  %396 = vmatmul.mubr.bf16.gmra.mxu0 %v202
  %v397 = vpop.f32.mrf.mxu0
  %v398 = vadd.f32 %v251, %v397
  %v399 = vpop.f32.mrf.mxu0
  %v400 = vpop.f32.mrf.mxu0
  %v401 = vpop.f32.mrf.mxu0
  %402 = vdwg.mxu0
  %403 = vmatprep.subr.bf16.mxu0 0
  %404 = vmatpush1.bf16.msra.mxu0 0
  %405 = vmatprep.subr.bf16.mxu0 0
  %406 = vmatpush1.bf16.msra.mxu0 0
  %407 = vmatprep.subr.bf16.mxu0 0
  %408 = vmatpush1.bf16.msra.mxu0 0
  %409 = vmatprep.subr.bf16.mxu0 0
  %410 = vmatpush1.bf16.msra.mxu0 0
  %411 = vmatprep.subr.bf16.mxu0 0
  %412 = vmatpush1.bf16.msra.mxu0 0
  %413 = vmatprep.subr.bf16.mxu0 0
  %414 = vmatpush1.bf16.msra.mxu0 0
  %415 = vmatprep.subr.bf16.mxu0 0
  %416 = vmatpush1.bf16.msra.mxu0 %v342
  %417 = vmatprep.subr.bf16.mxu0 0
  %418 = vmatpush1.bf16.msra.mxu0 %v341
  %419 = vmatprep.subr.bf16.mxu0 0
  %420 = vmatpush2.bf16.msra.mxu0 0
  %421 = vmatprep.subr.bf16.mxu0 0
  %422 = vmatpush2.bf16.msra.mxu0 0
  %423 = vmatprep.subr.bf16.mxu0 0
  %424 = vmatpush2.bf16.msra.mxu0 0
  %425 = vmatprep.subr.bf16.mxu0 0
  %426 = vmatpush2.bf16.msra.mxu0 0
  %427 = vmatprep.subr.bf16.mxu0 0
  %428 = vmatpush2.bf16.msra.mxu0 0
  %429 = vmatprep.subr.bf16.mxu0 0
  %430 = vmatpush2.bf16.msra.mxu0 0
  %431 = vmatprep.subr.bf16.mxu0 0
  %432 = vmatpush2.bf16.msra.mxu0 0
  %433 = vmatprep.subr.bf16.mxu0 0
  %434 = vmatpush2.bf16.msra.mxu0 0
  %435 = vmatprep.mubr.bf16.mxu0 0
  %436 = vmatmul.mubr.bf16.gmra.mxu0 %v361
  %v437 = vpop.f32.mrf.mxu0
  %v438 = vadd.f32 %v398, %v437
  %v439 = vpop.f32.mrf.mxu0
  %v440 = vpop.f32.mrf.mxu0
  %v441 = vpop.f32.mrf.mxu0
  %442 = vdwg.mxu0
  %v443 = vmax.f32 %v438, 0.0
  %vm444 = vcmask 257024
  %445 = vst.msk [vmem:[%s4] sm:$0xf] %vm444, %v443
  %s446 = scalar_lea.vmem %s4, 4
  %vm447 = vcmask 261124
  %448 = vst.msk [vmem:[%s446 - $0x4] sm:$0xf0] %vm447, %v443
  // Predicated region
  $region18: #{a_call__.12} parent=0 // pred_check
    _
  $region19: #{a_call__.12} parent=0 // pred_check_branch
    %450 = sbr.rel (0) target = $region21
  $region20: #{a_call__.12} parent=0 // pred_region
    _
  $region21: #{a_call__.12} parent=0 // pred_fallthru
    _
  // Predicated region
  $region22: #{a_call__.12} parent=0 // pred_check
    _
  $region23: #{a_call__.12} parent=0 // pred_check_branch
    %452 = sbr.rel (0) target = $region25
  $region24: #{a_call__.12} parent=0 // pred_region
    _
  $region25: #{a_call__.12} parent=0 // pred_fallthru
    _

// kernel: a_call__.13
$region0: #{a_call__.13}
  #allocation0 [shape = 'u32[]', space=smem, size = 0x4, offset = 0x4, fixed_abs, tag = 'smem constant byte address 0x4 - core index']
  #allocation1 [shape = 'u32[144,128]{1,0:T(1,128)}', space=vmem, size = 0x12000, scoped, tag = 'internal scratch']
  %s0 = inlined_call_operand.vmem [shape: f32[2,16,32], index: 0, kind: input, shape index: {}]
  %s1 = inlined_call_operand.vmem [shape: f32[2,4,32], index: 1, kind: input, shape index: {}]
  %s2 = inlined_call_operand.vmem [shape: bf16[16,4], index: 2, kind: input, shape index: {}]
  %s3 = inlined_call_operand.vmem [shape: bf16[288,32], index: 3, kind: input, shape index: {}]
  %s4 = inlined_call_operand.vmem [shape: f32[16,2], index: 4, kind: input, shape index: {}]
  %s5 = inlined_call_operand.vmem [shape: f32[1,32], index: 5, kind: input, shape index: {}]
  %s6 = inlined_call_operand.vmem [shape: f32[2,16,32], index: 6, kind: output, shape index: {}]
  %s7 = sld [smem:[#allocation0]]
  $region34: #{a_call__.13} parent=0
    _
  %s9 = ssub.s32 1, %s7
  %s10 = scalar_select 0, %s9, %s7
  // Predicated region
  $region2: #{a_call__.13} parent=0 // pred_check
    _
  $region3: #{a_call__.13} parent=0 // pred_check_branch
    %12 = sbr.rel (0) target = $region5
  $region4: #{a_call__.13} parent=0 // pred_region
    _
  $region5: #{a_call__.13} parent=0 // pred_fallthru
    _
  // Predicated region
  $region6: #{a_call__.13} parent=0 // pred_check
    _
  $region7: #{a_call__.13} parent=0 // pred_check_branch
    %14 = sbr.rel (0) target = $region9
  $region8: #{a_call__.13} parent=0 // pred_region
    _
  $region9: #{a_call__.13} parent=0 // pred_fallthru
    _
  // Predicated region
  $region10: #{a_call__.13} parent=0 // pred_check
    _
  $region11: #{a_call__.13} parent=0 // pred_check_branch
    %16 = sbr.rel (0) target = $region13
  $region12: #{a_call__.13} parent=0 // pred_region
    _
  $region13: #{a_call__.13} parent=0 // pred_fallthru
    _
  // Predicated region
  $region14: #{a_call__.13} parent=0 // pred_check
    _
  $region15: #{a_call__.13} parent=0 // pred_check_branch
    %18 = sbr.rel (0) target = $region17
  $region16: #{a_call__.13} parent=0 // pred_region
    _
  $region17: #{a_call__.13} parent=0 // pred_fallthru
    _
  // Predicated region
  $region18: #{a_call__.13} parent=0 // pred_check
    _
  $region19: #{a_call__.13} parent=0 // pred_check_branch
    %20 = sbr.rel (0) target = $region21
  $region20: #{a_call__.13} parent=0 // pred_region
    _
  $region21: #{a_call__.13} parent=0 // pred_fallthru
    _
  // Predicated region
  $region22: #{a_call__.13} parent=0 // pred_check
    _
  $region23: #{a_call__.13} parent=0 // pred_check_branch
    %22 = sbr.rel (0) target = $region25
  $region24: #{a_call__.13} parent=0 // pred_region
    _
  $region25: #{a_call__.13} parent=0 // pred_fallthru
    _
  %v24 = vld [vmem:[%s4] sm:$0xff]
  %v25 = vld [vmem:[%s4 + $0x8] sm:$0xff]
  %v26 = vld [vmem:[%s0] sm:$0xff]
  %v27 = vld [vmem:[%s0 + $0x8] sm:$0xff]
  %v28 = vld [vmem:[%s1] sm:$0xf]
  %v29 = vpack.c.bf16 %v28, %v28
  %v30 = vld [vmem:[%s2] sm:$0xf]
  %v31 = vld [vmem:[%s2 + $0x4] sm:$0xf]
  %v34 = vunpack.c.l.b16 %v30
  %v35 = vunpack.c.l.b16 %v31
  %v36 = vpack.c.b16 %v35, %v34
  %vm37 = vcmask 31744
  %v39 = vsel %vm37, %v36, 0
  %vm41 = vcmask 1041408
  %v43 = vsel %vm41, %v29, 0
  %45 = vmatprep.subr.bf16.mxu0 0
  %46 = vmatpush1.bf16.msra.mxu0 0
  %47 = vmatprep.subr.bf16.mxu0 0
  %48 = vmatpush1.bf16.msra.mxu0 0
  %49 = vmatprep.subr.bf16.mxu0 0
  %50 = vmatpush1.bf16.msra.mxu0 0
  %51 = vmatprep.subr.bf16.mxu0 0
  %52 = vmatpush1.bf16.msra.mxu0 0
  %53 = vmatprep.subr.bf16.mxu0 0
  %54 = vmatpush1.bf16.msra.mxu0 0
  %55 = vmatprep.subr.bf16.mxu0 0
  %56 = vmatpush1.bf16.msra.mxu0 0
  %57 = vmatprep.subr.bf16.mxu0 0
  %58 = vmatpush1.bf16.msra.mxu0 0
  %59 = vmatprep.subr.bf16.mxu0 0
  %60 = vmatpush1.bf16.msra.mxu0 %v43
  %61 = vmatprep.subr.bf16.mxu0 0
  %62 = vmatpush2.bf16.msra.mxu0 0
  %63 = vmatprep.subr.bf16.mxu0 0
  %64 = vmatpush2.bf16.msra.mxu0 0
  %65 = vmatprep.subr.bf16.mxu0 0
  %66 = vmatpush2.bf16.msra.mxu0 0
  %67 = vmatprep.subr.bf16.mxu0 0
  %68 = vmatpush2.bf16.msra.mxu0 0
  %69 = vmatprep.subr.bf16.mxu0 0
  %70 = vmatpush2.bf16.msra.mxu0 0
  %71 = vmatprep.subr.bf16.mxu0 0
  %72 = vmatpush2.bf16.msra.mxu0 0
  %73 = vmatprep.subr.bf16.mxu0 0
  %74 = vmatpush2.bf16.msra.mxu0 0
  %75 = vmatprep.subr.bf16.mxu0 0
  %76 = vmatpush2.bf16.msra.mxu0 0
  %77 = vmatprep.mubr.bf16.mxu0 0
  %78 = vmatmul.mubr.bf16.gmra.mxu0 %v39
  %v79 = vpop.f32.mrf.mxu0
  %v80 = vadd.f32 0.0, %v79
  %v81 = vpop.f32.mrf.mxu0
  %v82 = vpop.f32.mrf.mxu0
  %v83 = vadd.f32 0.0, %v82
  %v84 = vpop.f32.mrf.mxu0
  %85 = vdwg.mxu0
  %v86 = vadd.f32 %v26, %v80
  %v87 = vadd.f32 %v27, %v83
  %v88 = vpack.c.bf16 %v87, %v86
  %90 = vset.pattern.permute.xlu0 0
  %91 = vperm.xlu0 %90, %v24
  %v92 = vpop.permute.xlu0 %91
  %95 = vset.pattern.permute.xlu0 0
  %96 = vperm.xlu0 %95, %v25
  %v97 = vpop.permute.xlu0 %96
  %v99 = vmul.f32 %v86, %v92
  %v100 = vmul.f32 %v87, %v97
  %v101 = vpack.c.bf16 %v100, %v99
  %102 = vset.pattern.permute.xlu0 1
  %103 = vperm.xlu0 %102, %v24
  %v104 = vpop.permute.xlu0 %103
  %106 = vset.pattern.permute.xlu0 1
  %107 = vperm.xlu0 %106, %v25
  %v108 = vpop.permute.xlu0 %107
  %v110 = vmul.f32 %v86, %v104
  %v111 = vmul.f32 %v87, %v108
  %v112 = vpack.c.bf16 %v111, %v110
  %v114 = vshrl.u32 %v101, 16
  %v116 = vrot.slane %v114, 5
  %v117 = vshll.u32 %v101, 16
  %v119 = vrot.slane %v117, 6
  %v120 = vor.u32 %v116, %v119
  %vm122 = vcmask 1042432
  %vm123 = vsmask.f32 2304
  %vm124 = vmand %vm122, %vm123
  %v125 = vsel %vm124, 0, %v120
  %v127 = vrot.slane %v88, 6
  %v130 = vsel %vm41, 0, %v127
  %v132 = vshrl.u32 %v112, 16
  %v134 = vrot.slane %v132, 6
  %v135 = vshll.u32 %v112, 16
  %v137 = vrot.slane %v135, 7
  %v138 = vor.u32 %v134, %v137
  %vm140 = vcmask 1041408
  %vm141 = vsmask.f32 1280
  %vm142 = vmand %vm140, %vm141
  %v143 = vsel %vm142, 0, %v138
  %v144 = vrot.slane %v114, 7
  %v145 = vor.u32 %v144, %v117
  %vm147 = vcmask 1040384
  %vm148 = vsmask.f32 256
  %vm149 = vmand %vm147, %vm148
  %v150 = vsel %vm149, 0, %v145
  %v151 = vrot.slane %v135, 1
  %v152 = vor.u32 %v132, %v151
  %vm154 = vcmask 1047552
  %vm155 = vsmask.f32 7424
  %vm156 = vmand %vm154, %vm155
  %v157 = vsel %vm156, %v152, 0
  %v158 = vrot.slane %v114, 1
  %v159 = vrot.slane %v117, 2
  %v160 = vor.u32 %v158, %v159
  %vm162 = vcmask 1046528
  %vm163 = vsmask.f32 6400
  %vm164 = vmand %vm162, %vm163
  %v165 = vsel %vm164, %v160, 0
  %v166 = vrot.slane %v88, 2
  %vm167 = vcmask 1045504
  %v169 = vsel %vm167, %v166, 0
  %v170 = vrot.slane %v132, 2
  %v171 = vrot.slane %v135, 3
  %v172 = vor.u32 %v170, %v171
  %vm174 = vcmask 1045504
  %vm175 = vsmask.f32 5376
  %vm176 = vmand %vm174, %vm175
  %v177 = vsel %vm176, %v172, 0
  %179 = vrot.lane.b32.xlu0 %v130, 32
  %v180 = vpop.permute.xlu0 %179
  %182 = vrot.lane.b32.xlu0 %v143, 64
  %v183 = vpop.permute.xlu0 %182
  %185 = vrot.lane.b32.xlu0 %v150, 96
  %v186 = vpop.permute.xlu0 %185
  %188 = vrot.lane.b32.xlu0 %v157, 32
  %v189 = vpop.permute.xlu0 %188
  %191 = vrot.lane.b32.xlu0 %v165, 64
  %v192 = vpop.permute.xlu0 %191
  %194 = vrot.lane.b32.xlu0 %v169, 96
  %v195 = vpop.permute.xlu0 %194
  %vm196 = vcmask 261120
  %v199 = vsel %vm196, %v125, %v180
  %vm200 = vcmask 523264
  %v202 = vsel %vm200, %v199, %v183
  %vm203 = vcmask 785408
  %v205 = vsel %vm203, %v202, %v186
  %v209 = vsel %vm196, %v88, %v189
  %v211 = vsel %vm200, %v209, %v192
  %v213 = vsel %vm203, %v211, %v195
  %s215 = scalar_lea.vmem %s0, 16
  %v216 = vld [vmem:[%s215] sm:$0xff]
  %v217 = vld [vmem:[%s215 + $0x8] sm:$0xff]
  %s218 = scalar_lea.vmem %s1, 4
  %v219 = vld [vmem:[%s218] sm:$0xf]
  %v220 = vpack.c.bf16 %v219, %v219
  %v222 = vsel %vm41, %v220, 0
  %224 = vmatprep.subr.bf16.mxu0 0
  %225 = vmatpush1.bf16.msra.mxu0 0
  %226 = vmatprep.subr.bf16.mxu0 0
  %227 = vmatpush1.bf16.msra.mxu0 0
  %228 = vmatprep.subr.bf16.mxu0 0
  %229 = vmatpush1.bf16.msra.mxu0 0
  %230 = vmatprep.subr.bf16.mxu0 0
  %231 = vmatpush1.bf16.msra.mxu0 0
  %232 = vmatprep.subr.bf16.mxu0 0
  %233 = vmatpush1.bf16.msra.mxu0 0
  %234 = vmatprep.subr.bf16.mxu0 0
  %235 = vmatpush1.bf16.msra.mxu0 0
  %236 = vmatprep.subr.bf16.mxu0 0
  %237 = vmatpush1.bf16.msra.mxu0 0
  %238 = vmatprep.subr.bf16.mxu0 0
  %239 = vmatpush1.bf16.msra.mxu0 %v222
  %240 = vmatprep.subr.bf16.mxu0 0
  %241 = vmatpush2.bf16.msra.mxu0 0
  %242 = vmatprep.subr.bf16.mxu0 0
  %243 = vmatpush2.bf16.msra.mxu0 0
  %244 = vmatprep.subr.bf16.mxu0 0
  %245 = vmatpush2.bf16.msra.mxu0 0
  %246 = vmatprep.subr.bf16.mxu0 0
  %247 = vmatpush2.bf16.msra.mxu0 0
  %248 = vmatprep.subr.bf16.mxu0 0
  %249 = vmatpush2.bf16.msra.mxu0 0
  %250 = vmatprep.subr.bf16.mxu0 0
  %251 = vmatpush2.bf16.msra.mxu0 0
  %252 = vmatprep.subr.bf16.mxu0 0
  %253 = vmatpush2.bf16.msra.mxu0 0
  %254 = vmatprep.subr.bf16.mxu0 0
  %255 = vmatpush2.bf16.msra.mxu0 0
  %256 = vmatprep.mubr.bf16.mxu0 0
  %257 = vmatmul.mubr.bf16.gmra.mxu0 %v39
  %v258 = vpop.f32.mrf.mxu0
  %v259 = vadd.f32 0.0, %v258
  %v260 = vpop.f32.mrf.mxu0
  %v261 = vpop.f32.mrf.mxu0
  %v262 = vadd.f32 0.0, %v261
  %v263 = vpop.f32.mrf.mxu0
  %264 = vdwg.mxu0
  %v265 = vadd.f32 %v216, %v259
  %v266 = vadd.f32 %v217, %v262
  %v267 = vpack.c.bf16 %v266, %v265
  %v268 = vmul.f32 %v265, %v92
  %v269 = vmul.f32 %v266, %v97
  %v270 = vpack.c.bf16 %v269, %v268
  %v271 = vmul.f32 %v265, %v104
  %v272 = vmul.f32 %v266, %v108
  %v273 = vpack.c.bf16 %v272, %v271
  %v275 = vshrl.u32 %v270, 16
  %v277 = vrot.slane %v275, 5
  %v278 = vshll.u32 %v270, 16
  %v280 = vrot.slane %v278, 6
  %v281 = vor.u32 %v277, %v280
  %v283 = vsel %vm124, 0, %v281
  %v285 = vrot.slane %v267, 6
  %v287 = vsel %vm41, 0, %v285
  %v289 = vshrl.u32 %v273, 16
  %v291 = vrot.slane %v289, 6
  %v292 = vshll.u32 %v273, 16
  %v294 = vrot.slane %v292, 7
  %v295 = vor.u32 %v291, %v294
  %v297 = vsel %vm142, 0, %v295
  %v298 = vrot.slane %v275, 7
  %v299 = vor.u32 %v298, %v278
  %v301 = vsel %vm149, 0, %v299
  %v302 = vrot.slane %v292, 1
  %v303 = vor.u32 %v289, %v302
  %v305 = vsel %vm156, %v303, 0
  %v306 = vrot.slane %v275, 1
  %v307 = vrot.slane %v278, 2
  %v308 = vor.u32 %v306, %v307
  %v310 = vsel %vm164, %v308, 0
  %v311 = vrot.slane %v267, 2
  %v313 = vsel %vm167, %v311, 0
  %v314 = vrot.slane %v289, 2
  %v315 = vrot.slane %v292, 3
  %v316 = vor.u32 %v314, %v315
  %v318 = vsel %vm176, %v316, 0
  %320 = vrot.lane.b32.xlu0 %v287, 32
  %v321 = vpop.permute.xlu0 %320
  %323 = vrot.lane.b32.xlu0 %v297, 64
  %v324 = vpop.permute.xlu0 %323
  %326 = vrot.lane.b32.xlu0 %v301, 96
  %v327 = vpop.permute.xlu0 %326
  %329 = vrot.lane.b32.xlu0 %v305, 32
  %v330 = vpop.permute.xlu0 %329
  %332 = vrot.lane.b32.xlu0 %v310, 64
  %v333 = vpop.permute.xlu0 %332
  %335 = vrot.lane.b32.xlu0 %v313, 96
  %v336 = vpop.permute.xlu0 %335
  %v339 = vsel %vm196, %v283, %v321
  %v341 = vsel %vm200, %v339, %v324
  %v343 = vsel %vm203, %v341, %v327
  %v347 = vsel %vm196, %v267, %v330
  %v349 = vsel %vm200, %v347, %v333
  %v351 = vsel %vm203, %v349, %v336
  %v353 = vld [vmem:[%s3] sm:$0xf]
  %v354 = vld [vmem:[%s3 + $0x4] sm:$0xf]
  %v355 = vld [vmem:[%s3 + $0x8] sm:$0xf]
  %v356 = vld [vmem:[%s3 + $0xc] sm:$0xf]
  %v357 = vld [vmem:[%s3 + $0x10] sm:$0xf]
  %v358 = vld [vmem:[%s3 + $0x14] sm:$0xf]
  %v359 = vld [vmem:[%s3 + $0x18] sm:$0xf]
  %v360 = vld [vmem:[%s3 + $0x1c] sm:$0xf]
  %v361 = vld [vmem:[%s3 + $0x20] sm:$0xf]
  %v362 = vld [vmem:[%s3 + $0x24] sm:$0xf]
  %v363 = vld [vmem:[%s3 + $0x28] sm:$0xf]
  %v364 = vld [vmem:[%s3 + $0x2c] sm:$0xf]
  %v365 = vld [vmem:[%s3 + $0x30] sm:$0xf]
  %v366 = vld [vmem:[%s3 + $0x34] sm:$0xf]
  %v367 = vld [vmem:[%s3 + $0x38] sm:$0xf]
  %v368 = vld [vmem:[%s3 + $0x3c] sm:$0xf]
  %v369 = vld [vmem:[%s3 + $0x40] sm:$0xf]
  %v370 = vld [vmem:[%s3 + $0x44] sm:$0xf]
  %v371 = vld [vmem:[%s3 + $0x48] sm:$0xf]
  %v372 = vld [vmem:[%s3 + $0x4c] sm:$0xf]
  %v373 = vld [vmem:[%s3 + $0x50] sm:$0xf]
  %v374 = vld [vmem:[%s3 + $0x54] sm:$0xf]
  %v375 = vld [vmem:[%s3 + $0x58] sm:$0xf]
  %v376 = vld [vmem:[%s3 + $0x5c] sm:$0xf]
  %v377 = vld [vmem:[%s3 + $0x60] sm:$0xf]
  %v378 = vld [vmem:[%s3 + $0x64] sm:$0xf]
  %v379 = vld [vmem:[%s3 + $0x68] sm:$0xf]
  %v380 = vld [vmem:[%s3 + $0x6c] sm:$0xf]
  %v381 = vld [vmem:[%s3 + $0x70] sm:$0xf]
  %v382 = vld [vmem:[%s3 + $0x74] sm:$0xf]
  %v383 = vld [vmem:[%s3 + $0x78] sm:$0xf]
  %v384 = vld [vmem:[%s3 + $0x7c] sm:$0xf]
  %v385 = vld [vmem:[%s3 + $0x80] sm:$0xf]
  %v386 = vld [vmem:[%s3 + $0x84] sm:$0xf]
  %v387 = vld [vmem:[%s3 + $0x88] sm:$0xf]
  %v388 = vld [vmem:[%s3 + $0x8c] sm:$0xf]
  %v389 = vld [vmem:[%s5] sm:$0x1]
  %v391 = vlaneseq
  %v392 = vshrl.u32 %v391, 7
  %v393 = vsub.s32 0, %v392
  %v394 = vrot.slane %v389, %v393
  %v432 = vunpack.c.l.b16 %v353
  %v433 = vunpack.c.l.b16 %v354
  %v434 = vunpack.c.l.b16 %v355
  %v435 = vunpack.c.l.b16 %v356
  %v436 = vunpack.c.l.b16 %v357
  %v437 = vunpack.c.l.b16 %v358
  %v438 = vunpack.c.l.b16 %v359
  %v439 = vunpack.c.l.b16 %v360
  %v440 = vunpack.c.l.b16 %v361
  %v441 = vunpack.c.l.b16 %v362
  %v442 = vunpack.c.l.b16 %v363
  %v443 = vunpack.c.l.b16 %v364
  %v444 = vunpack.c.l.b16 %v365
  %v445 = vunpack.c.l.b16 %v366
  %v446 = vunpack.c.l.b16 %v367
  %v447 = vunpack.c.l.b16 %v368
  %v448 = vunpack.c.l.b16 %v369
  %v449 = vunpack.c.l.b16 %v370
  %v450 = vunpack.c.l.b16 %v371
  %v451 = vunpack.c.l.b16 %v372
  %v452 = vunpack.c.l.b16 %v373
  %v453 = vunpack.c.l.b16 %v374
  %v454 = vunpack.c.l.b16 %v375
  %v455 = vunpack.c.l.b16 %v376
  %v456 = vunpack.c.l.b16 %v377
  %v457 = vunpack.c.l.b16 %v378
  %v458 = vunpack.c.l.b16 %v379
  %v459 = vunpack.c.l.b16 %v380
  %v460 = vunpack.c.l.b16 %v381
  %v461 = vunpack.c.l.b16 %v382
  %v462 = vunpack.c.l.b16 %v383
  %v463 = vunpack.c.l.b16 %v384
  %v464 = vunpack.c.l.b16 %v385
  %v465 = vunpack.c.l.b16 %v386
  %v466 = vunpack.c.l.b16 %v387
  %v467 = vunpack.c.l.b16 %v388
  %v468 = vpack.c.b16 %v433, %v432
  %v469 = vpack.c.b16 %v435, %v434
  %v470 = vpack.c.b16 %v437, %v436
  %v471 = vpack.c.b16 %v439, %v438
  %v472 = vpack.c.b16 %v441, %v440
  %v473 = vpack.c.b16 %v443, %v442
  %v474 = vpack.c.b16 %v445, %v444
  %v475 = vpack.c.b16 %v447, %v446
  %v476 = vpack.c.b16 %v449, %v448
  %v477 = vpack.c.b16 %v451, %v450
  %v478 = vpack.c.b16 %v453, %v452
  %v479 = vpack.c.b16 %v455, %v454
  %v480 = vpack.c.b16 %v457, %v456
  %v481 = vpack.c.b16 %v459, %v458
  %v482 = vpack.c.b16 %v461, %v460
  %v483 = vpack.c.b16 %v463, %v462
  %v484 = vpack.c.b16 %v465, %v464
  %v485 = vpack.c.b16 %v467, %v466
  %v505 = vsel %vm196, %v177, 0
  %v508 = vsel %vm196, %v318, 0
  %510 = vmatprep.subr.bf16.mxu0 0
  %511 = vmatpush1.bf16.msra.mxu0 %v475
  %512 = vmatprep.subr.bf16.mxu0 0
  %513 = vmatpush1.bf16.msra.mxu0 %v474
  %514 = vmatprep.subr.bf16.mxu0 0
  %515 = vmatpush1.bf16.msra.mxu0 %v473
  %516 = vmatprep.subr.bf16.mxu0 0
  %517 = vmatpush1.bf16.msra.mxu0 %v472
  %518 = vmatprep.subr.bf16.mxu0 0
  %519 = vmatpush1.bf16.msra.mxu0 %v471
  %520 = vmatprep.subr.bf16.mxu0 0
  %521 = vmatpush1.bf16.msra.mxu0 %v470
  %522 = vmatprep.subr.bf16.mxu0 0
  %523 = vmatpush1.bf16.msra.mxu0 %v469
  %524 = vmatprep.subr.bf16.mxu0 0
  %525 = vmatpush1.bf16.msra.mxu0 %v468
  %526 = vmatprep.subr.bf16.mxu0 0
  %527 = vmatpush2.bf16.msra.mxu0 %v483
  %528 = vmatprep.subr.bf16.mxu0 0
  %529 = vmatpush2.bf16.msra.mxu0 %v482
  %530 = vmatprep.subr.bf16.mxu0 0
  %531 = vmatpush2.bf16.msra.mxu0 %v481
  %532 = vmatprep.subr.bf16.mxu0 0
  %533 = vmatpush2.bf16.msra.mxu0 %v480
  %534 = vmatprep.subr.bf16.mxu0 0
  %535 = vmatpush2.bf16.msra.mxu0 %v479
  %536 = vmatprep.subr.bf16.mxu0 0
  %537 = vmatpush2.bf16.msra.mxu0 %v478
  %538 = vmatprep.subr.bf16.mxu0 0
  %539 = vmatpush2.bf16.msra.mxu0 %v477
  %540 = vmatprep.subr.bf16.mxu0 0
  %541 = vmatpush2.bf16.msra.mxu0 %v476
  %542 = vmatprep.mubr.bf16.mxu0 %v213
  %543 = vmatmul.mubr.bf16.gmra.mxu0 %v205
  %v544 = vpop.f32.mrf.mxu0
  %v545 = vadd.f32 %v394, %v544
  %v546 = vpop.f32.mrf.mxu0
  %v547 = vpop.f32.mrf.mxu0
  %v548 = vadd.f32 %v394, %v547
  %v549 = vpop.f32.mrf.mxu0
  %550 = vmatprep.mubr.bf16.mxu0 %v351
  %551 = vmatmul.mubr.bf16.gmra.mxu0 %v343
  %v552 = vpop.f32.mrf.mxu0
  %v553 = vadd.f32 %v394, %v552
  %v554 = vpop.f32.mrf.mxu0
  %v555 = vpop.f32.mrf.mxu0
  %v556 = vadd.f32 %v394, %v555
  %v557 = vpop.f32.mrf.mxu0
  %558 = vdwg.mxu0
  %559 = vmatprep.subr.bf16.mxu0 0
  %560 = vmatpush1.bf16.msra.mxu0 0
  %561 = vmatprep.subr.bf16.mxu0 0
  %562 = vmatpush1.bf16.msra.mxu0 0
  %563 = vmatprep.subr.bf16.mxu0 0
  %564 = vmatpush1.bf16.msra.mxu0 0
  %565 = vmatprep.subr.bf16.mxu0 0
  %566 = vmatpush1.bf16.msra.mxu0 0
  %567 = vmatprep.subr.bf16.mxu0 0
  %568 = vmatpush1.bf16.msra.mxu0 0
  %569 = vmatprep.subr.bf16.mxu0 0
  %570 = vmatpush1.bf16.msra.mxu0 0
  %571 = vmatprep.subr.bf16.mxu0 0
  %572 = vmatpush1.bf16.msra.mxu0 %v485
  %573 = vmatprep.subr.bf16.mxu0 0
  %574 = vmatpush1.bf16.msra.mxu0 %v484
  %575 = vmatprep.subr.bf16.mxu0 0
  %576 = vmatpush2.bf16.msra.mxu0 0
  %577 = vmatprep.subr.bf16.mxu0 0
  %578 = vmatpush2.bf16.msra.mxu0 0
  %579 = vmatprep.subr.bf16.mxu0 0
  %580 = vmatpush2.bf16.msra.mxu0 0
  %581 = vmatprep.subr.bf16.mxu0 0
  %582 = vmatpush2.bf16.msra.mxu0 0
  %583 = vmatprep.subr.bf16.mxu0 0
  %584 = vmatpush2.bf16.msra.mxu0 0
  %585 = vmatprep.subr.bf16.mxu0 0
  %586 = vmatpush2.bf16.msra.mxu0 0
  %587 = vmatprep.subr.bf16.mxu0 0
  %588 = vmatpush2.bf16.msra.mxu0 0
  %589 = vmatprep.subr.bf16.mxu0 0
  %590 = vmatpush2.bf16.msra.mxu0 0
  %591 = vmatprep.mubr.bf16.mxu0 0
  %592 = vmatmul.mubr.bf16.gmra.mxu0 %v505
  %v593 = vpop.f32.mrf.mxu0
  %v594 = vadd.f32 %v545, %v593
  %v595 = vpop.f32.mrf.mxu0
  %v596 = vpop.f32.mrf.mxu0
  %v597 = vadd.f32 %v548, %v596
  %v598 = vpop.f32.mrf.mxu0
  %599 = vmatprep.mubr.bf16.mxu0 0
  %600 = vmatmul.mubr.bf16.gmra.mxu0 %v508
  %v601 = vpop.f32.mrf.mxu0
  %v602 = vadd.f32 %v553, %v601
  %v603 = vpop.f32.mrf.mxu0
  %v604 = vpop.f32.mrf.mxu0
  %v605 = vadd.f32 %v556, %v604
  %v606 = vpop.f32.mrf.mxu0
  %607 = vdwg.mxu0
  %v608 = vmax.f32 %v594, 0.0
  %v609 = vmax.f32 %v597, 0.0
  %v610 = vmax.f32 %v602, 0.0
  %v611 = vmax.f32 %v605, 0.0
  %612 = vst.msk [vmem:[%s6] sm:$0xff] %vm196, %v608
  %613 = vst.msk [vmem:[%s6 + $0x8] sm:$0xff] %vm196, %v609
  %s614 = scalar_lea.vmem %s6, 16
  %615 = vst.msk [vmem:[%s614] sm:$0xff] %vm196, %v610
  %616 = vst.msk [vmem:[%s614 + $0x8] sm:$0xff] %vm196, %v611
  // Predicated region
  $region26: #{a_call__.13} parent=0 // pred_check
    _
  $region27: #{a_call__.13} parent=0 // pred_check_branch
    %618 = sbr.rel (0) target = $region29
  $region28: #{a_call__.13} parent=0 // pred_region
    _
  $region29: #{a_call__.13} parent=0 // pred_fallthru
    _
  // Predicated region
  $region30: #{a_call__.13} parent=0 // pred_check
    _
  $region31: #{a_call__.13} parent=0 // pred_check_branch
    %620 = sbr.rel (0) target = $region33
  $region32: #{a_call__.13} parent=0 // pred_region
    _
  $region33: #{a_call__.13} parent=0 // pred_fallthru
    _

// kernel: a_call__.14
$region0: #{a_call__.14}
  #allocation0 [shape = 'u32[]', space=smem, size = 0x4, offset = 0x4, fixed_abs, tag = 'smem constant byte address 0x4 - core index']
  #allocation1 [shape = 'u32[144,128]{1,0:T(1,128)}', space=vmem, size = 0x12000, scoped, tag = 'internal scratch']
  %s0 = inlined_call_operand.vmem [shape: f32[2,64,32], index: 0, kind: input, shape index: {}]
  %s1 = inlined_call_operand.vmem [shape: f32[2,16,32], index: 1, kind: input, shape index: {}]
  %s2 = inlined_call_operand.vmem [shape: bf16[64,16], index: 2, kind: input, shape index: {}]
  %s3 = inlined_call_operand.vmem [shape: bf16[288,32], index: 3, kind: input, shape index: {}]
  %s4 = inlined_call_operand.vmem [shape: f32[64,2], index: 4, kind: input, shape index: {}]
  %s5 = inlined_call_operand.vmem [shape: f32[1,32], index: 5, kind: input, shape index: {}]
  %s6 = inlined_call_operand.vmem [shape: f32[2,64,32], index: 6, kind: output, shape index: {}]
  %s7 = sld [smem:[#allocation0]]
  $region34: #{a_call__.14} parent=0
    _
  %s9 = ssub.s32 1, %s7
  %s10 = scalar_select 0, %s9, %s7
  // Predicated region
  $region2: #{a_call__.14} parent=0 // pred_check
    _
  $region3: #{a_call__.14} parent=0 // pred_check_branch
    %12 = sbr.rel (0) target = $region5
  $region4: #{a_call__.14} parent=0 // pred_region
    _
  $region5: #{a_call__.14} parent=0 // pred_fallthru
    _
  // Predicated region
  $region6: #{a_call__.14} parent=0 // pred_check
    _
  $region7: #{a_call__.14} parent=0 // pred_check_branch
    %14 = sbr.rel (0) target = $region9
  $region8: #{a_call__.14} parent=0 // pred_region
    _
  $region9: #{a_call__.14} parent=0 // pred_fallthru
    _
  // Predicated region
  $region10: #{a_call__.14} parent=0 // pred_check
    _
  $region11: #{a_call__.14} parent=0 // pred_check_branch
    %16 = sbr.rel (0) target = $region13
  $region12: #{a_call__.14} parent=0 // pred_region
    _
  $region13: #{a_call__.14} parent=0 // pred_fallthru
    _
  // Predicated region
  $region14: #{a_call__.14} parent=0 // pred_check
    _
  $region15: #{a_call__.14} parent=0 // pred_check_branch
    %18 = sbr.rel (0) target = $region17
  $region16: #{a_call__.14} parent=0 // pred_region
    _
  $region17: #{a_call__.14} parent=0 // pred_fallthru
    _
  // Predicated region
  $region18: #{a_call__.14} parent=0 // pred_check
    _
  $region19: #{a_call__.14} parent=0 // pred_check_branch
    %20 = sbr.rel (0) target = $region21
  $region20: #{a_call__.14} parent=0 // pred_region
    _
  $region21: #{a_call__.14} parent=0 // pred_fallthru
    _
  // Predicated region
  $region22: #{a_call__.14} parent=0 // pred_check
    _
  $region23: #{a_call__.14} parent=0 // pred_check_branch
    %22 = sbr.rel (0) target = $region25
  $region24: #{a_call__.14} parent=0 // pred_region
    _
  $region25: #{a_call__.14} parent=0 // pred_fallthru
    _
  %v24 = vld [vmem:[%s4] sm:$0xff]
  %v25 = vld [vmem:[%s4 + $0x8] sm:$0xff]
  %v26 = vld [vmem:[%s4 + $0x10] sm:$0xff]
  %v27 = vld [vmem:[%s4 + $0x18] sm:$0xff]
  %v28 = vld [vmem:[%s4 + $0x20] sm:$0xff]
  %v29 = vld [vmem:[%s4 + $0x28] sm:$0xff]
  %v30 = vld [vmem:[%s4 + $0x30] sm:$0xff]
  %v31 = vld [vmem:[%s4 + $0x38] sm:$0xff]
  %v32 = vld [vmem:[%s0] sm:$0xff]
  %v33 = vld [vmem:[%s0 + $0x8] sm:$0xff]
  %v34 = vld [vmem:[%s0 + $0x10] sm:$0xff]
  %v35 = vld [vmem:[%s0 + $0x18] sm:$0xff]
  %v36 = vld [vmem:[%s0 + $0x20] sm:$0xff]
  %v37 = vld [vmem:[%s0 + $0x28] sm:$0xff]
  %v38 = vld [vmem:[%s0 + $0x30] sm:$0xff]
  %v39 = vld [vmem:[%s0 + $0x38] sm:$0xff]
  %v40 = vld [vmem:[%s1] sm:$0xff]
  %v41 = vld [vmem:[%s1 + $0x8] sm:$0xff]
  %v42 = vpack.c.bf16 %v41, %v40
  %v43 = vld [vmem:[%s2] sm:$0xf]
  %v44 = vld [vmem:[%s2 + $0x4] sm:$0xf]
  %v45 = vld [vmem:[%s2 + $0x8] sm:$0xf]
  %v46 = vld [vmem:[%s2 + $0xc] sm:$0xf]
  %v47 = vld [vmem:[%s2 + $0x10] sm:$0xf]
  %v48 = vld [vmem:[%s2 + $0x14] sm:$0xf]
  %v49 = vld [vmem:[%s2 + $0x18] sm:$0xf]
  %v50 = vld [vmem:[%s2 + $0x1c] sm:$0xf]
  %v59 = vunpack.c.l.b16 %v43
  %v60 = vunpack.c.l.b16 %v44
  %v61 = vunpack.c.l.b16 %v45
  %v62 = vunpack.c.l.b16 %v46
  %v63 = vunpack.c.l.b16 %v47
  %v64 = vunpack.c.l.b16 %v48
  %v65 = vunpack.c.l.b16 %v49
  %v66 = vunpack.c.l.b16 %v50
  %v67 = vpack.c.b16 %v60, %v59
  %v68 = vpack.c.b16 %v62, %v61
  %v69 = vpack.c.b16 %v64, %v63
  %v70 = vpack.c.b16 %v66, %v65
  %vm71 = vcmask 130048
  %v73 = vsel %vm71, %v67, 0
  %v76 = vsel %vm71, %v68, 0
  %v79 = vsel %vm71, %v69, 0
  %v82 = vsel %vm71, %v70, 0
  %84 = vmatprep.subr.bf16.mxu0 0
  %85 = vmatpush1.bf16.msra.mxu0 0
  %86 = vmatprep.subr.bf16.mxu0 0
  %87 = vmatpush1.bf16.msra.mxu0 0
  %88 = vmatprep.subr.bf16.mxu0 0
  %89 = vmatpush1.bf16.msra.mxu0 0
  %90 = vmatprep.subr.bf16.mxu0 0
  %91 = vmatpush1.bf16.msra.mxu0 0
  %92 = vmatprep.subr.bf16.mxu0 0
  %93 = vmatpush1.bf16.msra.mxu0 0
  %94 = vmatprep.subr.bf16.mxu0 0
  %95 = vmatpush1.bf16.msra.mxu0 0
  %96 = vmatprep.subr.bf16.mxu0 0
  %97 = vmatpush1.bf16.msra.mxu0 0
  %98 = vmatprep.subr.bf16.mxu0 0
  %99 = vmatpush1.bf16.msra.mxu0 %v42
  %100 = vmatprep.subr.bf16.mxu0 0
  %101 = vmatpush2.bf16.msra.mxu0 0
  %102 = vmatprep.subr.bf16.mxu0 0
  %103 = vmatpush2.bf16.msra.mxu0 0
  %104 = vmatprep.subr.bf16.mxu0 0
  %105 = vmatpush2.bf16.msra.mxu0 0
  %106 = vmatprep.subr.bf16.mxu0 0
  %107 = vmatpush2.bf16.msra.mxu0 0
  %108 = vmatprep.subr.bf16.mxu0 0
  %109 = vmatpush2.bf16.msra.mxu0 0
  %110 = vmatprep.subr.bf16.mxu0 0
  %111 = vmatpush2.bf16.msra.mxu0 0
  %112 = vmatprep.subr.bf16.mxu0 0
  %113 = vmatpush2.bf16.msra.mxu0 0
  %114 = vmatprep.subr.bf16.mxu0 0
  %115 = vmatpush2.bf16.msra.mxu0 0
  %116 = vmatprep.mubr.bf16.mxu0 0
  %117 = vmatmul.mubr.bf16.gmra.mxu0 %v73
  %v118 = vpop.f32.mrf.mxu0
  %v119 = vadd.f32 0.0, %v118
  %v120 = vpop.f32.mrf.mxu0
  %v121 = vpop.f32.mrf.mxu0
  %v122 = vadd.f32 0.0, %v121
  %v123 = vpop.f32.mrf.mxu0
  %124 = vmatprep.mubr.bf16.mxu0 0
  %125 = vmatmul.mubr.bf16.gmra.mxu0 %v76
  %v126 = vpop.f32.mrf.mxu0
  %v127 = vadd.f32 0.0, %v126
  %v128 = vpop.f32.mrf.mxu0
  %v129 = vpop.f32.mrf.mxu0
  %v130 = vadd.f32 0.0, %v129
  %v131 = vpop.f32.mrf.mxu0
  %132 = vmatprep.mubr.bf16.mxu0 0
  %133 = vmatmul.mubr.bf16.gmra.mxu0 %v79
  %v134 = vpop.f32.mrf.mxu0
  %v135 = vadd.f32 0.0, %v134
  %v136 = vpop.f32.mrf.mxu0
  %v137 = vpop.f32.mrf.mxu0
  %v138 = vadd.f32 0.0, %v137
  %v139 = vpop.f32.mrf.mxu0
  %140 = vmatprep.mubr.bf16.mxu0 0
  %141 = vmatmul.mubr.bf16.gmra.mxu0 %v82
  %v142 = vpop.f32.mrf.mxu0
  %v143 = vadd.f32 0.0, %v142
  %v144 = vpop.f32.mrf.mxu0
  %v145 = vpop.f32.mrf.mxu0
  %v146 = vadd.f32 0.0, %v145
  %v147 = vpop.f32.mrf.mxu0
  %148 = vdwg.mxu0
  %v149 = vadd.f32 %v32, %v119
  %v150 = vadd.f32 %v33, %v122
  %v151 = vadd.f32 %v34, %v127
  %v152 = vadd.f32 %v35, %v130
  %v153 = vadd.f32 %v36, %v135
  %v154 = vadd.f32 %v37, %v138
  %v155 = vadd.f32 %v38, %v143
  %v156 = vadd.f32 %v39, %v146
  %v157 = vpack.c.bf16 %v150, %v149
  %v158 = vpack.c.bf16 %v152, %v151
  %v159 = vpack.c.bf16 %v154, %v153
  %v160 = vpack.c.bf16 %v156, %v155
  %162 = vset.pattern.permute.xlu0 0
  %163 = vperm.xlu0 %162, %v24
  %v164 = vpop.permute.xlu0 %163
  %167 = vset.pattern.permute.xlu0 0
  %168 = vperm.xlu0 %167, %v25
  %v169 = vpop.permute.xlu0 %168
  %172 = vset.pattern.permute.xlu0 0
  %173 = vperm.xlu0 %172, %v26
  %v174 = vpop.permute.xlu0 %173
  %177 = vset.pattern.permute.xlu0 0
  %178 = vperm.xlu0 %177, %v27
  %v179 = vpop.permute.xlu0 %178
  %182 = vset.pattern.permute.xlu0 0
  %183 = vperm.xlu0 %182, %v28
  %v184 = vpop.permute.xlu0 %183
  %187 = vset.pattern.permute.xlu0 0
  %188 = vperm.xlu0 %187, %v29
  %v189 = vpop.permute.xlu0 %188
  %192 = vset.pattern.permute.xlu0 0
  %193 = vperm.xlu0 %192, %v30
  %v194 = vpop.permute.xlu0 %193
  %197 = vset.pattern.permute.xlu0 0
  %198 = vperm.xlu0 %197, %v31
  %v199 = vpop.permute.xlu0 %198
  %v201 = vmul.f32 %v149, %v164
  %v202 = vmul.f32 %v150, %v169
  %v203 = vmul.f32 %v151, %v174
  %v204 = vmul.f32 %v152, %v179
  %v205 = vmul.f32 %v153, %v184
  %v206 = vmul.f32 %v154, %v189
  %v207 = vmul.f32 %v155, %v194
  %v208 = vmul.f32 %v156, %v199
  %v209 = vpack.c.bf16 %v202, %v201
  %v210 = vpack.c.bf16 %v204, %v203
  %v211 = vpack.c.bf16 %v206, %v205
  %v212 = vpack.c.bf16 %v208, %v207
  %213 = vset.pattern.permute.xlu0 1
  %214 = vperm.xlu0 %213, %v24
  %v215 = vpop.permute.xlu0 %214
  %217 = vset.pattern.permute.xlu0 1
  %218 = vperm.xlu0 %217, %v25
  %v219 = vpop.permute.xlu0 %218
  %221 = vset.pattern.permute.xlu0 1
  %222 = vperm.xlu0 %221, %v26
  %v223 = vpop.permute.xlu0 %222
  %225 = vset.pattern.permute.xlu0 1
  %226 = vperm.xlu0 %225, %v27
  %v227 = vpop.permute.xlu0 %226
  %229 = vset.pattern.permute.xlu0 1
  %230 = vperm.xlu0 %229, %v28
  %v231 = vpop.permute.xlu0 %230
  %233 = vset.pattern.permute.xlu0 1
  %234 = vperm.xlu0 %233, %v29
  %v235 = vpop.permute.xlu0 %234
  %237 = vset.pattern.permute.xlu0 1
  %238 = vperm.xlu0 %237, %v30
  %v239 = vpop.permute.xlu0 %238
  %241 = vset.pattern.permute.xlu0 1
  %242 = vperm.xlu0 %241, %v31
  %v243 = vpop.permute.xlu0 %242
  %v245 = vmul.f32 %v149, %v215
  %v246 = vmul.f32 %v150, %v219
  %v247 = vmul.f32 %v151, %v223
  %v248 = vmul.f32 %v152, %v227
  %v249 = vmul.f32 %v153, %v231
  %v250 = vmul.f32 %v154, %v235
  %v251 = vmul.f32 %v155, %v239
  %v252 = vmul.f32 %v156, %v243
  %v253 = vpack.c.bf16 %v246, %v245
  %v254 = vpack.c.bf16 %v248, %v247
  %v255 = vpack.c.bf16 %v250, %v249
  %v256 = vpack.c.bf16 %v252, %v251
  %vm257 = vsmask.f32 4352
  %v259 = vshrl.u32 %v209, 16
  %v261 = vrot.slane %v259, 3
  %v262 = vshll.u32 %v209, 16
  %v264 = vrot.slane %v262, 4
  %v265 = vor.u32 %v261, %v264
  %v267 = vshrl.u32 %v210, 16
  %v269 = vrot.slane %v267, 3
  %v270 = vshll.u32 %v210, 16
  %v272 = vrot.slane %v270, 4
  %v273 = vor.u32 %v269, %v272
  %v274 = vsel %vm257, %v265, %v273
  %v276 = vshrl.u32 %v211, 16
  %v278 = vrot.slane %v276, 3
  %v279 = vshll.u32 %v211, 16
  %v281 = vrot.slane %v279, 4
  %v282 = vor.u32 %v278, %v281
  %v283 = vsel %vm257, %v273, %v282
  %v285 = vshrl.u32 %v212, 16
  %v287 = vrot.slane %v285, 3
  %v288 = vshll.u32 %v212, 16
  %v290 = vrot.slane %v288, 4
  %v291 = vor.u32 %v287, %v290
  %v292 = vsel %vm257, %v282, %v291
  %vm294 = vcmask 1044480
  %vm295 = vmand %vm294, %vm257
  %v296 = vsel %vm295, 0, %v265
  %vm301 = vcmask 1043456
  %v302 = vrot.slane %v157, 4
  %v303 = vrot.slane %v158, 4
  %v304 = vsel %vm301, %v302, %v303
  %v305 = vrot.slane %v159, 4
  %v306 = vsel %vm301, %v303, %v305
  %v307 = vrot.slane %v160, 4
  %v308 = vsel %vm301, %v305, %v307
  %vm309 = vcmask 1043456
  %v312 = vsel %vm309, 0, %v302
  %vm313 = vsmask.f32 3328
  %v315 = vshrl.u32 %v253, 16
  %v317 = vrot.slane %v315, 4
  %v318 = vshll.u32 %v253, 16
  %v320 = vrot.slane %v318, 5
  %v321 = vor.u32 %v317, %v320
  %v323 = vshrl.u32 %v254, 16
  %v325 = vrot.slane %v323, 4
  %v326 = vshll.u32 %v254, 16
  %v328 = vrot.slane %v326, 5
  %v329 = vor.u32 %v325, %v328
  %v330 = vsel %vm313, %v321, %v329
  %v332 = vshrl.u32 %v255, 16
  %v334 = vrot.slane %v332, 4
  %v335 = vshll.u32 %v255, 16
  %v337 = vrot.slane %v335, 5
  %v338 = vor.u32 %v334, %v337
  %v339 = vsel %vm313, %v329, %v338
  %v341 = vshrl.u32 %v256, 16
  %v343 = vrot.slane %v341, 4
  %v344 = vshll.u32 %v256, 16
  %v346 = vrot.slane %v344, 5
  %v347 = vor.u32 %v343, %v346
  %v348 = vsel %vm313, %v338, %v347
  %vm350 = vmand %vm301, %vm313
  %v351 = vsel %vm350, 0, %v321
  %vm352 = vsmask.f32 256
  %v353 = vrot.slane %v259, 7
  %v354 = vor.u32 %v353, %v262
  %v355 = vrot.slane %v267, 7
  %v356 = vor.u32 %v355, %v270
  %v357 = vsel %vm352, %v353, %v356
  %v358 = vrot.slane %v276, 7
  %v359 = vor.u32 %v358, %v279
  %v360 = vsel %vm352, %v355, %v359
  %v361 = vrot.slane %v285, 7
  %v362 = vor.u32 %v361, %v288
  %v363 = vsel %vm352, %v358, %v362
  %vm365 = vcmask 1040384
  %vm366 = vmand %vm365, %vm352
  %v367 = vsel %vm366, 0, %v354
  %vm368 = vsmask.f32 7424
  %v369 = vrot.slane %v318, 1
  %v370 = vor.u32 %v315, %v369
  %v371 = vrot.slane %v326, 1
  %v372 = vsel %vm368, %v370, %v371
  %v373 = vor.u32 %v323, %v371
  %v374 = vrot.slane %v335, 1
  %v375 = vsel %vm368, %v373, %v374
  %v376 = vor.u32 %v332, %v374
  %v377 = vrot.slane %v344, 1
  %v378 = vsel %vm368, %v376, %v377
  %v379 = vor.u32 %v341, %v377
  %vm381 = vcmask 1047552
  %vm382 = vmand %vm381, %vm368
  %v383 = vsel %vm382, %v379, 0
  %v385 = vsel %vm295, %v291, 0
  %v387 = vsel %vm309, %v307, 0
  %v389 = vsel %vm350, %v347, 0
  %391 = vrot.lane.b32.xlu0 %v312, 32
  %v392 = vpop.permute.xlu0 %391
  %393 = vrot.lane.b32.xlu0 %v304, 32
  %v394 = vpop.permute.xlu0 %393
  %395 = vrot.lane.b32.xlu0 %v306, 32
  %v396 = vpop.permute.xlu0 %395
  %397 = vrot.lane.b32.xlu0 %v308, 32
  %v398 = vpop.permute.xlu0 %397
  %400 = vrot.lane.b32.xlu0 %v351, 64
  %v401 = vpop.permute.xlu0 %400
  %402 = vrot.lane.b32.xlu0 %v330, 64
  %v403 = vpop.permute.xlu0 %402
  %404 = vrot.lane.b32.xlu0 %v339, 64
  %v405 = vpop.permute.xlu0 %404
  %406 = vrot.lane.b32.xlu0 %v348, 64
  %v407 = vpop.permute.xlu0 %406
  %409 = vrot.lane.b32.xlu0 %v367, 96
  %v410 = vpop.permute.xlu0 %409
  %411 = vrot.lane.b32.xlu0 %v357, 96
  %v412 = vpop.permute.xlu0 %411
  %413 = vrot.lane.b32.xlu0 %v360, 96
  %v414 = vpop.permute.xlu0 %413
  %415 = vrot.lane.b32.xlu0 %v363, 96
  %v416 = vpop.permute.xlu0 %415
  %418 = vrot.lane.b32.xlu0 %v372, 32
  %v419 = vpop.permute.xlu0 %418
  %420 = vrot.lane.b32.xlu0 %v375, 32
  %v421 = vpop.permute.xlu0 %420
  %422 = vrot.lane.b32.xlu0 %v378, 32
  %v423 = vpop.permute.xlu0 %422
  %424 = vrot.lane.b32.xlu0 %v383, 32
  %v425 = vpop.permute.xlu0 %424
  %427 = vrot.lane.b32.xlu0 %v274, 64
  %v428 = vpop.permute.xlu0 %427
  %429 = vrot.lane.b32.xlu0 %v283, 64
  %v430 = vpop.permute.xlu0 %429
  %431 = vrot.lane.b32.xlu0 %v292, 64
  %v432 = vpop.permute.xlu0 %431
  %433 = vrot.lane.b32.xlu0 %v385, 64
  %v434 = vpop.permute.xlu0 %433
  %436 = vrot.lane.b32.xlu0 %v304, 96
  %v437 = vpop.permute.xlu0 %436
  %438 = vrot.lane.b32.xlu0 %v306, 96
  %v439 = vpop.permute.xlu0 %438
  %440 = vrot.lane.b32.xlu0 %v308, 96
  %v441 = vpop.permute.xlu0 %440
  %442 = vrot.lane.b32.xlu0 %v387, 96
  %v443 = vpop.permute.xlu0 %442
  %vm444 = vcmask 261120
  %v447 = vsel %vm444, %v296, %v392
  %v450 = vsel %vm444, %v274, %v394
  %v453 = vsel %vm444, %v283, %v396
  %v456 = vsel %vm444, %v292, %v398
  %vm457 = vcmask 523264
  %v459 = vsel %vm457, %v447, %v401
  %v461 = vsel %vm457, %v450, %v403
  %v463 = vsel %vm457, %v453, %v405
  %v465 = vsel %vm457, %v456, %v407
  %vm466 = vcmask 785408
  %v468 = vsel %vm466, %v459, %v410
  %v471 = vsel %vm466, %v461, %v412
  %v474 = vsel %vm466, %v463, %v414
  %v477 = vsel %vm466, %v465, %v416
  %v481 = vsel %vm444, %v157, %v419
  %v484 = vsel %vm444, %v158, %v421
  %v487 = vsel %vm444, %v159, %v423
  %v490 = vsel %vm444, %v160, %v425
  %v492 = vsel %vm457, %v481, %v428
  %v494 = vsel %vm457, %v484, %v430
  %v496 = vsel %vm457, %v487, %v432
  %v498 = vsel %vm457, %v490, %v434
  %v500 = vsel %vm466, %v492, %v437
  %v503 = vsel %vm466, %v494, %v439
  %v506 = vsel %vm466, %v496, %v441
  %v509 = vsel %vm466, %v498, %v443
  %s511 = scalar_lea.vmem %s0, 64
  %v512 = vld [vmem:[%s511] sm:$0xff]
  %v513 = vld [vmem:[%s511 + $0x8] sm:$0xff]
  %v514 = vld [vmem:[%s511 + $0x10] sm:$0xff]
  %v515 = vld [vmem:[%s511 + $0x18] sm:$0xff]
  %v516 = vld [vmem:[%s511 + $0x20] sm:$0xff]
  %v517 = vld [vmem:[%s511 + $0x28] sm:$0xff]
  %v518 = vld [vmem:[%s511 + $0x30] sm:$0xff]
  %v519 = vld [vmem:[%s511 + $0x38] sm:$0xff]
  %s520 = scalar_lea.vmem %s1, 16
  %v521 = vld [vmem:[%s520] sm:$0xff]
  %v522 = vld [vmem:[%s520 + $0x8] sm:$0xff]
  %v523 = vpack.c.bf16 %v522, %v521
  %524 = vmatprep.subr.bf16.mxu0 0
  %525 = vmatpush1.bf16.msra.mxu0 0
  %526 = vmatprep.subr.bf16.mxu0 0
  %527 = vmatpush1.bf16.msra.mxu0 0
  %528 = vmatprep.subr.bf16.mxu0 0
  %529 = vmatpush1.bf16.msra.mxu0 0
  %530 = vmatprep.subr.bf16.mxu0 0
  %531 = vmatpush1.bf16.msra.mxu0 0
  %532 = vmatprep.subr.bf16.mxu0 0
  %533 = vmatpush1.bf16.msra.mxu0 0
  %534 = vmatprep.subr.bf16.mxu0 0
  %535 = vmatpush1.bf16.msra.mxu0 0
  %536 = vmatprep.subr.bf16.mxu0 0
  %537 = vmatpush1.bf16.msra.mxu0 0
  %538 = vmatprep.subr.bf16.mxu0 0
  %539 = vmatpush1.bf16.msra.mxu0 %v523
  %540 = vmatprep.subr.bf16.mxu0 0
  %541 = vmatpush2.bf16.msra.mxu0 0
  %542 = vmatprep.subr.bf16.mxu0 0
  %543 = vmatpush2.bf16.msra.mxu0 0
  %544 = vmatprep.subr.bf16.mxu0 0
  %545 = vmatpush2.bf16.msra.mxu0 0
  %546 = vmatprep.subr.bf16.mxu0 0
  %547 = vmatpush2.bf16.msra.mxu0 0
  %548 = vmatprep.subr.bf16.mxu0 0
  %549 = vmatpush2.bf16.msra.mxu0 0
  %550 = vmatprep.subr.bf16.mxu0 0
  %551 = vmatpush2.bf16.msra.mxu0 0
  %552 = vmatprep.subr.bf16.mxu0 0
  %553 = vmatpush2.bf16.msra.mxu0 0
  %554 = vmatprep.subr.bf16.mxu0 0
  %555 = vmatpush2.bf16.msra.mxu0 0
  %556 = vmatprep.mubr.bf16.mxu0 0
  %557 = vmatmul.mubr.bf16.gmra.mxu0 %v73
  %v558 = vpop.f32.mrf.mxu0
  %v559 = vadd.f32 0.0, %v558
  %v560 = vpop.f32.mrf.mxu0
  %v561 = vpop.f32.mrf.mxu0
  %v562 = vadd.f32 0.0, %v561
  %v563 = vpop.f32.mrf.mxu0
  %564 = vmatprep.mubr.bf16.mxu0 0
  %565 = vmatmul.mubr.bf16.gmra.mxu0 %v76
  %v566 = vpop.f32.mrf.mxu0
  %v567 = vadd.f32 0.0, %v566
  %v568 = vpop.f32.mrf.mxu0
  %v569 = vpop.f32.mrf.mxu0
  %v570 = vadd.f32 0.0, %v569
  %v571 = vpop.f32.mrf.mxu0
  %572 = vmatprep.mubr.bf16.mxu0 0
  %573 = vmatmul.mubr.bf16.gmra.mxu0 %v79
  %v574 = vpop.f32.mrf.mxu0
  %v575 = vadd.f32 0.0, %v574
  %v576 = vpop.f32.mrf.mxu0
  %v577 = vpop.f32.mrf.mxu0
  %v578 = vadd.f32 0.0, %v577
  %v579 = vpop.f32.mrf.mxu0
  %580 = vmatprep.mubr.bf16.mxu0 0
  %581 = vmatmul.mubr.bf16.gmra.mxu0 %v82
  %v582 = vpop.f32.mrf.mxu0
  %v583 = vadd.f32 0.0, %v582
  %v584 = vpop.f32.mrf.mxu0
  %v585 = vpop.f32.mrf.mxu0
  %v586 = vadd.f32 0.0, %v585
  %v587 = vpop.f32.mrf.mxu0
  %588 = vdwg.mxu0
  %v589 = vadd.f32 %v512, %v559
  %v590 = vadd.f32 %v513, %v562
  %v591 = vadd.f32 %v514, %v567
  %v592 = vadd.f32 %v515, %v570
  %v593 = vadd.f32 %v516, %v575
  %v594 = vadd.f32 %v517, %v578
  %v595 = vadd.f32 %v518, %v583
  %v596 = vadd.f32 %v519, %v586
  %v597 = vpack.c.bf16 %v590, %v589
  %v598 = vpack.c.bf16 %v592, %v591
  %v599 = vpack.c.bf16 %v594, %v593
  %v600 = vpack.c.bf16 %v596, %v595
  %v601 = vmul.f32 %v589, %v164
  %v602 = vmul.f32 %v590, %v169
  %v603 = vmul.f32 %v591, %v174
  %v604 = vmul.f32 %v592, %v179
  %v605 = vmul.f32 %v593, %v184
  %v606 = vmul.f32 %v594, %v189
  %v607 = vmul.f32 %v595, %v194
  %v608 = vmul.f32 %v596, %v199
  %v609 = vpack.c.bf16 %v602, %v601
  %v610 = vpack.c.bf16 %v604, %v603
  %v611 = vpack.c.bf16 %v606, %v605
  %v612 = vpack.c.bf16 %v608, %v607
  %v613 = vmul.f32 %v589, %v215
  %v614 = vmul.f32 %v590, %v219
  %v615 = vmul.f32 %v591, %v223
  %v616 = vmul.f32 %v592, %v227
  %v617 = vmul.f32 %v593, %v231
  %v618 = vmul.f32 %v594, %v235
  %v619 = vmul.f32 %v595, %v239
  %v620 = vmul.f32 %v596, %v243
  %v621 = vpack.c.bf16 %v614, %v613
  %v622 = vpack.c.bf16 %v616, %v615
  %v623 = vpack.c.bf16 %v618, %v617
  %v624 = vpack.c.bf16 %v620, %v619
  %v626 = vshrl.u32 %v609, 16
  %v628 = vrot.slane %v626, 3
  %v629 = vshll.u32 %v609, 16
  %v631 = vrot.slane %v629, 4
  %v632 = vor.u32 %v628, %v631
  %v634 = vshrl.u32 %v610, 16
  %v636 = vrot.slane %v634, 3
  %v637 = vshll.u32 %v610, 16
  %v639 = vrot.slane %v637, 4
  %v640 = vor.u32 %v636, %v639
  %v641 = vsel %vm257, %v632, %v640
  %v643 = vshrl.u32 %v611, 16
  %v645 = vrot.slane %v643, 3
  %v646 = vshll.u32 %v611, 16
  %v648 = vrot.slane %v646, 4
  %v649 = vor.u32 %v645, %v648
  %v650 = vsel %vm257, %v640, %v649
  %v652 = vshrl.u32 %v612, 16
  %v654 = vrot.slane %v652, 3
  %v655 = vshll.u32 %v612, 16
  %v657 = vrot.slane %v655, 4
  %v658 = vor.u32 %v654, %v657
  %v659 = vsel %vm257, %v649, %v658
  %v661 = vsel %vm295, 0, %v632
  %v666 = vrot.slane %v597, 4
  %v667 = vrot.slane %v598, 4
  %v668 = vsel %vm301, %v666, %v667
  %v669 = vrot.slane %v599, 4
  %v670 = vsel %vm301, %v667, %v669
  %v671 = vrot.slane %v600, 4
  %v672 = vsel %vm301, %v669, %v671
  %v674 = vsel %vm309, 0, %v666
  %v676 = vshrl.u32 %v621, 16
  %v678 = vrot.slane %v676, 4
  %v679 = vshll.u32 %v621, 16
  %v681 = vrot.slane %v679, 5
  %v682 = vor.u32 %v678, %v681
  %v684 = vshrl.u32 %v622, 16
  %v686 = vrot.slane %v684, 4
  %v687 = vshll.u32 %v622, 16
  %v689 = vrot.slane %v687, 5
  %v690 = vor.u32 %v686, %v689
  %v691 = vsel %vm313, %v682, %v690
  %v693 = vshrl.u32 %v623, 16
  %v695 = vrot.slane %v693, 4
  %v696 = vshll.u32 %v623, 16
  %v698 = vrot.slane %v696, 5
  %v699 = vor.u32 %v695, %v698
  %v700 = vsel %vm313, %v690, %v699
  %v702 = vshrl.u32 %v624, 16
  %v704 = vrot.slane %v702, 4
  %v705 = vshll.u32 %v624, 16
  %v707 = vrot.slane %v705, 5
  %v708 = vor.u32 %v704, %v707
  %v709 = vsel %vm313, %v699, %v708
  %v711 = vsel %vm350, 0, %v682
  %v712 = vrot.slane %v626, 7
  %v713 = vor.u32 %v712, %v629
  %v714 = vrot.slane %v634, 7
  %v715 = vor.u32 %v714, %v637
  %v716 = vsel %vm352, %v712, %v715
  %v717 = vrot.slane %v643, 7
  %v718 = vor.u32 %v717, %v646
  %v719 = vsel %vm352, %v714, %v718
  %v720 = vrot.slane %v652, 7
  %v721 = vor.u32 %v720, %v655
  %v722 = vsel %vm352, %v717, %v721
  %v724 = vsel %vm366, 0, %v713
  %v725 = vrot.slane %v679, 1
  %v726 = vor.u32 %v676, %v725
  %v727 = vrot.slane %v687, 1
  %v728 = vsel %vm368, %v726, %v727
  %v729 = vor.u32 %v684, %v727
  %v730 = vrot.slane %v696, 1
  %v731 = vsel %vm368, %v729, %v730
  %v732 = vor.u32 %v693, %v730
  %v733 = vrot.slane %v705, 1
  %v734 = vsel %vm368, %v732, %v733
  %v735 = vor.u32 %v702, %v733
  %v737 = vsel %vm382, %v735, 0
  %v739 = vsel %vm295, %v658, 0
  %v741 = vsel %vm309, %v671, 0
  %v743 = vsel %vm350, %v708, 0
  %745 = vrot.lane.b32.xlu0 %v674, 32
  %v746 = vpop.permute.xlu0 %745
  %747 = vrot.lane.b32.xlu0 %v668, 32
  %v748 = vpop.permute.xlu0 %747
  %749 = vrot.lane.b32.xlu0 %v670, 32
  %v750 = vpop.permute.xlu0 %749
  %751 = vrot.lane.b32.xlu0 %v672, 32
  %v752 = vpop.permute.xlu0 %751
  %754 = vrot.lane.b32.xlu0 %v711, 64
  %v755 = vpop.permute.xlu0 %754
  %756 = vrot.lane.b32.xlu0 %v691, 64
  %v757 = vpop.permute.xlu0 %756
  %758 = vrot.lane.b32.xlu0 %v700, 64
  %v759 = vpop.permute.xlu0 %758
  %760 = vrot.lane.b32.xlu0 %v709, 64
  %v761 = vpop.permute.xlu0 %760
  %763 = vrot.lane.b32.xlu0 %v724, 96
  %v764 = vpop.permute.xlu0 %763
  %765 = vrot.lane.b32.xlu0 %v716, 96
  %v766 = vpop.permute.xlu0 %765
  %767 = vrot.lane.b32.xlu0 %v719, 96
  %v768 = vpop.permute.xlu0 %767
  %769 = vrot.lane.b32.xlu0 %v722, 96
  %v770 = vpop.permute.xlu0 %769
  %772 = vrot.lane.b32.xlu0 %v728, 32
  %v773 = vpop.permute.xlu0 %772
  %774 = vrot.lane.b32.xlu0 %v731, 32
  %v775 = vpop.permute.xlu0 %774
  %776 = vrot.lane.b32.xlu0 %v734, 32
  %v777 = vpop.permute.xlu0 %776
  %778 = vrot.lane.b32.xlu0 %v737, 32
  %v779 = vpop.permute.xlu0 %778
  %781 = vrot.lane.b32.xlu0 %v641, 64
  %v782 = vpop.permute.xlu0 %781
  %783 = vrot.lane.b32.xlu0 %v650, 64
  %v784 = vpop.permute.xlu0 %783
  %785 = vrot.lane.b32.xlu0 %v659, 64
  %v786 = vpop.permute.xlu0 %785
  %787 = vrot.lane.b32.xlu0 %v739, 64
  %v788 = vpop.permute.xlu0 %787
  %790 = vrot.lane.b32.xlu0 %v668, 96
  %v791 = vpop.permute.xlu0 %790
  %792 = vrot.lane.b32.xlu0 %v670, 96
  %v793 = vpop.permute.xlu0 %792
  %794 = vrot.lane.b32.xlu0 %v672, 96
  %v795 = vpop.permute.xlu0 %794
  %796 = vrot.lane.b32.xlu0 %v741, 96
  %v797 = vpop.permute.xlu0 %796
  %v800 = vsel %vm444, %v661, %v746
  %v803 = vsel %vm444, %v641, %v748
  %v806 = vsel %vm444, %v650, %v750
  %v809 = vsel %vm444, %v659, %v752
  %v811 = vsel %vm457, %v800, %v755
  %v813 = vsel %vm457, %v803, %v757
  %v815 = vsel %vm457, %v806, %v759
  %v817 = vsel %vm457, %v809, %v761
  %v819 = vsel %vm466, %v811, %v764
  %v822 = vsel %vm466, %v813, %v766
  %v825 = vsel %vm466, %v815, %v768
  %v828 = vsel %vm466, %v817, %v770
  %v832 = vsel %vm444, %v597, %v773
  %v835 = vsel %vm444, %v598, %v775
  %v838 = vsel %vm444, %v599, %v777
  %v841 = vsel %vm444, %v600, %v779
  %v843 = vsel %vm457, %v832, %v782
  %v845 = vsel %vm457, %v835, %v784
  %v847 = vsel %vm457, %v838, %v786
  %v849 = vsel %vm457, %v841, %v788
  %v851 = vsel %vm466, %v843, %v791
  %v854 = vsel %vm466, %v845, %v793
  %v857 = vsel %vm466, %v847, %v795
  %v860 = vsel %vm466, %v849, %v797
  %v862 = vld [vmem:[%s3] sm:$0xf]
  %v863 = vld [vmem:[%s3 + $0x4] sm:$0xf]
  %v864 = vld [vmem:[%s3 + $0x8] sm:$0xf]
  %v865 = vld [vmem:[%s3 + $0xc] sm:$0xf]
  %v866 = vld [vmem:[%s3 + $0x10] sm:$0xf]
  %v867 = vld [vmem:[%s3 + $0x14] sm:$0xf]
  %v868 = vld [vmem:[%s3 + $0x18] sm:$0xf]
  %v869 = vld [vmem:[%s3 + $0x1c] sm:$0xf]
  %v870 = vld [vmem:[%s3 + $0x20] sm:$0xf]
  %v871 = vld [vmem:[%s3 + $0x24] sm:$0xf]
  %v872 = vld [vmem:[%s3 + $0x28] sm:$0xf]
  %v873 = vld [vmem:[%s3 + $0x2c] sm:$0xf]
  %v874 = vld [vmem:[%s3 + $0x30] sm:$0xf]
  %v875 = vld [vmem:[%s3 + $0x34] sm:$0xf]
  %v876 = vld [vmem:[%s3 + $0x38] sm:$0xf]
  %v877 = vld [vmem:[%s3 + $0x3c] sm:$0xf]
  %v878 = vld [vmem:[%s3 + $0x40] sm:$0xf]
  %v879 = vld [vmem:[%s3 + $0x44] sm:$0xf]
  %v880 = vld [vmem:[%s3 + $0x48] sm:$0xf]
  %v881 = vld [vmem:[%s3 + $0x4c] sm:$0xf]
  %v882 = vld [vmem:[%s3 + $0x50] sm:$0xf]
  %v883 = vld [vmem:[%s3 + $0x54] sm:$0xf]
  %v884 = vld [vmem:[%s3 + $0x58] sm:$0xf]
  %v885 = vld [vmem:[%s3 + $0x5c] sm:$0xf]
  %v886 = vld [vmem:[%s3 + $0x60] sm:$0xf]
  %v887 = vld [vmem:[%s3 + $0x64] sm:$0xf]
  %v888 = vld [vmem:[%s3 + $0x68] sm:$0xf]
  %v889 = vld [vmem:[%s3 + $0x6c] sm:$0xf]
  %v890 = vld [vmem:[%s3 + $0x70] sm:$0xf]
  %v891 = vld [vmem:[%s3 + $0x74] sm:$0xf]
  %v892 = vld [vmem:[%s3 + $0x78] sm:$0xf]
  %v893 = vld [vmem:[%s3 + $0x7c] sm:$0xf]
  %v894 = vld [vmem:[%s3 + $0x80] sm:$0xf]
  %v895 = vld [vmem:[%s3 + $0x84] sm:$0xf]
  %v896 = vld [vmem:[%s3 + $0x88] sm:$0xf]
  %v897 = vld [vmem:[%s3 + $0x8c] sm:$0xf]
  %v898 = vld [vmem:[%s5] sm:$0x1]
  %v900 = vlaneseq
  %v901 = vshrl.u32 %v900, 7
  %v902 = vsub.s32 0, %v901
  %v903 = vrot.slane %v898, %v902
  %v941 = vunpack.c.l.b16 %v862
  %v942 = vunpack.c.l.b16 %v863
  %v943 = vunpack.c.l.b16 %v864
  %v944 = vunpack.c.l.b16 %v865
  %v945 = vunpack.c.l.b16 %v866
  %v946 = vunpack.c.l.b16 %v867
  %v947 = vunpack.c.l.b16 %v868
  %v948 = vunpack.c.l.b16 %v869
  %v949 = vunpack.c.l.b16 %v870
  %v950 = vunpack.c.l.b16 %v871
  %v951 = vunpack.c.l.b16 %v872
  %v952 = vunpack.c.l.b16 %v873
  %v953 = vunpack.c.l.b16 %v874
  %v954 = vunpack.c.l.b16 %v875
  %v955 = vunpack.c.l.b16 %v876
  %v956 = vunpack.c.l.b16 %v877
  %v957 = vunpack.c.l.b16 %v878
  %v958 = vunpack.c.l.b16 %v879
  %v959 = vunpack.c.l.b16 %v880
  %v960 = vunpack.c.l.b16 %v881
  %v961 = vunpack.c.l.b16 %v882
  %v962 = vunpack.c.l.b16 %v883
  %v963 = vunpack.c.l.b16 %v884
  %v964 = vunpack.c.l.b16 %v885
  %v965 = vunpack.c.l.b16 %v886
  %v966 = vunpack.c.l.b16 %v887
  %v967 = vunpack.c.l.b16 %v888
  %v968 = vunpack.c.l.b16 %v889
  %v969 = vunpack.c.l.b16 %v890
  %v970 = vunpack.c.l.b16 %v891
  %v971 = vunpack.c.l.b16 %v892
  %v972 = vunpack.c.l.b16 %v893
  %v973 = vunpack.c.l.b16 %v894
  %v974 = vunpack.c.l.b16 %v895
  %v975 = vunpack.c.l.b16 %v896
  %v976 = vunpack.c.l.b16 %v897
  %v977 = vpack.c.b16 %v942, %v941
  %v978 = vpack.c.b16 %v944, %v943
  %v979 = vpack.c.b16 %v946, %v945
  %v980 = vpack.c.b16 %v948, %v947
  %v981 = vpack.c.b16 %v950, %v949
  %v982 = vpack.c.b16 %v952, %v951
  %v983 = vpack.c.b16 %v954, %v953
  %v984 = vpack.c.b16 %v956, %v955
  %v985 = vpack.c.b16 %v958, %v957
  %v986 = vpack.c.b16 %v960, %v959
  %v987 = vpack.c.b16 %v962, %v961
  %v988 = vpack.c.b16 %v964, %v963
  %v989 = vpack.c.b16 %v966, %v965
  %v990 = vpack.c.b16 %v968, %v967
  %v991 = vpack.c.b16 %v970, %v969
  %v992 = vpack.c.b16 %v972, %v971
  %v993 = vpack.c.b16 %v974, %v973
  %v994 = vpack.c.b16 %v976, %v975
  %v1014 = vsel %vm444, %v330, 0
  %v1017 = vsel %vm444, %v339, 0
  %v1020 = vsel %vm444, %v348, 0
  %v1023 = vsel %vm444, %v389, 0
  %v1026 = vsel %vm444, %v691, 0
  %v1029 = vsel %vm444, %v700, 0
  %v1032 = vsel %vm444, %v709, 0
  %v1035 = vsel %vm444, %v743, 0
  %1037 = vmatprep.subr.bf16.mxu0 0
  %1038 = vmatpush1.bf16.msra.mxu0 %v984
  %1039 = vmatprep.subr.bf16.mxu0 0
  %1040 = vmatpush1.bf16.msra.mxu0 %v983
  %1041 = vmatprep.subr.bf16.mxu0 0
  %1042 = vmatpush1.bf16.msra.mxu0 %v982
  %1043 = vmatprep.subr.bf16.mxu0 0
  %1044 = vmatpush1.bf16.msra.mxu0 %v981
  %1045 = vmatprep.subr.bf16.mxu0 0
  %1046 = vmatpush1.bf16.msra.mxu0 %v980
  %1047 = vmatprep.subr.bf16.mxu0 0
  %1048 = vmatpush1.bf16.msra.mxu0 %v979
  %1049 = vmatprep.subr.bf16.mxu0 0
  %1050 = vmatpush1.bf16.msra.mxu0 %v978
  %1051 = vmatprep.subr.bf16.mxu0 0
  %1052 = vmatpush1.bf16.msra.mxu0 %v977
  %1053 = vmatprep.subr.bf16.mxu0 0
  %1054 = vmatpush2.bf16.msra.mxu0 %v992
  %1055 = vmatprep.subr.bf16.mxu0 0
  %1056 = vmatpush2.bf16.msra.mxu0 %v991
  %1057 = vmatprep.subr.bf16.mxu0 0
  %1058 = vmatpush2.bf16.msra.mxu0 %v990
  %1059 = vmatprep.subr.bf16.mxu0 0
  %1060 = vmatpush2.bf16.msra.mxu0 %v989
  %1061 = vmatprep.subr.bf16.mxu0 0
  %1062 = vmatpush2.bf16.msra.mxu0 %v988
  %1063 = vmatprep.subr.bf16.mxu0 0
  %1064 = vmatpush2.bf16.msra.mxu0 %v987
  %1065 = vmatprep.subr.bf16.mxu0 0
  %1066 = vmatpush2.bf16.msra.mxu0 %v986
  %1067 = vmatprep.subr.bf16.mxu0 0
  %1068 = vmatpush2.bf16.msra.mxu0 %v985
  %1069 = vmatprep.mubr.bf16.mxu0 %v500
  %1070 = vmatmul.mubr.bf16.gmra.mxu0 %v468
  %v1071 = vpop.f32.mrf.mxu0
  %v1072 = vadd.f32 %v903, %v1071
  %v1073 = vpop.f32.mrf.mxu0
  %v1074 = vpop.f32.mrf.mxu0
  %v1075 = vadd.f32 %v903, %v1074
  %v1076 = vpop.f32.mrf.mxu0
  %1077 = vmatprep.mubr.bf16.mxu0 %v503
  %1078 = vmatmul.mubr.bf16.gmra.mxu0 %v471
  %v1079 = vpop.f32.mrf.mxu0
  %v1080 = vadd.f32 %v903, %v1079
  %v1081 = vpop.f32.mrf.mxu0
  %v1082 = vpop.f32.mrf.mxu0
  %v1083 = vadd.f32 %v903, %v1082
  %v1084 = vpop.f32.mrf.mxu0
  %1085 = vmatprep.mubr.bf16.mxu0 %v506
  %1086 = vmatmul.mubr.bf16.gmra.mxu0 %v474
  %v1087 = vpop.f32.mrf.mxu0
  %v1088 = vadd.f32 %v903, %v1087
  %v1089 = vpop.f32.mrf.mxu0
  %v1090 = vpop.f32.mrf.mxu0
  %v1091 = vadd.f32 %v903, %v1090
  %v1092 = vpop.f32.mrf.mxu0
  %1093 = vmatprep.mubr.bf16.mxu0 %v509
  %1094 = vmatmul.mubr.bf16.gmra.mxu0 %v477
  %v1095 = vpop.f32.mrf.mxu0
  %v1096 = vadd.f32 %v903, %v1095
  %v1097 = vpop.f32.mrf.mxu0
  %v1098 = vpop.f32.mrf.mxu0
  %v1099 = vadd.f32 %v903, %v1098
  %v1100 = vpop.f32.mrf.mxu0
  %1101 = vmatprep.mubr.bf16.mxu0 %v851
  %1102 = vmatmul.mubr.bf16.gmra.mxu0 %v819
  %v1103 = vpop.f32.mrf.mxu0
  %v1104 = vadd.f32 %v903, %v1103
  %v1105 = vpop.f32.mrf.mxu0
  %v1106 = vpop.f32.mrf.mxu0
  %v1107 = vadd.f32 %v903, %v1106
  %v1108 = vpop.f32.mrf.mxu0
  %1109 = vmatprep.mubr.bf16.mxu0 %v854
  %1110 = vmatmul.mubr.bf16.gmra.mxu0 %v822
  %v1111 = vpop.f32.mrf.mxu0
  %v1112 = vadd.f32 %v903, %v1111
  %v1113 = vpop.f32.mrf.mxu0
  %v1114 = vpop.f32.mrf.mxu0
  %v1115 = vadd.f32 %v903, %v1114
  %v1116 = vpop.f32.mrf.mxu0
  %1117 = vmatprep.mubr.bf16.mxu0 %v857
  %1118 = vmatmul.mubr.bf16.gmra.mxu0 %v825
  %v1119 = vpop.f32.mrf.mxu0
  %v1120 = vadd.f32 %v903, %v1119
  %v1121 = vpop.f32.mrf.mxu0
  %v1122 = vpop.f32.mrf.mxu0
  %v1123 = vadd.f32 %v903, %v1122
  %v1124 = vpop.f32.mrf.mxu0
  %1125 = vmatprep.mubr.bf16.mxu0 %v860
  %1126 = vmatmul.mubr.bf16.gmra.mxu0 %v828
  %v1127 = vpop.f32.mrf.mxu0
  %v1128 = vadd.f32 %v903, %v1127
  %v1129 = vpop.f32.mrf.mxu0
  %v1130 = vpop.f32.mrf.mxu0
  %v1131 = vadd.f32 %v903, %v1130
  %v1132 = vpop.f32.mrf.mxu0
  %1133 = vdwg.mxu0
  %1134 = vmatprep.subr.bf16.mxu0 0
  %1135 = vmatpush1.bf16.msra.mxu0 0
  %1136 = vmatprep.subr.bf16.mxu0 0
  %1137 = vmatpush1.bf16.msra.mxu0 0
  %1138 = vmatprep.subr.bf16.mxu0 0
  %1139 = vmatpush1.bf16.msra.mxu0 0
  %1140 = vmatprep.subr.bf16.mxu0 0
  %1141 = vmatpush1.bf16.msra.mxu0 0
  %1142 = vmatprep.subr.bf16.mxu0 0
  %1143 = vmatpush1.bf16.msra.mxu0 0
  %1144 = vmatprep.subr.bf16.mxu0 0
  %1145 = vmatpush1.bf16.msra.mxu0 0
  %1146 = vmatprep.subr.bf16.mxu0 0
  %1147 = vmatpush1.bf16.msra.mxu0 %v994
  %1148 = vmatprep.subr.bf16.mxu0 0
  %1149 = vmatpush1.bf16.msra.mxu0 %v993
  %1150 = vmatprep.subr.bf16.mxu0 0
  %1151 = vmatpush2.bf16.msra.mxu0 0
  %1152 = vmatprep.subr.bf16.mxu0 0
  %1153 = vmatpush2.bf16.msra.mxu0 0
  %1154 = vmatprep.subr.bf16.mxu0 0
  %1155 = vmatpush2.bf16.msra.mxu0 0
  %1156 = vmatprep.subr.bf16.mxu0 0
  %1157 = vmatpush2.bf16.msra.mxu0 0
  %1158 = vmatprep.subr.bf16.mxu0 0
  %1159 = vmatpush2.bf16.msra.mxu0 0
  %1160 = vmatprep.subr.bf16.mxu0 0
  %1161 = vmatpush2.bf16.msra.mxu0 0
  %1162 = vmatprep.subr.bf16.mxu0 0
  %1163 = vmatpush2.bf16.msra.mxu0 0
  %1164 = vmatprep.subr.bf16.mxu0 0
  %1165 = vmatpush2.bf16.msra.mxu0 0
  %1166 = vmatprep.mubr.bf16.mxu0 0
  %1167 = vmatmul.mubr.bf16.gmra.mxu0 %v1014
  %v1168 = vpop.f32.mrf.mxu0
  %v1169 = vadd.f32 %v1072, %v1168
  %v1170 = vpop.f32.mrf.mxu0
  %v1171 = vpop.f32.mrf.mxu0
  %v1172 = vadd.f32 %v1075, %v1171
  %v1173 = vpop.f32.mrf.mxu0
  %1174 = vmatprep.mubr.bf16.mxu0 0
  %1175 = vmatmul.mubr.bf16.gmra.mxu0 %v1017
  %v1176 = vpop.f32.mrf.mxu0
  %v1177 = vadd.f32 %v1080, %v1176
  %v1178 = vpop.f32.mrf.mxu0
  %v1179 = vpop.f32.mrf.mxu0
  %v1180 = vadd.f32 %v1083, %v1179
  %v1181 = vpop.f32.mrf.mxu0
  %1182 = vmatprep.mubr.bf16.mxu0 0
  %1183 = vmatmul.mubr.bf16.gmra.mxu0 %v1020
  %v1184 = vpop.f32.mrf.mxu0
  %v1185 = vadd.f32 %v1088, %v1184
  %v1186 = vpop.f32.mrf.mxu0
  %v1187 = vpop.f32.mrf.mxu0
  %v1188 = vadd.f32 %v1091, %v1187
  %v1189 = vpop.f32.mrf.mxu0
  %1190 = vmatprep.mubr.bf16.mxu0 0
  %1191 = vmatmul.mubr.bf16.gmra.mxu0 %v1023
  %v1192 = vpop.f32.mrf.mxu0
  %v1193 = vadd.f32 %v1096, %v1192
  %v1194 = vpop.f32.mrf.mxu0
  %v1195 = vpop.f32.mrf.mxu0
  %v1196 = vadd.f32 %v1099, %v1195
  %v1197 = vpop.f32.mrf.mxu0
  %1198 = vmatprep.mubr.bf16.mxu0 0
  %1199 = vmatmul.mubr.bf16.gmra.mxu0 %v1026
  %v1200 = vpop.f32.mrf.mxu0
  %v1201 = vadd.f32 %v1104, %v1200
  %v1202 = vpop.f32.mrf.mxu0
  %v1203 = vpop.f32.mrf.mxu0
  %v1204 = vadd.f32 %v1107, %v1203
  %v1205 = vpop.f32.mrf.mxu0
  %1206 = vmatprep.mubr.bf16.mxu0 0
  %1207 = vmatmul.mubr.bf16.gmra.mxu0 %v1029
  %v1208 = vpop.f32.mrf.mxu0
  %v1209 = vadd.f32 %v1112, %v1208
  %v1210 = vpop.f32.mrf.mxu0
  %v1211 = vpop.f32.mrf.mxu0
  %v1212 = vadd.f32 %v1115, %v1211
  %v1213 = vpop.f32.mrf.mxu0
  %1214 = vmatprep.mubr.bf16.mxu0 0
  %1215 = vmatmul.mubr.bf16.gmra.mxu0 %v1032
  %v1216 = vpop.f32.mrf.mxu0
  %v1217 = vadd.f32 %v1120, %v1216
  %v1218 = vpop.f32.mrf.mxu0
  %v1219 = vpop.f32.mrf.mxu0
  %v1220 = vadd.f32 %v1123, %v1219
  %v1221 = vpop.f32.mrf.mxu0
  %1222 = vmatprep.mubr.bf16.mxu0 0
  %1223 = vmatmul.mubr.bf16.gmra.mxu0 %v1035
  %v1224 = vpop.f32.mrf.mxu0
  %v1225 = vadd.f32 %v1128, %v1224
  %v1226 = vpop.f32.mrf.mxu0
  %v1227 = vpop.f32.mrf.mxu0
  %v1228 = vadd.f32 %v1131, %v1227
  %v1229 = vpop.f32.mrf.mxu0
  %1230 = vdwg.mxu0
  %v1231 = vmax.f32 %v1169, 0.0
  %v1232 = vmax.f32 %v1172, 0.0
  %v1233 = vmax.f32 %v1177, 0.0
  %v1234 = vmax.f32 %v1180, 0.0
  %v1235 = vmax.f32 %v1185, 0.0
  %v1236 = vmax.f32 %v1188, 0.0
  %v1237 = vmax.f32 %v1193, 0.0
  %v1238 = vmax.f32 %v1196, 0.0
  %v1239 = vmax.f32 %v1201, 0.0
  %v1240 = vmax.f32 %v1204, 0.0
  %v1241 = vmax.f32 %v1209, 0.0
  %v1242 = vmax.f32 %v1212, 0.0
  %v1243 = vmax.f32 %v1217, 0.0
  %v1244 = vmax.f32 %v1220, 0.0
  %v1245 = vmax.f32 %v1225, 0.0
  %v1246 = vmax.f32 %v1228, 0.0
  %1247 = vst.msk [vmem:[%s6] sm:$0xff] %vm444, %v1231
  %1248 = vst.msk [vmem:[%s6 + $0x8] sm:$0xff] %vm444, %v1232
  %1249 = vst.msk [vmem:[%s6 + $0x10] sm:$0xff] %vm444, %v1233
  %1250 = vst.msk [vmem:[%s6 + $0x18] sm:$0xff] %vm444, %v1234
  %1251 = vst.msk [vmem:[%s6 + $0x20] sm:$0xff] %vm444, %v1235
  %1252 = vst.msk [vmem:[%s6 + $0x28] sm:$0xff] %vm444, %v1236
  %1253 = vst.msk [vmem:[%s6 + $0x30] sm:$0xff] %vm444, %v1237
  %1254 = vst.msk [vmem:[%s6 + $0x38] sm:$0xff] %vm444, %v1238
  %s1255 = scalar_lea.vmem %s6, 64
  %1256 = vst.msk [vmem:[%s1255] sm:$0xff] %vm444, %v1239
  %1257 = vst.msk [vmem:[%s1255 + $0x8] sm:$0xff] %vm444, %v1240
  %1258 = vst.msk [vmem:[%s1255 + $0x10] sm:$0xff] %vm444, %v1241
  %1259 = vst.msk [vmem:[%s1255 + $0x18] sm:$0xff] %vm444, %v1242
  %1260 = vst.msk [vmem:[%s1255 + $0x20] sm:$0xff] %vm444, %v1243
  %1261 = vst.msk [vmem:[%s1255 + $0x28] sm:$0xff] %vm444, %v1244
  %1262 = vst.msk [vmem:[%s1255 + $0x30] sm:$0xff] %vm444, %v1245
  %1263 = vst.msk [vmem:[%s1255 + $0x38] sm:$0xff] %vm444, %v1246
  // Predicated region
  $region26: #{a_call__.14} parent=0 // pred_check
    _
  $region27: #{a_call__.14} parent=0 // pred_check_branch
    %1265 = sbr.rel (0) target = $region29
  $region28: #{a_call__.14} parent=0 // pred_region
    _
  $region29: #{a_call__.14} parent=0 // pred_fallthru
    _
  // Predicated region
  $region30: #{a_call__.14} parent=0 // pred_check
    _
  $region31: #{a_call__.14} parent=0 // pred_check_branch
    %1267 = sbr.rel (0) target = $region33
  $region32: #{a_call__.14} parent=0 // pred_region
    _
  $region33: #{a_call__.14} parent=0 // pred_fallthru
    _

// kernel: a_call__.15
$region0: #{a_call__.15}
  #allocation0 [shape = 'u32[]', space=smem, size = 0x4, offset = 0x4, fixed_abs, tag = 'smem constant byte address 0x4 - core index']
  #allocation1 [shape = 'u32[144,128]{1,0:T(1,128)}', space=vmem, size = 0x12000, scoped, tag = 'internal scratch']
  %s0 = inlined_call_operand.vmem [shape: f32[2,256,32], index: 0, kind: input, shape index: {}]
  %s1 = inlined_call_operand.vmem [shape: f32[2,64,32], index: 1, kind: input, shape index: {}]
  %s2 = inlined_call_operand.vmem [shape: bf16[256,64], index: 2, kind: input, shape index: {}]
  %s3 = inlined_call_operand.vmem [shape: bf16[288,32], index: 3, kind: input, shape index: {}]
  %s4 = inlined_call_operand.vmem [shape: f32[256,2], index: 4, kind: input, shape index: {}]
  %s5 = inlined_call_operand.vmem [shape: f32[1,32], index: 5, kind: input, shape index: {}]
  %s6 = inlined_call_operand.hbm [shape: f32[2,256,32], index: 6, kind: output, shape index: {}]
  %s7 = sld [smem:[#allocation0]]
  $region34: #{a_call__.15} parent=0
    _
  %s9 = ssub.s32 1, %s7
  %s10 = scalar_select 0, %s9, %s7
  $region1: #{a_call__.15} parent=0
    #allocation2 [shape = 'u8[262144]{0}', space=vmem, size = 0x40000, scoped, tag = 'output window, operand 0, single buffered']
    #allocation3 [shape = 's32[1]{0}', space=sflag, size = 0x4, scoped, tag = 'scoped memory for a_call__.15']
    %11 = vsyncpa [#allocation3], 0
    // Predicated region
    $region2: #{a_call__.15} parent=1 // pred_check
      _
    $region3: #{a_call__.15} parent=1 // pred_check_branch
      %13 = sbr.rel (0) target = $region5
    $region4: #{a_call__.15} parent=1 // pred_region
      _
    $region5: #{a_call__.15} parent=1 // pred_fallthru
      _
    // Predicated region
    $region6: #{a_call__.15} parent=1 // pred_check
      _
    $region7: #{a_call__.15} parent=1 // pred_check_branch
      %15 = sbr.rel (0) target = $region9
    $region8: #{a_call__.15} parent=1 // pred_region
      _
    $region9: #{a_call__.15} parent=1 // pred_fallthru
      _
    // Predicated region
    $region10: #{a_call__.15} parent=1 // pred_check
      _
    $region11: #{a_call__.15} parent=1 // pred_check_branch
      %17 = sbr.rel (0) target = $region13
    $region12: #{a_call__.15} parent=1 // pred_region
      _
    $region13: #{a_call__.15} parent=1 // pred_fallthru
      _
    // Predicated region
    $region14: #{a_call__.15} parent=1 // pred_check
      _
    $region15: #{a_call__.15} parent=1 // pred_check_branch
      %19 = sbr.rel (0) target = $region17
    $region16: #{a_call__.15} parent=1 // pred_region
      _
    $region17: #{a_call__.15} parent=1 // pred_fallthru
      _
    // Predicated region
    $region18: #{a_call__.15} parent=1 // pred_check
      _
    $region19: #{a_call__.15} parent=1 // pred_check_branch
      %21 = sbr.rel (0) target = $region21
    $region20: #{a_call__.15} parent=1 // pred_region
      _
    $region21: #{a_call__.15} parent=1 // pred_fallthru
      _
    // Predicated region
    $region22: #{a_call__.15} parent=1 // pred_check
      _
    $region23: #{a_call__.15} parent=1 // pred_check_branch
      %23 = sbr.rel (0) target = $region25
    $region24: #{a_call__.15} parent=1 // pred_region
      _
    $region25: #{a_call__.15} parent=1 // pred_fallthru
      _
    %v25 = vld [vmem:[%s4] sm:$0xff]
    %v26 = vld [vmem:[%s4 + $0x8] sm:$0xff]
    %v27 = vld [vmem:[%s4 + $0x10] sm:$0xff]
    %v28 = vld [vmem:[%s4 + $0x18] sm:$0xff]
    %v29 = vld [vmem:[%s4 + $0x20] sm:$0xff]
    %v30 = vld [vmem:[%s4 + $0x28] sm:$0xff]
    %v31 = vld [vmem:[%s4 + $0x30] sm:$0xff]
    %v32 = vld [vmem:[%s4 + $0x38] sm:$0xff]
    %v33 = vld [vmem:[%s4 + $0x40] sm:$0xff]
    %v34 = vld [vmem:[%s4 + $0x48] sm:$0xff]
    %v35 = vld [vmem:[%s4 + $0x50] sm:$0xff]
    %v36 = vld [vmem:[%s4 + $0x58] sm:$0xff]
    %v37 = vld [vmem:[%s4 + $0x60] sm:$0xff]
    %v38 = vld [vmem:[%s4 + $0x68] sm:$0xff]
    %v39 = vld [vmem:[%s4 + $0x70] sm:$0xff]
    %v40 = vld [vmem:[%s4 + $0x78] sm:$0xff]
    %v41 = vld [vmem:[%s4 + $0x80] sm:$0xff]
    %v42 = vld [vmem:[%s4 + $0x88] sm:$0xff]
    %v43 = vld [vmem:[%s4 + $0x90] sm:$0xff]
    %v44 = vld [vmem:[%s4 + $0x98] sm:$0xff]
    %v45 = vld [vmem:[%s4 + $0xa0] sm:$0xff]
    %v46 = vld [vmem:[%s4 + $0xa8] sm:$0xff]
    %v47 = vld [vmem:[%s4 + $0xb0] sm:$0xff]
    %v48 = vld [vmem:[%s4 + $0xb8] sm:$0xff]
    %v49 = vld [vmem:[%s4 + $0xc0] sm:$0xff]
    %v50 = vld [vmem:[%s4 + $0xc8] sm:$0xff]
    %v51 = vld [vmem:[%s4 + $0xd0] sm:$0xff]
    %v52 = vld [vmem:[%s4 + $0xd8] sm:$0xff]
    %v53 = vld [vmem:[%s4 + $0xe0] sm:$0xff]
    %v54 = vld [vmem:[%s4 + $0xe8] sm:$0xff]
    %v55 = vld [vmem:[%s4 + $0xf0] sm:$0xff]
    %v56 = vld [vmem:[%s4 + $0xf8] sm:$0xff]
    %v57 = vld [vmem:[%s0] sm:$0xff]
    %v58 = vld [vmem:[%s0 + $0x8] sm:$0xff]
    %v59 = vld [vmem:[%s0 + $0x10] sm:$0xff]
    %v60 = vld [vmem:[%s0 + $0x18] sm:$0xff]
    %v61 = vld [vmem:[%s0 + $0x20] sm:$0xff]
    %v62 = vld [vmem:[%s0 + $0x28] sm:$0xff]
    %v63 = vld [vmem:[%s0 + $0x30] sm:$0xff]
    %v64 = vld [vmem:[%s0 + $0x38] sm:$0xff]
    %v65 = vld [vmem:[%s0 + $0x40] sm:$0xff]
    %v66 = vld [vmem:[%s0 + $0x48] sm:$0xff]
    %v67 = vld [vmem:[%s0 + $0x50] sm:$0xff]
    %v68 = vld [vmem:[%s0 + $0x58] sm:$0xff]
    %v69 = vld [vmem:[%s0 + $0x60] sm:$0xff]
    %v70 = vld [vmem:[%s0 + $0x68] sm:$0xff]
    %v71 = vld [vmem:[%s0 + $0x70] sm:$0xff]
    %v72 = vld [vmem:[%s0 + $0x78] sm:$0xff]
    %v73 = vld [vmem:[%s0 + $0x80] sm:$0xff]
    %v74 = vld [vmem:[%s0 + $0x88] sm:$0xff]
    %v75 = vld [vmem:[%s0 + $0x90] sm:$0xff]
    %v76 = vld [vmem:[%s0 + $0x98] sm:$0xff]
    %v77 = vld [vmem:[%s0 + $0xa0] sm:$0xff]
    %v78 = vld [vmem:[%s0 + $0xa8] sm:$0xff]
    %v79 = vld [vmem:[%s0 + $0xb0] sm:$0xff]
    %v80 = vld [vmem:[%s0 + $0xb8] sm:$0xff]
    %v81 = vld [vmem:[%s0 + $0xc0] sm:$0xff]
    %v82 = vld [vmem:[%s0 + $0xc8] sm:$0xff]
    %v83 = vld [vmem:[%s0 + $0xd0] sm:$0xff]
    %v84 = vld [vmem:[%s0 + $0xd8] sm:$0xff]
    %v85 = vld [vmem:[%s0 + $0xe0] sm:$0xff]
    %v86 = vld [vmem:[%s0 + $0xe8] sm:$0xff]
    %v87 = vld [vmem:[%s0 + $0xf0] sm:$0xff]
    %v88 = vld [vmem:[%s0 + $0xf8] sm:$0xff]
    %v89 = vld [vmem:[%s1] sm:$0xff]
    %v90 = vld [vmem:[%s1 + $0x8] sm:$0xff]
    %v91 = vld [vmem:[%s1 + $0x10] sm:$0xff]
    %v92 = vld [vmem:[%s1 + $0x18] sm:$0xff]
    %v93 = vld [vmem:[%s1 + $0x20] sm:$0xff]
    %v94 = vld [vmem:[%s1 + $0x28] sm:$0xff]
    %v95 = vld [vmem:[%s1 + $0x30] sm:$0xff]
    %v96 = vld [vmem:[%s1 + $0x38] sm:$0xff]
    %v97 = vpack.c.bf16 %v90, %v89
    %v98 = vpack.c.bf16 %v92, %v91
    %v99 = vpack.c.bf16 %v94, %v93
    %v100 = vpack.c.bf16 %v96, %v95
    %v101 = vld [vmem:[%s2] sm:$0xf]
    %v102 = vld [vmem:[%s2 + $0x4] sm:$0xf]
    %v103 = vld [vmem:[%s2 + $0x8] sm:$0xf]
    %v104 = vld [vmem:[%s2 + $0xc] sm:$0xf]
    %v105 = vld [vmem:[%s2 + $0x10] sm:$0xf]
    %v106 = vld [vmem:[%s2 + $0x14] sm:$0xf]
    %v107 = vld [vmem:[%s2 + $0x18] sm:$0xf]
    %v108 = vld [vmem:[%s2 + $0x1c] sm:$0xf]
    %v109 = vld [vmem:[%s2 + $0x20] sm:$0xf]
    %v110 = vld [vmem:[%s2 + $0x24] sm:$0xf]
    %v111 = vld [vmem:[%s2 + $0x28] sm:$0xf]
    %v112 = vld [vmem:[%s2 + $0x2c] sm:$0xf]
    %v113 = vld [vmem:[%s2 + $0x30] sm:$0xf]
    %v114 = vld [vmem:[%s2 + $0x34] sm:$0xf]
    %v115 = vld [vmem:[%s2 + $0x38] sm:$0xf]
    %v116 = vld [vmem:[%s2 + $0x3c] sm:$0xf]
    %v117 = vld [vmem:[%s2 + $0x40] sm:$0xf]
    %v118 = vld [vmem:[%s2 + $0x44] sm:$0xf]
    %v119 = vld [vmem:[%s2 + $0x48] sm:$0xf]
    %v120 = vld [vmem:[%s2 + $0x4c] sm:$0xf]
    %v121 = vld [vmem:[%s2 + $0x50] sm:$0xf]
    %v122 = vld [vmem:[%s2 + $0x54] sm:$0xf]
    %v123 = vld [vmem:[%s2 + $0x58] sm:$0xf]
    %v124 = vld [vmem:[%s2 + $0x5c] sm:$0xf]
    %v125 = vld [vmem:[%s2 + $0x60] sm:$0xf]
    %v126 = vld [vmem:[%s2 + $0x64] sm:$0xf]
    %v127 = vld [vmem:[%s2 + $0x68] sm:$0xf]
    %v128 = vld [vmem:[%s2 + $0x6c] sm:$0xf]
    %v129 = vld [vmem:[%s2 + $0x70] sm:$0xf]
    %v130 = vld [vmem:[%s2 + $0x74] sm:$0xf]
    %v131 = vld [vmem:[%s2 + $0x78] sm:$0xf]
    %v132 = vld [vmem:[%s2 + $0x7c] sm:$0xf]
    %v165 = vunpack.c.l.b16 %v101
    %v166 = vunpack.c.l.b16 %v102
    %v167 = vunpack.c.l.b16 %v103
    %v168 = vunpack.c.l.b16 %v104
    %v169 = vunpack.c.l.b16 %v105
    %v170 = vunpack.c.l.b16 %v106
    %v171 = vunpack.c.l.b16 %v107
    %v172 = vunpack.c.l.b16 %v108
    %v173 = vunpack.c.l.b16 %v109
    %v174 = vunpack.c.l.b16 %v110
    %v175 = vunpack.c.l.b16 %v111
    %v176 = vunpack.c.l.b16 %v112
    %v177 = vunpack.c.l.b16 %v113
    %v178 = vunpack.c.l.b16 %v114
    %v179 = vunpack.c.l.b16 %v115
    %v180 = vunpack.c.l.b16 %v116
    %v181 = vunpack.c.l.b16 %v117
    %v182 = vunpack.c.l.b16 %v118
    %v183 = vunpack.c.l.b16 %v119
    %v184 = vunpack.c.l.b16 %v120
    %v185 = vunpack.c.l.b16 %v121
    %v186 = vunpack.c.l.b16 %v122
    %v187 = vunpack.c.l.b16 %v123
    %v188 = vunpack.c.l.b16 %v124
    %v189 = vunpack.c.l.b16 %v125
    %v190 = vunpack.c.l.b16 %v126
    %v191 = vunpack.c.l.b16 %v127
    %v192 = vunpack.c.l.b16 %v128
    %v193 = vunpack.c.l.b16 %v129
    %v194 = vunpack.c.l.b16 %v130
    %v195 = vunpack.c.l.b16 %v131
    %v196 = vunpack.c.l.b16 %v132
    %v197 = vpack.c.b16 %v166, %v165
    %v198 = vpack.c.b16 %v168, %v167
    %v199 = vpack.c.b16 %v170, %v169
    %v200 = vpack.c.b16 %v172, %v171
    %v201 = vpack.c.b16 %v174, %v173
    %v202 = vpack.c.b16 %v176, %v175
    %v203 = vpack.c.b16 %v178, %v177
    %v204 = vpack.c.b16 %v180, %v179
    %v205 = vpack.c.b16 %v182, %v181
    %v206 = vpack.c.b16 %v184, %v183
    %v207 = vpack.c.b16 %v186, %v185
    %v208 = vpack.c.b16 %v188, %v187
    %v209 = vpack.c.b16 %v190, %v189
    %v210 = vpack.c.b16 %v192, %v191
    %v211 = vpack.c.b16 %v194, %v193
    %v212 = vpack.c.b16 %v196, %v195
    %vm213 = vcmask 523264
    %v215 = vsel %vm213, %v197, 0
    %v218 = vsel %vm213, %v198, 0
    %v221 = vsel %vm213, %v199, 0
    %v224 = vsel %vm213, %v200, 0
    %v227 = vsel %vm213, %v201, 0
    %v230 = vsel %vm213, %v202, 0
    %v233 = vsel %vm213, %v203, 0
    %v236 = vsel %vm213, %v204, 0
    %v239 = vsel %vm213, %v205, 0
    %v242 = vsel %vm213, %v206, 0
    %v245 = vsel %vm213, %v207, 0
    %v248 = vsel %vm213, %v208, 0
    %v251 = vsel %vm213, %v209, 0
    %v254 = vsel %vm213, %v210, 0
    %v257 = vsel %vm213, %v211, 0
    %v260 = vsel %vm213, %v212, 0
    %262 = vmatprep.subr.bf16.mxu0 0
    %263 = vmatpush1.bf16.msra.mxu0 0
    %264 = vmatprep.subr.bf16.mxu0 0
    %265 = vmatpush1.bf16.msra.mxu0 0
    %266 = vmatprep.subr.bf16.mxu0 0
    %267 = vmatpush1.bf16.msra.mxu0 0
    %268 = vmatprep.subr.bf16.mxu0 0
    %269 = vmatpush1.bf16.msra.mxu0 0
    %270 = vmatprep.subr.bf16.mxu0 0
    %271 = vmatpush1.bf16.msra.mxu0 %v100
    %272 = vmatprep.subr.bf16.mxu0 0
    %273 = vmatpush1.bf16.msra.mxu0 %v99
    %274 = vmatprep.subr.bf16.mxu0 0
    %275 = vmatpush1.bf16.msra.mxu0 %v98
    %276 = vmatprep.subr.bf16.mxu0 0
    %277 = vmatpush1.bf16.msra.mxu0 %v97
    %278 = vmatprep.subr.bf16.mxu0 0
    %279 = vmatpush2.bf16.msra.mxu0 0
    %280 = vmatprep.subr.bf16.mxu0 0
    %281 = vmatpush2.bf16.msra.mxu0 0
    %282 = vmatprep.subr.bf16.mxu0 0
    %283 = vmatpush2.bf16.msra.mxu0 0
    %284 = vmatprep.subr.bf16.mxu0 0
    %285 = vmatpush2.bf16.msra.mxu0 0
    %286 = vmatprep.subr.bf16.mxu0 0
    %287 = vmatpush2.bf16.msra.mxu0 0
    %288 = vmatprep.subr.bf16.mxu0 0
    %289 = vmatpush2.bf16.msra.mxu0 0
    %290 = vmatprep.subr.bf16.mxu0 0
    %291 = vmatpush2.bf16.msra.mxu0 0
    %292 = vmatprep.subr.bf16.mxu0 0
    %293 = vmatpush2.bf16.msra.mxu0 0
    %294 = vmatprep.mubr.bf16.mxu0 0
    %295 = vmatmul.mubr.bf16.gmra.mxu0 %v215
    %v296 = vpop.f32.mrf.mxu0
    %v297 = vadd.f32 0.0, %v296
    %v298 = vpop.f32.mrf.mxu0
    %v299 = vpop.f32.mrf.mxu0
    %v300 = vadd.f32 0.0, %v299
    %v301 = vpop.f32.mrf.mxu0
    %302 = vmatprep.mubr.bf16.mxu0 0
    %303 = vmatmul.mubr.bf16.gmra.mxu0 %v218
    %v304 = vpop.f32.mrf.mxu0
    %v305 = vadd.f32 0.0, %v304
    %v306 = vpop.f32.mrf.mxu0
    %v307 = vpop.f32.mrf.mxu0
    %v308 = vadd.f32 0.0, %v307
    %v309 = vpop.f32.mrf.mxu0
    %310 = vmatprep.mubr.bf16.mxu0 0
    %311 = vmatmul.mubr.bf16.gmra.mxu0 %v221
    %v312 = vpop.f32.mrf.mxu0
    %v313 = vadd.f32 0.0, %v312
    %v314 = vpop.f32.mrf.mxu0
    %v315 = vpop.f32.mrf.mxu0
    %v316 = vadd.f32 0.0, %v315
    %v317 = vpop.f32.mrf.mxu0
    %318 = vmatprep.mubr.bf16.mxu0 0
    %319 = vmatmul.mubr.bf16.gmra.mxu0 %v224
    %v320 = vpop.f32.mrf.mxu0
    %v321 = vadd.f32 0.0, %v320
    %v322 = vpop.f32.mrf.mxu0
    %v323 = vpop.f32.mrf.mxu0
    %v324 = vadd.f32 0.0, %v323
    %v325 = vpop.f32.mrf.mxu0
    %326 = vmatprep.mubr.bf16.mxu0 0
    %327 = vmatmul.mubr.bf16.gmra.mxu0 %v227
    %v328 = vpop.f32.mrf.mxu0
    %v329 = vadd.f32 0.0, %v328
    %v330 = vpop.f32.mrf.mxu0
    %v331 = vpop.f32.mrf.mxu0
    %v332 = vadd.f32 0.0, %v331
    %v333 = vpop.f32.mrf.mxu0
    %334 = vmatprep.mubr.bf16.mxu0 0
    %335 = vmatmul.mubr.bf16.gmra.mxu0 %v230
    %v336 = vpop.f32.mrf.mxu0
    %v337 = vadd.f32 0.0, %v336
    %v338 = vpop.f32.mrf.mxu0
    %v339 = vpop.f32.mrf.mxu0
    %v340 = vadd.f32 0.0, %v339
    %v341 = vpop.f32.mrf.mxu0
    %342 = vmatprep.mubr.bf16.mxu0 0
    %343 = vmatmul.mubr.bf16.gmra.mxu0 %v233
    %v344 = vpop.f32.mrf.mxu0
    %v345 = vadd.f32 0.0, %v344
    %v346 = vpop.f32.mrf.mxu0
    %v347 = vpop.f32.mrf.mxu0
    %v348 = vadd.f32 0.0, %v347
    %v349 = vpop.f32.mrf.mxu0
    %350 = vmatprep.mubr.bf16.mxu0 0
    %351 = vmatmul.mubr.bf16.gmra.mxu0 %v236
    %v352 = vpop.f32.mrf.mxu0
    %v353 = vadd.f32 0.0, %v352
    %v354 = vpop.f32.mrf.mxu0
    %v355 = vpop.f32.mrf.mxu0
    %v356 = vadd.f32 0.0, %v355
    %v357 = vpop.f32.mrf.mxu0
    %358 = vmatprep.mubr.bf16.mxu0 0
    %359 = vmatmul.mubr.bf16.gmra.mxu0 %v239
    %v360 = vpop.f32.mrf.mxu0
    %v361 = vadd.f32 0.0, %v360
    %v362 = vpop.f32.mrf.mxu0
    %v363 = vpop.f32.mrf.mxu0
    %v364 = vadd.f32 0.0, %v363
    %v365 = vpop.f32.mrf.mxu0
    %366 = vmatprep.mubr.bf16.mxu0 0
    %367 = vmatmul.mubr.bf16.gmra.mxu0 %v242
    %v368 = vpop.f32.mrf.mxu0
    %v369 = vadd.f32 0.0, %v368
    %v370 = vpop.f32.mrf.mxu0
    %v371 = vpop.f32.mrf.mxu0
    %v372 = vadd.f32 0.0, %v371
    %v373 = vpop.f32.mrf.mxu0
    %374 = vmatprep.mubr.bf16.mxu0 0
    %375 = vmatmul.mubr.bf16.gmra.mxu0 %v245
    %v376 = vpop.f32.mrf.mxu0
    %v377 = vadd.f32 0.0, %v376
    %v378 = vpop.f32.mrf.mxu0
    %v379 = vpop.f32.mrf.mxu0
    %v380 = vadd.f32 0.0, %v379
    %v381 = vpop.f32.mrf.mxu0
    %382 = vmatprep.mubr.bf16.mxu0 0
    %383 = vmatmul.mubr.bf16.gmra.mxu0 %v248
    %v384 = vpop.f32.mrf.mxu0
    %v385 = vadd.f32 0.0, %v384
    %v386 = vpop.f32.mrf.mxu0
    %v387 = vpop.f32.mrf.mxu0
    %v388 = vadd.f32 0.0, %v387
    %v389 = vpop.f32.mrf.mxu0
    %390 = vmatprep.mubr.bf16.mxu0 0
    %391 = vmatmul.mubr.bf16.gmra.mxu0 %v251
    %v392 = vpop.f32.mrf.mxu0
    %v393 = vadd.f32 0.0, %v392
    %v394 = vpop.f32.mrf.mxu0
    %v395 = vpop.f32.mrf.mxu0
    %v396 = vadd.f32 0.0, %v395
    %v397 = vpop.f32.mrf.mxu0
    %398 = vmatprep.mubr.bf16.mxu0 0
    %399 = vmatmul.mubr.bf16.gmra.mxu0 %v254
    %v400 = vpop.f32.mrf.mxu0
    %v401 = vadd.f32 0.0, %v400
    %v402 = vpop.f32.mrf.mxu0
    %v403 = vpop.f32.mrf.mxu0
    %v404 = vadd.f32 0.0, %v403
    %v405 = vpop.f32.mrf.mxu0
    %406 = vmatprep.mubr.bf16.mxu0 0
    %407 = vmatmul.mubr.bf16.gmra.mxu0 %v257
    %v408 = vpop.f32.mrf.mxu0
    %v409 = vadd.f32 0.0, %v408
    %v410 = vpop.f32.mrf.mxu0
    %v411 = vpop.f32.mrf.mxu0
    %v412 = vadd.f32 0.0, %v411
    %v413 = vpop.f32.mrf.mxu0
    %414 = vmatprep.mubr.bf16.mxu0 0
    %415 = vmatmul.mubr.bf16.gmra.mxu0 %v260
    %v416 = vpop.f32.mrf.mxu0
    %v417 = vadd.f32 0.0, %v416
    %v418 = vpop.f32.mrf.mxu0
    %v419 = vpop.f32.mrf.mxu0
    %v420 = vadd.f32 0.0, %v419
    %v421 = vpop.f32.mrf.mxu0
    %422 = vdwg.mxu0
    %v423 = vadd.f32 %v57, %v297
    %v424 = vadd.f32 %v58, %v300
    %v425 = vadd.f32 %v59, %v305
    %v426 = vadd.f32 %v60, %v308
    %v427 = vadd.f32 %v61, %v313
    %v428 = vadd.f32 %v62, %v316
    %v429 = vadd.f32 %v63, %v321
    %v430 = vadd.f32 %v64, %v324
    %v431 = vadd.f32 %v65, %v329
    %v432 = vadd.f32 %v66, %v332
    %v433 = vadd.f32 %v67, %v337
    %v434 = vadd.f32 %v68, %v340
    %v435 = vadd.f32 %v69, %v345
    %v436 = vadd.f32 %v70, %v348
    %v437 = vadd.f32 %v71, %v353
    %v438 = vadd.f32 %v72, %v356
    %v439 = vadd.f32 %v73, %v361
    %v440 = vadd.f32 %v74, %v364
    %v441 = vadd.f32 %v75, %v369
    %v442 = vadd.f32 %v76, %v372
    %v443 = vadd.f32 %v77, %v377
    %v444 = vadd.f32 %v78, %v380
    %v445 = vadd.f32 %v79, %v385
    %v446 = vadd.f32 %v80, %v388
    %v447 = vadd.f32 %v81, %v393
    %v448 = vadd.f32 %v82, %v396
    %v449 = vadd.f32 %v83, %v401
    %v450 = vadd.f32 %v84, %v404
    %v451 = vadd.f32 %v85, %v409
    %v452 = vadd.f32 %v86, %v412
    %v453 = vadd.f32 %v87, %v417
    %v454 = vadd.f32 %v88, %v420
    %v455 = vpack.c.bf16 %v424, %v423
    %v456 = vpack.c.bf16 %v426, %v425
    %v457 = vpack.c.bf16 %v428, %v427
    %v458 = vpack.c.bf16 %v430, %v429
    %v459 = vpack.c.bf16 %v432, %v431
    %v460 = vpack.c.bf16 %v434, %v433
    %v461 = vpack.c.bf16 %v436, %v435
    %v462 = vpack.c.bf16 %v438, %v437
    %v463 = vpack.c.bf16 %v440, %v439
    %v464 = vpack.c.bf16 %v442, %v441
    %v465 = vpack.c.bf16 %v444, %v443
    %v466 = vpack.c.bf16 %v446, %v445
    %v467 = vpack.c.bf16 %v448, %v447
    %v468 = vpack.c.bf16 %v450, %v449
    %v469 = vpack.c.bf16 %v452, %v451
    %v470 = vpack.c.bf16 %v454, %v453
    %472 = vset.pattern.permute.xlu0 0
    %473 = vperm.xlu0 %472, %v25
    %v474 = vpop.permute.xlu0 %473
    %477 = vset.pattern.permute.xlu0 0
    %478 = vperm.xlu0 %477, %v26
    %v479 = vpop.permute.xlu0 %478
    %482 = vset.pattern.permute.xlu0 0
    %483 = vperm.xlu0 %482, %v27
    %v484 = vpop.permute.xlu0 %483
    %487 = vset.pattern.permute.xlu0 0
    %488 = vperm.xlu0 %487, %v28
    %v489 = vpop.permute.xlu0 %488
    %492 = vset.pattern.permute.xlu0 0
    %493 = vperm.xlu0 %492, %v29
    %v494 = vpop.permute.xlu0 %493
    %497 = vset.pattern.permute.xlu0 0
    %498 = vperm.xlu0 %497, %v30
    %v499 = vpop.permute.xlu0 %498
    %502 = vset.pattern.permute.xlu0 0
    %503 = vperm.xlu0 %502, %v31
    %v504 = vpop.permute.xlu0 %503
    %507 = vset.pattern.permute.xlu0 0
    %508 = vperm.xlu0 %507, %v32
    %v509 = vpop.permute.xlu0 %508
    %512 = vset.pattern.permute.xlu0 0
    %513 = vperm.xlu0 %512, %v33
    %v514 = vpop.permute.xlu0 %513
    %517 = vset.pattern.permute.xlu0 0
    %518 = vperm.xlu0 %517, %v34
    %v519 = vpop.permute.xlu0 %518
    %522 = vset.pattern.permute.xlu0 0
    %523 = vperm.xlu0 %522, %v35
    %v524 = vpop.permute.xlu0 %523
    %527 = vset.pattern.permute.xlu0 0
    %528 = vperm.xlu0 %527, %v36
    %v529 = vpop.permute.xlu0 %528
    %532 = vset.pattern.permute.xlu0 0
    %533 = vperm.xlu0 %532, %v37
    %v534 = vpop.permute.xlu0 %533
    %537 = vset.pattern.permute.xlu0 0
    %538 = vperm.xlu0 %537, %v38
    %v539 = vpop.permute.xlu0 %538
    %542 = vset.pattern.permute.xlu0 0
    %543 = vperm.xlu0 %542, %v39
    %v544 = vpop.permute.xlu0 %543
    %547 = vset.pattern.permute.xlu0 0
    %548 = vperm.xlu0 %547, %v40
    %v549 = vpop.permute.xlu0 %548
    %552 = vset.pattern.permute.xlu0 0
    %553 = vperm.xlu0 %552, %v41
    %v554 = vpop.permute.xlu0 %553
    %557 = vset.pattern.permute.xlu0 0
    %558 = vperm.xlu0 %557, %v42
    %v559 = vpop.permute.xlu0 %558
    %562 = vset.pattern.permute.xlu0 0
    %563 = vperm.xlu0 %562, %v43
    %v564 = vpop.permute.xlu0 %563
    %567 = vset.pattern.permute.xlu0 0
    %568 = vperm.xlu0 %567, %v44
    %v569 = vpop.permute.xlu0 %568
    %572 = vset.pattern.permute.xlu0 0
    %573 = vperm.xlu0 %572, %v45
    %v574 = vpop.permute.xlu0 %573
    %577 = vset.pattern.permute.xlu0 0
    %578 = vperm.xlu0 %577, %v46
    %v579 = vpop.permute.xlu0 %578
    %582 = vset.pattern.permute.xlu0 0
    %583 = vperm.xlu0 %582, %v47
    %v584 = vpop.permute.xlu0 %583
    %587 = vset.pattern.permute.xlu0 0
    %588 = vperm.xlu0 %587, %v48
    %v589 = vpop.permute.xlu0 %588
    %592 = vset.pattern.permute.xlu0 0
    %593 = vperm.xlu0 %592, %v49
    %v594 = vpop.permute.xlu0 %593
    %597 = vset.pattern.permute.xlu0 0
    %598 = vperm.xlu0 %597, %v50
    %v599 = vpop.permute.xlu0 %598
    %602 = vset.pattern.permute.xlu0 0
    %603 = vperm.xlu0 %602, %v51
    %v604 = vpop.permute.xlu0 %603
    %607 = vset.pattern.permute.xlu0 0
    %608 = vperm.xlu0 %607, %v52
    %v609 = vpop.permute.xlu0 %608
    %612 = vset.pattern.permute.xlu0 0
    %613 = vperm.xlu0 %612, %v53
    %v614 = vpop.permute.xlu0 %613
    %617 = vset.pattern.permute.xlu0 0
    %618 = vperm.xlu0 %617, %v54
    %v619 = vpop.permute.xlu0 %618
    %622 = vset.pattern.permute.xlu0 0
    %623 = vperm.xlu0 %622, %v55
    %v624 = vpop.permute.xlu0 %623
    %627 = vset.pattern.permute.xlu0 0
    %628 = vperm.xlu0 %627, %v56
    %v629 = vpop.permute.xlu0 %628
    %v631 = vmul.f32 %v423, %v474
    %v632 = vmul.f32 %v424, %v479
    %v633 = vmul.f32 %v425, %v484
    %v634 = vmul.f32 %v426, %v489
    %v635 = vmul.f32 %v427, %v494
    %v636 = vmul.f32 %v428, %v499
    %v637 = vmul.f32 %v429, %v504
    %v638 = vmul.f32 %v430, %v509
    %v639 = vmul.f32 %v431, %v514
    %v640 = vmul.f32 %v432, %v519
    %v641 = vmul.f32 %v433, %v524
    %v642 = vmul.f32 %v434, %v529
    %v643 = vmul.f32 %v435, %v534
    %v644 = vmul.f32 %v436, %v539
    %v645 = vmul.f32 %v437, %v544
    %v646 = vmul.f32 %v438, %v549
    %v647 = vmul.f32 %v439, %v554
    %v648 = vmul.f32 %v440, %v559
    %v649 = vmul.f32 %v441, %v564
    %v650 = vmul.f32 %v442, %v569
    %v651 = vmul.f32 %v443, %v574
    %v652 = vmul.f32 %v444, %v579
    %v653 = vmul.f32 %v445, %v584
    %v654 = vmul.f32 %v446, %v589
    %v655 = vmul.f32 %v447, %v594
    %v656 = vmul.f32 %v448, %v599
    %v657 = vmul.f32 %v449, %v604
    %v658 = vmul.f32 %v450, %v609
    %v659 = vmul.f32 %v451, %v614
    %v660 = vmul.f32 %v452, %v619
    %v661 = vmul.f32 %v453, %v624
    %v662 = vmul.f32 %v454, %v629
    %v663 = vpack.c.bf16 %v632, %v631
    %v664 = vpack.c.bf16 %v634, %v633
    %v665 = vpack.c.bf16 %v636, %v635
    %v666 = vpack.c.bf16 %v638, %v637
    %v667 = vpack.c.bf16 %v640, %v639
    %v668 = vpack.c.bf16 %v642, %v641
    %v669 = vpack.c.bf16 %v644, %v643
    %v670 = vpack.c.bf16 %v646, %v645
    %v671 = vpack.c.bf16 %v648, %v647
    %v672 = vpack.c.bf16 %v650, %v649
    %v673 = vpack.c.bf16 %v652, %v651
    %v674 = vpack.c.bf16 %v654, %v653
    %v675 = vpack.c.bf16 %v656, %v655
    %v676 = vpack.c.bf16 %v658, %v657
    %v677 = vpack.c.bf16 %v660, %v659
    %v678 = vpack.c.bf16 %v662, %v661
    %679 = vset.pattern.permute.xlu0 1
    %680 = vperm.xlu0 %679, %v25
    %v681 = vpop.permute.xlu0 %680
    %683 = vset.pattern.permute.xlu0 1
    %684 = vperm.xlu0 %683, %v26
    %v685 = vpop.permute.xlu0 %684
    %687 = vset.pattern.permute.xlu0 1
    %688 = vperm.xlu0 %687, %v27
    %v689 = vpop.permute.xlu0 %688
    %691 = vset.pattern.permute.xlu0 1
    %692 = vperm.xlu0 %691, %v28
    %v693 = vpop.permute.xlu0 %692
    %695 = vset.pattern.permute.xlu0 1
    %696 = vperm.xlu0 %695, %v29
    %v697 = vpop.permute.xlu0 %696
    %699 = vset.pattern.permute.xlu0 1
    %700 = vperm.xlu0 %699, %v30
    %v701 = vpop.permute.xlu0 %700
    %703 = vset.pattern.permute.xlu0 1
    %704 = vperm.xlu0 %703, %v31
    %v705 = vpop.permute.xlu0 %704
    %707 = vset.pattern.permute.xlu0 1
    %708 = vperm.xlu0 %707, %v32
    %v709 = vpop.permute.xlu0 %708
    %711 = vset.pattern.permute.xlu0 1
    %712 = vperm.xlu0 %711, %v33
    %v713 = vpop.permute.xlu0 %712
    %715 = vset.pattern.permute.xlu0 1
    %716 = vperm.xlu0 %715, %v34
    %v717 = vpop.permute.xlu0 %716
    %719 = vset.pattern.permute.xlu0 1
    %720 = vperm.xlu0 %719, %v35
    %v721 = vpop.permute.xlu0 %720
    %723 = vset.pattern.permute.xlu0 1
    %724 = vperm.xlu0 %723, %v36
    %v725 = vpop.permute.xlu0 %724
    %727 = vset.pattern.permute.xlu0 1
    %728 = vperm.xlu0 %727, %v37
    %v729 = vpop.permute.xlu0 %728
    %731 = vset.pattern.permute.xlu0 1
    %732 = vperm.xlu0 %731, %v38
    %v733 = vpop.permute.xlu0 %732
    %735 = vset.pattern.permute.xlu0 1
    %736 = vperm.xlu0 %735, %v39
    %v737 = vpop.permute.xlu0 %736
    %739 = vset.pattern.permute.xlu0 1
    %740 = vperm.xlu0 %739, %v40
    %v741 = vpop.permute.xlu0 %740
    %743 = vset.pattern.permute.xlu0 1
    %744 = vperm.xlu0 %743, %v41
    %v745 = vpop.permute.xlu0 %744
    %747 = vset.pattern.permute.xlu0 1
    %748 = vperm.xlu0 %747, %v42
    %v749 = vpop.permute.xlu0 %748
    %751 = vset.pattern.permute.xlu0 1
    %752 = vperm.xlu0 %751, %v43
    %v753 = vpop.permute.xlu0 %752
    %755 = vset.pattern.permute.xlu0 1
    %756 = vperm.xlu0 %755, %v44
    %v757 = vpop.permute.xlu0 %756
    %759 = vset.pattern.permute.xlu0 1
    %760 = vperm.xlu0 %759, %v45
    %v761 = vpop.permute.xlu0 %760
    %763 = vset.pattern.permute.xlu0 1
    %764 = vperm.xlu0 %763, %v46
    %v765 = vpop.permute.xlu0 %764
    %767 = vset.pattern.permute.xlu0 1
    %768 = vperm.xlu0 %767, %v47
    %v769 = vpop.permute.xlu0 %768
    %771 = vset.pattern.permute.xlu0 1
    %772 = vperm.xlu0 %771, %v48
    %v773 = vpop.permute.xlu0 %772
    %775 = vset.pattern.permute.xlu0 1
    %776 = vperm.xlu0 %775, %v49
    %v777 = vpop.permute.xlu0 %776
    %779 = vset.pattern.permute.xlu0 1
    %780 = vperm.xlu0 %779, %v50
    %v781 = vpop.permute.xlu0 %780
    %783 = vset.pattern.permute.xlu0 1
    %784 = vperm.xlu0 %783, %v51
    %v785 = vpop.permute.xlu0 %784
    %787 = vset.pattern.permute.xlu0 1
    %788 = vperm.xlu0 %787, %v52
    %v789 = vpop.permute.xlu0 %788
    %791 = vset.pattern.permute.xlu0 1
    %792 = vperm.xlu0 %791, %v53
    %v793 = vpop.permute.xlu0 %792
    %795 = vset.pattern.permute.xlu0 1
    %796 = vperm.xlu0 %795, %v54
    %v797 = vpop.permute.xlu0 %796
    %799 = vset.pattern.permute.xlu0 1
    %800 = vperm.xlu0 %799, %v55
    %v801 = vpop.permute.xlu0 %800
    %803 = vset.pattern.permute.xlu0 1
    %804 = vperm.xlu0 %803, %v56
    %v805 = vpop.permute.xlu0 %804
    %v807 = vmul.f32 %v423, %v681
    %v808 = vmul.f32 %v424, %v685
    %v809 = vmul.f32 %v425, %v689
    %v810 = vmul.f32 %v426, %v693
    %v811 = vmul.f32 %v427, %v697
    %v812 = vmul.f32 %v428, %v701
    %v813 = vmul.f32 %v429, %v705
    %v814 = vmul.f32 %v430, %v709
    %v815 = vmul.f32 %v431, %v713
    %v816 = vmul.f32 %v432, %v717
    %v817 = vmul.f32 %v433, %v721
    %v818 = vmul.f32 %v434, %v725
    %v819 = vmul.f32 %v435, %v729
    %v820 = vmul.f32 %v436, %v733
    %v821 = vmul.f32 %v437, %v737
    %v822 = vmul.f32 %v438, %v741
    %v823 = vmul.f32 %v439, %v745
    %v824 = vmul.f32 %v440, %v749
    %v825 = vmul.f32 %v441, %v753
    %v826 = vmul.f32 %v442, %v757
    %v827 = vmul.f32 %v443, %v761
    %v828 = vmul.f32 %v444, %v765
    %v829 = vmul.f32 %v445, %v769
    %v830 = vmul.f32 %v446, %v773
    %v831 = vmul.f32 %v447, %v777
    %v832 = vmul.f32 %v448, %v781
    %v833 = vmul.f32 %v449, %v785
    %v834 = vmul.f32 %v450, %v789
    %v835 = vmul.f32 %v451, %v793
    %v836 = vmul.f32 %v452, %v797
    %v837 = vmul.f32 %v453, %v801
    %v838 = vmul.f32 %v454, %v805
    %v839 = vpack.c.bf16 %v808, %v807
    %v840 = vpack.c.bf16 %v810, %v809
    %v841 = vpack.c.bf16 %v812, %v811
    %v842 = vpack.c.bf16 %v814, %v813
    %v843 = vpack.c.bf16 %v816, %v815
    %v844 = vpack.c.bf16 %v818, %v817
    %v845 = vpack.c.bf16 %v820, %v819
    %v846 = vpack.c.bf16 %v822, %v821
    %v847 = vpack.c.bf16 %v824, %v823
    %v848 = vpack.c.bf16 %v826, %v825
    %v849 = vpack.c.bf16 %v828, %v827
    %v850 = vpack.c.bf16 %v830, %v829
    %v851 = vpack.c.bf16 %v832, %v831
    %v852 = vpack.c.bf16 %v834, %v833
    %v853 = vpack.c.bf16 %v836, %v835
    %v854 = vpack.c.bf16 %v838, %v837
    %vm855 = vsmask.f32 256
    %v857 = vshrl.u32 %v663, 16
    %v859 = vrot.slane %v857, 7
    %v860 = vshll.u32 %v663, 16
    %v862 = vor.u32 %v859, %v860
    %v864 = vshrl.u32 %v664, 16
    %v866 = vrot.slane %v864, 7
    %v867 = vshll.u32 %v664, 16
    %v869 = vor.u32 %v866, %v867
    %v870 = vsel %vm855, %v859, %v869
    %v872 = vshrl.u32 %v665, 16
    %v874 = vrot.slane %v872, 7
    %v875 = vshll.u32 %v665, 16
    %v877 = vor.u32 %v874, %v875
    %v878 = vsel %vm855, %v866, %v877
    %v880 = vshrl.u32 %v666, 16
    %v882 = vrot.slane %v880, 7
    %v883 = vshll.u32 %v666, 16
    %v885 = vor.u32 %v882, %v883
    %v886 = vsel %vm855, %v874, %v885
    %v888 = vshrl.u32 %v667, 16
    %v890 = vrot.slane %v888, 7
    %v891 = vshll.u32 %v667, 16
    %v893 = vor.u32 %v890, %v891
    %v894 = vsel %vm855, %v882, %v893
    %v896 = vshrl.u32 %v668, 16
    %v898 = vrot.slane %v896, 7
    %v899 = vshll.u32 %v668, 16
    %v901 = vor.u32 %v898, %v899
    %v902 = vsel %vm855, %v890, %v901
    %v904 = vshrl.u32 %v669, 16
    %v906 = vrot.slane %v904, 7
    %v907 = vshll.u32 %v669, 16
    %v909 = vor.u32 %v906, %v907
    %v910 = vsel %vm855, %v898, %v909
    %v912 = vshrl.u32 %v670, 16
    %v914 = vrot.slane %v912, 7
    %v915 = vshll.u32 %v670, 16
    %v917 = vor.u32 %v914, %v915
    %v918 = vsel %vm855, %v906, %v917
    %v920 = vshrl.u32 %v671, 16
    %v922 = vrot.slane %v920, 7
    %v923 = vshll.u32 %v671, 16
    %v925 = vor.u32 %v922, %v923
    %v926 = vsel %vm855, %v914, %v925
    %v928 = vshrl.u32 %v672, 16
    %v930 = vrot.slane %v928, 7
    %v931 = vshll.u32 %v672, 16
    %v933 = vor.u32 %v930, %v931
    %v934 = vsel %vm855, %v922, %v933
    %v936 = vshrl.u32 %v673, 16
    %v938 = vrot.slane %v936, 7
    %v939 = vshll.u32 %v673, 16
    %v941 = vor.u32 %v938, %v939
    %v942 = vsel %vm855, %v930, %v941
    %v944 = vshrl.u32 %v674, 16
    %v946 = vrot.slane %v944, 7
    %v947 = vshll.u32 %v674, 16
    %v949 = vor.u32 %v946, %v947
    %v950 = vsel %vm855, %v938, %v949
    %v952 = vshrl.u32 %v675, 16
    %v954 = vrot.slane %v952, 7
    %v955 = vshll.u32 %v675, 16
    %v957 = vor.u32 %v954, %v955
    %v958 = vsel %vm855, %v946, %v957
    %v960 = vshrl.u32 %v676, 16
    %v962 = vrot.slane %v960, 7
    %v963 = vshll.u32 %v676, 16
    %v965 = vor.u32 %v962, %v963
    %v966 = vsel %vm855, %v954, %v965
    %v968 = vshrl.u32 %v677, 16
    %v970 = vrot.slane %v968, 7
    %v971 = vshll.u32 %v677, 16
    %v973 = vor.u32 %v970, %v971
    %v974 = vsel %vm855, %v962, %v973
    %vm976 = vcmask 1040384
    %vm977 = vmand %vm976, %vm855
    %v978 = vsel %vm977, 0, %v862
    %vm979 = vsmask.f32 7424
    %v981 = vshll.u32 %v839, 16
    %v983 = vrot.slane %v981, 1
    %v984 = vshrl.u32 %v839, 16
    %v986 = vor.u32 %v984, %v983
    %v988 = vshll.u32 %v840, 16
    %v990 = vrot.slane %v988, 1
    %v991 = vsel %vm979, %v986, %v990
    %v992 = vshrl.u32 %v840, 16
    %v994 = vor.u32 %v992, %v990
    %v996 = vshll.u32 %v841, 16
    %v998 = vrot.slane %v996, 1
    %v999 = vsel %vm979, %v994, %v998
    %v1000 = vshrl.u32 %v841, 16
    %v1002 = vor.u32 %v1000, %v998
    %v1004 = vshll.u32 %v842, 16
    %v1006 = vrot.slane %v1004, 1
    %v1007 = vsel %vm979, %v1002, %v1006
    %v1008 = vshrl.u32 %v842, 16
    %v1010 = vor.u32 %v1008, %v1006
    %v1012 = vshll.u32 %v843, 16
    %v1014 = vrot.slane %v1012, 1
    %v1015 = vsel %vm979, %v1010, %v1014
    %v1016 = vshrl.u32 %v843, 16
    %v1018 = vor.u32 %v1016, %v1014
    %v1020 = vshll.u32 %v844, 16
    %v1022 = vrot.slane %v1020, 1
    %v1023 = vsel %vm979, %v1018, %v1022
    %v1024 = vshrl.u32 %v844, 16
    %v1026 = vor.u32 %v1024, %v1022
    %v1028 = vshll.u32 %v845, 16
    %v1030 = vrot.slane %v1028, 1
    %v1031 = vsel %vm979, %v1026, %v1030
    %v1032 = vshrl.u32 %v845, 16
    %v1034 = vor.u32 %v1032, %v1030
    %v1036 = vshll.u32 %v846, 16
    %v1038 = vrot.slane %v1036, 1
    %v1039 = vsel %vm979, %v1034, %v1038
    %v1040 = vshrl.u32 %v846, 16
    %v1042 = vor.u32 %v1040, %v1038
    %v1044 = vshll.u32 %v847, 16
    %v1046 = vrot.slane %v1044, 1
    %v1047 = vsel %vm979, %v1042, %v1046
    %v1048 = vshrl.u32 %v847, 16
    %v1050 = vor.u32 %v1048, %v1046
    %v1052 = vshll.u32 %v848, 16
    %v1054 = vrot.slane %v1052, 1
    %v1055 = vsel %vm979, %v1050, %v1054
    %v1056 = vshrl.u32 %v848, 16
    %v1058 = vor.u32 %v1056, %v1054
    %v1060 = vshll.u32 %v849, 16
    %v1062 = vrot.slane %v1060, 1
    %v1063 = vsel %vm979, %v1058, %v1062
    %v1064 = vshrl.u32 %v849, 16
    %v1066 = vor.u32 %v1064, %v1062
    %v1068 = vshll.u32 %v850, 16
    %v1070 = vrot.slane %v1068, 1
    %v1071 = vsel %vm979, %v1066, %v1070
    %v1072 = vshrl.u32 %v850, 16
    %v1074 = vor.u32 %v1072, %v1070
    %v1076 = vshll.u32 %v851, 16
    %v1078 = vrot.slane %v1076, 1
    %v1079 = vsel %vm979, %v1074, %v1078
    %v1080 = vshrl.u32 %v851, 16
    %v1082 = vor.u32 %v1080, %v1078
    %v1084 = vshll.u32 %v852, 16
    %v1086 = vrot.slane %v1084, 1
    %v1087 = vsel %vm979, %v1082, %v1086
    %v1088 = vshrl.u32 %v852, 16
    %v1090 = vor.u32 %v1088, %v1086
    %v1092 = vshll.u32 %v853, 16
    %v1094 = vrot.slane %v1092, 1
    %v1095 = vsel %vm979, %v1090, %v1094
    %v1096 = vshrl.u32 %v853, 16
    %v1098 = vor.u32 %v1096, %v1094
    %v1100 = vshll.u32 %v854, 16
    %v1102 = vrot.slane %v1100, 1
    %v1103 = vsel %vm979, %v1098, %v1102
    %vm1105 = vcmask 1047552
    %vm1106 = vmand %vm1105, %vm979
    %v1107 = vsel %vm1106, 0, %v983
    %v1109 = vshrl.u32 %v678, 16
    %v1111 = vrot.slane %v1109, 7
    %v1112 = vshll.u32 %v678, 16
    %v1114 = vor.u32 %v1111, %v1112
    %v1115 = vsel %vm855, %v970, %v1114
    %v1116 = vshrl.u32 %v854, 16
    %v1118 = vor.u32 %v1116, %v1102
    %v1120 = vsel %vm1106, %v1118, 0
    %v1122 = vsel %vm977, %v1111, 0
    %1139 = vrot.lane.b32.xlu0 0, 32
    %v1140 = vpop.permute.xlu0 %1139
    %1141 = vrot.lane.b32.xlu0 %v455, 32
    %v1142 = vpop.permute.xlu0 %1141
    %1143 = vrot.lane.b32.xlu0 %v456, 32
    %v1144 = vpop.permute.xlu0 %1143
    %1145 = vrot.lane.b32.xlu0 %v457, 32
    %v1146 = vpop.permute.xlu0 %1145
    %1147 = vrot.lane.b32.xlu0 %v458, 32
    %v1148 = vpop.permute.xlu0 %1147
    %1149 = vrot.lane.b32.xlu0 %v459, 32
    %v1150 = vpop.permute.xlu0 %1149
    %1151 = vrot.lane.b32.xlu0 %v460, 32
    %v1152 = vpop.permute.xlu0 %1151
    %1153 = vrot.lane.b32.xlu0 %v461, 32
    %v1154 = vpop.permute.xlu0 %1153
    %1155 = vrot.lane.b32.xlu0 %v462, 32
    %v1156 = vpop.permute.xlu0 %1155
    %1157 = vrot.lane.b32.xlu0 %v463, 32
    %v1158 = vpop.permute.xlu0 %1157
    %1159 = vrot.lane.b32.xlu0 %v464, 32
    %v1160 = vpop.permute.xlu0 %1159
    %1161 = vrot.lane.b32.xlu0 %v465, 32
    %v1162 = vpop.permute.xlu0 %1161
    %1163 = vrot.lane.b32.xlu0 %v466, 32
    %v1164 = vpop.permute.xlu0 %1163
    %1165 = vrot.lane.b32.xlu0 %v467, 32
    %v1166 = vpop.permute.xlu0 %1165
    %1167 = vrot.lane.b32.xlu0 %v468, 32
    %v1168 = vpop.permute.xlu0 %1167
    %1169 = vrot.lane.b32.xlu0 %v469, 32
    %v1170 = vpop.permute.xlu0 %1169
    %1172 = vrot.lane.b32.xlu0 %v1107, 64
    %v1173 = vpop.permute.xlu0 %1172
    %1174 = vrot.lane.b32.xlu0 %v991, 64
    %v1175 = vpop.permute.xlu0 %1174
    %1176 = vrot.lane.b32.xlu0 %v999, 64
    %v1177 = vpop.permute.xlu0 %1176
    %1178 = vrot.lane.b32.xlu0 %v1007, 64
    %v1179 = vpop.permute.xlu0 %1178
    %1180 = vrot.lane.b32.xlu0 %v1015, 64
    %v1181 = vpop.permute.xlu0 %1180
    %1182 = vrot.lane.b32.xlu0 %v1023, 64
    %v1183 = vpop.permute.xlu0 %1182
    %1184 = vrot.lane.b32.xlu0 %v1031, 64
    %v1185 = vpop.permute.xlu0 %1184
    %1186 = vrot.lane.b32.xlu0 %v1039, 64
    %v1187 = vpop.permute.xlu0 %1186
    %1188 = vrot.lane.b32.xlu0 %v1047, 64
    %v1189 = vpop.permute.xlu0 %1188
    %1190 = vrot.lane.b32.xlu0 %v1055, 64
    %v1191 = vpop.permute.xlu0 %1190
    %1192 = vrot.lane.b32.xlu0 %v1063, 64
    %v1193 = vpop.permute.xlu0 %1192
    %1194 = vrot.lane.b32.xlu0 %v1071, 64
    %v1195 = vpop.permute.xlu0 %1194
    %1196 = vrot.lane.b32.xlu0 %v1079, 64
    %v1197 = vpop.permute.xlu0 %1196
    %1198 = vrot.lane.b32.xlu0 %v1087, 64
    %v1199 = vpop.permute.xlu0 %1198
    %1200 = vrot.lane.b32.xlu0 %v1095, 64
    %v1201 = vpop.permute.xlu0 %1200
    %1202 = vrot.lane.b32.xlu0 %v1103, 64
    %v1203 = vpop.permute.xlu0 %1202
    %1205 = vrot.lane.b32.xlu0 %v978, 96
    %v1206 = vpop.permute.xlu0 %1205
    %1207 = vrot.lane.b32.xlu0 %v870, 96
    %v1208 = vpop.permute.xlu0 %1207
    %1209 = vrot.lane.b32.xlu0 %v878, 96
    %v1210 = vpop.permute.xlu0 %1209
    %1211 = vrot.lane.b32.xlu0 %v886, 96
    %v1212 = vpop.permute.xlu0 %1211
    %1213 = vrot.lane.b32.xlu0 %v894, 96
    %v1214 = vpop.permute.xlu0 %1213
    %1215 = vrot.lane.b32.xlu0 %v902, 96
    %v1216 = vpop.permute.xlu0 %1215
    %1217 = vrot.lane.b32.xlu0 %v910, 96
    %v1218 = vpop.permute.xlu0 %1217
    %1219 = vrot.lane.b32.xlu0 %v918, 96
    %v1220 = vpop.permute.xlu0 %1219
    %1221 = vrot.lane.b32.xlu0 %v926, 96
    %v1222 = vpop.permute.xlu0 %1221
    %1223 = vrot.lane.b32.xlu0 %v934, 96
    %v1224 = vpop.permute.xlu0 %1223
    %1225 = vrot.lane.b32.xlu0 %v942, 96
    %v1226 = vpop.permute.xlu0 %1225
    %1227 = vrot.lane.b32.xlu0 %v950, 96
    %v1228 = vpop.permute.xlu0 %1227
    %1229 = vrot.lane.b32.xlu0 %v958, 96
    %v1230 = vpop.permute.xlu0 %1229
    %1231 = vrot.lane.b32.xlu0 %v966, 96
    %v1232 = vpop.permute.xlu0 %1231
    %1233 = vrot.lane.b32.xlu0 %v974, 96
    %v1234 = vpop.permute.xlu0 %1233
    %1235 = vrot.lane.b32.xlu0 %v1115, 96
    %v1236 = vpop.permute.xlu0 %1235
    %1238 = vrot.lane.b32.xlu0 %v991, 32
    %v1239 = vpop.permute.xlu0 %1238
    %1240 = vrot.lane.b32.xlu0 %v999, 32
    %v1241 = vpop.permute.xlu0 %1240
    %1242 = vrot.lane.b32.xlu0 %v1007, 32
    %v1243 = vpop.permute.xlu0 %1242
    %1244 = vrot.lane.b32.xlu0 %v1015, 32
    %v1245 = vpop.permute.xlu0 %1244
    %1246 = vrot.lane.b32.xlu0 %v1023, 32
    %v1247 = vpop.permute.xlu0 %1246
    %1248 = vrot.lane.b32.xlu0 %v1031, 32
    %v1249 = vpop.permute.xlu0 %1248
    %1250 = vrot.lane.b32.xlu0 %v1039, 32
    %v1251 = vpop.permute.xlu0 %1250
    %1252 = vrot.lane.b32.xlu0 %v1047, 32
    %v1253 = vpop.permute.xlu0 %1252
    %1254 = vrot.lane.b32.xlu0 %v1055, 32
    %v1255 = vpop.permute.xlu0 %1254
    %1256 = vrot.lane.b32.xlu0 %v1063, 32
    %v1257 = vpop.permute.xlu0 %1256
    %1258 = vrot.lane.b32.xlu0 %v1071, 32
    %v1259 = vpop.permute.xlu0 %1258
    %1260 = vrot.lane.b32.xlu0 %v1079, 32
    %v1261 = vpop.permute.xlu0 %1260
    %1262 = vrot.lane.b32.xlu0 %v1087, 32
    %v1263 = vpop.permute.xlu0 %1262
    %1264 = vrot.lane.b32.xlu0 %v1095, 32
    %v1265 = vpop.permute.xlu0 %1264
    %1266 = vrot.lane.b32.xlu0 %v1103, 32
    %v1267 = vpop.permute.xlu0 %1266
    %1268 = vrot.lane.b32.xlu0 %v1120, 32
    %v1269 = vpop.permute.xlu0 %1268
    %1271 = vrot.lane.b32.xlu0 %v870, 64
    %v1272 = vpop.permute.xlu0 %1271
    %1273 = vrot.lane.b32.xlu0 %v878, 64
    %v1274 = vpop.permute.xlu0 %1273
    %1275 = vrot.lane.b32.xlu0 %v886, 64
    %v1276 = vpop.permute.xlu0 %1275
    %1277 = vrot.lane.b32.xlu0 %v894, 64
    %v1278 = vpop.permute.xlu0 %1277
    %1279 = vrot.lane.b32.xlu0 %v902, 64
    %v1280 = vpop.permute.xlu0 %1279
    %1281 = vrot.lane.b32.xlu0 %v910, 64
    %v1282 = vpop.permute.xlu0 %1281
    %1283 = vrot.lane.b32.xlu0 %v918, 64
    %v1284 = vpop.permute.xlu0 %1283
    %1285 = vrot.lane.b32.xlu0 %v926, 64
    %v1286 = vpop.permute.xlu0 %1285
    %1287 = vrot.lane.b32.xlu0 %v934, 64
    %v1288 = vpop.permute.xlu0 %1287
    %1289 = vrot.lane.b32.xlu0 %v942, 64
    %v1290 = vpop.permute.xlu0 %1289
    %1291 = vrot.lane.b32.xlu0 %v950, 64
    %v1292 = vpop.permute.xlu0 %1291
    %1293 = vrot.lane.b32.xlu0 %v958, 64
    %v1294 = vpop.permute.xlu0 %1293
    %1295 = vrot.lane.b32.xlu0 %v966, 64
    %v1296 = vpop.permute.xlu0 %1295
    %1297 = vrot.lane.b32.xlu0 %v974, 64
    %v1298 = vpop.permute.xlu0 %1297
    %1299 = vrot.lane.b32.xlu0 %v1115, 64
    %v1300 = vpop.permute.xlu0 %1299
    %1301 = vrot.lane.b32.xlu0 %v1122, 64
    %v1302 = vpop.permute.xlu0 %1301
    %1304 = vrot.lane.b32.xlu0 %v456, 96
    %v1305 = vpop.permute.xlu0 %1304
    %1306 = vrot.lane.b32.xlu0 %v457, 96
    %v1307 = vpop.permute.xlu0 %1306
    %1308 = vrot.lane.b32.xlu0 %v458, 96
    %v1309 = vpop.permute.xlu0 %1308
    %1310 = vrot.lane.b32.xlu0 %v459, 96
    %v1311 = vpop.permute.xlu0 %1310
    %1312 = vrot.lane.b32.xlu0 %v460, 96
    %v1313 = vpop.permute.xlu0 %1312
    %1314 = vrot.lane.b32.xlu0 %v461, 96
    %v1315 = vpop.permute.xlu0 %1314
    %1316 = vrot.lane.b32.xlu0 %v462, 96
    %v1317 = vpop.permute.xlu0 %1316
    %1318 = vrot.lane.b32.xlu0 %v463, 96
    %v1319 = vpop.permute.xlu0 %1318
    %1320 = vrot.lane.b32.xlu0 %v464, 96
    %v1321 = vpop.permute.xlu0 %1320
    %1322 = vrot.lane.b32.xlu0 %v465, 96
    %v1323 = vpop.permute.xlu0 %1322
    %1324 = vrot.lane.b32.xlu0 %v466, 96
    %v1325 = vpop.permute.xlu0 %1324
    %1326 = vrot.lane.b32.xlu0 %v467, 96
    %v1327 = vpop.permute.xlu0 %1326
    %1328 = vrot.lane.b32.xlu0 %v468, 96
    %v1329 = vpop.permute.xlu0 %1328
    %1330 = vrot.lane.b32.xlu0 %v469, 96
    %v1331 = vpop.permute.xlu0 %1330
    %1332 = vrot.lane.b32.xlu0 %v470, 96
    %v1333 = vpop.permute.xlu0 %1332
    %1334 = vrot.lane.b32.xlu0 0, 96
    %v1335 = vpop.permute.xlu0 %1334
    %vm1336 = vcmask 261120
    %v1339 = vsel %vm1336, 0, %v1140
    %v1342 = vsel %vm1336, %v978, %v1142
    %v1345 = vsel %vm1336, %v870, %v1144
    %v1348 = vsel %vm1336, %v878, %v1146
    %v1351 = vsel %vm1336, %v886, %v1148
    %v1354 = vsel %vm1336, %v894, %v1150
    %v1357 = vsel %vm1336, %v902, %v1152
    %v1360 = vsel %vm1336, %v910, %v1154
    %v1363 = vsel %vm1336, %v918, %v1156
    %v1366 = vsel %vm1336, %v926, %v1158
    %v1369 = vsel %vm1336, %v934, %v1160
    %v1372 = vsel %vm1336, %v942, %v1162
    %v1375 = vsel %vm1336, %v950, %v1164
    %v1378 = vsel %vm1336, %v958, %v1166
    %v1381 = vsel %vm1336, %v966, %v1168
    %v1384 = vsel %vm1336, %v974, %v1170
    %v1386 = vsel %vm213, %v1339, %v1173
    %v1388 = vsel %vm213, %v1342, %v1175
    %v1390 = vsel %vm213, %v1345, %v1177
    %v1392 = vsel %vm213, %v1348, %v1179
    %v1394 = vsel %vm213, %v1351, %v1181
    %v1396 = vsel %vm213, %v1354, %v1183
    %v1398 = vsel %vm213, %v1357, %v1185
    %v1400 = vsel %vm213, %v1360, %v1187
    %v1402 = vsel %vm213, %v1363, %v1189
    %v1404 = vsel %vm213, %v1366, %v1191
    %v1406 = vsel %vm213, %v1369, %v1193
    %v1408 = vsel %vm213, %v1372, %v1195
    %v1410 = vsel %vm213, %v1375, %v1197
    %v1412 = vsel %vm213, %v1378, %v1199
    %v1414 = vsel %vm213, %v1381, %v1201
    %v1416 = vsel %vm213, %v1384, %v1203
    %vm1417 = vcmask 785408
    %v1419 = vsel %vm1417, %v1386, %v1206
    %v1422 = vsel %vm1417, %v1388, %v1208
    %v1425 = vsel %vm1417, %v1390, %v1210
    %v1428 = vsel %vm1417, %v1392, %v1212
    %v1431 = vsel %vm1417, %v1394, %v1214
    %v1434 = vsel %vm1417, %v1396, %v1216
    %v1437 = vsel %vm1417, %v1398, %v1218
    %v1440 = vsel %vm1417, %v1400, %v1220
    %v1443 = vsel %vm1417, %v1402, %v1222
    %v1446 = vsel %vm1417, %v1404, %v1224
    %v1449 = vsel %vm1417, %v1406, %v1226
    %v1452 = vsel %vm1417, %v1408, %v1228
    %v1455 = vsel %vm1417, %v1410, %v1230
    %v1458 = vsel %vm1417, %v1412, %v1232
    %v1461 = vsel %vm1417, %v1414, %v1234
    %v1464 = vsel %vm1417, %v1416, %v1236
    %v1468 = vsel %vm1336, %v455, %v1239
    %v1471 = vsel %vm1336, %v456, %v1241
    %v1474 = vsel %vm1336, %v457, %v1243
    %v1477 = vsel %vm1336, %v458, %v1245
    %v1480 = vsel %vm1336, %v459, %v1247
    %v1483 = vsel %vm1336, %v460, %v1249
    %v1486 = vsel %vm1336, %v461, %v1251
    %v1489 = vsel %vm1336, %v462, %v1253
    %v1492 = vsel %vm1336, %v463, %v1255
    %v1495 = vsel %vm1336, %v464, %v1257
    %v1498 = vsel %vm1336, %v465, %v1259
    %v1501 = vsel %vm1336, %v466, %v1261
    %v1504 = vsel %vm1336, %v467, %v1263
    %v1507 = vsel %vm1336, %v468, %v1265
    %v1510 = vsel %vm1336, %v469, %v1267
    %v1513 = vsel %vm1336, %v470, %v1269
    %v1515 = vsel %vm213, %v1468, %v1272
    %v1517 = vsel %vm213, %v1471, %v1274
    %v1519 = vsel %vm213, %v1474, %v1276
    %v1521 = vsel %vm213, %v1477, %v1278
    %v1523 = vsel %vm213, %v1480, %v1280
    %v1525 = vsel %vm213, %v1483, %v1282
    %v1527 = vsel %vm213, %v1486, %v1284
    %v1529 = vsel %vm213, %v1489, %v1286
    %v1531 = vsel %vm213, %v1492, %v1288
    %v1533 = vsel %vm213, %v1495, %v1290
    %v1535 = vsel %vm213, %v1498, %v1292
    %v1537 = vsel %vm213, %v1501, %v1294
    %v1539 = vsel %vm213, %v1504, %v1296
    %v1541 = vsel %vm213, %v1507, %v1298
    %v1543 = vsel %vm213, %v1510, %v1300
    %v1545 = vsel %vm213, %v1513, %v1302
    %v1547 = vsel %vm1417, %v1515, %v1305
    %v1550 = vsel %vm1417, %v1517, %v1307
    %v1553 = vsel %vm1417, %v1519, %v1309
    %v1556 = vsel %vm1417, %v1521, %v1311
    %v1559 = vsel %vm1417, %v1523, %v1313
    %v1562 = vsel %vm1417, %v1525, %v1315
    %v1565 = vsel %vm1417, %v1527, %v1317
    %v1568 = vsel %vm1417, %v1529, %v1319
    %v1571 = vsel %vm1417, %v1531, %v1321
    %v1574 = vsel %vm1417, %v1533, %v1323
    %v1577 = vsel %vm1417, %v1535, %v1325
    %v1580 = vsel %vm1417, %v1537, %v1327
    %v1583 = vsel %vm1417, %v1539, %v1329
    %v1586 = vsel %vm1417, %v1541, %v1331
    %v1589 = vsel %vm1417, %v1543, %v1333
    %v1592 = vsel %vm1417, %v1545, %v1335
    %s1594 = scalar_lea.vmem %s0, 256
    %v1595 = vld [vmem:[%s1594] sm:$0xff]
    %v1596 = vld [vmem:[%s1594 + $0x8] sm:$0xff]
    %v1597 = vld [vmem:[%s1594 + $0x10] sm:$0xff]
    %v1598 = vld [vmem:[%s1594 + $0x18] sm:$0xff]
    %v1599 = vld [vmem:[%s1594 + $0x20] sm:$0xff]
    %v1600 = vld [vmem:[%s1594 + $0x28] sm:$0xff]
    %v1601 = vld [vmem:[%s1594 + $0x30] sm:$0xff]
    %v1602 = vld [vmem:[%s1594 + $0x38] sm:$0xff]
    %v1603 = vld [vmem:[%s1594 + $0x40] sm:$0xff]
    %v1604 = vld [vmem:[%s1594 + $0x48] sm:$0xff]
    %v1605 = vld [vmem:[%s1594 + $0x50] sm:$0xff]
    %v1606 = vld [vmem:[%s1594 + $0x58] sm:$0xff]
    %v1607 = vld [vmem:[%s1594 + $0x60] sm:$0xff]
    %v1608 = vld [vmem:[%s1594 + $0x68] sm:$0xff]
    %v1609 = vld [vmem:[%s1594 + $0x70] sm:$0xff]
    %v1610 = vld [vmem:[%s1594 + $0x78] sm:$0xff]
    %v1611 = vld [vmem:[%s1594 + $0x80] sm:$0xff]
    %v1612 = vld [vmem:[%s1594 + $0x88] sm:$0xff]
    %v1613 = vld [vmem:[%s1594 + $0x90] sm:$0xff]
    %v1614 = vld [vmem:[%s1594 + $0x98] sm:$0xff]
    %v1615 = vld [vmem:[%s1594 + $0xa0] sm:$0xff]
    %v1616 = vld [vmem:[%s1594 + $0xa8] sm:$0xff]
    %v1617 = vld [vmem:[%s1594 + $0xb0] sm:$0xff]
    %v1618 = vld [vmem:[%s1594 + $0xb8] sm:$0xff]
    %v1619 = vld [vmem:[%s1594 + $0xc0] sm:$0xff]
    %v1620 = vld [vmem:[%s1594 + $0xc8] sm:$0xff]
    %v1621 = vld [vmem:[%s1594 + $0xd0] sm:$0xff]
    %v1622 = vld [vmem:[%s1594 + $0xd8] sm:$0xff]
    %v1623 = vld [vmem:[%s1594 + $0xe0] sm:$0xff]
    %v1624 = vld [vmem:[%s1594 + $0xe8] sm:$0xff]
    %v1625 = vld [vmem:[%s1594 + $0xf0] sm:$0xff]
    %v1626 = vld [vmem:[%s1594 + $0xf8] sm:$0xff]
    %s1627 = scalar_lea.vmem %s1, 64
    %v1628 = vld [vmem:[%s1627] sm:$0xff]
    %v1629 = vld [vmem:[%s1627 + $0x8] sm:$0xff]
    %v1630 = vld [vmem:[%s1627 + $0x10] sm:$0xff]
    %v1631 = vld [vmem:[%s1627 + $0x18] sm:$0xff]
    %v1632 = vld [vmem:[%s1627 + $0x20] sm:$0xff]
    %v1633 = vld [vmem:[%s1627 + $0x28] sm:$0xff]
    %v1634 = vld [vmem:[%s1627 + $0x30] sm:$0xff]
    %v1635 = vld [vmem:[%s1627 + $0x38] sm:$0xff]
    %v1636 = vpack.c.bf16 %v1629, %v1628
    %v1637 = vpack.c.bf16 %v1631, %v1630
    %v1638 = vpack.c.bf16 %v1633, %v1632
    %v1639 = vpack.c.bf16 %v1635, %v1634
    %1640 = vmatprep.subr.bf16.mxu0 0
    %1641 = vmatpush1.bf16.msra.mxu0 0
    %1642 = vmatprep.subr.bf16.mxu0 0
    %1643 = vmatpush1.bf16.msra.mxu0 0
    %1644 = vmatprep.subr.bf16.mxu0 0
    %1645 = vmatpush1.bf16.msra.mxu0 0
    %1646 = vmatprep.subr.bf16.mxu0 0
    %1647 = vmatpush1.bf16.msra.mxu0 0
    %1648 = vmatprep.subr.bf16.mxu0 0
    %1649 = vmatpush1.bf16.msra.mxu0 %v1639
    %1650 = vmatprep.subr.bf16.mxu0 0
    %1651 = vmatpush1.bf16.msra.mxu0 %v1638
    %1652 = vmatprep.subr.bf16.mxu0 0
    %1653 = vmatpush1.bf16.msra.mxu0 %v1637
    %1654 = vmatprep.subr.bf16.mxu0 0
    %1655 = vmatpush1.bf16.msra.mxu0 %v1636
    %1656 = vmatprep.subr.bf16.mxu0 0
    %1657 = vmatpush2.bf16.msra.mxu0 0
    %1658 = vmatprep.subr.bf16.mxu0 0
    %1659 = vmatpush2.bf16.msra.mxu0 0
    %1660 = vmatprep.subr.bf16.mxu0 0
    %1661 = vmatpush2.bf16.msra.mxu0 0
    %1662 = vmatprep.subr.bf16.mxu0 0
    %1663 = vmatpush2.bf16.msra.mxu0 0
    %1664 = vmatprep.subr.bf16.mxu0 0
    %1665 = vmatpush2.bf16.msra.mxu0 0
    %1666 = vmatprep.subr.bf16.mxu0 0
    %1667 = vmatpush2.bf16.msra.mxu0 0
    %1668 = vmatprep.subr.bf16.mxu0 0
    %1669 = vmatpush2.bf16.msra.mxu0 0
    %1670 = vmatprep.subr.bf16.mxu0 0
    %1671 = vmatpush2.bf16.msra.mxu0 0
    %1672 = vmatprep.mubr.bf16.mxu0 0
    %1673 = vmatmul.mubr.bf16.gmra.mxu0 %v215
    %v1674 = vpop.f32.mrf.mxu0
    %v1675 = vadd.f32 0.0, %v1674
    %v1676 = vpop.f32.mrf.mxu0
    %v1677 = vpop.f32.mrf.mxu0
    %v1678 = vadd.f32 0.0, %v1677
    %v1679 = vpop.f32.mrf.mxu0
    %1680 = vmatprep.mubr.bf16.mxu0 0
    %1681 = vmatmul.mubr.bf16.gmra.mxu0 %v218
    %v1682 = vpop.f32.mrf.mxu0
    %v1683 = vadd.f32 0.0, %v1682
    %v1684 = vpop.f32.mrf.mxu0
    %v1685 = vpop.f32.mrf.mxu0
    %v1686 = vadd.f32 0.0, %v1685
    %v1687 = vpop.f32.mrf.mxu0
    %1688 = vmatprep.mubr.bf16.mxu0 0
    %1689 = vmatmul.mubr.bf16.gmra.mxu0 %v221
    %v1690 = vpop.f32.mrf.mxu0
    %v1691 = vadd.f32 0.0, %v1690
    %v1692 = vpop.f32.mrf.mxu0
    %v1693 = vpop.f32.mrf.mxu0
    %v1694 = vadd.f32 0.0, %v1693
    %v1695 = vpop.f32.mrf.mxu0
    %1696 = vmatprep.mubr.bf16.mxu0 0
    %1697 = vmatmul.mubr.bf16.gmra.mxu0 %v224
    %v1698 = vpop.f32.mrf.mxu0
    %v1699 = vadd.f32 0.0, %v1698
    %v1700 = vpop.f32.mrf.mxu0
    %v1701 = vpop.f32.mrf.mxu0
    %v1702 = vadd.f32 0.0, %v1701
    %v1703 = vpop.f32.mrf.mxu0
    %1704 = vmatprep.mubr.bf16.mxu0 0
    %1705 = vmatmul.mubr.bf16.gmra.mxu0 %v227
    %v1706 = vpop.f32.mrf.mxu0
    %v1707 = vadd.f32 0.0, %v1706
    %v1708 = vpop.f32.mrf.mxu0
    %v1709 = vpop.f32.mrf.mxu0
    %v1710 = vadd.f32 0.0, %v1709
    %v1711 = vpop.f32.mrf.mxu0
    %1712 = vmatprep.mubr.bf16.mxu0 0
    %1713 = vmatmul.mubr.bf16.gmra.mxu0 %v230
    %v1714 = vpop.f32.mrf.mxu0
    %v1715 = vadd.f32 0.0, %v1714
    %v1716 = vpop.f32.mrf.mxu0
    %v1717 = vpop.f32.mrf.mxu0
    %v1718 = vadd.f32 0.0, %v1717
    %v1719 = vpop.f32.mrf.mxu0
    %1720 = vmatprep.mubr.bf16.mxu0 0
    %1721 = vmatmul.mubr.bf16.gmra.mxu0 %v233
    %v1722 = vpop.f32.mrf.mxu0
    %v1723 = vadd.f32 0.0, %v1722
    %v1724 = vpop.f32.mrf.mxu0
    %v1725 = vpop.f32.mrf.mxu0
    %v1726 = vadd.f32 0.0, %v1725
    %v1727 = vpop.f32.mrf.mxu0
    %1728 = vmatprep.mubr.bf16.mxu0 0
    %1729 = vmatmul.mubr.bf16.gmra.mxu0 %v236
    %v1730 = vpop.f32.mrf.mxu0
    %v1731 = vadd.f32 0.0, %v1730
    %v1732 = vpop.f32.mrf.mxu0
    %v1733 = vpop.f32.mrf.mxu0
    %v1734 = vadd.f32 0.0, %v1733
    %v1735 = vpop.f32.mrf.mxu0
    %1736 = vmatprep.mubr.bf16.mxu0 0
    %1737 = vmatmul.mubr.bf16.gmra.mxu0 %v239
    %v1738 = vpop.f32.mrf.mxu0
    %v1739 = vadd.f32 0.0, %v1738
    %v1740 = vpop.f32.mrf.mxu0
    %v1741 = vpop.f32.mrf.mxu0
    %v1742 = vadd.f32 0.0, %v1741
    %v1743 = vpop.f32.mrf.mxu0
    %1744 = vmatprep.mubr.bf16.mxu0 0
    %1745 = vmatmul.mubr.bf16.gmra.mxu0 %v242
    %v1746 = vpop.f32.mrf.mxu0
    %v1747 = vadd.f32 0.0, %v1746
    %v1748 = vpop.f32.mrf.mxu0
    %v1749 = vpop.f32.mrf.mxu0
    %v1750 = vadd.f32 0.0, %v1749
    %v1751 = vpop.f32.mrf.mxu0
    %1752 = vmatprep.mubr.bf16.mxu0 0
    %1753 = vmatmul.mubr.bf16.gmra.mxu0 %v245
    %v1754 = vpop.f32.mrf.mxu0
    %v1755 = vadd.f32 0.0, %v1754
    %v1756 = vpop.f32.mrf.mxu0
    %v1757 = vpop.f32.mrf.mxu0
    %v1758 = vadd.f32 0.0, %v1757
    %v1759 = vpop.f32.mrf.mxu0
    %1760 = vmatprep.mubr.bf16.mxu0 0
    %1761 = vmatmul.mubr.bf16.gmra.mxu0 %v248
    %v1762 = vpop.f32.mrf.mxu0
    %v1763 = vadd.f32 0.0, %v1762
    %v1764 = vpop.f32.mrf.mxu0
    %v1765 = vpop.f32.mrf.mxu0
    %v1766 = vadd.f32 0.0, %v1765
    %v1767 = vpop.f32.mrf.mxu0
    %1768 = vmatprep.mubr.bf16.mxu0 0
    %1769 = vmatmul.mubr.bf16.gmra.mxu0 %v251
    %v1770 = vpop.f32.mrf.mxu0
    %v1771 = vadd.f32 0.0, %v1770
    %v1772 = vpop.f32.mrf.mxu0
    %v1773 = vpop.f32.mrf.mxu0
    %v1774 = vadd.f32 0.0, %v1773
    %v1775 = vpop.f32.mrf.mxu0
    %1776 = vmatprep.mubr.bf16.mxu0 0
    %1777 = vmatmul.mubr.bf16.gmra.mxu0 %v254
    %v1778 = vpop.f32.mrf.mxu0
    %v1779 = vadd.f32 0.0, %v1778
    %v1780 = vpop.f32.mrf.mxu0
    %v1781 = vpop.f32.mrf.mxu0
    %v1782 = vadd.f32 0.0, %v1781
    %v1783 = vpop.f32.mrf.mxu0
    %1784 = vmatprep.mubr.bf16.mxu0 0
    %1785 = vmatmul.mubr.bf16.gmra.mxu0 %v257
    %v1786 = vpop.f32.mrf.mxu0
    %v1787 = vadd.f32 0.0, %v1786
    %v1788 = vpop.f32.mrf.mxu0
    %v1789 = vpop.f32.mrf.mxu0
    %v1790 = vadd.f32 0.0, %v1789
    %v1791 = vpop.f32.mrf.mxu0
    %1792 = vmatprep.mubr.bf16.mxu0 0
    %1793 = vmatmul.mubr.bf16.gmra.mxu0 %v260
    %v1794 = vpop.f32.mrf.mxu0
    %v1795 = vadd.f32 0.0, %v1794
    %v1796 = vpop.f32.mrf.mxu0
    %v1797 = vpop.f32.mrf.mxu0
    %v1798 = vadd.f32 0.0, %v1797
    %v1799 = vpop.f32.mrf.mxu0
    %1800 = vdwg.mxu0
    %v1801 = vadd.f32 %v1595, %v1675
    %v1802 = vadd.f32 %v1596, %v1678
    %v1803 = vadd.f32 %v1597, %v1683
    %v1804 = vadd.f32 %v1598, %v1686
    %v1805 = vadd.f32 %v1599, %v1691
    %v1806 = vadd.f32 %v1600, %v1694
    %v1807 = vadd.f32 %v1601, %v1699
    %v1808 = vadd.f32 %v1602, %v1702
    %v1809 = vadd.f32 %v1603, %v1707
    %v1810 = vadd.f32 %v1604, %v1710
    %v1811 = vadd.f32 %v1605, %v1715
    %v1812 = vadd.f32 %v1606, %v1718
    %v1813 = vadd.f32 %v1607, %v1723
    %v1814 = vadd.f32 %v1608, %v1726
    %v1815 = vadd.f32 %v1609, %v1731
    %v1816 = vadd.f32 %v1610, %v1734
    %v1817 = vadd.f32 %v1611, %v1739
    %v1818 = vadd.f32 %v1612, %v1742
    %v1819 = vadd.f32 %v1613, %v1747
    %v1820 = vadd.f32 %v1614, %v1750
    %v1821 = vadd.f32 %v1615, %v1755
    %v1822 = vadd.f32 %v1616, %v1758
    %v1823 = vadd.f32 %v1617, %v1763
    %v1824 = vadd.f32 %v1618, %v1766
    %v1825 = vadd.f32 %v1619, %v1771
    %v1826 = vadd.f32 %v1620, %v1774
    %v1827 = vadd.f32 %v1621, %v1779
    %v1828 = vadd.f32 %v1622, %v1782
    %v1829 = vadd.f32 %v1623, %v1787
    %v1830 = vadd.f32 %v1624, %v1790
    %v1831 = vadd.f32 %v1625, %v1795
    %v1832 = vadd.f32 %v1626, %v1798
    %v1833 = vpack.c.bf16 %v1802, %v1801
    %v1834 = vpack.c.bf16 %v1804, %v1803
    %v1835 = vpack.c.bf16 %v1806, %v1805
    %v1836 = vpack.c.bf16 %v1808, %v1807
    %v1837 = vpack.c.bf16 %v1810, %v1809
    %v1838 = vpack.c.bf16 %v1812, %v1811
    %v1839 = vpack.c.bf16 %v1814, %v1813
    %v1840 = vpack.c.bf16 %v1816, %v1815
    %v1841 = vpack.c.bf16 %v1818, %v1817
    %v1842 = vpack.c.bf16 %v1820, %v1819
    %v1843 = vpack.c.bf16 %v1822, %v1821
    %v1844 = vpack.c.bf16 %v1824, %v1823
    %v1845 = vpack.c.bf16 %v1826, %v1825
    %v1846 = vpack.c.bf16 %v1828, %v1827
    %v1847 = vpack.c.bf16 %v1830, %v1829
    %v1848 = vpack.c.bf16 %v1832, %v1831
    %v1849 = vmul.f32 %v1801, %v474
    %v1850 = vmul.f32 %v1802, %v479
    %v1851 = vmul.f32 %v1803, %v484
    %v1852 = vmul.f32 %v1804, %v489
    %v1853 = vmul.f32 %v1805, %v494
    %v1854 = vmul.f32 %v1806, %v499
    %v1855 = vmul.f32 %v1807, %v504
    %v1856 = vmul.f32 %v1808, %v509
    %v1857 = vmul.f32 %v1809, %v514
    %v1858 = vmul.f32 %v1810, %v519
    %v1859 = vmul.f32 %v1811, %v524
    %v1860 = vmul.f32 %v1812, %v529
    %v1861 = vmul.f32 %v1813, %v534
    %v1862 = vmul.f32 %v1814, %v539
    %v1863 = vmul.f32 %v1815, %v544
    %v1864 = vmul.f32 %v1816, %v549
    %v1865 = vmul.f32 %v1817, %v554
    %v1866 = vmul.f32 %v1818, %v559
    %v1867 = vmul.f32 %v1819, %v564
    %v1868 = vmul.f32 %v1820, %v569
    %v1869 = vmul.f32 %v1821, %v574
    %v1870 = vmul.f32 %v1822, %v579
    %v1871 = vmul.f32 %v1823, %v584
    %v1872 = vmul.f32 %v1824, %v589
    %v1873 = vmul.f32 %v1825, %v594
    %v1874 = vmul.f32 %v1826, %v599
    %v1875 = vmul.f32 %v1827, %v604
    %v1876 = vmul.f32 %v1828, %v609
    %v1877 = vmul.f32 %v1829, %v614
    %v1878 = vmul.f32 %v1830, %v619
    %v1879 = vmul.f32 %v1831, %v624
    %v1880 = vmul.f32 %v1832, %v629
    %v1881 = vpack.c.bf16 %v1850, %v1849
    %v1882 = vpack.c.bf16 %v1852, %v1851
    %v1883 = vpack.c.bf16 %v1854, %v1853
    %v1884 = vpack.c.bf16 %v1856, %v1855
    %v1885 = vpack.c.bf16 %v1858, %v1857
    %v1886 = vpack.c.bf16 %v1860, %v1859
    %v1887 = vpack.c.bf16 %v1862, %v1861
    %v1888 = vpack.c.bf16 %v1864, %v1863
    %v1889 = vpack.c.bf16 %v1866, %v1865
    %v1890 = vpack.c.bf16 %v1868, %v1867
    %v1891 = vpack.c.bf16 %v1870, %v1869
    %v1892 = vpack.c.bf16 %v1872, %v1871
    %v1893 = vpack.c.bf16 %v1874, %v1873
    %v1894 = vpack.c.bf16 %v1876, %v1875
    %v1895 = vpack.c.bf16 %v1878, %v1877
    %v1896 = vpack.c.bf16 %v1880, %v1879
    %v1897 = vmul.f32 %v1801, %v681
    %v1898 = vmul.f32 %v1802, %v685
    %v1899 = vmul.f32 %v1803, %v689
    %v1900 = vmul.f32 %v1804, %v693
    %v1901 = vmul.f32 %v1805, %v697
    %v1902 = vmul.f32 %v1806, %v701
    %v1903 = vmul.f32 %v1807, %v705
    %v1904 = vmul.f32 %v1808, %v709
    %v1905 = vmul.f32 %v1809, %v713
    %v1906 = vmul.f32 %v1810, %v717
    %v1907 = vmul.f32 %v1811, %v721
    %v1908 = vmul.f32 %v1812, %v725
    %v1909 = vmul.f32 %v1813, %v729
    %v1910 = vmul.f32 %v1814, %v733
    %v1911 = vmul.f32 %v1815, %v737
    %v1912 = vmul.f32 %v1816, %v741
    %v1913 = vmul.f32 %v1817, %v745
    %v1914 = vmul.f32 %v1818, %v749
    %v1915 = vmul.f32 %v1819, %v753
    %v1916 = vmul.f32 %v1820, %v757
    %v1917 = vmul.f32 %v1821, %v761
    %v1918 = vmul.f32 %v1822, %v765
    %v1919 = vmul.f32 %v1823, %v769
    %v1920 = vmul.f32 %v1824, %v773
    %v1921 = vmul.f32 %v1825, %v777
    %v1922 = vmul.f32 %v1826, %v781
    %v1923 = vmul.f32 %v1827, %v785
    %v1924 = vmul.f32 %v1828, %v789
    %v1925 = vmul.f32 %v1829, %v793
    %v1926 = vmul.f32 %v1830, %v797
    %v1927 = vmul.f32 %v1831, %v801
    %v1928 = vmul.f32 %v1832, %v805
    %v1929 = vpack.c.bf16 %v1898, %v1897
    %v1930 = vpack.c.bf16 %v1900, %v1899
    %v1931 = vpack.c.bf16 %v1902, %v1901
    %v1932 = vpack.c.bf16 %v1904, %v1903
    %v1933 = vpack.c.bf16 %v1906, %v1905
    %v1934 = vpack.c.bf16 %v1908, %v1907
    %v1935 = vpack.c.bf16 %v1910, %v1909
    %v1936 = vpack.c.bf16 %v1912, %v1911
    %v1937 = vpack.c.bf16 %v1914, %v1913
    %v1938 = vpack.c.bf16 %v1916, %v1915
    %v1939 = vpack.c.bf16 %v1918, %v1917
    %v1940 = vpack.c.bf16 %v1920, %v1919
    %v1941 = vpack.c.bf16 %v1922, %v1921
    %v1942 = vpack.c.bf16 %v1924, %v1923
    %v1943 = vpack.c.bf16 %v1926, %v1925
    %v1944 = vpack.c.bf16 %v1928, %v1927
    %v1946 = vshrl.u32 %v1881, 16
    %v1948 = vrot.slane %v1946, 7
    %v1949 = vshll.u32 %v1881, 16
    %v1951 = vor.u32 %v1948, %v1949
    %v1953 = vshrl.u32 %v1882, 16
    %v1955 = vrot.slane %v1953, 7
    %v1956 = vshll.u32 %v1882, 16
    %v1958 = vor.u32 %v1955, %v1956
    %v1959 = vsel %vm855, %v1948, %v1958
    %v1961 = vshrl.u32 %v1883, 16
    %v1963 = vrot.slane %v1961, 7
    %v1964 = vshll.u32 %v1883, 16
    %v1966 = vor.u32 %v1963, %v1964
    %v1967 = vsel %vm855, %v1955, %v1966
    %v1969 = vshrl.u32 %v1884, 16
    %v1971 = vrot.slane %v1969, 7
    %v1972 = vshll.u32 %v1884, 16
    %v1974 = vor.u32 %v1971, %v1972
    %v1975 = vsel %vm855, %v1963, %v1974
    %v1977 = vshrl.u32 %v1885, 16
    %v1979 = vrot.slane %v1977, 7
    %v1980 = vshll.u32 %v1885, 16
    %v1982 = vor.u32 %v1979, %v1980
    %v1983 = vsel %vm855, %v1971, %v1982
    %v1985 = vshrl.u32 %v1886, 16
    %v1987 = vrot.slane %v1985, 7
    %v1988 = vshll.u32 %v1886, 16
    %v1990 = vor.u32 %v1987, %v1988
    %v1991 = vsel %vm855, %v1979, %v1990
    %v1993 = vshrl.u32 %v1887, 16
    %v1995 = vrot.slane %v1993, 7
    %v1996 = vshll.u32 %v1887, 16
    %v1998 = vor.u32 %v1995, %v1996
    %v1999 = vsel %vm855, %v1987, %v1998
    %v2001 = vshrl.u32 %v1888, 16
    %v2003 = vrot.slane %v2001, 7
    %v2004 = vshll.u32 %v1888, 16
    %v2006 = vor.u32 %v2003, %v2004
    %v2007 = vsel %vm855, %v1995, %v2006
    %v2009 = vshrl.u32 %v1889, 16
    %v2011 = vrot.slane %v2009, 7
    %v2012 = vshll.u32 %v1889, 16
    %v2014 = vor.u32 %v2011, %v2012
    %v2015 = vsel %vm855, %v2003, %v2014
    %v2017 = vshrl.u32 %v1890, 16
    %v2019 = vrot.slane %v2017, 7
    %v2020 = vshll.u32 %v1890, 16
    %v2022 = vor.u32 %v2019, %v2020
    %v2023 = vsel %vm855, %v2011, %v2022
    %v2025 = vshrl.u32 %v1891, 16
    %v2027 = vrot.slane %v2025, 7
    %v2028 = vshll.u32 %v1891, 16
    %v2030 = vor.u32 %v2027, %v2028
    %v2031 = vsel %vm855, %v2019, %v2030
    %v2033 = vshrl.u32 %v1892, 16
    %v2035 = vrot.slane %v2033, 7
    %v2036 = vshll.u32 %v1892, 16
    %v2038 = vor.u32 %v2035, %v2036
    %v2039 = vsel %vm855, %v2027, %v2038
    %v2041 = vshrl.u32 %v1893, 16
    %v2043 = vrot.slane %v2041, 7
    %v2044 = vshll.u32 %v1893, 16
    %v2046 = vor.u32 %v2043, %v2044
    %v2047 = vsel %vm855, %v2035, %v2046
    %v2049 = vshrl.u32 %v1894, 16
    %v2051 = vrot.slane %v2049, 7
    %v2052 = vshll.u32 %v1894, 16
    %v2054 = vor.u32 %v2051, %v2052
    %v2055 = vsel %vm855, %v2043, %v2054
    %v2057 = vshrl.u32 %v1895, 16
    %v2059 = vrot.slane %v2057, 7
    %v2060 = vshll.u32 %v1895, 16
    %v2062 = vor.u32 %v2059, %v2060
    %v2063 = vsel %vm855, %v2051, %v2062
    %v2065 = vsel %vm977, 0, %v1951
    %v2067 = vshll.u32 %v1929, 16
    %v2069 = vrot.slane %v2067, 1
    %v2070 = vshrl.u32 %v1929, 16
    %v2072 = vor.u32 %v2070, %v2069
    %v2074 = vshll.u32 %v1930, 16
    %v2076 = vrot.slane %v2074, 1
    %v2077 = vsel %vm979, %v2072, %v2076
    %v2078 = vshrl.u32 %v1930, 16
    %v2080 = vor.u32 %v2078, %v2076
    %v2082 = vshll.u32 %v1931, 16
    %v2084 = vrot.slane %v2082, 1
    %v2085 = vsel %vm979, %v2080, %v2084
    %v2086 = vshrl.u32 %v1931, 16
    %v2088 = vor.u32 %v2086, %v2084
    %v2090 = vshll.u32 %v1932, 16
    %v2092 = vrot.slane %v2090, 1
    %v2093 = vsel %vm979, %v2088, %v2092
    %v2094 = vshrl.u32 %v1932, 16
    %v2096 = vor.u32 %v2094, %v2092
    %v2098 = vshll.u32 %v1933, 16
    %v2100 = vrot.slane %v2098, 1
    %v2101 = vsel %vm979, %v2096, %v2100
    %v2102 = vshrl.u32 %v1933, 16
    %v2104 = vor.u32 %v2102, %v2100
    %v2106 = vshll.u32 %v1934, 16
    %v2108 = vrot.slane %v2106, 1
    %v2109 = vsel %vm979, %v2104, %v2108
    %v2110 = vshrl.u32 %v1934, 16
    %v2112 = vor.u32 %v2110, %v2108
    %v2114 = vshll.u32 %v1935, 16
    %v2116 = vrot.slane %v2114, 1
    %v2117 = vsel %vm979, %v2112, %v2116
    %v2118 = vshrl.u32 %v1935, 16
    %v2120 = vor.u32 %v2118, %v2116
    %v2122 = vshll.u32 %v1936, 16
    %v2124 = vrot.slane %v2122, 1
    %v2125 = vsel %vm979, %v2120, %v2124
    %v2126 = vshrl.u32 %v1936, 16
    %v2128 = vor.u32 %v2126, %v2124
    %v2130 = vshll.u32 %v1937, 16
    %v2132 = vrot.slane %v2130, 1
    %v2133 = vsel %vm979, %v2128, %v2132
    %v2134 = vshrl.u32 %v1937, 16
    %v2136 = vor.u32 %v2134, %v2132
    %v2138 = vshll.u32 %v1938, 16
    %v2140 = vrot.slane %v2138, 1
    %v2141 = vsel %vm979, %v2136, %v2140
    %v2142 = vshrl.u32 %v1938, 16
    %v2144 = vor.u32 %v2142, %v2140
    %v2146 = vshll.u32 %v1939, 16
    %v2148 = vrot.slane %v2146, 1
    %v2149 = vsel %vm979, %v2144, %v2148
    %v2150 = vshrl.u32 %v1939, 16
    %v2152 = vor.u32 %v2150, %v2148
    %v2154 = vshll.u32 %v1940, 16
    %v2156 = vrot.slane %v2154, 1
    %v2157 = vsel %vm979, %v2152, %v2156
    %v2158 = vshrl.u32 %v1940, 16
    %v2160 = vor.u32 %v2158, %v2156
    %v2162 = vshll.u32 %v1941, 16
    %v2164 = vrot.slane %v2162, 1
    %v2165 = vsel %vm979, %v2160, %v2164
    %v2166 = vshrl.u32 %v1941, 16
    %v2168 = vor.u32 %v2166, %v2164
    %v2170 = vshll.u32 %v1942, 16
    %v2172 = vrot.slane %v2170, 1
    %v2173 = vsel %vm979, %v2168, %v2172
    %v2174 = vshrl.u32 %v1942, 16
    %v2176 = vor.u32 %v2174, %v2172
    %v2178 = vshll.u32 %v1943, 16
    %v2180 = vrot.slane %v2178, 1
    %v2181 = vsel %vm979, %v2176, %v2180
    %v2182 = vshrl.u32 %v1943, 16
    %v2184 = vor.u32 %v2182, %v2180
    %v2186 = vshll.u32 %v1944, 16
    %v2188 = vrot.slane %v2186, 1
    %v2189 = vsel %vm979, %v2184, %v2188
    %v2191 = vsel %vm1106, 0, %v2069
    %v2193 = vshrl.u32 %v1896, 16
    %v2195 = vrot.slane %v2193, 7
    %v2196 = vshll.u32 %v1896, 16
    %v2198 = vor.u32 %v2195, %v2196
    %v2199 = vsel %vm855, %v2059, %v2198
    %v2200 = vshrl.u32 %v1944, 16
    %v2202 = vor.u32 %v2200, %v2188
    %v2204 = vsel %vm1106, %v2202, 0
    %v2206 = vsel %vm977, %v2195, 0
    %2222 = vrot.lane.b32.xlu0 %v1833, 32
    %v2223 = vpop.permute.xlu0 %2222
    %2224 = vrot.lane.b32.xlu0 %v1834, 32
    %v2225 = vpop.permute.xlu0 %2224
    %2226 = vrot.lane.b32.xlu0 %v1835, 32
    %v2227 = vpop.permute.xlu0 %2226
    %2228 = vrot.lane.b32.xlu0 %v1836, 32
    %v2229 = vpop.permute.xlu0 %2228
    %2230 = vrot.lane.b32.xlu0 %v1837, 32
    %v2231 = vpop.permute.xlu0 %2230
    %2232 = vrot.lane.b32.xlu0 %v1838, 32
    %v2233 = vpop.permute.xlu0 %2232
    %2234 = vrot.lane.b32.xlu0 %v1839, 32
    %v2235 = vpop.permute.xlu0 %2234
    %2236 = vrot.lane.b32.xlu0 %v1840, 32
    %v2237 = vpop.permute.xlu0 %2236
    %2238 = vrot.lane.b32.xlu0 %v1841, 32
    %v2239 = vpop.permute.xlu0 %2238
    %2240 = vrot.lane.b32.xlu0 %v1842, 32
    %v2241 = vpop.permute.xlu0 %2240
    %2242 = vrot.lane.b32.xlu0 %v1843, 32
    %v2243 = vpop.permute.xlu0 %2242
    %2244 = vrot.lane.b32.xlu0 %v1844, 32
    %v2245 = vpop.permute.xlu0 %2244
    %2246 = vrot.lane.b32.xlu0 %v1845, 32
    %v2247 = vpop.permute.xlu0 %2246
    %2248 = vrot.lane.b32.xlu0 %v1846, 32
    %v2249 = vpop.permute.xlu0 %2248
    %2250 = vrot.lane.b32.xlu0 %v1847, 32
    %v2251 = vpop.permute.xlu0 %2250
    %2253 = vrot.lane.b32.xlu0 %v2191, 64
    %v2254 = vpop.permute.xlu0 %2253
    %2255 = vrot.lane.b32.xlu0 %v2077, 64
    %v2256 = vpop.permute.xlu0 %2255
    %2257 = vrot.lane.b32.xlu0 %v2085, 64
    %v2258 = vpop.permute.xlu0 %2257
    %2259 = vrot.lane.b32.xlu0 %v2093, 64
    %v2260 = vpop.permute.xlu0 %2259
    %2261 = vrot.lane.b32.xlu0 %v2101, 64
    %v2262 = vpop.permute.xlu0 %2261
    %2263 = vrot.lane.b32.xlu0 %v2109, 64
    %v2264 = vpop.permute.xlu0 %2263
    %2265 = vrot.lane.b32.xlu0 %v2117, 64
    %v2266 = vpop.permute.xlu0 %2265
    %2267 = vrot.lane.b32.xlu0 %v2125, 64
    %v2268 = vpop.permute.xlu0 %2267
    %2269 = vrot.lane.b32.xlu0 %v2133, 64
    %v2270 = vpop.permute.xlu0 %2269
    %2271 = vrot.lane.b32.xlu0 %v2141, 64
    %v2272 = vpop.permute.xlu0 %2271
    %2273 = vrot.lane.b32.xlu0 %v2149, 64
    %v2274 = vpop.permute.xlu0 %2273
    %2275 = vrot.lane.b32.xlu0 %v2157, 64
    %v2276 = vpop.permute.xlu0 %2275
    %2277 = vrot.lane.b32.xlu0 %v2165, 64
    %v2278 = vpop.permute.xlu0 %2277
    %2279 = vrot.lane.b32.xlu0 %v2173, 64
    %v2280 = vpop.permute.xlu0 %2279
    %2281 = vrot.lane.b32.xlu0 %v2181, 64
    %v2282 = vpop.permute.xlu0 %2281
    %2283 = vrot.lane.b32.xlu0 %v2189, 64
    %v2284 = vpop.permute.xlu0 %2283
    %2286 = vrot.lane.b32.xlu0 %v2065, 96
    %v2287 = vpop.permute.xlu0 %2286
    %2288 = vrot.lane.b32.xlu0 %v1959, 96
    %v2289 = vpop.permute.xlu0 %2288
    %2290 = vrot.lane.b32.xlu0 %v1967, 96
    %v2291 = vpop.permute.xlu0 %2290
    %2292 = vrot.lane.b32.xlu0 %v1975, 96
    %v2293 = vpop.permute.xlu0 %2292
    %2294 = vrot.lane.b32.xlu0 %v1983, 96
    %v2295 = vpop.permute.xlu0 %2294
    %2296 = vrot.lane.b32.xlu0 %v1991, 96
    %v2297 = vpop.permute.xlu0 %2296
    %2298 = vrot.lane.b32.xlu0 %v1999, 96
    %v2299 = vpop.permute.xlu0 %2298
    %2300 = vrot.lane.b32.xlu0 %v2007, 96
    %v2301 = vpop.permute.xlu0 %2300
    %2302 = vrot.lane.b32.xlu0 %v2015, 96
    %v2303 = vpop.permute.xlu0 %2302
    %2304 = vrot.lane.b32.xlu0 %v2023, 96
    %v2305 = vpop.permute.xlu0 %2304
    %2306 = vrot.lane.b32.xlu0 %v2031, 96
    %v2307 = vpop.permute.xlu0 %2306
    %2308 = vrot.lane.b32.xlu0 %v2039, 96
    %v2309 = vpop.permute.xlu0 %2308
    %2310 = vrot.lane.b32.xlu0 %v2047, 96
    %v2311 = vpop.permute.xlu0 %2310
    %2312 = vrot.lane.b32.xlu0 %v2055, 96
    %v2313 = vpop.permute.xlu0 %2312
    %2314 = vrot.lane.b32.xlu0 %v2063, 96
    %v2315 = vpop.permute.xlu0 %2314
    %2316 = vrot.lane.b32.xlu0 %v2199, 96
    %v2317 = vpop.permute.xlu0 %2316
    %2319 = vrot.lane.b32.xlu0 %v2077, 32
    %v2320 = vpop.permute.xlu0 %2319
    %2321 = vrot.lane.b32.xlu0 %v2085, 32
    %v2322 = vpop.permute.xlu0 %2321
    %2323 = vrot.lane.b32.xlu0 %v2093, 32
    %v2324 = vpop.permute.xlu0 %2323
    %2325 = vrot.lane.b32.xlu0 %v2101, 32
    %v2326 = vpop.permute.xlu0 %2325
    %2327 = vrot.lane.b32.xlu0 %v2109, 32
    %v2328 = vpop.permute.xlu0 %2327
    %2329 = vrot.lane.b32.xlu0 %v2117, 32
    %v2330 = vpop.permute.xlu0 %2329
    %2331 = vrot.lane.b32.xlu0 %v2125, 32
    %v2332 = vpop.permute.xlu0 %2331
    %2333 = vrot.lane.b32.xlu0 %v2133, 32
    %v2334 = vpop.permute.xlu0 %2333
    %2335 = vrot.lane.b32.xlu0 %v2141, 32
    %v2336 = vpop.permute.xlu0 %2335
    %2337 = vrot.lane.b32.xlu0 %v2149, 32
    %v2338 = vpop.permute.xlu0 %2337
    %2339 = vrot.lane.b32.xlu0 %v2157, 32
    %v2340 = vpop.permute.xlu0 %2339
    %2341 = vrot.lane.b32.xlu0 %v2165, 32
    %v2342 = vpop.permute.xlu0 %2341
    %2343 = vrot.lane.b32.xlu0 %v2173, 32
    %v2344 = vpop.permute.xlu0 %2343
    %2345 = vrot.lane.b32.xlu0 %v2181, 32
    %v2346 = vpop.permute.xlu0 %2345
    %2347 = vrot.lane.b32.xlu0 %v2189, 32
    %v2348 = vpop.permute.xlu0 %2347
    %2349 = vrot.lane.b32.xlu0 %v2204, 32
    %v2350 = vpop.permute.xlu0 %2349
    %2352 = vrot.lane.b32.xlu0 %v1959, 64
    %v2353 = vpop.permute.xlu0 %2352
    %2354 = vrot.lane.b32.xlu0 %v1967, 64
    %v2355 = vpop.permute.xlu0 %2354
    %2356 = vrot.lane.b32.xlu0 %v1975, 64
    %v2357 = vpop.permute.xlu0 %2356
    %2358 = vrot.lane.b32.xlu0 %v1983, 64
    %v2359 = vpop.permute.xlu0 %2358
    %2360 = vrot.lane.b32.xlu0 %v1991, 64
    %v2361 = vpop.permute.xlu0 %2360
    %2362 = vrot.lane.b32.xlu0 %v1999, 64
    %v2363 = vpop.permute.xlu0 %2362
    %2364 = vrot.lane.b32.xlu0 %v2007, 64
    %v2365 = vpop.permute.xlu0 %2364
    %2366 = vrot.lane.b32.xlu0 %v2015, 64
    %v2367 = vpop.permute.xlu0 %2366
    %2368 = vrot.lane.b32.xlu0 %v2023, 64
    %v2369 = vpop.permute.xlu0 %2368
    %2370 = vrot.lane.b32.xlu0 %v2031, 64
    %v2371 = vpop.permute.xlu0 %2370
    %2372 = vrot.lane.b32.xlu0 %v2039, 64
    %v2373 = vpop.permute.xlu0 %2372
    %2374 = vrot.lane.b32.xlu0 %v2047, 64
    %v2375 = vpop.permute.xlu0 %2374
    %2376 = vrot.lane.b32.xlu0 %v2055, 64
    %v2377 = vpop.permute.xlu0 %2376
    %2378 = vrot.lane.b32.xlu0 %v2063, 64
    %v2379 = vpop.permute.xlu0 %2378
    %2380 = vrot.lane.b32.xlu0 %v2199, 64
    %v2381 = vpop.permute.xlu0 %2380
    %2382 = vrot.lane.b32.xlu0 %v2206, 64
    %v2383 = vpop.permute.xlu0 %2382
    %2385 = vrot.lane.b32.xlu0 %v1834, 96
    %v2386 = vpop.permute.xlu0 %2385
    %2387 = vrot.lane.b32.xlu0 %v1835, 96
    %v2388 = vpop.permute.xlu0 %2387
    %2389 = vrot.lane.b32.xlu0 %v1836, 96
    %v2390 = vpop.permute.xlu0 %2389
    %2391 = vrot.lane.b32.xlu0 %v1837, 96
    %v2392 = vpop.permute.xlu0 %2391
    %2393 = vrot.lane.b32.xlu0 %v1838, 96
    %v2394 = vpop.permute.xlu0 %2393
    %2395 = vrot.lane.b32.xlu0 %v1839, 96
    %v2396 = vpop.permute.xlu0 %2395
    %2397 = vrot.lane.b32.xlu0 %v1840, 96
    %v2398 = vpop.permute.xlu0 %2397
    %2399 = vrot.lane.b32.xlu0 %v1841, 96
    %v2400 = vpop.permute.xlu0 %2399
    %2401 = vrot.lane.b32.xlu0 %v1842, 96
    %v2402 = vpop.permute.xlu0 %2401
    %2403 = vrot.lane.b32.xlu0 %v1843, 96
    %v2404 = vpop.permute.xlu0 %2403
    %2405 = vrot.lane.b32.xlu0 %v1844, 96
    %v2406 = vpop.permute.xlu0 %2405
    %2407 = vrot.lane.b32.xlu0 %v1845, 96
    %v2408 = vpop.permute.xlu0 %2407
    %2409 = vrot.lane.b32.xlu0 %v1846, 96
    %v2410 = vpop.permute.xlu0 %2409
    %2411 = vrot.lane.b32.xlu0 %v1847, 96
    %v2412 = vpop.permute.xlu0 %2411
    %2413 = vrot.lane.b32.xlu0 %v1848, 96
    %v2414 = vpop.permute.xlu0 %2413
    %v2417 = vsel %vm1336, %v2065, %v2223
    %v2420 = vsel %vm1336, %v1959, %v2225
    %v2423 = vsel %vm1336, %v1967, %v2227
    %v2426 = vsel %vm1336, %v1975, %v2229
    %v2429 = vsel %vm1336, %v1983, %v2231
    %v2432 = vsel %vm1336, %v1991, %v2233
    %v2435 = vsel %vm1336, %v1999, %v2235
    %v2438 = vsel %vm1336, %v2007, %v2237
    %v2441 = vsel %vm1336, %v2015, %v2239
    %v2444 = vsel %vm1336, %v2023, %v2241
    %v2447 = vsel %vm1336, %v2031, %v2243
    %v2450 = vsel %vm1336, %v2039, %v2245
    %v2453 = vsel %vm1336, %v2047, %v2247
    %v2456 = vsel %vm1336, %v2055, %v2249
    %v2459 = vsel %vm1336, %v2063, %v2251
    %v2461 = vsel %vm213, %v1339, %v2254
    %v2463 = vsel %vm213, %v2417, %v2256
    %v2465 = vsel %vm213, %v2420, %v2258
    %v2467 = vsel %vm213, %v2423, %v2260
    %v2469 = vsel %vm213, %v2426, %v2262
    %v2471 = vsel %vm213, %v2429, %v2264
    %v2473 = vsel %vm213, %v2432, %v2266
    %v2475 = vsel %vm213, %v2435, %v2268
    %v2477 = vsel %vm213, %v2438, %v2270
    %v2479 = vsel %vm213, %v2441, %v2272
    %v2481 = vsel %vm213, %v2444, %v2274
    %v2483 = vsel %vm213, %v2447, %v2276
    %v2485 = vsel %vm213, %v2450, %v2278
    %v2487 = vsel %vm213, %v2453, %v2280
    %v2489 = vsel %vm213, %v2456, %v2282
    %v2491 = vsel %vm213, %v2459, %v2284
    %v2493 = vsel %vm1417, %v2461, %v2287
    %v2496 = vsel %vm1417, %v2463, %v2289
    %v2499 = vsel %vm1417, %v2465, %v2291
    %v2502 = vsel %vm1417, %v2467, %v2293
    %v2505 = vsel %vm1417, %v2469, %v2295
    %v2508 = vsel %vm1417, %v2471, %v2297
    %v2511 = vsel %vm1417, %v2473, %v2299
    %v2514 = vsel %vm1417, %v2475, %v2301
    %v2517 = vsel %vm1417, %v2477, %v2303
    %v2520 = vsel %vm1417, %v2479, %v2305
    %v2523 = vsel %vm1417, %v2481, %v2307
    %v2526 = vsel %vm1417, %v2483, %v2309
    %v2529 = vsel %vm1417, %v2485, %v2311
    %v2532 = vsel %vm1417, %v2487, %v2313
    %v2535 = vsel %vm1417, %v2489, %v2315
    %v2538 = vsel %vm1417, %v2491, %v2317
    %v2542 = vsel %vm1336, %v1833, %v2320
    %v2545 = vsel %vm1336, %v1834, %v2322
    %v2548 = vsel %vm1336, %v1835, %v2324
    %v2551 = vsel %vm1336, %v1836, %v2326
    %v2554 = vsel %vm1336, %v1837, %v2328
    %v2557 = vsel %vm1336, %v1838, %v2330
    %v2560 = vsel %vm1336, %v1839, %v2332
    %v2563 = vsel %vm1336, %v1840, %v2334
    %v2566 = vsel %vm1336, %v1841, %v2336
    %v2569 = vsel %vm1336, %v1842, %v2338
    %v2572 = vsel %vm1336, %v1843, %v2340
    %v2575 = vsel %vm1336, %v1844, %v2342
    %v2578 = vsel %vm1336, %v1845, %v2344
    %v2581 = vsel %vm1336, %v1846, %v2346
    %v2584 = vsel %vm1336, %v1847, %v2348
    %v2587 = vsel %vm1336, %v1848, %v2350
    %v2589 = vsel %vm213, %v2542, %v2353
    %v2591 = vsel %vm213, %v2545, %v2355
    %v2593 = vsel %vm213, %v2548, %v2357
    %v2595 = vsel %vm213, %v2551, %v2359
    %v2597 = vsel %vm213, %v2554, %v2361
    %v2599 = vsel %vm213, %v2557, %v2363
    %v2601 = vsel %vm213, %v2560, %v2365
    %v2603 = vsel %vm213, %v2563, %v2367
    %v2605 = vsel %vm213, %v2566, %v2369
    %v2607 = vsel %vm213, %v2569, %v2371
    %v2609 = vsel %vm213, %v2572, %v2373
    %v2611 = vsel %vm213, %v2575, %v2375
    %v2613 = vsel %vm213, %v2578, %v2377
    %v2615 = vsel %vm213, %v2581, %v2379
    %v2617 = vsel %vm213, %v2584, %v2381
    %v2619 = vsel %vm213, %v2587, %v2383
    %v2621 = vsel %vm1417, %v2589, %v2386
    %v2624 = vsel %vm1417, %v2591, %v2388
    %v2627 = vsel %vm1417, %v2593, %v2390
    %v2630 = vsel %vm1417, %v2595, %v2392
    %v2633 = vsel %vm1417, %v2597, %v2394
    %v2636 = vsel %vm1417, %v2599, %v2396
    %v2639 = vsel %vm1417, %v2601, %v2398
    %v2642 = vsel %vm1417, %v2603, %v2400
    %v2645 = vsel %vm1417, %v2605, %v2402
    %v2648 = vsel %vm1417, %v2607, %v2404
    %v2651 = vsel %vm1417, %v2609, %v2406
    %v2654 = vsel %vm1417, %v2611, %v2408
    %v2657 = vsel %vm1417, %v2613, %v2410
    %v2660 = vsel %vm1417, %v2615, %v2412
    %v2663 = vsel %vm1417, %v2617, %v2414
    %v2665 = vsel %vm1417, %v2619, %v1335
    %v2667 = vld [vmem:[%s3] sm:$0xf]
    %v2668 = vld [vmem:[%s3 + $0x4] sm:$0xf]
    %v2669 = vld [vmem:[%s3 + $0x8] sm:$0xf]
    %v2670 = vld [vmem:[%s3 + $0xc] sm:$0xf]
    %v2671 = vld [vmem:[%s3 + $0x10] sm:$0xf]
    %v2672 = vld [vmem:[%s3 + $0x14] sm:$0xf]
    %v2673 = vld [vmem:[%s3 + $0x18] sm:$0xf]
    %v2674 = vld [vmem:[%s3 + $0x1c] sm:$0xf]
    %v2675 = vld [vmem:[%s3 + $0x20] sm:$0xf]
    %v2676 = vld [vmem:[%s3 + $0x24] sm:$0xf]
    %v2677 = vld [vmem:[%s3 + $0x28] sm:$0xf]
    %v2678 = vld [vmem:[%s3 + $0x2c] sm:$0xf]
    %v2679 = vld [vmem:[%s3 + $0x30] sm:$0xf]
    %v2680 = vld [vmem:[%s3 + $0x34] sm:$0xf]
    %v2681 = vld [vmem:[%s3 + $0x38] sm:$0xf]
    %v2682 = vld [vmem:[%s3 + $0x3c] sm:$0xf]
    %v2683 = vld [vmem:[%s3 + $0x40] sm:$0xf]
    %v2684 = vld [vmem:[%s3 + $0x44] sm:$0xf]
    %v2685 = vld [vmem:[%s3 + $0x48] sm:$0xf]
    %v2686 = vld [vmem:[%s3 + $0x4c] sm:$0xf]
    %v2687 = vld [vmem:[%s3 + $0x50] sm:$0xf]
    %v2688 = vld [vmem:[%s3 + $0x54] sm:$0xf]
    %v2689 = vld [vmem:[%s3 + $0x58] sm:$0xf]
    %v2690 = vld [vmem:[%s3 + $0x5c] sm:$0xf]
    %v2691 = vld [vmem:[%s3 + $0x60] sm:$0xf]
    %v2692 = vld [vmem:[%s3 + $0x64] sm:$0xf]
    %v2693 = vld [vmem:[%s3 + $0x68] sm:$0xf]
    %v2694 = vld [vmem:[%s3 + $0x6c] sm:$0xf]
    %v2695 = vld [vmem:[%s3 + $0x70] sm:$0xf]
    %v2696 = vld [vmem:[%s3 + $0x74] sm:$0xf]
    %v2697 = vld [vmem:[%s3 + $0x78] sm:$0xf]
    %v2698 = vld [vmem:[%s3 + $0x7c] sm:$0xf]
    %v2699 = vld [vmem:[%s3 + $0x80] sm:$0xf]
    %v2700 = vld [vmem:[%s3 + $0x84] sm:$0xf]
    %v2701 = vld [vmem:[%s3 + $0x88] sm:$0xf]
    %v2702 = vld [vmem:[%s3 + $0x8c] sm:$0xf]
    %v2703 = vld [vmem:[%s5] sm:$0x1]
    %v2705 = vlaneseq
    %v2706 = vshrl.u32 %v2705, 7
    %v2707 = vsub.s32 0, %v2706
    %v2708 = vrot.slane %v2703, %v2707
    %v2746 = vunpack.c.l.b16 %v2667
    %v2747 = vunpack.c.l.b16 %v2668
    %v2748 = vunpack.c.l.b16 %v2669
    %v2749 = vunpack.c.l.b16 %v2670
    %v2750 = vunpack.c.l.b16 %v2671
    %v2751 = vunpack.c.l.b16 %v2672
    %v2752 = vunpack.c.l.b16 %v2673
    %v2753 = vunpack.c.l.b16 %v2674
    %v2754 = vunpack.c.l.b16 %v2675
    %v2755 = vunpack.c.l.b16 %v2676
    %v2756 = vunpack.c.l.b16 %v2677
    %v2757 = vunpack.c.l.b16 %v2678
    %v2758 = vunpack.c.l.b16 %v2679
    %v2759 = vunpack.c.l.b16 %v2680
    %v2760 = vunpack.c.l.b16 %v2681
    %v2761 = vunpack.c.l.b16 %v2682
    %v2762 = vunpack.c.l.b16 %v2683
    %v2763 = vunpack.c.l.b16 %v2684
    %v2764 = vunpack.c.l.b16 %v2685
    %v2765 = vunpack.c.l.b16 %v2686
    %v2766 = vunpack.c.l.b16 %v2687
    %v2767 = vunpack.c.l.b16 %v2688
    %v2768 = vunpack.c.l.b16 %v2689
    %v2769 = vunpack.c.l.b16 %v2690
    %v2770 = vunpack.c.l.b16 %v2691
    %v2771 = vunpack.c.l.b16 %v2692
    %v2772 = vunpack.c.l.b16 %v2693
    %v2773 = vunpack.c.l.b16 %v2694
    %v2774 = vunpack.c.l.b16 %v2695
    %v2775 = vunpack.c.l.b16 %v2696
    %v2776 = vunpack.c.l.b16 %v2697
    %v2777 = vunpack.c.l.b16 %v2698
    %v2778 = vunpack.c.l.b16 %v2699
    %v2779 = vunpack.c.l.b16 %v2700
    %v2780 = vunpack.c.l.b16 %v2701
    %v2781 = vunpack.c.l.b16 %v2702
    %v2782 = vpack.c.b16 %v2747, %v2746
    %v2783 = vpack.c.b16 %v2749, %v2748
    %v2784 = vpack.c.b16 %v2751, %v2750
    %v2785 = vpack.c.b16 %v2753, %v2752
    %v2786 = vpack.c.b16 %v2755, %v2754
    %v2787 = vpack.c.b16 %v2757, %v2756
    %v2788 = vpack.c.b16 %v2759, %v2758
    %v2789 = vpack.c.b16 %v2761, %v2760
    %v2790 = vpack.c.b16 %v2763, %v2762
    %v2791 = vpack.c.b16 %v2765, %v2764
    %v2792 = vpack.c.b16 %v2767, %v2766
    %v2793 = vpack.c.b16 %v2769, %v2768
    %v2794 = vpack.c.b16 %v2771, %v2770
    %v2795 = vpack.c.b16 %v2773, %v2772
    %v2796 = vpack.c.b16 %v2775, %v2774
    %v2797 = vpack.c.b16 %v2777, %v2776
    %v2798 = vpack.c.b16 %v2779, %v2778
    %v2799 = vpack.c.b16 %v2781, %v2780
    %v2819 = vsel %vm1336, %v999, 0
    %v2822 = vsel %vm1336, %v1007, 0
    %v2825 = vsel %vm1336, %v1015, 0
    %v2828 = vsel %vm1336, %v1023, 0
    %v2831 = vsel %vm1336, %v1031, 0
    %v2834 = vsel %vm1336, %v1039, 0
    %v2837 = vsel %vm1336, %v1047, 0
    %v2840 = vsel %vm1336, %v1055, 0
    %v2843 = vsel %vm1336, %v1063, 0
    %v2846 = vsel %vm1336, %v1071, 0
    %v2849 = vsel %vm1336, %v1079, 0
    %v2852 = vsel %vm1336, %v1087, 0
    %v2855 = vsel %vm1336, %v1095, 0
    %v2858 = vsel %vm1336, %v1103, 0
    %v2861 = vsel %vm1336, %v1120, 0
    %v2863 = vsel %vm1336, 0, 0
    %v2866 = vsel %vm1336, %v2085, 0
    %v2869 = vsel %vm1336, %v2093, 0
    %v2872 = vsel %vm1336, %v2101, 0
    %v2875 = vsel %vm1336, %v2109, 0
    %v2878 = vsel %vm1336, %v2117, 0
    %v2881 = vsel %vm1336, %v2125, 0
    %v2884 = vsel %vm1336, %v2133, 0
    %v2887 = vsel %vm1336, %v2141, 0
    %v2890 = vsel %vm1336, %v2149, 0
    %v2893 = vsel %vm1336, %v2157, 0
    %v2896 = vsel %vm1336, %v2165, 0
    %v2899 = vsel %vm1336, %v2173, 0
    %v2902 = vsel %vm1336, %v2181, 0
    %v2905 = vsel %vm1336, %v2189, 0
    %v2908 = vsel %vm1336, %v2204, 0
    %2910 = vmatprep.subr.bf16.mxu0 0
    %2911 = vmatpush1.bf16.msra.mxu0 %v2789
    %2912 = vmatprep.subr.bf16.mxu0 0
    %2913 = vmatpush1.bf16.msra.mxu0 %v2788
    %2914 = vmatprep.subr.bf16.mxu0 0
    %2915 = vmatpush1.bf16.msra.mxu0 %v2787
    %2916 = vmatprep.subr.bf16.mxu0 0
    %2917 = vmatpush1.bf16.msra.mxu0 %v2786
    %2918 = vmatprep.subr.bf16.mxu0 0
    %2919 = vmatpush1.bf16.msra.mxu0 %v2785
    %2920 = vmatprep.subr.bf16.mxu0 0
    %2921 = vmatpush1.bf16.msra.mxu0 %v2784
    %2922 = vmatprep.subr.bf16.mxu0 0
    %2923 = vmatpush1.bf16.msra.mxu0 %v2783
    %2924 = vmatprep.subr.bf16.mxu0 0
    %2925 = vmatpush1.bf16.msra.mxu0 %v2782
    %2926 = vmatprep.subr.bf16.mxu0 0
    %2927 = vmatpush2.bf16.msra.mxu0 %v2797
    %2928 = vmatprep.subr.bf16.mxu0 0
    %2929 = vmatpush2.bf16.msra.mxu0 %v2796
    %2930 = vmatprep.subr.bf16.mxu0 0
    %2931 = vmatpush2.bf16.msra.mxu0 %v2795
    %2932 = vmatprep.subr.bf16.mxu0 0
    %2933 = vmatpush2.bf16.msra.mxu0 %v2794
    %2934 = vmatprep.subr.bf16.mxu0 0
    %2935 = vmatpush2.bf16.msra.mxu0 %v2793
    %2936 = vmatprep.subr.bf16.mxu0 0
    %2937 = vmatpush2.bf16.msra.mxu0 %v2792
    %2938 = vmatprep.subr.bf16.mxu0 0
    %2939 = vmatpush2.bf16.msra.mxu0 %v2791
    %2940 = vmatprep.subr.bf16.mxu0 0
    %2941 = vmatpush2.bf16.msra.mxu0 %v2790
    %2942 = vmatprep.mubr.bf16.mxu0 %v1547
    %2943 = vmatmul.mubr.bf16.gmra.mxu0 %v1419
    %v2944 = vpop.f32.mrf.mxu0
    %v2945 = vadd.f32 %v2708, %v2944
    %v2946 = vpop.f32.mrf.mxu0
    %v2947 = vpop.f32.mrf.mxu0
    %v2948 = vadd.f32 %v2708, %v2947
    %v2949 = vpop.f32.mrf.mxu0
    %2950 = vmatprep.mubr.bf16.mxu0 %v1550
    %2951 = vmatmul.mubr.bf16.gmra.mxu0 %v1422
    %v2952 = vpop.f32.mrf.mxu0
    %v2953 = vadd.f32 %v2708, %v2952
    %v2954 = vpop.f32.mrf.mxu0
    %v2955 = vpop.f32.mrf.mxu0
    %v2956 = vadd.f32 %v2708, %v2955
    %v2957 = vpop.f32.mrf.mxu0
    %2958 = vmatprep.mubr.bf16.mxu0 %v1553
    %2959 = vmatmul.mubr.bf16.gmra.mxu0 %v1425
    %v2960 = vpop.f32.mrf.mxu0
    %v2961 = vadd.f32 %v2708, %v2960
    %v2962 = vpop.f32.mrf.mxu0
    %v2963 = vpop.f32.mrf.mxu0
    %v2964 = vadd.f32 %v2708, %v2963
    %v2965 = vpop.f32.mrf.mxu0
    %2966 = vmatprep.mubr.bf16.mxu0 %v1556
    %2967 = vmatmul.mubr.bf16.gmra.mxu0 %v1428
    %v2968 = vpop.f32.mrf.mxu0
    %v2969 = vadd.f32 %v2708, %v2968
    %v2970 = vpop.f32.mrf.mxu0
    %v2971 = vpop.f32.mrf.mxu0
    %v2972 = vadd.f32 %v2708, %v2971
    %v2973 = vpop.f32.mrf.mxu0
    %2974 = vmatprep.mubr.bf16.mxu0 %v1559
    %2975 = vmatmul.mubr.bf16.gmra.mxu0 %v1431
    %v2976 = vpop.f32.mrf.mxu0
    %v2977 = vadd.f32 %v2708, %v2976
    %v2978 = vpop.f32.mrf.mxu0
    %v2979 = vpop.f32.mrf.mxu0
    %v2980 = vadd.f32 %v2708, %v2979
    %v2981 = vpop.f32.mrf.mxu0
    %2982 = vmatprep.mubr.bf16.mxu0 %v1562
    %2983 = vmatmul.mubr.bf16.gmra.mxu0 %v1434
    %v2984 = vpop.f32.mrf.mxu0
    %v2985 = vadd.f32 %v2708, %v2984
    %v2986 = vpop.f32.mrf.mxu0
    %v2987 = vpop.f32.mrf.mxu0
    %v2988 = vadd.f32 %v2708, %v2987
    %v2989 = vpop.f32.mrf.mxu0
    %2990 = vmatprep.mubr.bf16.mxu0 %v1565
    %2991 = vmatmul.mubr.bf16.gmra.mxu0 %v1437
    %v2992 = vpop.f32.mrf.mxu0
    %v2993 = vadd.f32 %v2708, %v2992
    %v2994 = vpop.f32.mrf.mxu0
    %v2995 = vpop.f32.mrf.mxu0
    %v2996 = vadd.f32 %v2708, %v2995
    %v2997 = vpop.f32.mrf.mxu0
    %2998 = vmatprep.mubr.bf16.mxu0 %v1568
    %2999 = vmatmul.mubr.bf16.gmra.mxu0 %v1440
    %v3000 = vpop.f32.mrf.mxu0
    %v3001 = vadd.f32 %v2708, %v3000
    %v3002 = vpop.f32.mrf.mxu0
    %v3003 = vpop.f32.mrf.mxu0
    %v3004 = vadd.f32 %v2708, %v3003
    %v3005 = vpop.f32.mrf.mxu0
    %3006 = vmatprep.mubr.bf16.mxu0 %v1571
    %3007 = vmatmul.mubr.bf16.gmra.mxu0 %v1443
    %v3008 = vpop.f32.mrf.mxu0
    %v3009 = vadd.f32 %v2708, %v3008
    %v3010 = vpop.f32.mrf.mxu0
    %v3011 = vpop.f32.mrf.mxu0
    %v3012 = vadd.f32 %v2708, %v3011
    %v3013 = vpop.f32.mrf.mxu0
    %3014 = vmatprep.mubr.bf16.mxu0 %v1574
    %3015 = vmatmul.mubr.bf16.gmra.mxu0 %v1446
    %v3016 = vpop.f32.mrf.mxu0
    %v3017 = vadd.f32 %v2708, %v3016
    %v3018 = vpop.f32.mrf.mxu0
    %v3019 = vpop.f32.mrf.mxu0
    %v3020 = vadd.f32 %v2708, %v3019
    %v3021 = vpop.f32.mrf.mxu0
    %3022 = vmatprep.mubr.bf16.mxu0 %v1577
    %3023 = vmatmul.mubr.bf16.gmra.mxu0 %v1449
    %v3024 = vpop.f32.mrf.mxu0
    %v3025 = vadd.f32 %v2708, %v3024
    %v3026 = vpop.f32.mrf.mxu0
    %v3027 = vpop.f32.mrf.mxu0
    %v3028 = vadd.f32 %v2708, %v3027
    %v3029 = vpop.f32.mrf.mxu0
    %3030 = vmatprep.mubr.bf16.mxu0 %v1580
    %3031 = vmatmul.mubr.bf16.gmra.mxu0 %v1452
    %v3032 = vpop.f32.mrf.mxu0
    %v3033 = vadd.f32 %v2708, %v3032
    %v3034 = vpop.f32.mrf.mxu0
    %v3035 = vpop.f32.mrf.mxu0
    %v3036 = vadd.f32 %v2708, %v3035
    %v3037 = vpop.f32.mrf.mxu0
    %3038 = vmatprep.mubr.bf16.mxu0 %v1583
    %3039 = vmatmul.mubr.bf16.gmra.mxu0 %v1455
    %v3040 = vpop.f32.mrf.mxu0
    %v3041 = vadd.f32 %v2708, %v3040
    %v3042 = vpop.f32.mrf.mxu0
    %v3043 = vpop.f32.mrf.mxu0
    %v3044 = vadd.f32 %v2708, %v3043
    %v3045 = vpop.f32.mrf.mxu0
    %3046 = vmatprep.mubr.bf16.mxu0 %v1586
    %3047 = vmatmul.mubr.bf16.gmra.mxu0 %v1458
    %v3048 = vpop.f32.mrf.mxu0
    %v3049 = vadd.f32 %v2708, %v3048
    %v3050 = vpop.f32.mrf.mxu0
    %v3051 = vpop.f32.mrf.mxu0
    %v3052 = vadd.f32 %v2708, %v3051
    %v3053 = vpop.f32.mrf.mxu0
    %3054 = vmatprep.mubr.bf16.mxu0 %v1589
    %3055 = vmatmul.mubr.bf16.gmra.mxu0 %v1461
    %v3056 = vpop.f32.mrf.mxu0
    %v3057 = vadd.f32 %v2708, %v3056
    %v3058 = vpop.f32.mrf.mxu0
    %v3059 = vpop.f32.mrf.mxu0
    %v3060 = vadd.f32 %v2708, %v3059
    %v3061 = vpop.f32.mrf.mxu0
    %3062 = vmatprep.mubr.bf16.mxu0 %v1592
    %3063 = vmatmul.mubr.bf16.gmra.mxu0 %v1464
    %v3064 = vpop.f32.mrf.mxu0
    %v3065 = vadd.f32 %v2708, %v3064
    %v3066 = vpop.f32.mrf.mxu0
    %v3067 = vpop.f32.mrf.mxu0
    %v3068 = vadd.f32 %v2708, %v3067
    %v3069 = vpop.f32.mrf.mxu0
    %3070 = vmatprep.mubr.bf16.mxu0 %v2621
    %3071 = vmatmul.mubr.bf16.gmra.mxu0 %v2493
    %v3072 = vpop.f32.mrf.mxu0
    %v3073 = vadd.f32 %v2708, %v3072
    %v3074 = vpop.f32.mrf.mxu0
    %v3075 = vpop.f32.mrf.mxu0
    %v3076 = vadd.f32 %v2708, %v3075
    %v3077 = vpop.f32.mrf.mxu0
    %3078 = vmatprep.mubr.bf16.mxu0 %v2624
    %3079 = vmatmul.mubr.bf16.gmra.mxu0 %v2496
    %v3080 = vpop.f32.mrf.mxu0
    %v3081 = vadd.f32 %v2708, %v3080
    %v3082 = vpop.f32.mrf.mxu0
    %v3083 = vpop.f32.mrf.mxu0
    %v3084 = vadd.f32 %v2708, %v3083
    %v3085 = vpop.f32.mrf.mxu0
    %3086 = vmatprep.mubr.bf16.mxu0 %v2627
    %3087 = vmatmul.mubr.bf16.gmra.mxu0 %v2499
    %v3088 = vpop.f32.mrf.mxu0
    %v3089 = vadd.f32 %v2708, %v3088
    %v3090 = vpop.f32.mrf.mxu0
    %v3091 = vpop.f32.mrf.mxu0
    %v3092 = vadd.f32 %v2708, %v3091
    %v3093 = vpop.f32.mrf.mxu0
    %3094 = vmatprep.mubr.bf16.mxu0 %v2630
    %3095 = vmatmul.mubr.bf16.gmra.mxu0 %v2502
    %v3096 = vpop.f32.mrf.mxu0
    %v3097 = vadd.f32 %v2708, %v3096
    %v3098 = vpop.f32.mrf.mxu0
    %v3099 = vpop.f32.mrf.mxu0
    %v3100 = vadd.f32 %v2708, %v3099
    %v3101 = vpop.f32.mrf.mxu0
    %3102 = vmatprep.mubr.bf16.mxu0 %v2633
    %3103 = vmatmul.mubr.bf16.gmra.mxu0 %v2505
    %v3104 = vpop.f32.mrf.mxu0
    %v3105 = vadd.f32 %v2708, %v3104
    %v3106 = vpop.f32.mrf.mxu0
    %v3107 = vpop.f32.mrf.mxu0
    %v3108 = vadd.f32 %v2708, %v3107
    %v3109 = vpop.f32.mrf.mxu0
    %3110 = vmatprep.mubr.bf16.mxu0 %v2636
    %3111 = vmatmul.mubr.bf16.gmra.mxu0 %v2508
    %v3112 = vpop.f32.mrf.mxu0
    %v3113 = vadd.f32 %v2708, %v3112
    %v3114 = vpop.f32.mrf.mxu0
    %v3115 = vpop.f32.mrf.mxu0
    %v3116 = vadd.f32 %v2708, %v3115
    %v3117 = vpop.f32.mrf.mxu0
    %3118 = vmatprep.mubr.bf16.mxu0 %v2639
    %3119 = vmatmul.mubr.bf16.gmra.mxu0 %v2511
    %v3120 = vpop.f32.mrf.mxu0
    %v3121 = vadd.f32 %v2708, %v3120
    %v3122 = vpop.f32.mrf.mxu0
    %v3123 = vpop.f32.mrf.mxu0
    %v3124 = vadd.f32 %v2708, %v3123
    %v3125 = vpop.f32.mrf.mxu0
    %3126 = vmatprep.mubr.bf16.mxu0 %v2642
    %3127 = vmatmul.mubr.bf16.gmra.mxu0 %v2514
    %v3128 = vpop.f32.mrf.mxu0
    %v3129 = vadd.f32 %v2708, %v3128
    %v3130 = vpop.f32.mrf.mxu0
    %v3131 = vpop.f32.mrf.mxu0
    %v3132 = vadd.f32 %v2708, %v3131
    %v3133 = vpop.f32.mrf.mxu0
    %3134 = vmatprep.mubr.bf16.mxu0 %v2645
    %3135 = vmatmul.mubr.bf16.gmra.mxu0 %v2517
    %v3136 = vpop.f32.mrf.mxu0
    %v3137 = vadd.f32 %v2708, %v3136
    %v3138 = vpop.f32.mrf.mxu0
    %v3139 = vpop.f32.mrf.mxu0
    %v3140 = vadd.f32 %v2708, %v3139
    %v3141 = vpop.f32.mrf.mxu0
    %3142 = vmatprep.mubr.bf16.mxu0 %v2648
    %3143 = vmatmul.mubr.bf16.gmra.mxu0 %v2520
    %v3144 = vpop.f32.mrf.mxu0
    %v3145 = vadd.f32 %v2708, %v3144
    %v3146 = vpop.f32.mrf.mxu0
    %v3147 = vpop.f32.mrf.mxu0
    %v3148 = vadd.f32 %v2708, %v3147
    %v3149 = vpop.f32.mrf.mxu0
    %3150 = vmatprep.mubr.bf16.mxu0 %v2651
    %3151 = vmatmul.mubr.bf16.gmra.mxu0 %v2523
    %v3152 = vpop.f32.mrf.mxu0
    %v3153 = vadd.f32 %v2708, %v3152
    %v3154 = vpop.f32.mrf.mxu0
    %v3155 = vpop.f32.mrf.mxu0
    %v3156 = vadd.f32 %v2708, %v3155
    %v3157 = vpop.f32.mrf.mxu0
    %3158 = vmatprep.mubr.bf16.mxu0 %v2654
    %3159 = vmatmul.mubr.bf16.gmra.mxu0 %v2526
    %v3160 = vpop.f32.mrf.mxu0
    %v3161 = vadd.f32 %v2708, %v3160
    %v3162 = vpop.f32.mrf.mxu0
    %v3163 = vpop.f32.mrf.mxu0
    %v3164 = vadd.f32 %v2708, %v3163
    %v3165 = vpop.f32.mrf.mxu0
    %3166 = vmatprep.mubr.bf16.mxu0 %v2657
    %3167 = vmatmul.mubr.bf16.gmra.mxu0 %v2529
    %v3168 = vpop.f32.mrf.mxu0
    %v3169 = vadd.f32 %v2708, %v3168
    %v3170 = vpop.f32.mrf.mxu0
    %v3171 = vpop.f32.mrf.mxu0
    %v3172 = vadd.f32 %v2708, %v3171
    %v3173 = vpop.f32.mrf.mxu0
    %3174 = vmatprep.mubr.bf16.mxu0 %v2660
    %3175 = vmatmul.mubr.bf16.gmra.mxu0 %v2532
    %v3176 = vpop.f32.mrf.mxu0
    %v3177 = vadd.f32 %v2708, %v3176
    %v3178 = vpop.f32.mrf.mxu0
    %v3179 = vpop.f32.mrf.mxu0
    %v3180 = vadd.f32 %v2708, %v3179
    %v3181 = vpop.f32.mrf.mxu0
    %3182 = vmatprep.mubr.bf16.mxu0 %v2663
    %3183 = vmatmul.mubr.bf16.gmra.mxu0 %v2535
    %v3184 = vpop.f32.mrf.mxu0
    %v3185 = vadd.f32 %v2708, %v3184
    %v3186 = vpop.f32.mrf.mxu0
    %v3187 = vpop.f32.mrf.mxu0
    %v3188 = vadd.f32 %v2708, %v3187
    %v3189 = vpop.f32.mrf.mxu0
    %3190 = vmatprep.mubr.bf16.mxu0 %v2665
    %3191 = vmatmul.mubr.bf16.gmra.mxu0 %v2538
    %v3192 = vpop.f32.mrf.mxu0
    %v3193 = vadd.f32 %v2708, %v3192
    %v3194 = vpop.f32.mrf.mxu0
    %v3195 = vpop.f32.mrf.mxu0
    %v3196 = vadd.f32 %v2708, %v3195
    %v3197 = vpop.f32.mrf.mxu0
    %3198 = vdwg.mxu0
    %3199 = vmatprep.subr.bf16.mxu0 0
    %3200 = vmatpush1.bf16.msra.mxu0 0
    %3201 = vmatprep.subr.bf16.mxu0 0
    %3202 = vmatpush1.bf16.msra.mxu0 0
    %3203 = vmatprep.subr.bf16.mxu0 0
    %3204 = vmatpush1.bf16.msra.mxu0 0
    %3205 = vmatprep.subr.bf16.mxu0 0
    %3206 = vmatpush1.bf16.msra.mxu0 0
    %3207 = vmatprep.subr.bf16.mxu0 0
    %3208 = vmatpush1.bf16.msra.mxu0 0
    %3209 = vmatprep.subr.bf16.mxu0 0
    %3210 = vmatpush1.bf16.msra.mxu0 0
    %3211 = vmatprep.subr.bf16.mxu0 0
    %3212 = vmatpush1.bf16.msra.mxu0 %v2799
    %3213 = vmatprep.subr.bf16.mxu0 0
    %3214 = vmatpush1.bf16.msra.mxu0 %v2798
    %3215 = vmatprep.subr.bf16.mxu0 0
    %3216 = vmatpush2.bf16.msra.mxu0 0
    %3217 = vmatprep.subr.bf16.mxu0 0
    %3218 = vmatpush2.bf16.msra.mxu0 0
    %3219 = vmatprep.subr.bf16.mxu0 0
    %3220 = vmatpush2.bf16.msra.mxu0 0
    %3221 = vmatprep.subr.bf16.mxu0 0
    %3222 = vmatpush2.bf16.msra.mxu0 0
    %3223 = vmatprep.subr.bf16.mxu0 0
    %3224 = vmatpush2.bf16.msra.mxu0 0
    %3225 = vmatprep.subr.bf16.mxu0 0
    %3226 = vmatpush2.bf16.msra.mxu0 0
    %3227 = vmatprep.subr.bf16.mxu0 0
    %3228 = vmatpush2.bf16.msra.mxu0 0
    %3229 = vmatprep.subr.bf16.mxu0 0
    %3230 = vmatpush2.bf16.msra.mxu0 0
    %3231 = vmatprep.mubr.bf16.mxu0 0
    %3232 = vmatmul.mubr.bf16.gmra.mxu0 %v2819
    %v3233 = vpop.f32.mrf.mxu0
    %v3234 = vadd.f32 %v2945, %v3233
    %v3235 = vpop.f32.mrf.mxu0
    %v3236 = vpop.f32.mrf.mxu0
    %v3237 = vadd.f32 %v2948, %v3236
    %v3238 = vpop.f32.mrf.mxu0
    %3239 = vmatprep.mubr.bf16.mxu0 0
    %3240 = vmatmul.mubr.bf16.gmra.mxu0 %v2822
    %v3241 = vpop.f32.mrf.mxu0
    %v3242 = vadd.f32 %v2953, %v3241
    %v3243 = vpop.f32.mrf.mxu0
    %v3244 = vpop.f32.mrf.mxu0
    %v3245 = vadd.f32 %v2956, %v3244
    %v3246 = vpop.f32.mrf.mxu0
    %3247 = vmatprep.mubr.bf16.mxu0 0
    %3248 = vmatmul.mubr.bf16.gmra.mxu0 %v2825
    %v3249 = vpop.f32.mrf.mxu0
    %v3250 = vadd.f32 %v2961, %v3249
    %v3251 = vpop.f32.mrf.mxu0
    %v3252 = vpop.f32.mrf.mxu0
    %v3253 = vadd.f32 %v2964, %v3252
    %v3254 = vpop.f32.mrf.mxu0
    %3255 = vmatprep.mubr.bf16.mxu0 0
    %3256 = vmatmul.mubr.bf16.gmra.mxu0 %v2828
    %v3257 = vpop.f32.mrf.mxu0
    %v3258 = vadd.f32 %v2969, %v3257
    %v3259 = vpop.f32.mrf.mxu0
    %v3260 = vpop.f32.mrf.mxu0
    %v3261 = vadd.f32 %v2972, %v3260
    %v3262 = vpop.f32.mrf.mxu0
    %3263 = vmatprep.mubr.bf16.mxu0 0
    %3264 = vmatmul.mubr.bf16.gmra.mxu0 %v2831
    %v3265 = vpop.f32.mrf.mxu0
    %v3266 = vadd.f32 %v2977, %v3265
    %v3267 = vpop.f32.mrf.mxu0
    %v3268 = vpop.f32.mrf.mxu0
    %v3269 = vadd.f32 %v2980, %v3268
    %v3270 = vpop.f32.mrf.mxu0
    %3271 = vmatprep.mubr.bf16.mxu0 0
    %3272 = vmatmul.mubr.bf16.gmra.mxu0 %v2834
    %v3273 = vpop.f32.mrf.mxu0
    %v3274 = vadd.f32 %v2985, %v3273
    %v3275 = vpop.f32.mrf.mxu0
    %v3276 = vpop.f32.mrf.mxu0
    %v3277 = vadd.f32 %v2988, %v3276
    %v3278 = vpop.f32.mrf.mxu0
    %3279 = vmatprep.mubr.bf16.mxu0 0
    %3280 = vmatmul.mubr.bf16.gmra.mxu0 %v2837
    %v3281 = vpop.f32.mrf.mxu0
    %v3282 = vadd.f32 %v2993, %v3281
    %v3283 = vpop.f32.mrf.mxu0
    %v3284 = vpop.f32.mrf.mxu0
    %v3285 = vadd.f32 %v2996, %v3284
    %v3286 = vpop.f32.mrf.mxu0
    %3287 = vmatprep.mubr.bf16.mxu0 0
    %3288 = vmatmul.mubr.bf16.gmra.mxu0 %v2840
    %v3289 = vpop.f32.mrf.mxu0
    %v3290 = vadd.f32 %v3001, %v3289
    %v3291 = vpop.f32.mrf.mxu0
    %v3292 = vpop.f32.mrf.mxu0
    %v3293 = vadd.f32 %v3004, %v3292
    %v3294 = vpop.f32.mrf.mxu0
    %3295 = vmatprep.mubr.bf16.mxu0 0
    %3296 = vmatmul.mubr.bf16.gmra.mxu0 %v2843
    %v3297 = vpop.f32.mrf.mxu0
    %v3298 = vadd.f32 %v3009, %v3297
    %v3299 = vpop.f32.mrf.mxu0
    %v3300 = vpop.f32.mrf.mxu0
    %v3301 = vadd.f32 %v3012, %v3300
    %v3302 = vpop.f32.mrf.mxu0
    %3303 = vmatprep.mubr.bf16.mxu0 0
    %3304 = vmatmul.mubr.bf16.gmra.mxu0 %v2846
    %v3305 = vpop.f32.mrf.mxu0
    %v3306 = vadd.f32 %v3017, %v3305
    %v3307 = vpop.f32.mrf.mxu0
    %v3308 = vpop.f32.mrf.mxu0
    %v3309 = vadd.f32 %v3020, %v3308
    %v3310 = vpop.f32.mrf.mxu0
    %3311 = vmatprep.mubr.bf16.mxu0 0
    %3312 = vmatmul.mubr.bf16.gmra.mxu0 %v2849
    %v3313 = vpop.f32.mrf.mxu0
    %v3314 = vadd.f32 %v3025, %v3313
    %v3315 = vpop.f32.mrf.mxu0
    %v3316 = vpop.f32.mrf.mxu0
    %v3317 = vadd.f32 %v3028, %v3316
    %v3318 = vpop.f32.mrf.mxu0
    %3319 = vmatprep.mubr.bf16.mxu0 0
    %3320 = vmatmul.mubr.bf16.gmra.mxu0 %v2852
    %v3321 = vpop.f32.mrf.mxu0
    %v3322 = vadd.f32 %v3033, %v3321
    %v3323 = vpop.f32.mrf.mxu0
    %v3324 = vpop.f32.mrf.mxu0
    %v3325 = vadd.f32 %v3036, %v3324
    %v3326 = vpop.f32.mrf.mxu0
    %3327 = vmatprep.mubr.bf16.mxu0 0
    %3328 = vmatmul.mubr.bf16.gmra.mxu0 %v2855
    %v3329 = vpop.f32.mrf.mxu0
    %v3330 = vadd.f32 %v3041, %v3329
    %v3331 = vpop.f32.mrf.mxu0
    %v3332 = vpop.f32.mrf.mxu0
    %v3333 = vadd.f32 %v3044, %v3332
    %v3334 = vpop.f32.mrf.mxu0
    %3335 = vmatprep.mubr.bf16.mxu0 0
    %3336 = vmatmul.mubr.bf16.gmra.mxu0 %v2858
    %v3337 = vpop.f32.mrf.mxu0
    %v3338 = vadd.f32 %v3049, %v3337
    %v3339 = vpop.f32.mrf.mxu0
    %v3340 = vpop.f32.mrf.mxu0
    %v3341 = vadd.f32 %v3052, %v3340
    %v3342 = vpop.f32.mrf.mxu0
    %3343 = vmatprep.mubr.bf16.mxu0 0
    %3344 = vmatmul.mubr.bf16.gmra.mxu0 %v2861
    %v3345 = vpop.f32.mrf.mxu0
    %v3346 = vadd.f32 %v3057, %v3345
    %v3347 = vpop.f32.mrf.mxu0
    %v3348 = vpop.f32.mrf.mxu0
    %v3349 = vadd.f32 %v3060, %v3348
    %v3350 = vpop.f32.mrf.mxu0
    %3351 = vmatprep.mubr.bf16.mxu0 0
    %3352 = vmatmul.mubr.bf16.gmra.mxu0 %v2863
    %v3353 = vpop.f32.mrf.mxu0
    %v3354 = vadd.f32 %v3065, %v3353
    %v3355 = vpop.f32.mrf.mxu0
    %v3356 = vpop.f32.mrf.mxu0
    %v3357 = vadd.f32 %v3068, %v3356
    %v3358 = vpop.f32.mrf.mxu0
    %3359 = vmatprep.mubr.bf16.mxu0 0
    %3360 = vmatmul.mubr.bf16.gmra.mxu0 %v2866
    %v3361 = vpop.f32.mrf.mxu0
    %v3362 = vadd.f32 %v3073, %v3361
    %v3363 = vpop.f32.mrf.mxu0
    %v3364 = vpop.f32.mrf.mxu0
    %v3365 = vadd.f32 %v3076, %v3364
    %v3366 = vpop.f32.mrf.mxu0
    %3367 = vmatprep.mubr.bf16.mxu0 0
    %3368 = vmatmul.mubr.bf16.gmra.mxu0 %v2869
    %v3369 = vpop.f32.mrf.mxu0
    %v3370 = vadd.f32 %v3081, %v3369
    %v3371 = vpop.f32.mrf.mxu0
    %v3372 = vpop.f32.mrf.mxu0
    %v3373 = vadd.f32 %v3084, %v3372
    %v3374 = vpop.f32.mrf.mxu0
    %3375 = vmatprep.mubr.bf16.mxu0 0
    %3376 = vmatmul.mubr.bf16.gmra.mxu0 %v2872
    %v3377 = vpop.f32.mrf.mxu0
    %v3378 = vadd.f32 %v3089, %v3377
    %v3379 = vpop.f32.mrf.mxu0
    %v3380 = vpop.f32.mrf.mxu0
    %v3381 = vadd.f32 %v3092, %v3380
    %v3382 = vpop.f32.mrf.mxu0
    %3383 = vmatprep.mubr.bf16.mxu0 0
    %3384 = vmatmul.mubr.bf16.gmra.mxu0 %v2875
    %v3385 = vpop.f32.mrf.mxu0
    %v3386 = vadd.f32 %v3097, %v3385
    %v3387 = vpop.f32.mrf.mxu0
    %v3388 = vpop.f32.mrf.mxu0
    %v3389 = vadd.f32 %v3100, %v3388
    %v3390 = vpop.f32.mrf.mxu0
    %3391 = vmatprep.mubr.bf16.mxu0 0
    %3392 = vmatmul.mubr.bf16.gmra.mxu0 %v2878
    %v3393 = vpop.f32.mrf.mxu0
    %v3394 = vadd.f32 %v3105, %v3393
    %v3395 = vpop.f32.mrf.mxu0
    %v3396 = vpop.f32.mrf.mxu0
    %v3397 = vadd.f32 %v3108, %v3396
    %v3398 = vpop.f32.mrf.mxu0
    %3399 = vmatprep.mubr.bf16.mxu0 0
    %3400 = vmatmul.mubr.bf16.gmra.mxu0 %v2881
    %v3401 = vpop.f32.mrf.mxu0
    %v3402 = vadd.f32 %v3113, %v3401
    %v3403 = vpop.f32.mrf.mxu0
    %v3404 = vpop.f32.mrf.mxu0
    %v3405 = vadd.f32 %v3116, %v3404
    %v3406 = vpop.f32.mrf.mxu0
    %3407 = vmatprep.mubr.bf16.mxu0 0
    %3408 = vmatmul.mubr.bf16.gmra.mxu0 %v2884
    %v3409 = vpop.f32.mrf.mxu0
    %v3410 = vadd.f32 %v3121, %v3409
    %v3411 = vpop.f32.mrf.mxu0
    %v3412 = vpop.f32.mrf.mxu0
    %v3413 = vadd.f32 %v3124, %v3412
    %v3414 = vpop.f32.mrf.mxu0
    %3415 = vmatprep.mubr.bf16.mxu0 0
    %3416 = vmatmul.mubr.bf16.gmra.mxu0 %v2887
    %v3417 = vpop.f32.mrf.mxu0
    %v3418 = vadd.f32 %v3129, %v3417
    %v3419 = vpop.f32.mrf.mxu0
    %v3420 = vpop.f32.mrf.mxu0
    %v3421 = vadd.f32 %v3132, %v3420
    %v3422 = vpop.f32.mrf.mxu0
    %3423 = vmatprep.mubr.bf16.mxu0 0
    %3424 = vmatmul.mubr.bf16.gmra.mxu0 %v2890
    %v3425 = vpop.f32.mrf.mxu0
    %v3426 = vadd.f32 %v3137, %v3425
    %v3427 = vpop.f32.mrf.mxu0
    %v3428 = vpop.f32.mrf.mxu0
    %v3429 = vadd.f32 %v3140, %v3428
    %v3430 = vpop.f32.mrf.mxu0
    %3431 = vmatprep.mubr.bf16.mxu0 0
    %3432 = vmatmul.mubr.bf16.gmra.mxu0 %v2893
    %v3433 = vpop.f32.mrf.mxu0
    %v3434 = vadd.f32 %v3145, %v3433
    %v3435 = vpop.f32.mrf.mxu0
    %v3436 = vpop.f32.mrf.mxu0
    %v3437 = vadd.f32 %v3148, %v3436
    %v3438 = vpop.f32.mrf.mxu0
    %3439 = vmatprep.mubr.bf16.mxu0 0
    %3440 = vmatmul.mubr.bf16.gmra.mxu0 %v2896
    %v3441 = vpop.f32.mrf.mxu0
    %v3442 = vadd.f32 %v3153, %v3441
    %v3443 = vpop.f32.mrf.mxu0
    %v3444 = vpop.f32.mrf.mxu0
    %v3445 = vadd.f32 %v3156, %v3444
    %v3446 = vpop.f32.mrf.mxu0
    %3447 = vmatprep.mubr.bf16.mxu0 0
    %3448 = vmatmul.mubr.bf16.gmra.mxu0 %v2899
    %v3449 = vpop.f32.mrf.mxu0
    %v3450 = vadd.f32 %v3161, %v3449
    %v3451 = vpop.f32.mrf.mxu0
    %v3452 = vpop.f32.mrf.mxu0
    %v3453 = vadd.f32 %v3164, %v3452
    %v3454 = vpop.f32.mrf.mxu0
    %3455 = vmatprep.mubr.bf16.mxu0 0
    %3456 = vmatmul.mubr.bf16.gmra.mxu0 %v2902
    %v3457 = vpop.f32.mrf.mxu0
    %v3458 = vadd.f32 %v3169, %v3457
    %v3459 = vpop.f32.mrf.mxu0
    %v3460 = vpop.f32.mrf.mxu0
    %v3461 = vadd.f32 %v3172, %v3460
    %v3462 = vpop.f32.mrf.mxu0
    %3463 = vmatprep.mubr.bf16.mxu0 0
    %3464 = vmatmul.mubr.bf16.gmra.mxu0 %v2905
    %v3465 = vpop.f32.mrf.mxu0
    %v3466 = vadd.f32 %v3177, %v3465
    %v3467 = vpop.f32.mrf.mxu0
    %v3468 = vpop.f32.mrf.mxu0
    %v3469 = vadd.f32 %v3180, %v3468
    %v3470 = vpop.f32.mrf.mxu0
    %3471 = vmatprep.mubr.bf16.mxu0 0
    %3472 = vmatmul.mubr.bf16.gmra.mxu0 %v2908
    %v3473 = vpop.f32.mrf.mxu0
    %v3474 = vadd.f32 %v3185, %v3473
    %v3475 = vpop.f32.mrf.mxu0
    %v3476 = vpop.f32.mrf.mxu0
    %v3477 = vadd.f32 %v3188, %v3476
    %v3478 = vpop.f32.mrf.mxu0
    %3479 = vmatprep.mubr.bf16.mxu0 0
    %3480 = vmatmul.mubr.bf16.gmra.mxu0 %v2863
    %v3481 = vpop.f32.mrf.mxu0
    %v3482 = vadd.f32 %v3193, %v3481
    %v3483 = vpop.f32.mrf.mxu0
    %v3484 = vpop.f32.mrf.mxu0
    %v3485 = vadd.f32 %v3196, %v3484
    %v3486 = vpop.f32.mrf.mxu0
    %3487 = vdwg.mxu0
    %v3488 = vmax.f32 %v3234, 0.0
    %v3489 = vmax.f32 %v3237, 0.0
    %v3490 = vmax.f32 %v3242, 0.0
    %v3491 = vmax.f32 %v3245, 0.0
    %v3492 = vmax.f32 %v3250, 0.0
    %v3493 = vmax.f32 %v3253, 0.0
    %v3494 = vmax.f32 %v3258, 0.0
    %v3495 = vmax.f32 %v3261, 0.0
    %v3496 = vmax.f32 %v3266, 0.0
    %v3497 = vmax.f32 %v3269, 0.0
    %v3498 = vmax.f32 %v3274, 0.0
    %v3499 = vmax.f32 %v3277, 0.0
    %v3500 = vmax.f32 %v3282, 0.0
    %v3501 = vmax.f32 %v3285, 0.0
    %v3502 = vmax.f32 %v3290, 0.0
    %v3503 = vmax.f32 %v3293, 0.0
    %v3504 = vmax.f32 %v3298, 0.0
    %v3505 = vmax.f32 %v3301, 0.0
    %v3506 = vmax.f32 %v3306, 0.0
    %v3507 = vmax.f32 %v3309, 0.0
    %v3508 = vmax.f32 %v3314, 0.0
    %v3509 = vmax.f32 %v3317, 0.0
    %v3510 = vmax.f32 %v3322, 0.0
    %v3511 = vmax.f32 %v3325, 0.0
    %v3512 = vmax.f32 %v3330, 0.0
    %v3513 = vmax.f32 %v3333, 0.0
    %v3514 = vmax.f32 %v3338, 0.0
    %v3515 = vmax.f32 %v3341, 0.0
    %v3516 = vmax.f32 %v3346, 0.0
    %v3517 = vmax.f32 %v3349, 0.0
    %v3518 = vmax.f32 %v3354, 0.0
    %v3519 = vmax.f32 %v3357, 0.0
    %v3520 = vmax.f32 %v3362, 0.0
    %v3521 = vmax.f32 %v3365, 0.0
    %v3522 = vmax.f32 %v3370, 0.0
    %v3523 = vmax.f32 %v3373, 0.0
    %v3524 = vmax.f32 %v3378, 0.0
    %v3525 = vmax.f32 %v3381, 0.0
    %v3526 = vmax.f32 %v3386, 0.0
    %v3527 = vmax.f32 %v3389, 0.0
    %v3528 = vmax.f32 %v3394, 0.0
    %v3529 = vmax.f32 %v3397, 0.0
    %v3530 = vmax.f32 %v3402, 0.0
    %v3531 = vmax.f32 %v3405, 0.0
    %v3532 = vmax.f32 %v3410, 0.0
    %v3533 = vmax.f32 %v3413, 0.0
    %v3534 = vmax.f32 %v3418, 0.0
    %v3535 = vmax.f32 %v3421, 0.0
    %v3536 = vmax.f32 %v3426, 0.0
    %v3537 = vmax.f32 %v3429, 0.0
    %v3538 = vmax.f32 %v3434, 0.0
    %v3539 = vmax.f32 %v3437, 0.0
    %v3540 = vmax.f32 %v3442, 0.0
    %v3541 = vmax.f32 %v3445, 0.0
    %v3542 = vmax.f32 %v3450, 0.0
    %v3543 = vmax.f32 %v3453, 0.0
    %v3544 = vmax.f32 %v3458, 0.0
    %v3545 = vmax.f32 %v3461, 0.0
    %v3546 = vmax.f32 %v3466, 0.0
    %v3547 = vmax.f32 %v3469, 0.0
    %v3548 = vmax.f32 %v3474, 0.0
    %v3549 = vmax.f32 %v3477, 0.0
    %v3550 = vmax.f32 %v3482, 0.0
    %v3551 = vmax.f32 %v3485, 0.0
    %3552 = vst.msk [vmem:[#allocation2] sm:$0xff] %vm1336, %v3488
    %3553 = vst.msk [vmem:[#allocation2 + $0x8] sm:$0xff] %vm1336, %v3489
    %3554 = vst.msk [vmem:[#allocation2 + $0x10] sm:$0xff] %vm1336, %v3490
    %3555 = vst.msk [vmem:[#allocation2 + $0x18] sm:$0xff] %vm1336, %v3491
    %3556 = vst.msk [vmem:[#allocation2 + $0x20] sm:$0xff] %vm1336, %v3492
    %3557 = vst.msk [vmem:[#allocation2 + $0x28] sm:$0xff] %vm1336, %v3493
    %3558 = vst.msk [vmem:[#allocation2 + $0x30] sm:$0xff] %vm1336, %v3494
    %3559 = vst.msk [vmem:[#allocation2 + $0x38] sm:$0xff] %vm1336, %v3495
    %3560 = vst.msk [vmem:[#allocation2 + $0x40] sm:$0xff] %vm1336, %v3496
    %3561 = vst.msk [vmem:[#allocation2 + $0x48] sm:$0xff] %vm1336, %v3497
    %3562 = vst.msk [vmem:[#allocation2 + $0x50] sm:$0xff] %vm1336, %v3498
    %3563 = vst.msk [vmem:[#allocation2 + $0x58] sm:$0xff] %vm1336, %v3499
    %3564 = vst.msk [vmem:[#allocation2 + $0x60] sm:$0xff] %vm1336, %v3500
    %3565 = vst.msk [vmem:[#allocation2 + $0x68] sm:$0xff] %vm1336, %v3501
    %3566 = vst.msk [vmem:[#allocation2 + $0x70] sm:$0xff] %vm1336, %v3502
    %3567 = vst.msk [vmem:[#allocation2 + $0x78] sm:$0xff] %vm1336, %v3503
    %3568 = vst.msk [vmem:[#allocation2 + $0x80] sm:$0xff] %vm1336, %v3504
    %3569 = vst.msk [vmem:[#allocation2 + $0x88] sm:$0xff] %vm1336, %v3505
    %3570 = vst.msk [vmem:[#allocation2 + $0x90] sm:$0xff] %vm1336, %v3506
    %3571 = vst.msk [vmem:[#allocation2 + $0x98] sm:$0xff] %vm1336, %v3507
    %3572 = vst.msk [vmem:[#allocation2 + $0xa0] sm:$0xff] %vm1336, %v3508
    %3573 = vst.msk [vmem:[#allocation2 + $0xa8] sm:$0xff] %vm1336, %v3509
    %3574 = vst.msk [vmem:[#allocation2 + $0xb0] sm:$0xff] %vm1336, %v3510
    %3575 = vst.msk [vmem:[#allocation2 + $0xb8] sm:$0xff] %vm1336, %v3511
    %3576 = vst.msk [vmem:[#allocation2 + $0xc0] sm:$0xff] %vm1336, %v3512
    %3577 = vst.msk [vmem:[#allocation2 + $0xc8] sm:$0xff] %vm1336, %v3513
    %3578 = vst.msk [vmem:[#allocation2 + $0xd0] sm:$0xff] %vm1336, %v3514
    %3579 = vst.msk [vmem:[#allocation2 + $0xd8] sm:$0xff] %vm1336, %v3515
    %3580 = vst.msk [vmem:[#allocation2 + $0xe0] sm:$0xff] %vm1336, %v3516
    %3581 = vst.msk [vmem:[#allocation2 + $0xe8] sm:$0xff] %vm1336, %v3517
    %3582 = vst.msk [vmem:[#allocation2 + $0xf0] sm:$0xff] %vm1336, %v3518
    %3583 = vst.msk [vmem:[#allocation2 + $0xf8] sm:$0xff] %vm1336, %v3519
    %s3584 = scalar_lea.vmem [#allocation2], 256
    %3585 = vst.msk [vmem:[%s3584] sm:$0xff] %vm1336, %v3520
    %3586 = vst.msk [vmem:[%s3584 + $0x8] sm:$0xff] %vm1336, %v3521
    %3587 = vst.msk [vmem:[%s3584 + $0x10] sm:$0xff] %vm1336, %v3522
    %3588 = vst.msk [vmem:[%s3584 + $0x18] sm:$0xff] %vm1336, %v3523
    %3589 = vst.msk [vmem:[%s3584 + $0x20] sm:$0xff] %vm1336, %v3524
    %3590 = vst.msk [vmem:[%s3584 + $0x28] sm:$0xff] %vm1336, %v3525
    %3591 = vst.msk [vmem:[%s3584 + $0x30] sm:$0xff] %vm1336, %v3526
    %3592 = vst.msk [vmem:[%s3584 + $0x38] sm:$0xff] %vm1336, %v3527
    %3593 = vst.msk [vmem:[%s3584 + $0x40] sm:$0xff] %vm1336, %v3528
    %3594 = vst.msk [vmem:[%s3584 + $0x48] sm:$0xff] %vm1336, %v3529
    %3595 = vst.msk [vmem:[%s3584 + $0x50] sm:$0xff] %vm1336, %v3530
    %3596 = vst.msk [vmem:[%s3584 + $0x58] sm:$0xff] %vm1336, %v3531
    %3597 = vst.msk [vmem:[%s3584 + $0x60] sm:$0xff] %vm1336, %v3532
    %3598 = vst.msk [vmem:[%s3584 + $0x68] sm:$0xff] %vm1336, %v3533
    %3599 = vst.msk [vmem:[%s3584 + $0x70] sm:$0xff] %vm1336, %v3534
    %3600 = vst.msk [vmem:[%s3584 + $0x78] sm:$0xff] %vm1336, %v3535
    %3601 = vst.msk [vmem:[%s3584 + $0x80] sm:$0xff] %vm1336, %v3536
    %3602 = vst.msk [vmem:[%s3584 + $0x88] sm:$0xff] %vm1336, %v3537
    %3603 = vst.msk [vmem:[%s3584 + $0x90] sm:$0xff] %vm1336, %v3538
    %3604 = vst.msk [vmem:[%s3584 + $0x98] sm:$0xff] %vm1336, %v3539
    %3605 = vst.msk [vmem:[%s3584 + $0xa0] sm:$0xff] %vm1336, %v3540
    %3606 = vst.msk [vmem:[%s3584 + $0xa8] sm:$0xff] %vm1336, %v3541
    %3607 = vst.msk [vmem:[%s3584 + $0xb0] sm:$0xff] %vm1336, %v3542
    %3608 = vst.msk [vmem:[%s3584 + $0xb8] sm:$0xff] %vm1336, %v3543
    %3609 = vst.msk [vmem:[%s3584 + $0xc0] sm:$0xff] %vm1336, %v3544
    %3610 = vst.msk [vmem:[%s3584 + $0xc8] sm:$0xff] %vm1336, %v3545
    %3611 = vst.msk [vmem:[%s3584 + $0xd0] sm:$0xff] %vm1336, %v3546
    %3612 = vst.msk [vmem:[%s3584 + $0xd8] sm:$0xff] %vm1336, %v3547
    %3613 = vst.msk [vmem:[%s3584 + $0xe0] sm:$0xff] %vm1336, %v3548
    %3614 = vst.msk [vmem:[%s3584 + $0xe8] sm:$0xff] %vm1336, %v3549
    %3615 = vst.msk [vmem:[%s3584 + $0xf0] sm:$0xff] %vm1336, %v3550
    %3616 = vst.msk [vmem:[%s3584 + $0xf8] sm:$0xff] %vm1336, %v3551
    // Predicated region
    $region26: #{a_call__.15} parent=1 // pred_check
      _
    $region27: #{a_call__.15} parent=1 // pred_check_branch
      %3618 = sbr.rel (0) target = $region29
    $region28: #{a_call__.15} parent=1 // pred_region
      %s3620 = ssub.s32 8192, 8192
      %3621 = vsyncadd [#allocation3], %s3620
      %s3622 = sshll.u32 [#allocation2], 4
      %s3623 = int_to_ptr.vmem [resolvable:$true] %s3622
      %3628 = dma.vmem_to_hbm [thread:$0]  %s3623, 8192, %s6, [#allocation3], 128, 128, 8
    $region29: #{a_call__.15} parent=1 // pred_fallthru
      _
    // Predicated region
    $region30: #{a_call__.15} parent=1 // pred_check
      _
    $region31: #{a_call__.15} parent=1 // pred_check_branch
      %3630 = sbr.rel (0) target = $region33
    $region32: #{a_call__.15} parent=1 // pred_region
      %3631 = dma.done [#allocation3], 8192
    $region33: #{a_call__.15} parent=1 // pred_fallthru
      _
    %3632 = vsyncpa [#allocation3], 1

</llo_original>
